<compile_context>
chip_gen: v6e
topology: v6e:2x2x1
jax: 0.10.0
libtpu: 0.0.40
codegen_flags: <defaults>
</compile_context>

<pallas_src>
import functools

import jax
import jax.numpy as jnp
from jax.experimental import pallas as pl
from jax.experimental.pallas import tpu as pltpu

# bf16-in / f32-accumulate on the MXU (native on v5e/v6e/v7x).  Elementwise math stays f32.
_MXU_DTYPE = jnp.bfloat16

_TKEYS = ("ln1_g", "ln1_b", "qkv_w", "out_w", "out_b", "ln2_g", "ln2_b",
          "ff1_w", "ff1_b", "ff2_w", "ff2_b", "norm_g", "norm_b")


# --------------------------------------------------------------------------
# In-kernel helpers (operate on VMEM-resident traced values)
# --------------------------------------------------------------------------
def _mxu(a, b):
    """a @ b on the MXU: bf16 inputs, f32 accumulation."""
    return jnp.dot(a.astype(_MXU_DTYPE), b.astype(_MXU_DTYPE),
                   preferred_element_type=jnp.float32)


def _mxu_nt(a, b):
    """a @ b.T without materializing the transpose (contract last-vs-last)."""
    return jax.lax.dot_general(a.astype(_MXU_DTYPE), b.astype(_MXU_DTYPE),
                               (((1,), (1,)), ((), ())),
                               preferred_element_type=jnp.float32)


def _ln(x, g, b, eps=1e-5):
    x = x.astype(jnp.float32)
    mu = jnp.mean(x, axis=-1, keepdims=True)
    xc = x - mu
    var = jnp.mean(xc * xc, axis=-1, keepdims=True)
    return xc * jax.lax.rsqrt(var + eps) * g + b


def _transformer(x, wrefs, *, depth, heads, dim_head, bias):
    """Pre-norm transformer stack on an (M, dim) token slab, fully VMEM-resident."""
    (ln1_g, ln1_b, qkv_w, out_w, out_b, ln2_g, ln2_b,
     ff1_w, ff1_b, ff2_w, ff2_b, norm_g, norm_b) = wrefs
    inner = heads * dim_head
    scale = dim_head ** -0.5
    for l in range(depth):                       # static unroll over layers
        # ---- multi-head self-attention (pre-norm) ----
        h = _ln(x, ln1_g[l], ln1_b[l])
        qkv = _mxu(h, qkv_w[l])                  # (M, 3*inner); to_qkv has no bias
        wo = out_w[l]                            # (inner, dim)
        attn = jnp.zeros((x.shape[0], wo.shape[1]), jnp.float32)
        for hh in range(heads):                  # heads stay on the lane axis; no transposes
            c = hh * dim_head
            q = qkv[:, c:c + dim_head]
            k = qkv[:, inner + c:inner + c + dim_head]
            v = qkv[:, 2 * inner + c:2 * inner + c + dim_head]
            s = _mxu_nt(q, k) * scale            # (M, M)
            if bias is not None:
                s = s + bias                     # block-diagonal (per-frame) masking
            s = s - jnp.max(s, axis=-1, keepdims=True)
            p = jnp.exp(s)
            p = p * pl.reciprocal(jnp.sum(p, axis=-1, keepdims=True), approx=True)
            o = _mxu(p, v)                       # (M, dim_head)
            # fold the head-concat into the output projection (row-block of W_o)
            attn = attn + _mxu(o, wo[c:c + dim_head, :])
        x = x + attn + out_b[l]
        # ---- MLP (pre-norm) ----
        h = _ln(x, ln2_g[l], ln2_b[l])
        # TODO(synk): PyTorch nn.GELU() defaults to the erf form; tanh approx used here.
        h = jax.nn.gelu(_mxu(h, ff1_w[l]) + ff1_b[l], approximate=True)
        h = _mxu(h, ff2_w[l]) + ff2_b[l]
        x = x + h
    return _ln(x, norm_g[...], norm_b[...])


# --------------------------------------------------------------------------
# Fused kernels (one pallas_call per transformer; grid = megacore split)
# --------------------------------------------------------------------------
def _spatial_kernel(xp_ref, pw_ref, pb_ref, cls_ref, posp_ref, bias_ref, *args,
                    frames, heads, dim_head, depth):
    wrefs = args[:13]
    o_ref = args[13]
    # patch embedding + positional embedding for this block of `frames` frames
    tok = _mxu(xp_ref[0], pw_ref[...]) + pb_ref[...] + posp_ref[0]   # (frames*n, dim) f32
    cls = cls_ref[0].astype(jnp.float32)                             # (frames, dim)
    # token order: [patch tokens frame-major, then the per-frame CLS tokens]
    x = jnp.concatenate([tok, cls], axis=0)                          # (M, dim)
    x = _transformer(x, wrefs, depth=depth, heads=heads, dim_head=dim_head,
                     bias=bias_ref[...])
    # only the per-frame CLS tokens feed the temporal transformer
    o_ref[0] = x[x.shape[0] - frames:, :].astype(o_ref.dtype)


def _temporal_kernel(x_ref, *args, heads, dim_head, depth):
    wrefs = args[:13]
    hg, hb, hw, hbias = args[13:17]
    o_ref = args[17]
    x = x_ref[0].astype(jnp.float32)             # (T, dim): one batch = one sequence
    x = _transformer(x, wrefs, depth=depth, heads=heads, dim_head=dim_head, bias=None)
    y = _ln(x, hg[...], hb[...])
    y = _mxu(y, hw[...]) + hbias[...]            # per-frame head -> (T, C*H*W)
    o_ref[0] = y.astype(o_ref.dtype)


# --------------------------------------------------------------------------
# BlockSpec helpers
# --------------------------------------------------------------------------
def _full_spec(a):
    zero = (0,) * a.ndim
    return pl.BlockSpec(tuple(a.shape), lambda i: zero)        # resident across the grid


def _block_spec(a):
    return pl.BlockSpec((1,) + tuple(a.shape[1:]), lambda i: (i, 0, 0))


# --------------------------------------------------------------------------
# Parameter construction (deterministic, in-script; weights stacked over depth)
# --------------------------------------------------------------------------
def init_params(key, *, C, H, W, T, patch_size, dim, depth, heads):
    dim_head = dim // heads
    inner = heads * dim_head
    mlp_dim = dim * 4
    patch_dim = C * patch_size * patch_size
    n_patches = (H // patch_size) * (W // patch_size)
    num_classes = C * H * W

    keys = iter(jax.random.split(key, 64))

    def nrm(shape, scale=0.02):
        return scale * jax.random.normal(next(keys), shape, jnp.float32)

    zeros = lambda s: jnp.zeros(s, jnp.float32)
    ones = lambda s: jnp.ones(s, jnp.float32)

    def make_transformer():
        return dict(
            ln1_g=ones((depth, 1, dim)), ln1_b=zeros((depth, 1, dim)),
            qkv_w=nrm((depth, dim, 3 * inner)),                  # to_qkv (bias=False)
            out_w=nrm((depth, inner, dim)), out_b=zeros((depth, 1, dim)),
            ln2_g=ones((depth, 1, dim)), ln2_b=zeros((depth, 1, dim)),
            ff1_w=nrm((depth, dim, mlp_dim)), ff1_b=zeros((depth, 1, mlp_dim)),
            ff2_w=nrm((depth, mlp_dim, dim)), ff2_b=zeros((depth, 1, dim)),
            norm_g=ones((1, dim)), norm_b=zeros((1, dim)))

    return dict(
        patch_w=nrm((patch_dim, dim)), patch_b=zeros((1, dim)),
        pos_emb=nrm((1, T, n_patches + 1, dim)),
        space_token=nrm((1, 1, dim)),
        space=make_transformer(),
        temporal=make_transformer(),
        head_ln_g=ones((1, dim)), head_ln_b=zeros((1, dim)),
        head_w=nrm((dim, num_classes)), head_b=zeros((1, num_classes)))


# --------------------------------------------------------------------------
# Forward pass
# --------------------------------------------------------------------------
def traffic_vivit_forward(x, params, *, patch_size, dim, depth, heads):
    """x: (B, T, H, W, C) -> (B, T, H, W, C)  (matches TrafficViViT.forward)."""
    B, T, H, W, C = x.shape
    dim_head = dim // heads
    p = patch_size
    nh, nw = H // p, W // p
    n = nh * nw
    BT = B * T
    patch_dim = C * p * p
    num_classes = C * H * W

    # ---- patch rearrange: equivalent to permute(0,1,4,2,3) then
    # 'b t c (h p1) (w p2) -> b t (h w) (p1 p2 c)'.
    # TODO(synk): left to XLA; expressing it as a Pallas index_map would need one
    # sub-(8,128) DMA per patch which is slower than a single XLA copy.
    xp = x.reshape(B, T, nh, p, nw, p, C)
    xp = jnp.transpose(xp, (0, 1, 2, 4, 3, 5, 6)).reshape(BT * n, patch_dim)

    # ---- split frames into 2 grid blocks ('parallel') so v7x uses both TensorCores
    nblk = 2 if (BT % 2 == 0 and BT >= 2) else 1
    fpb = BT // nblk                         # frames per grid step
    Mb = fpb * (n + 1)                       # tokens per grid step

    pos = params["pos_emb"][0]                                       # (T, n+1, dim)
    cls_pos = params["space_token"].reshape(1, dim) + pos[:, 0, :]   # (T, dim)
    cls_pos = jnp.broadcast_to(cls_pos[None], (B, T, dim)).reshape(nblk, fpb, dim)
    pos_pat = jnp.broadcast_to(pos[None, :, 1:, :], (B, T, n, dim)).reshape(nblk, fpb * n, dim)
    xp = xp.reshape(nblk, fpb * n, patch_dim)

    # block-diagonal attention bias (token order: patches frame-major, then CLS tokens)
    row = jnp.arange(Mb)
    fid = jnp.where(row < fpb * n, row // n, row - fpb * n)
    attn_bias = jnp.where(fid[:, None] == fid[None, :], 0.0, -1e30).astype(jnp.float32)

    cparams = pltpu.CompilerParams(dimension_semantics=("parallel",),
                                   vmem_limit_bytes=32 * 1024 * 1024)

    # ---- fused: patch-embed + spatial transformer -> per-frame CLS tokens ----
    sp_w = [params["space"][k] for k in _TKEYS]
    cls_out = pl.pallas_call(
        functools.partial(_spatial_kernel, frames=fpb, heads=heads,
                          dim_head=dim_head, depth=depth),
        grid=(nblk,),
        in_specs=[_block_spec(xp), _full_spec(params["patch_w"]),
                  _full_spec(params["patch_b"]), _block_spec(cls_pos),
                  _block_spec(pos_pat), _full_spec(attn_bias)]
                 + [_full_spec(w) for w in sp_w],
        out_specs=pl.BlockSpec((1, fpb, dim), lambda i: (i, 0, 0)),
        out_shape=jax.ShapeDtypeStruct((nblk, fpb, dim), jnp.float32),
        compiler_params=cparams,
    )(xp, params["patch_w"], params["patch_b"], cls_pos, pos_pat, attn_bias, *sp_w)

    xt = cls_out.reshape(B, T, dim)          # per-frame CLS tokens, (b, t) ordering

    # ---- fused: temporal transformer + per-frame LayerNorm+Linear head ----
    tp_w = [params["temporal"][k] for k in _TKEYS]
    y = pl.pallas_call(
        functools.partial(_temporal_kernel, heads=heads, dim_head=dim_head, depth=depth),
        grid=(B,),
        in_specs=[pl.BlockSpec((1, T, dim), lambda i: (i, 0, 0))]
                 + [_full_spec(w) for w in tp_w]
                 + [_full_spec(params["head_ln_g"]), _full_spec(params["head_ln_b"]),
                    _full_spec(params["head_w"]), _full_spec(params["head_b"])],
        out_specs=pl.BlockSpec((1, T, num_classes), lambda i: (i, 0, 0)),
        out_shape=jax.ShapeDtypeStruct((B, T, num_classes), jnp.float32),
        compiler_params=cparams,
    )(xt, *tp_w, params["head_ln_g"], params["head_ln_b"],
      params["head_w"], params["head_b"])

    # vit output (B*T, C*H*W) -> reshape(B,T,C,H,W).permute(0,1,3,4,2)
    return jnp.transpose(y.reshape(B, T, C, H, W), (0, 1, 3, 4, 2))


# --------------------------------------------------------------------------
if __name__ == "__main__":
    # args: crop_size=8, patch_size=4, dim_feature=4, pred_len=4,
    #       dim_hidden=32, num_layers=2, num_heads=4
    B, T, H, C = 2, 4, 8, 4
    patch_size, dim, depth, heads = 4, 32, 2, 4

    key = jax.random.PRNGKey(0)
    kx, kp = jax.random.split(key)
    x = jax.random.normal(kx, (B, T, H, H, C), jnp.float32)
    params = init_params(kp, C=C, H=H, W=H, T=T, patch_size=patch_size,
                         dim=dim, depth=depth, heads=heads)

    fwd = jax.jit(functools.partial(traffic_vivit_forward, patch_size=patch_size,
                                    dim=dim, depth=depth, heads=heads))
    out = fwd(x, params)
    jax.block_until_ready(out)
    assert out.shape == (B, T, H, H, C), out.shape
    print("KERNEL_OK")
</pallas_src>

<mosaic_0001>
module attributes {stable_mosaic.version = 11 : i64} {
  func.func @_temporal_kernel(%arg0: i32, %arg1: memref<1x4x32xf32, #tpu.memory_space<vmem>>, %arg2: memref<2x1x32xf32, #tpu.memory_space<vmem>>, %arg3: memref<2x1x32xf32, #tpu.memory_space<vmem>>, %arg4: memref<2x32x96xf32, #tpu.memory_space<vmem>>, %arg5: memref<2x32x32xf32, #tpu.memory_space<vmem>>, %arg6: memref<2x1x32xf32, #tpu.memory_space<vmem>>, %arg7: memref<2x1x32xf32, #tpu.memory_space<vmem>>, %arg8: memref<2x1x32xf32, #tpu.memory_space<vmem>>, %arg9: memref<2x32x128xf32, #tpu.memory_space<vmem>>, %arg10: memref<2x1x128xf32, #tpu.memory_space<vmem>>, %arg11: memref<2x128x32xf32, #tpu.memory_space<vmem>>, %arg12: memref<2x1x32xf32, #tpu.memory_space<vmem>>, %arg13: memref<1x32xf32, #tpu.memory_space<vmem>>, %arg14: memref<1x32xf32, #tpu.memory_space<vmem>>, %arg15: memref<1x32xf32, #tpu.memory_space<vmem>>, %arg16: memref<1x32xf32, #tpu.memory_space<vmem>>, %arg17: memref<32x256xf32, #tpu.memory_space<vmem>>, %arg18: memref<1x256xf32, #tpu.memory_space<vmem>>, %arg19: memref<1x4x256xf32, #tpu.memory_space<vmem>>) attributes {dimension_semantics = [#tpu.dimension_semantics<parallel>], iteration_bounds = array<i64: 2>, scalar_prefetch = 0 : i64, scratch_operands = 0 : i64, tpu.core_type = #tpu.core_type<tc>, window_params = [{transform_indices = @transform_0, window_bounds = array<i64: 1, 4, 32>}, {pipeline_mode = #tpu.pipeline_mode<synchronous>, transform_indices = @transform_1, window_bounds = array<i64: 2, 1, 32>}, {pipeline_mode = #tpu.pipeline_mode<synchronous>, transform_indices = @transform_2, window_bounds = array<i64: 2, 1, 32>}, {pipeline_mode = #tpu.pipeline_mode<synchronous>, transform_indices = @transform_3, window_bounds = array<i64: 2, 32, 96>}, {pipeline_mode = #tpu.pipeline_mode<synchronous>, transform_indices = @transform_4, window_bounds = array<i64: 2, 32, 32>}, {pipeline_mode = #tpu.pipeline_mode<synchronous>, transform_indices = @transform_5, window_bounds = array<i64: 2, 1, 32>}, {pipeline_mode = #tpu.pipeline_mode<synchronous>, transform_indices = @transform_6, window_bounds = array<i64: 2, 1, 32>}, {pipeline_mode = #tpu.pipeline_mode<synchronous>, transform_indices = @transform_7, window_bounds = array<i64: 2, 1, 32>}, {pipeline_mode = #tpu.pipeline_mode<synchronous>, transform_indices = @transform_8, window_bounds = array<i64: 2, 32, 128>}, {pipeline_mode = #tpu.pipeline_mode<synchronous>, transform_indices = @transform_9, window_bounds = array<i64: 2, 1, 128>}, {pipeline_mode = #tpu.pipeline_mode<synchronous>, transform_indices = @transform_10, window_bounds = array<i64: 2, 128, 32>}, {pipeline_mode = #tpu.pipeline_mode<synchronous>, transform_indices = @transform_11, window_bounds = array<i64: 2, 1, 32>}, {pipeline_mode = #tpu.pipeline_mode<synchronous>, transform_indices = @transform_12, window_bounds = array<i64: 1, 32>}, {pipeline_mode = #tpu.pipeline_mode<synchronous>, transform_indices = @transform_13, window_bounds = array<i64: 1, 32>}, {pipeline_mode = #tpu.pipeline_mode<synchronous>, transform_indices = @transform_14, window_bounds = array<i64: 1, 32>}, {pipeline_mode = #tpu.pipeline_mode<synchronous>, transform_indices = @transform_15, window_bounds = array<i64: 1, 32>}, {pipeline_mode = #tpu.pipeline_mode<synchronous>, transform_indices = @transform_16, window_bounds = array<i64: 32, 256>}, {pipeline_mode = #tpu.pipeline_mode<synchronous>, transform_indices = @transform_17, window_bounds = array<i64: 1, 256>}, {transform_indices = @transform_18, window_bounds = array<i64: 1, 4, 256>}]} {
    %c0 = arith.constant 0 : index
    %c0_0 = arith.constant 0 : index
    %c0_1 = arith.constant 0 : index
    %0 = vector.load %arg1[%c0, %c0_0, %c0_1] : memref<1x4x32xf32, #tpu.memory_space<vmem>>, vector<1x4x32xf32>
    %1 = vector.shape_cast %0 : vector<1x4x32xf32> to vector<4x32xf32>
    %c0_2 = arith.constant 0 : index
    %c0_3 = arith.constant 0 : index
    %c0_4 = arith.constant 0 : index
    %2 = vector.load %arg2[%c0_2, %c0_3, %c0_4] : memref<2x1x32xf32, #tpu.memory_space<vmem>>, vector<1x1x32xf32>
    %3 = vector.shape_cast %2 : vector<1x1x32xf32> to vector<1x32xf32>
    %c0_5 = arith.constant 0 : index
    %c0_6 = arith.constant 0 : index
    %c0_7 = arith.constant 0 : index
    %4 = vector.load %arg3[%c0_5, %c0_6, %c0_7] : memref<2x1x32xf32, #tpu.memory_space<vmem>>, vector<1x1x32xf32>
    %5 = vector.shape_cast %4 : vector<1x1x32xf32> to vector<1x32xf32>
    %cst = arith.constant dense<0.000000e+00> : vector<4xf32>
    %6 = vector.multi_reduction <add>, %1, %cst [1] : vector<4x32xf32> to vector<4xf32>
    %7 = vector.shape_cast %6 : vector<4xf32> to vector<4x1xf32>
    %cst_8 = arith.constant 3.200000e+01 : f32
    %8 = vector.broadcast %cst_8 : f32 to vector<4x1xf32>
    %9 = arith.divf %7, %8 : vector<4x1xf32>
    %10 = vector.broadcast %9 : vector<4x1xf32> to vector<4x32xf32>
    %11 = arith.subf %1, %10 : vector<4x32xf32>
    %12 = arith.mulf %11, %11 : vector<4x32xf32>
    %cst_9 = arith.constant dense<0.000000e+00> : vector<4xf32>
    %13 = vector.multi_reduction <add>, %12, %cst_9 [1] : vector<4x32xf32> to vector<4xf32>
    %14 = vector.shape_cast %13 : vector<4xf32> to vector<4x1xf32>
    %cst_10 = arith.constant 3.200000e+01 : f32
    %15 = vector.broadcast %cst_10 : f32 to vector<4x1xf32>
    %16 = arith.divf %14, %15 : vector<4x1xf32>
    %cst_11 = arith.constant 9.99999974E-6 : f32
    %17 = vector.broadcast %cst_11 : f32 to vector<4x1xf32>
    %18 = arith.addf %16, %17 : vector<4x1xf32>
    %19 = math.rsqrt %18 : vector<4x1xf32>
    %20 = vector.broadcast %19 : vector<4x1xf32> to vector<4x32xf32>
    %21 = arith.mulf %11, %20 : vector<4x32xf32>
    %22 = vector.broadcast %3 : vector<1x32xf32> to vector<4x32xf32>
    %23 = arith.mulf %21, %22 : vector<4x32xf32>
    %24 = vector.broadcast %5 : vector<1x32xf32> to vector<4x32xf32>
    %25 = arith.addf %23, %24 : vector<4x32xf32>
    %c0_12 = arith.constant 0 : index
    %c0_13 = arith.constant 0 : index
    %c0_14 = arith.constant 0 : index
    %26 = vector.load %arg4[%c0_12, %c0_13, %c0_14] : memref<2x32x96xf32, #tpu.memory_space<vmem>>, vector<1x32x96xf32>
    %27 = vector.shape_cast %26 : vector<1x32x96xf32> to vector<32x96xf32>
    %28 = arith.truncf %25 : vector<4x32xf32> to vector<4x32xbf16>
    %29 = arith.truncf %27 : vector<32x96xf32> to vector<32x96xbf16>
    %cst_15 = arith.constant dense<0.000000e+00> : vector<4x96xf32>
    %30 = tpu.matmul %28, %29, %cst_15 {dimension_numbers = #tpu.dot_dimension_numbers<[1], [0], [0], [1], [0, 0, 1, 1], [], []>} : vector<4x32xbf16>, vector<32x96xbf16>, vector<4x96xf32> -> vector<4x96xf32>
    %c0_16 = arith.constant 0 : index
    %c0_17 = arith.constant 0 : index
    %c0_18 = arith.constant 0 : index
    %31 = vector.load %arg5[%c0_16, %c0_17, %c0_18] : memref<2x32x32xf32, #tpu.memory_space<vmem>>, vector<1x32x32xf32>
    %32 = vector.shape_cast %31 : vector<1x32x32xf32> to vector<32x32xf32>
    %cst_19 = arith.constant 0.000000e+00 : f32
    %33 = vector.broadcast %cst_19 : f32 to vector<4x32xf32>
    %34 = vector.extract_strided_slice %30 {offsets = [0, 0], sizes = [4, 8], strides = [1, 1]} : vector<4x96xf32> to vector<4x8xf32>
    %35 = vector.extract_strided_slice %30 {offsets = [0, 32], sizes = [4, 8], strides = [1, 1]} : vector<4x96xf32> to vector<4x8xf32>
    %36 = vector.extract_strided_slice %30 {offsets = [0, 64], sizes = [4, 8], strides = [1, 1]} : vector<4x96xf32> to vector<4x8xf32>
    %37 = arith.truncf %34 : vector<4x8xf32> to vector<4x8xbf16>
    %38 = arith.truncf %35 : vector<4x8xf32> to vector<4x8xbf16>
    %cst_20 = arith.constant dense<0.000000e+00> : vector<4x4xf32>
    %39 = tpu.matmul %37, %38, %cst_20 {dimension_numbers = #tpu.dot_dimension_numbers<[1], [1], [0], [0], [0, 0, 1, 0], [], []>} : vector<4x8xbf16>, vector<4x8xbf16>, vector<4x4xf32> -> vector<4x4xf32>
    %cst_21 = arith.constant 0.353553385 : f32
    %40 = vector.broadcast %cst_21 : f32 to vector<4x4xf32>
    %41 = arith.mulf %39, %40 : vector<4x4xf32>
    %cst_22 = arith.constant dense<0xFF800000> : vector<4xf32>
    %42 = vector.multi_reduction <maximumf>, %41, %cst_22 [1] : vector<4x4xf32> to vector<4xf32>
    %43 = vector.shape_cast %42 : vector<4xf32> to vector<4x1xf32>
    %44 = vector.broadcast %43 : vector<4x1xf32> to vector<4x4xf32>
    %45 = arith.subf %41, %44 : vector<4x4xf32>
    %46 = math.exp %45 : vector<4x4xf32>
    %cst_23 = arith.constant dense<0.000000e+00> : vector<4xf32>
    %47 = vector.multi_reduction <add>, %46, %cst_23 [1] : vector<4x4xf32> to vector<4xf32>
    %48 = vector.shape_cast %47 : vector<4xf32> to vector<4x1xf32>
    %49 = tpu.reciprocal %48 {approx = true} : vector<4x1xf32> -> vector<4x1xf32>
    %50 = vector.broadcast %49 : vector<4x1xf32> to vector<4x4xf32>
    %51 = arith.mulf %46, %50 : vector<4x4xf32>
    %52 = arith.truncf %51 : vector<4x4xf32> to vector<4x4xbf16>
    %53 = arith.truncf %36 : vector<4x8xf32> to vector<4x8xbf16>
    %cst_24 = arith.constant dense<0.000000e+00> : vector<4x8xf32>
    %54 = tpu.matmul %52, %53, %cst_24 {dimension_numbers = #tpu.dot_dimension_numbers<[1], [0], [0], [1], [0, 0, 1, 1], [], []>} : vector<4x4xbf16>, vector<4x8xbf16>, vector<4x8xf32> -> vector<4x8xf32>
    %55 = vector.extract_strided_slice %32 {offsets = [0, 0], sizes = [8, 32], strides = [1, 1]} : vector<32x32xf32> to vector<8x32xf32>
    %56 = arith.truncf %54 : vector<4x8xf32> to vector<4x8xbf16>
    %57 = arith.truncf %55 : vector<8x32xf32> to vector<8x32xbf16>
    %cst_25 = arith.constant dense<0.000000e+00> : vector<4x32xf32>
    %58 = tpu.matmul %56, %57, %cst_25 {dimension_numbers = #tpu.dot_dimension_numbers<[1], [0], [0], [1], [0, 0, 1, 1], [], []>} : vector<4x8xbf16>, vector<8x32xbf16>, vector<4x32xf32> -> vector<4x32xf32>
    %59 = arith.addf %33, %58 : vector<4x32xf32>
    %60 = vector.extract_strided_slice %30 {offsets = [0, 8], sizes = [4, 8], strides = [1, 1]} : vector<4x96xf32> to vector<4x8xf32>
    %61 = vector.extract_strided_slice %30 {offsets = [0, 40], sizes = [4, 8], strides = [1, 1]} : vector<4x96xf32> to vector<4x8xf32>
    %62 = vector.extract_strided_slice %30 {offsets = [0, 72], sizes = [4, 8], strides = [1, 1]} : vector<4x96xf32> to vector<4x8xf32>
    %63 = arith.truncf %60 : vector<4x8xf32> to vector<4x8xbf16>
    %64 = arith.truncf %61 : vector<4x8xf32> to vector<4x8xbf16>
    %cst_26 = arith.constant dense<0.000000e+00> : vector<4x4xf32>
    %65 = tpu.matmul %63, %64, %cst_26 {dimension_numbers = #tpu.dot_dimension_numbers<[1], [1], [0], [0], [0, 0, 1, 0], [], []>} : vector<4x8xbf16>, vector<4x8xbf16>, vector<4x4xf32> -> vector<4x4xf32>
    %cst_27 = arith.constant 0.353553385 : f32
    %66 = vector.broadcast %cst_27 : f32 to vector<4x4xf32>
    %67 = arith.mulf %65, %66 : vector<4x4xf32>
    %cst_28 = arith.constant dense<0xFF800000> : vector<4xf32>
    %68 = vector.multi_reduction <maximumf>, %67, %cst_28 [1] : vector<4x4xf32> to vector<4xf32>
    %69 = vector.shape_cast %68 : vector<4xf32> to vector<4x1xf32>
    %70 = vector.broadcast %69 : vector<4x1xf32> to vector<4x4xf32>
    %71 = arith.subf %67, %70 : vector<4x4xf32>
    %72 = math.exp %71 : vector<4x4xf32>
    %cst_29 = arith.constant dense<0.000000e+00> : vector<4xf32>
    %73 = vector.multi_reduction <add>, %72, %cst_29 [1] : vector<4x4xf32> to vector<4xf32>
    %74 = vector.shape_cast %73 : vector<4xf32> to vector<4x1xf32>
    %75 = tpu.reciprocal %74 {approx = true} : vector<4x1xf32> -> vector<4x1xf32>
    %76 = vector.broadcast %75 : vector<4x1xf32> to vector<4x4xf32>
    %77 = arith.mulf %72, %76 : vector<4x4xf32>
    %78 = arith.truncf %77 : vector<4x4xf32> to vector<4x4xbf16>
    %79 = arith.truncf %62 : vector<4x8xf32> to vector<4x8xbf16>
    %cst_30 = arith.constant dense<0.000000e+00> : vector<4x8xf32>
    %80 = tpu.matmul %78, %79, %cst_30 {dimension_numbers = #tpu.dot_dimension_numbers<[1], [0], [0], [1], [0, 0, 1, 1], [], []>} : vector<4x4xbf16>, vector<4x8xbf16>, vector<4x8xf32> -> vector<4x8xf32>
    %81 = vector.extract_strided_slice %32 {offsets = [8, 0], sizes = [8, 32], strides = [1, 1]} : vector<32x32xf32> to vector<8x32xf32>
    %82 = arith.truncf %80 : vector<4x8xf32> to vector<4x8xbf16>
    %83 = arith.truncf %81 : vector<8x32xf32> to vector<8x32xbf16>
    %cst_31 = arith.constant dense<0.000000e+00> : vector<4x32xf32>
    %84 = tpu.matmul %82, %83, %cst_31 {dimension_numbers = #tpu.dot_dimension_numbers<[1], [0], [0], [1], [0, 0, 1, 1], [], []>} : vector<4x8xbf16>, vector<8x32xbf16>, vector<4x32xf32> -> vector<4x32xf32>
    %85 = arith.addf %59, %84 : vector<4x32xf32>
    %86 = vector.extract_strided_slice %30 {offsets = [0, 16], sizes = [4, 8], strides = [1, 1]} : vector<4x96xf32> to vector<4x8xf32>
    %87 = vector.extract_strided_slice %30 {offsets = [0, 48], sizes = [4, 8], strides = [1, 1]} : vector<4x96xf32> to vector<4x8xf32>
    %88 = vector.extract_strided_slice %30 {offsets = [0, 80], sizes = [4, 8], strides = [1, 1]} : vector<4x96xf32> to vector<4x8xf32>
    %89 = arith.truncf %86 : vector<4x8xf32> to vector<4x8xbf16>
    %90 = arith.truncf %87 : vector<4x8xf32> to vector<4x8xbf16>
    %cst_32 = arith.constant dense<0.000000e+00> : vector<4x4xf32>
    %91 = tpu.matmul %89, %90, %cst_32 {dimension_numbers = #tpu.dot_dimension_numbers<[1], [1], [0], [0], [0, 0, 1, 0], [], []>} : vector<4x8xbf16>, vector<4x8xbf16>, vector<4x4xf32> -> vector<4x4xf32>
    %cst_33 = arith.constant 0.353553385 : f32
    %92 = vector.broadcast %cst_33 : f32 to vector<4x4xf32>
    %93 = arith.mulf %91, %92 : vector<4x4xf32>
    %cst_34 = arith.constant dense<0xFF800000> : vector<4xf32>
    %94 = vector.multi_reduction <maximumf>, %93, %cst_34 [1] : vector<4x4xf32> to vector<4xf32>
    %95 = vector.shape_cast %94 : vector<4xf32> to vector<4x1xf32>
    %96 = vector.broadcast %95 : vector<4x1xf32> to vector<4x4xf32>
    %97 = arith.subf %93, %96 : vector<4x4xf32>
    %98 = math.exp %97 : vector<4x4xf32>
    %cst_35 = arith.constant dense<0.000000e+00> : vector<4xf32>
    %99 = vector.multi_reduction <add>, %98, %cst_35 [1] : vector<4x4xf32> to vector<4xf32>
    %100 = vector.shape_cast %99 : vector<4xf32> to vector<4x1xf32>
    %101 = tpu.reciprocal %100 {approx = true} : vector<4x1xf32> -> vector<4x1xf32>
    %102 = vector.broadcast %101 : vector<4x1xf32> to vector<4x4xf32>
    %103 = arith.mulf %98, %102 : vector<4x4xf32>
    %104 = arith.truncf %103 : vector<4x4xf32> to vector<4x4xbf16>
    %105 = arith.truncf %88 : vector<4x8xf32> to vector<4x8xbf16>
    %cst_36 = arith.constant dense<0.000000e+00> : vector<4x8xf32>
    %106 = tpu.matmul %104, %105, %cst_36 {dimension_numbers = #tpu.dot_dimension_numbers<[1], [0], [0], [1], [0, 0, 1, 1], [], []>} : vector<4x4xbf16>, vector<4x8xbf16>, vector<4x8xf32> -> vector<4x8xf32>
    %107 = vector.extract_strided_slice %32 {offsets = [16, 0], sizes = [8, 32], strides = [1, 1]} : vector<32x32xf32> to vector<8x32xf32>
    %108 = arith.truncf %106 : vector<4x8xf32> to vector<4x8xbf16>
    %109 = arith.truncf %107 : vector<8x32xf32> to vector<8x32xbf16>
    %cst_37 = arith.constant dense<0.000000e+00> : vector<4x32xf32>
    %110 = tpu.matmul %108, %109, %cst_37 {dimension_numbers = #tpu.dot_dimension_numbers<[1], [0], [0], [1], [0, 0, 1, 1], [], []>} : vector<4x8xbf16>, vector<8x32xbf16>, vector<4x32xf32> -> vector<4x32xf32>
    %111 = arith.addf %85, %110 : vector<4x32xf32>
    %112 = vector.extract_strided_slice %30 {offsets = [0, 24], sizes = [4, 8], strides = [1, 1]} : vector<4x96xf32> to vector<4x8xf32>
    %113 = vector.extract_strided_slice %30 {offsets = [0, 56], sizes = [4, 8], strides = [1, 1]} : vector<4x96xf32> to vector<4x8xf32>
    %114 = vector.extract_strided_slice %30 {offsets = [0, 88], sizes = [4, 8], strides = [1, 1]} : vector<4x96xf32> to vector<4x8xf32>
    %115 = arith.truncf %112 : vector<4x8xf32> to vector<4x8xbf16>
    %116 = arith.truncf %113 : vector<4x8xf32> to vector<4x8xbf16>
    %cst_38 = arith.constant dense<0.000000e+00> : vector<4x4xf32>
    %117 = tpu.matmul %115, %116, %cst_38 {dimension_numbers = #tpu.dot_dimension_numbers<[1], [1], [0], [0], [0, 0, 1, 0], [], []>} : vector<4x8xbf16>, vector<4x8xbf16>, vector<4x4xf32> -> vector<4x4xf32>
    %cst_39 = arith.constant 0.353553385 : f32
    %118 = vector.broadcast %cst_39 : f32 to vector<4x4xf32>
    %119 = arith.mulf %117, %118 : vector<4x4xf32>
    %cst_40 = arith.constant dense<0xFF800000> : vector<4xf32>
    %120 = vector.multi_reduction <maximumf>, %119, %cst_40 [1] : vector<4x4xf32> to vector<4xf32>
    %121 = vector.shape_cast %120 : vector<4xf32> to vector<4x1xf32>
    %122 = vector.broadcast %121 : vector<4x1xf32> to vector<4x4xf32>
    %123 = arith.subf %119, %122 : vector<4x4xf32>
    %124 = math.exp %123 : vector<4x4xf32>
    %cst_41 = arith.constant dense<0.000000e+00> : vector<4xf32>
    %125 = vector.multi_reduction <add>, %124, %cst_41 [1] : vector<4x4xf32> to vector<4xf32>
    %126 = vector.shape_cast %125 : vector<4xf32> to vector<4x1xf32>
    %127 = tpu.reciprocal %126 {approx = true} : vector<4x1xf32> -> vector<4x1xf32>
    %128 = vector.broadcast %127 : vector<4x1xf32> to vector<4x4xf32>
    %129 = arith.mulf %124, %128 : vector<4x4xf32>
    %130 = arith.truncf %129 : vector<4x4xf32> to vector<4x4xbf16>
    %131 = arith.truncf %114 : vector<4x8xf32> to vector<4x8xbf16>
    %cst_42 = arith.constant dense<0.000000e+00> : vector<4x8xf32>
    %132 = tpu.matmul %130, %131, %cst_42 {dimension_numbers = #tpu.dot_dimension_numbers<[1], [0], [0], [1], [0, 0, 1, 1], [], []>} : vector<4x4xbf16>, vector<4x8xbf16>, vector<4x8xf32> -> vector<4x8xf32>
    %133 = vector.extract_strided_slice %32 {offsets = [24, 0], sizes = [8, 32], strides = [1, 1]} : vector<32x32xf32> to vector<8x32xf32>
    %134 = arith.truncf %132 : vector<4x8xf32> to vector<4x8xbf16>
    %135 = arith.truncf %133 : vector<8x32xf32> to vector<8x32xbf16>
    %cst_43 = arith.constant dense<0.000000e+00> : vector<4x32xf32>
    %136 = tpu.matmul %134, %135, %cst_43 {dimension_numbers = #tpu.dot_dimension_numbers<[1], [0], [0], [1], [0, 0, 1, 1], [], []>} : vector<4x8xbf16>, vector<8x32xbf16>, vector<4x32xf32> -> vector<4x32xf32>
    %137 = arith.addf %111, %136 : vector<4x32xf32>
    %138 = arith.addf %1, %137 : vector<4x32xf32>
    %c0_44 = arith.constant 0 : index
    %c0_45 = arith.constant 0 : index
    %c0_46 = arith.constant 0 : index
    %139 = vector.load %arg6[%c0_44, %c0_45, %c0_46] : memref<2x1x32xf32, #tpu.memory_space<vmem>>, vector<1x1x32xf32>
    %140 = vector.shape_cast %139 : vector<1x1x32xf32> to vector<1x32xf32>
    %141 = vector.broadcast %140 : vector<1x32xf32> to vector<4x32xf32>
    %142 = arith.addf %138, %141 : vector<4x32xf32>
    %c0_47 = arith.constant 0 : index
    %c0_48 = arith.constant 0 : index
    %c0_49 = arith.constant 0 : index
    %143 = vector.load %arg7[%c0_47, %c0_48, %c0_49] : memref<2x1x32xf32, #tpu.memory_space<vmem>>, vector<1x1x32xf32>
    %144 = vector.shape_cast %143 : vector<1x1x32xf32> to vector<1x32xf32>
    %c0_50 = arith.constant 0 : index
    %c0_51 = arith.constant 0 : index
    %c0_52 = arith.constant 0 : index
    %145 = vector.load %arg8[%c0_50, %c0_51, %c0_52] : memref<2x1x32xf32, #tpu.memory_space<vmem>>, vector<1x1x32xf32>
    %146 = vector.shape_cast %145 : vector<1x1x32xf32> to vector<1x32xf32>
    %cst_53 = arith.constant dense<0.000000e+00> : vector<4xf32>
    %147 = vector.multi_reduction <add>, %142, %cst_53 [1] : vector<4x32xf32> to vector<4xf32>
    %148 = vector.shape_cast %147 : vector<4xf32> to vector<4x1xf32>
    %cst_54 = arith.constant 3.200000e+01 : f32
    %149 = vector.broadcast %cst_54 : f32 to vector<4x1xf32>
    %150 = arith.divf %148, %149 : vector<4x1xf32>
    %151 = vector.broadcast %150 : vector<4x1xf32> to vector<4x32xf32>
    %152 = arith.subf %142, %151 : vector<4x32xf32>
    %153 = arith.mulf %152, %152 : vector<4x32xf32>
    %cst_55 = arith.constant dense<0.000000e+00> : vector<4xf32>
    %154 = vector.multi_reduction <add>, %153, %cst_55 [1] : vector<4x32xf32> to vector<4xf32>
    %155 = vector.shape_cast %154 : vector<4xf32> to vector<4x1xf32>
    %cst_56 = arith.constant 3.200000e+01 : f32
    %156 = vector.broadcast %cst_56 : f32 to vector<4x1xf32>
    %157 = arith.divf %155, %156 : vector<4x1xf32>
    %cst_57 = arith.constant 9.99999974E-6 : f32
    %158 = vector.broadcast %cst_57 : f32 to vector<4x1xf32>
    %159 = arith.addf %157, %158 : vector<4x1xf32>
    %160 = math.rsqrt %159 : vector<4x1xf32>
    %161 = vector.broadcast %160 : vector<4x1xf32> to vector<4x32xf32>
    %162 = arith.mulf %152, %161 : vector<4x32xf32>
    %163 = vector.broadcast %144 : vector<1x32xf32> to vector<4x32xf32>
    %164 = arith.mulf %162, %163 : vector<4x32xf32>
    %165 = vector.broadcast %146 : vector<1x32xf32> to vector<4x32xf32>
    %166 = arith.addf %164, %165 : vector<4x32xf32>
    %c0_58 = arith.constant 0 : index
    %c0_59 = arith.constant 0 : index
    %c0_60 = arith.constant 0 : index
    %167 = vector.load %arg9[%c0_58, %c0_59, %c0_60] : memref<2x32x128xf32, #tpu.memory_space<vmem>>, vector<1x32x128xf32>
    %168 = vector.shape_cast %167 : vector<1x32x128xf32> to vector<32x128xf32>
    %169 = arith.truncf %166 : vector<4x32xf32> to vector<4x32xbf16>
    %170 = arith.truncf %168 : vector<32x128xf32> to vector<32x128xbf16>
    %cst_61 = arith.constant dense<0.000000e+00> : vector<4x128xf32>
    %171 = tpu.matmul %169, %170, %cst_61 {dimension_numbers = #tpu.dot_dimension_numbers<[1], [0], [0], [1], [0, 0, 1, 1], [], []>} : vector<4x32xbf16>, vector<32x128xbf16>, vector<4x128xf32> -> vector<4x128xf32>
    %c0_62 = arith.constant 0 : index
    %c0_63 = arith.constant 0 : index
    %c0_64 = arith.constant 0 : index
    %172 = vector.load %arg10[%c0_62, %c0_63, %c0_64] : memref<2x1x128xf32, #tpu.memory_space<vmem>>, vector<1x1x128xf32>
    %173 = vector.shape_cast %172 : vector<1x1x128xf32> to vector<1x128xf32>
    %174 = vector.broadcast %173 : vector<1x128xf32> to vector<4x128xf32>
    %175 = arith.addf %171, %174 : vector<4x128xf32>
    %176 = arith.mulf %175, %175 : vector<4x128xf32>
    %177 = arith.mulf %175, %176 : vector<4x128xf32>
    %cst_65 = arith.constant 4.471500e-02 : f32
    %178 = vector.broadcast %cst_65 : f32 to vector<4x128xf32>
    %179 = arith.mulf %178, %177 : vector<4x128xf32>
    %180 = arith.addf %175, %179 : vector<4x128xf32>
    %cst_66 = arith.constant 0.797884583 : f32
    %181 = vector.broadcast %cst_66 : f32 to vector<4x128xf32>
    %182 = arith.mulf %181, %180 : vector<4x128xf32>
    %183 = math.tanh %182 : vector<4x128xf32>
    %cst_67 = arith.constant 1.000000e+00 : f32
    %184 = vector.broadcast %cst_67 : f32 to vector<4x128xf32>
    %185 = arith.addf %184, %183 : vector<4x128xf32>
    %cst_68 = arith.constant 5.000000e-01 : f32
    %186 = vector.broadcast %cst_68 : f32 to vector<4x128xf32>
    %187 = arith.mulf %186, %185 : vector<4x128xf32>
    %188 = arith.mulf %175, %187 : vector<4x128xf32>
    %c0_69 = arith.constant 0 : index
    %c0_70 = arith.constant 0 : index
    %c0_71 = arith.constant 0 : index
    %189 = vector.load %arg11[%c0_69, %c0_70, %c0_71] : memref<2x128x32xf32, #tpu.memory_space<vmem>>, vector<1x128x32xf32>
    %190 = vector.shape_cast %189 : vector<1x128x32xf32> to vector<128x32xf32>
    %191 = arith.truncf %188 : vector<4x128xf32> to vector<4x128xbf16>
    %192 = arith.truncf %190 : vector<128x32xf32> to vector<128x32xbf16>
    %cst_72 = arith.constant dense<0.000000e+00> : vector<4x32xf32>
    %193 = tpu.matmul %191, %192, %cst_72 {dimension_numbers = #tpu.dot_dimension_numbers<[1], [0], [0], [1], [0, 0, 1, 1], [], []>} : vector<4x128xbf16>, vector<128x32xbf16>, vector<4x32xf32> -> vector<4x32xf32>
    %c0_73 = arith.constant 0 : index
    %c0_74 = arith.constant 0 : index
    %c0_75 = arith.constant 0 : index
    %194 = vector.load %arg12[%c0_73, %c0_74, %c0_75] : memref<2x1x32xf32, #tpu.memory_space<vmem>>, vector<1x1x32xf32>
    %195 = vector.shape_cast %194 : vector<1x1x32xf32> to vector<1x32xf32>
    %196 = vector.broadcast %195 : vector<1x32xf32> to vector<4x32xf32>
    %197 = arith.addf %193, %196 : vector<4x32xf32>
    %198 = arith.addf %142, %197 : vector<4x32xf32>
    %c1 = arith.constant 1 : index
    %c0_76 = arith.constant 0 : index
    %c0_77 = arith.constant 0 : index
    %199 = vector.load %arg2[%c1, %c0_76, %c0_77] : memref<2x1x32xf32, #tpu.memory_space<vmem>>, vector<1x1x32xf32>
    %200 = vector.shape_cast %199 : vector<1x1x32xf32> to vector<1x32xf32>
    %c1_78 = arith.constant 1 : index
    %c0_79 = arith.constant 0 : index
    %c0_80 = arith.constant 0 : index
    %201 = vector.load %arg3[%c1_78, %c0_79, %c0_80] : memref<2x1x32xf32, #tpu.memory_space<vmem>>, vector<1x1x32xf32>
    %202 = vector.shape_cast %201 : vector<1x1x32xf32> to vector<1x32xf32>
    %cst_81 = arith.constant dense<0.000000e+00> : vector<4xf32>
    %203 = vector.multi_reduction <add>, %198, %cst_81 [1] : vector<4x32xf32> to vector<4xf32>
    %204 = vector.shape_cast %203 : vector<4xf32> to vector<4x1xf32>
    %cst_82 = arith.constant 3.200000e+01 : f32
    %205 = vector.broadcast %cst_82 : f32 to vector<4x1xf32>
    %206 = arith.divf %204, %205 : vector<4x1xf32>
    %207 = vector.broadcast %206 : vector<4x1xf32> to vector<4x32xf32>
    %208 = arith.subf %198, %207 : vector<4x32xf32>
    %209 = arith.mulf %208, %208 : vector<4x32xf32>
    %cst_83 = arith.constant dense<0.000000e+00> : vector<4xf32>
    %210 = vector.multi_reduction <add>, %209, %cst_83 [1] : vector<4x32xf32> to vector<4xf32>
    %211 = vector.shape_cast %210 : vector<4xf32> to vector<4x1xf32>
    %cst_84 = arith.constant 3.200000e+01 : f32
    %212 = vector.broadcast %cst_84 : f32 to vector<4x1xf32>
    %213 = arith.divf %211, %212 : vector<4x1xf32>
    %cst_85 = arith.constant 9.99999974E-6 : f32
    %214 = vector.broadcast %cst_85 : f32 to vector<4x1xf32>
    %215 = arith.addf %213, %214 : vector<4x1xf32>
    %216 = math.rsqrt %215 : vector<4x1xf32>
    %217 = vector.broadcast %216 : vector<4x1xf32> to vector<4x32xf32>
    %218 = arith.mulf %208, %217 : vector<4x32xf32>
    %219 = vector.broadcast %200 : vector<1x32xf32> to vector<4x32xf32>
    %220 = arith.mulf %218, %219 : vector<4x32xf32>
    %221 = vector.broadcast %202 : vector<1x32xf32> to vector<4x32xf32>
    %222 = arith.addf %220, %221 : vector<4x32xf32>
    %c1_86 = arith.constant 1 : index
    %c0_87 = arith.constant 0 : index
    %c0_88 = arith.constant 0 : index
    %223 = vector.load %arg4[%c1_86, %c0_87, %c0_88] : memref<2x32x96xf32, #tpu.memory_space<vmem>>, vector<1x32x96xf32>
    %224 = vector.shape_cast %223 : vector<1x32x96xf32> to vector<32x96xf32>
    %225 = arith.truncf %222 : vector<4x32xf32> to vector<4x32xbf16>
    %226 = arith.truncf %224 : vector<32x96xf32> to vector<32x96xbf16>
    %cst_89 = arith.constant dense<0.000000e+00> : vector<4x96xf32>
    %227 = tpu.matmul %225, %226, %cst_89 {dimension_numbers = #tpu.dot_dimension_numbers<[1], [0], [0], [1], [0, 0, 1, 1], [], []>} : vector<4x32xbf16>, vector<32x96xbf16>, vector<4x96xf32> -> vector<4x96xf32>
    %c1_90 = arith.constant 1 : index
    %c0_91 = arith.constant 0 : index
    %c0_92 = arith.constant 0 : index
    %228 = vector.load %arg5[%c1_90, %c0_91, %c0_92] : memref<2x32x32xf32, #tpu.memory_space<vmem>>, vector<1x32x32xf32>
    %229 = vector.shape_cast %228 : vector<1x32x32xf32> to vector<32x32xf32>
    %cst_93 = arith.constant 0.000000e+00 : f32
    %230 = vector.broadcast %cst_93 : f32 to vector<4x32xf32>
    %231 = vector.extract_strided_slice %227 {offsets = [0, 0], sizes = [4, 8], strides = [1, 1]} : vector<4x96xf32> to vector<4x8xf32>
    %232 = vector.extract_strided_slice %227 {offsets = [0, 32], sizes = [4, 8], strides = [1, 1]} : vector<4x96xf32> to vector<4x8xf32>
    %233 = vector.extract_strided_slice %227 {offsets = [0, 64], sizes = [4, 8], strides = [1, 1]} : vector<4x96xf32> to vector<4x8xf32>
    %234 = arith.truncf %231 : vector<4x8xf32> to vector<4x8xbf16>
    %235 = arith.truncf %232 : vector<4x8xf32> to vector<4x8xbf16>
    %cst_94 = arith.constant dense<0.000000e+00> : vector<4x4xf32>
    %236 = tpu.matmul %234, %235, %cst_94 {dimension_numbers = #tpu.dot_dimension_numbers<[1], [1], [0], [0], [0, 0, 1, 0], [], []>} : vector<4x8xbf16>, vector<4x8xbf16>, vector<4x4xf32> -> vector<4x4xf32>
    %cst_95 = arith.constant 0.353553385 : f32
    %237 = vector.broadcast %cst_95 : f32 to vector<4x4xf32>
    %238 = arith.mulf %236, %237 : vector<4x4xf32>
    %cst_96 = arith.constant dense<0xFF800000> : vector<4xf32>
    %239 = vector.multi_reduction <maximumf>, %238, %cst_96 [1] : vector<4x4xf32> to vector<4xf32>
    %240 = vector.shape_cast %239 : vector<4xf32> to vector<4x1xf32>
    %241 = vector.broadcast %240 : vector<4x1xf32> to vector<4x4xf32>
    %242 = arith.subf %238, %241 : vector<4x4xf32>
    %243 = math.exp %242 : vector<4x4xf32>
    %cst_97 = arith.constant dense<0.000000e+00> : vector<4xf32>
    %244 = vector.multi_reduction <add>, %243, %cst_97 [1] : vector<4x4xf32> to vector<4xf32>
    %245 = vector.shape_cast %244 : vector<4xf32> to vector<4x1xf32>
    %246 = tpu.reciprocal %245 {approx = true} : vector<4x1xf32> -> vector<4x1xf32>
    %247 = vector.broadcast %246 : vector<4x1xf32> to vector<4x4xf32>
    %248 = arith.mulf %243, %247 : vector<4x4xf32>
    %249 = arith.truncf %248 : vector<4x4xf32> to vector<4x4xbf16>
    %250 = arith.truncf %233 : vector<4x8xf32> to vector<4x8xbf16>
    %cst_98 = arith.constant dense<0.000000e+00> : vector<4x8xf32>
    %251 = tpu.matmul %249, %250, %cst_98 {dimension_numbers = #tpu.dot_dimension_numbers<[1], [0], [0], [1], [0, 0, 1, 1], [], []>} : vector<4x4xbf16>, vector<4x8xbf16>, vector<4x8xf32> -> vector<4x8xf32>
    %252 = vector.extract_strided_slice %229 {offsets = [0, 0], sizes = [8, 32], strides = [1, 1]} : vector<32x32xf32> to vector<8x32xf32>
    %253 = arith.truncf %251 : vector<4x8xf32> to vector<4x8xbf16>
    %254 = arith.truncf %252 : vector<8x32xf32> to vector<8x32xbf16>
    %cst_99 = arith.constant dense<0.000000e+00> : vector<4x32xf32>
    %255 = tpu.matmul %253, %254, %cst_99 {dimension_numbers = #tpu.dot_dimension_numbers<[1], [0], [0], [1], [0, 0, 1, 1], [], []>} : vector<4x8xbf16>, vector<8x32xbf16>, vector<4x32xf32> -> vector<4x32xf32>
    %256 = arith.addf %230, %255 : vector<4x32xf32>
    %257 = vector.extract_strided_slice %227 {offsets = [0, 8], sizes = [4, 8], strides = [1, 1]} : vector<4x96xf32> to vector<4x8xf32>
    %258 = vector.extract_strided_slice %227 {offsets = [0, 40], sizes = [4, 8], strides = [1, 1]} : vector<4x96xf32> to vector<4x8xf32>
    %259 = vector.extract_strided_slice %227 {offsets = [0, 72], sizes = [4, 8], strides = [1, 1]} : vector<4x96xf32> to vector<4x8xf32>
    %260 = arith.truncf %257 : vector<4x8xf32> to vector<4x8xbf16>
    %261 = arith.truncf %258 : vector<4x8xf32> to vector<4x8xbf16>
    %cst_100 = arith.constant dense<0.000000e+00> : vector<4x4xf32>
    %262 = tpu.matmul %260, %261, %cst_100 {dimension_numbers = #tpu.dot_dimension_numbers<[1], [1], [0], [0], [0, 0, 1, 0], [], []>} : vector<4x8xbf16>, vector<4x8xbf16>, vector<4x4xf32> -> vector<4x4xf32>
    %cst_101 = arith.constant 0.353553385 : f32
    %263 = vector.broadcast %cst_101 : f32 to vector<4x4xf32>
    %264 = arith.mulf %262, %263 : vector<4x4xf32>
    %cst_102 = arith.constant dense<0xFF800000> : vector<4xf32>
    %265 = vector.multi_reduction <maximumf>, %264, %cst_102 [1] : vector<4x4xf32> to vector<4xf32>
    %266 = vector.shape_cast %265 : vector<4xf32> to vector<4x1xf32>
    %267 = vector.broadcast %266 : vector<4x1xf32> to vector<4x4xf32>
    %268 = arith.subf %264, %267 : vector<4x4xf32>
    %269 = math.exp %268 : vector<4x4xf32>
    %cst_103 = arith.constant dense<0.000000e+00> : vector<4xf32>
    %270 = vector.multi_reduction <add>, %269, %cst_103 [1] : vector<4x4xf32> to vector<4xf32>
    %271 = vector.shape_cast %270 : vector<4xf32> to vector<4x1xf32>
    %272 = tpu.reciprocal %271 {approx = true} : vector<4x1xf32> -> vector<4x1xf32>
    %273 = vector.broadcast %272 : vector<4x1xf32> to vector<4x4xf32>
    %274 = arith.mulf %269, %273 : vector<4x4xf32>
    %275 = arith.truncf %274 : vector<4x4xf32> to vector<4x4xbf16>
    %276 = arith.truncf %259 : vector<4x8xf32> to vector<4x8xbf16>
    %cst_104 = arith.constant dense<0.000000e+00> : vector<4x8xf32>
    %277 = tpu.matmul %275, %276, %cst_104 {dimension_numbers = #tpu.dot_dimension_numbers<[1], [0], [0], [1], [0, 0, 1, 1], [], []>} : vector<4x4xbf16>, vector<4x8xbf16>, vector<4x8xf32> -> vector<4x8xf32>
    %278 = vector.extract_strided_slice %229 {offsets = [8, 0], sizes = [8, 32], strides = [1, 1]} : vector<32x32xf32> to vector<8x32xf32>
    %279 = arith.truncf %277 : vector<4x8xf32> to vector<4x8xbf16>
    %280 = arith.truncf %278 : vector<8x32xf32> to vector<8x32xbf16>
    %cst_105 = arith.constant dense<0.000000e+00> : vector<4x32xf32>
    %281 = tpu.matmul %279, %280, %cst_105 {dimension_numbers = #tpu.dot_dimension_numbers<[1], [0], [0], [1], [0, 0, 1, 1], [], []>} : vector<4x8xbf16>, vector<8x32xbf16>, vector<4x32xf32> -> vector<4x32xf32>
    %282 = arith.addf %256, %281 : vector<4x32xf32>
    %283 = vector.extract_strided_slice %227 {offsets = [0, 16], sizes = [4, 8], strides = [1, 1]} : vector<4x96xf32> to vector<4x8xf32>
    %284 = vector.extract_strided_slice %227 {offsets = [0, 48], sizes = [4, 8], strides = [1, 1]} : vector<4x96xf32> to vector<4x8xf32>
    %285 = vector.extract_strided_slice %227 {offsets = [0, 80], sizes = [4, 8], strides = [1, 1]} : vector<4x96xf32> to vector<4x8xf32>
    %286 = arith.truncf %283 : vector<4x8xf32> to vector<4x8xbf16>
    %287 = arith.truncf %284 : vector<4x8xf32> to vector<4x8xbf16>
    %cst_106 = arith.constant dense<0.000000e+00> : vector<4x4xf32>
    %288 = tpu.matmul %286, %287, %cst_106 {dimension_numbers = #tpu.dot_dimension_numbers<[1], [1], [0], [0], [0, 0, 1, 0], [], []>} : vector<4x8xbf16>, vector<4x8xbf16>, vector<4x4xf32> -> vector<4x4xf32>
    %cst_107 = arith.constant 0.353553385 : f32
    %289 = vector.broadcast %cst_107 : f32 to vector<4x4xf32>
    %290 = arith.mulf %288, %289 : vector<4x4xf32>
    %cst_108 = arith.constant dense<0xFF800000> : vector<4xf32>
    %291 = vector.multi_reduction <maximumf>, %290, %cst_108 [1] : vector<4x4xf32> to vector<4xf32>
    %292 = vector.shape_cast %291 : vector<4xf32> to vector<4x1xf32>
    %293 = vector.broadcast %292 : vector<4x1xf32> to vector<4x4xf32>
    %294 = arith.subf %290, %293 : vector<4x4xf32>
    %295 = math.exp %294 : vector<4x4xf32>
    %cst_109 = arith.constant dense<0.000000e+00> : vector<4xf32>
    %296 = vector.multi_reduction <add>, %295, %cst_109 [1] : vector<4x4xf32> to vector<4xf32>
    %297 = vector.shape_cast %296 : vector<4xf32> to vector<4x1xf32>
    %298 = tpu.reciprocal %297 {approx = true} : vector<4x1xf32> -> vector<4x1xf32>
    %299 = vector.broadcast %298 : vector<4x1xf32> to vector<4x4xf32>
    %300 = arith.mulf %295, %299 : vector<4x4xf32>
    %301 = arith.truncf %300 : vector<4x4xf32> to vector<4x4xbf16>
    %302 = arith.truncf %285 : vector<4x8xf32> to vector<4x8xbf16>
    %cst_110 = arith.constant dense<0.000000e+00> : vector<4x8xf32>
    %303 = tpu.matmul %301, %302, %cst_110 {dimension_numbers = #tpu.dot_dimension_numbers<[1], [0], [0], [1], [0, 0, 1, 1], [], []>} : vector<4x4xbf16>, vector<4x8xbf16>, vector<4x8xf32> -> vector<4x8xf32>
    %304 = vector.extract_strided_slice %229 {offsets = [16, 0], sizes = [8, 32], strides = [1, 1]} : vector<32x32xf32> to vector<8x32xf32>
    %305 = arith.truncf %303 : vector<4x8xf32> to vector<4x8xbf16>
    %306 = arith.truncf %304 : vector<8x32xf32> to vector<8x32xbf16>
    %cst_111 = arith.constant dense<0.000000e+00> : vector<4x32xf32>
    %307 = tpu.matmul %305, %306, %cst_111 {dimension_numbers = #tpu.dot_dimension_numbers<[1], [0], [0], [1], [0, 0, 1, 1], [], []>} : vector<4x8xbf16>, vector<8x32xbf16>, vector<4x32xf32> -> vector<4x32xf32>
    %308 = arith.addf %282, %307 : vector<4x32xf32>
    %309 = vector.extract_strided_slice %227 {offsets = [0, 24], sizes = [4, 8], strides = [1, 1]} : vector<4x96xf32> to vector<4x8xf32>
    %310 = vector.extract_strided_slice %227 {offsets = [0, 56], sizes = [4, 8], strides = [1, 1]} : vector<4x96xf32> to vector<4x8xf32>
    %311 = vector.extract_strided_slice %227 {offsets = [0, 88], sizes = [4, 8], strides = [1, 1]} : vector<4x96xf32> to vector<4x8xf32>
    %312 = arith.truncf %309 : vector<4x8xf32> to vector<4x8xbf16>
    %313 = arith.truncf %310 : vector<4x8xf32> to vector<4x8xbf16>
    %cst_112 = arith.constant dense<0.000000e+00> : vector<4x4xf32>
    %314 = tpu.matmul %312, %313, %cst_112 {dimension_numbers = #tpu.dot_dimension_numbers<[1], [1], [0], [0], [0, 0, 1, 0], [], []>} : vector<4x8xbf16>, vector<4x8xbf16>, vector<4x4xf32> -> vector<4x4xf32>
    %cst_113 = arith.constant 0.353553385 : f32
    %315 = vector.broadcast %cst_113 : f32 to vector<4x4xf32>
    %316 = arith.mulf %314, %315 : vector<4x4xf32>
    %cst_114 = arith.constant dense<0xFF800000> : vector<4xf32>
    %317 = vector.multi_reduction <maximumf>, %316, %cst_114 [1] : vector<4x4xf32> to vector<4xf32>
    %318 = vector.shape_cast %317 : vector<4xf32> to vector<4x1xf32>
    %319 = vector.broadcast %318 : vector<4x1xf32> to vector<4x4xf32>
    %320 = arith.subf %316, %319 : vector<4x4xf32>
    %321 = math.exp %320 : vector<4x4xf32>
    %cst_115 = arith.constant dense<0.000000e+00> : vector<4xf32>
    %322 = vector.multi_reduction <add>, %321, %cst_115 [1] : vector<4x4xf32> to vector<4xf32>
    %323 = vector.shape_cast %322 : vector<4xf32> to vector<4x1xf32>
    %324 = tpu.reciprocal %323 {approx = true} : vector<4x1xf32> -> vector<4x1xf32>
    %325 = vector.broadcast %324 : vector<4x1xf32> to vector<4x4xf32>
    %326 = arith.mulf %321, %325 : vector<4x4xf32>
    %327 = arith.truncf %326 : vector<4x4xf32> to vector<4x4xbf16>
    %328 = arith.truncf %311 : vector<4x8xf32> to vector<4x8xbf16>
    %cst_116 = arith.constant dense<0.000000e+00> : vector<4x8xf32>
    %329 = tpu.matmul %327, %328, %cst_116 {dimension_numbers = #tpu.dot_dimension_numbers<[1], [0], [0], [1], [0, 0, 1, 1], [], []>} : vector<4x4xbf16>, vector<4x8xbf16>, vector<4x8xf32> -> vector<4x8xf32>
    %330 = vector.extract_strided_slice %229 {offsets = [24, 0], sizes = [8, 32], strides = [1, 1]} : vector<32x32xf32> to vector<8x32xf32>
    %331 = arith.truncf %329 : vector<4x8xf32> to vector<4x8xbf16>
    %332 = arith.truncf %330 : vector<8x32xf32> to vector<8x32xbf16>
    %cst_117 = arith.constant dense<0.000000e+00> : vector<4x32xf32>
    %333 = tpu.matmul %331, %332, %cst_117 {dimension_numbers = #tpu.dot_dimension_numbers<[1], [0], [0], [1], [0, 0, 1, 1], [], []>} : vector<4x8xbf16>, vector<8x32xbf16>, vector<4x32xf32> -> vector<4x32xf32>
    %334 = arith.addf %308, %333 : vector<4x32xf32>
    %335 = arith.addf %198, %334 : vector<4x32xf32>
    %c1_118 = arith.constant 1 : index
    %c0_119 = arith.constant 0 : index
    %c0_120 = arith.constant 0 : index
    %336 = vector.load %arg6[%c1_118, %c0_119, %c0_120] : memref<2x1x32xf32, #tpu.memory_space<vmem>>, vector<1x1x32xf32>
    %337 = vector.shape_cast %336 : vector<1x1x32xf32> to vector<1x32xf32>
    %338 = vector.broadcast %337 : vector<1x32xf32> to vector<4x32xf32>
    %339 = arith.addf %335, %338 : vector<4x32xf32>
    %c1_121 = arith.constant 1 : index
    %c0_122 = arith.constant 0 : index
    %c0_123 = arith.constant 0 : index
    %340 = vector.load %arg7[%c1_121, %c0_122, %c0_123] : memref<2x1x32xf32, #tpu.memory_space<vmem>>, vector<1x1x32xf32>
    %341 = vector.shape_cast %340 : vector<1x1x32xf32> to vector<1x32xf32>
    %c1_124 = arith.constant 1 : index
    %c0_125 = arith.constant 0 : index
    %c0_126 = arith.constant 0 : index
    %342 = vector.load %arg8[%c1_124, %c0_125, %c0_126] : memref<2x1x32xf32, #tpu.memory_space<vmem>>, vector<1x1x32xf32>
    %343 = vector.shape_cast %342 : vector<1x1x32xf32> to vector<1x32xf32>
    %cst_127 = arith.constant dense<0.000000e+00> : vector<4xf32>
    %344 = vector.multi_reduction <add>, %339, %cst_127 [1] : vector<4x32xf32> to vector<4xf32>
    %345 = vector.shape_cast %344 : vector<4xf32> to vector<4x1xf32>
    %cst_128 = arith.constant 3.200000e+01 : f32
    %346 = vector.broadcast %cst_128 : f32 to vector<4x1xf32>
    %347 = arith.divf %345, %346 : vector<4x1xf32>
    %348 = vector.broadcast %347 : vector<4x1xf32> to vector<4x32xf32>
    %349 = arith.subf %339, %348 : vector<4x32xf32>
    %350 = arith.mulf %349, %349 : vector<4x32xf32>
    %cst_129 = arith.constant dense<0.000000e+00> : vector<4xf32>
    %351 = vector.multi_reduction <add>, %350, %cst_129 [1] : vector<4x32xf32> to vector<4xf32>
    %352 = vector.shape_cast %351 : vector<4xf32> to vector<4x1xf32>
    %cst_130 = arith.constant 3.200000e+01 : f32
    %353 = vector.broadcast %cst_130 : f32 to vector<4x1xf32>
    %354 = arith.divf %352, %353 : vector<4x1xf32>
    %cst_131 = arith.constant 9.99999974E-6 : f32
    %355 = vector.broadcast %cst_131 : f32 to vector<4x1xf32>
    %356 = arith.addf %354, %355 : vector<4x1xf32>
    %357 = math.rsqrt %356 : vector<4x1xf32>
    %358 = vector.broadcast %357 : vector<4x1xf32> to vector<4x32xf32>
    %359 = arith.mulf %349, %358 : vector<4x32xf32>
    %360 = vector.broadcast %341 : vector<1x32xf32> to vector<4x32xf32>
    %361 = arith.mulf %359, %360 : vector<4x32xf32>
    %362 = vector.broadcast %343 : vector<1x32xf32> to vector<4x32xf32>
    %363 = arith.addf %361, %362 : vector<4x32xf32>
    %c1_132 = arith.constant 1 : index
    %c0_133 = arith.constant 0 : index
    %c0_134 = arith.constant 0 : index
    %364 = vector.load %arg9[%c1_132, %c0_133, %c0_134] : memref<2x32x128xf32, #tpu.memory_space<vmem>>, vector<1x32x128xf32>
    %365 = vector.shape_cast %364 : vector<1x32x128xf32> to vector<32x128xf32>
    %366 = arith.truncf %363 : vector<4x32xf32> to vector<4x32xbf16>
    %367 = arith.truncf %365 : vector<32x128xf32> to vector<32x128xbf16>
    %cst_135 = arith.constant dense<0.000000e+00> : vector<4x128xf32>
    %368 = tpu.matmul %366, %367, %cst_135 {dimension_numbers = #tpu.dot_dimension_numbers<[1], [0], [0], [1], [0, 0, 1, 1], [], []>} : vector<4x32xbf16>, vector<32x128xbf16>, vector<4x128xf32> -> vector<4x128xf32>
    %c1_136 = arith.constant 1 : index
    %c0_137 = arith.constant 0 : index
    %c0_138 = arith.constant 0 : index
    %369 = vector.load %arg10[%c1_136, %c0_137, %c0_138] : memref<2x1x128xf32, #tpu.memory_space<vmem>>, vector<1x1x128xf32>
    %370 = vector.shape_cast %369 : vector<1x1x128xf32> to vector<1x128xf32>
    %371 = vector.broadcast %370 : vector<1x128xf32> to vector<4x128xf32>
    %372 = arith.addf %368, %371 : vector<4x128xf32>
    %373 = arith.mulf %372, %372 : vector<4x128xf32>
    %374 = arith.mulf %372, %373 : vector<4x128xf32>
    %cst_139 = arith.constant 4.471500e-02 : f32
    %375 = vector.broadcast %cst_139 : f32 to vector<4x128xf32>
    %376 = arith.mulf %375, %374 : vector<4x128xf32>
    %377 = arith.addf %372, %376 : vector<4x128xf32>
    %cst_140 = arith.constant 0.797884583 : f32
    %378 = vector.broadcast %cst_140 : f32 to vector<4x128xf32>
    %379 = arith.mulf %378, %377 : vector<4x128xf32>
    %380 = math.tanh %379 : vector<4x128xf32>
    %cst_141 = arith.constant 1.000000e+00 : f32
    %381 = vector.broadcast %cst_141 : f32 to vector<4x128xf32>
    %382 = arith.addf %381, %380 : vector<4x128xf32>
    %cst_142 = arith.constant 5.000000e-01 : f32
    %383 = vector.broadcast %cst_142 : f32 to vector<4x128xf32>
    %384 = arith.mulf %383, %382 : vector<4x128xf32>
    %385 = arith.mulf %372, %384 : vector<4x128xf32>
    %c1_143 = arith.constant 1 : index
    %c0_144 = arith.constant 0 : index
    %c0_145 = arith.constant 0 : index
    %386 = vector.load %arg11[%c1_143, %c0_144, %c0_145] : memref<2x128x32xf32, #tpu.memory_space<vmem>>, vector<1x128x32xf32>
    %387 = vector.shape_cast %386 : vector<1x128x32xf32> to vector<128x32xf32>
    %388 = arith.truncf %385 : vector<4x128xf32> to vector<4x128xbf16>
    %389 = arith.truncf %387 : vector<128x32xf32> to vector<128x32xbf16>
    %cst_146 = arith.constant dense<0.000000e+00> : vector<4x32xf32>
    %390 = tpu.matmul %388, %389, %cst_146 {dimension_numbers = #tpu.dot_dimension_numbers<[1], [0], [0], [1], [0, 0, 1, 1], [], []>} : vector<4x128xbf16>, vector<128x32xbf16>, vector<4x32xf32> -> vector<4x32xf32>
    %c1_147 = arith.constant 1 : index
    %c0_148 = arith.constant 0 : index
    %c0_149 = arith.constant 0 : index
    %391 = vector.load %arg12[%c1_147, %c0_148, %c0_149] : memref<2x1x32xf32, #tpu.memory_space<vmem>>, vector<1x1x32xf32>
    %392 = vector.shape_cast %391 : vector<1x1x32xf32> to vector<1x32xf32>
    %393 = vector.broadcast %392 : vector<1x32xf32> to vector<4x32xf32>
    %394 = arith.addf %390, %393 : vector<4x32xf32>
    %395 = arith.addf %339, %394 : vector<4x32xf32>
    %c0_150 = arith.constant 0 : index
    %c0_151 = arith.constant 0 : index
    %396 = vector.load %arg13[%c0_150, %c0_151] : memref<1x32xf32, #tpu.memory_space<vmem>>, vector<1x32xf32>
    %c0_152 = arith.constant 0 : index
    %c0_153 = arith.constant 0 : index
    %397 = vector.load %arg14[%c0_152, %c0_153] : memref<1x32xf32, #tpu.memory_space<vmem>>, vector<1x32xf32>
    %cst_154 = arith.constant dense<0.000000e+00> : vector<4xf32>
    %398 = vector.multi_reduction <add>, %395, %cst_154 [1] : vector<4x32xf32> to vector<4xf32>
    %399 = vector.shape_cast %398 : vector<4xf32> to vector<4x1xf32>
    %cst_155 = arith.constant 3.200000e+01 : f32
    %400 = vector.broadcast %cst_155 : f32 to vector<4x1xf32>
    %401 = arith.divf %399, %400 : vector<4x1xf32>
    %402 = vector.broadcast %401 : vector<4x1xf32> to vector<4x32xf32>
    %403 = arith.subf %395, %402 : vector<4x32xf32>
    %404 = arith.mulf %403, %403 : vector<4x32xf32>
    %cst_156 = arith.constant dense<0.000000e+00> : vector<4xf32>
    %405 = vector.multi_reduction <add>, %404, %cst_156 [1] : vector<4x32xf32> to vector<4xf32>
    %406 = vector.shape_cast %405 : vector<4xf32> to vector<4x1xf32>
    %cst_157 = arith.constant 3.200000e+01 : f32
    %407 = vector.broadcast %cst_157 : f32 to vector<4x1xf32>
    %408 = arith.divf %406, %407 : vector<4x1xf32>
    %cst_158 = arith.constant 9.99999974E-6 : f32
    %409 = vector.broadcast %cst_158 : f32 to vector<4x1xf32>
    %410 = arith.addf %408, %409 : vector<4x1xf32>
    %411 = math.rsqrt %410 : vector<4x1xf32>
    %412 = vector.broadcast %411 : vector<4x1xf32> to vector<4x32xf32>
    %413 = arith.mulf %403, %412 : vector<4x32xf32>
    %414 = vector.broadcast %396 : vector<1x32xf32> to vector<4x32xf32>
    %415 = arith.mulf %413, %414 : vector<4x32xf32>
    %416 = vector.broadcast %397 : vector<1x32xf32> to vector<4x32xf32>
    %417 = arith.addf %415, %416 : vector<4x32xf32>
    %c0_159 = arith.constant 0 : index
    %c0_160 = arith.constant 0 : index
    %418 = vector.load %arg15[%c0_159, %c0_160] : memref<1x32xf32, #tpu.memory_space<vmem>>, vector<1x32xf32>
    %c0_161 = arith.constant 0 : index
    %c0_162 = arith.constant 0 : index
    %419 = vector.load %arg16[%c0_161, %c0_162] : memref<1x32xf32, #tpu.memory_space<vmem>>, vector<1x32xf32>
    %cst_163 = arith.constant dense<0.000000e+00> : vector<4xf32>
    %420 = vector.multi_reduction <add>, %417, %cst_163 [1] : vector<4x32xf32> to vector<4xf32>
    %421 = vector.shape_cast %420 : vector<4xf32> to vector<4x1xf32>
    %cst_164 = arith.constant 3.200000e+01 : f32
    %422 = vector.broadcast %cst_164 : f32 to vector<4x1xf32>
    %423 = arith.divf %421, %422 : vector<4x1xf32>
    %424 = vector.broadcast %423 : vector<4x1xf32> to vector<4x32xf32>
    %425 = arith.subf %417, %424 : vector<4x32xf32>
    %426 = arith.mulf %425, %425 : vector<4x32xf32>
    %cst_165 = arith.constant dense<0.000000e+00> : vector<4xf32>
    %427 = vector.multi_reduction <add>, %426, %cst_165 [1] : vector<4x32xf32> to vector<4xf32>
    %428 = vector.shape_cast %427 : vector<4xf32> to vector<4x1xf32>
    %cst_166 = arith.constant 3.200000e+01 : f32
    %429 = vector.broadcast %cst_166 : f32 to vector<4x1xf32>
    %430 = arith.divf %428, %429 : vector<4x1xf32>
    %cst_167 = arith.constant 9.99999974E-6 : f32
    %431 = vector.broadcast %cst_167 : f32 to vector<4x1xf32>
    %432 = arith.addf %430, %431 : vector<4x1xf32>
    %433 = math.rsqrt %432 : vector<4x1xf32>
    %434 = vector.broadcast %433 : vector<4x1xf32> to vector<4x32xf32>
    %435 = arith.mulf %425, %434 : vector<4x32xf32>
    %436 = vector.broadcast %418 : vector<1x32xf32> to vector<4x32xf32>
    %437 = arith.mulf %435, %436 : vector<4x32xf32>
    %438 = vector.broadcast %419 : vector<1x32xf32> to vector<4x32xf32>
    %439 = arith.addf %437, %438 : vector<4x32xf32>
    %c0_168 = arith.constant 0 : index
    %c0_169 = arith.constant 0 : index
    %440 = vector.load %arg17[%c0_168, %c0_169] : memref<32x256xf32, #tpu.memory_space<vmem>>, vector<32x256xf32>
    %441 = arith.truncf %439 : vector<4x32xf32> to vector<4x32xbf16>
    %442 = arith.truncf %440 : vector<32x256xf32> to vector<32x256xbf16>
    %cst_170 = arith.constant dense<0.000000e+00> : vector<4x256xf32>
    %443 = tpu.matmul %441, %442, %cst_170 {dimension_numbers = #tpu.dot_dimension_numbers<[1], [0], [0], [1], [0, 0, 1, 1], [], []>} : vector<4x32xbf16>, vector<32x256xbf16>, vector<4x256xf32> -> vector<4x256xf32>
    %c0_171 = arith.constant 0 : index
    %c0_172 = arith.constant 0 : index
    %444 = vector.load %arg18[%c0_171, %c0_172] : memref<1x256xf32, #tpu.memory_space<vmem>>, vector<1x256xf32>
    %445 = vector.broadcast %444 : vector<1x256xf32> to vector<4x256xf32>
    %446 = arith.addf %443, %445 : vector<4x256xf32>
    %c0_173 = arith.constant 0 : index
    %c0_174 = arith.constant 0 : index
    %c0_175 = arith.constant 0 : index
    %447 = vector.load %arg19[%c0_173, %c0_174, %c0_175] : memref<1x4x256xf32, #tpu.memory_space<vmem>>, vector<1x4x256xf32>
    %448 = vector.shape_cast %447 : vector<1x4x256xf32> to vector<4x256xf32>
    %449 = vector.shape_cast %446 : vector<4x256xf32> to vector<1x4x256xf32>
    tpu.vector_store %arg19[%c0_173, %c0_174, %c0_175], %449 {strides = array<i32>} : memref<1x4x256xf32, #tpu.memory_space<vmem>>, vector<1x4x256xf32>,
    return
  }
  func.func @transform_0(%arg0: i32) -> (i32, i32, i32) {
    %c0_i32 = arith.constant 0 : i32
    %c0_i32_0 = arith.constant 0 : i32
    %c0_i32_1 = arith.constant 0 : i32
    return %arg0, %c0_i32, %c0_i32_0 : i32, i32, i32
  }
  func.func @transform_1(%arg0: i32) -> (i32, i32, i32) {
    %c0_i32 = arith.constant 0 : i32
    %c0_i32_0 = arith.constant 0 : i32
    %c0_i32_1 = arith.constant 0 : i32
    %c0_i32_2 = arith.constant 0 : i32
    return %c0_i32, %c0_i32_0, %c0_i32_1 : i32, i32, i32
  }
  func.func @transform_2(%arg0: i32) -> (i32, i32, i32) {
    %c0_i32 = arith.constant 0 : i32
    %c0_i32_0 = arith.constant 0 : i32
    %c0_i32_1 = arith.constant 0 : i32
    %c0_i32_2 = arith.constant 0 : i32
    return %c0_i32, %c0_i32_0, %c0_i32_1 : i32, i32, i32
  }
  func.func @transform_3(%arg0: i32) -> (i32, i32, i32) {
    %c0_i32 = arith.constant 0 : i32
    %c0_i32_0 = arith.constant 0 : i32
    %c0_i32_1 = arith.constant 0 : i32
    %c0_i32_2 = arith.constant 0 : i32
    return %c0_i32, %c0_i32_0, %c0_i32_1 : i32, i32, i32
  }
  func.func @transform_4(%arg0: i32) -> (i32, i32, i32) {
    %c0_i32 = arith.constant 0 : i32
    %c0_i32_0 = arith.constant 0 : i32
    %c0_i32_1 = arith.constant 0 : i32
    %c0_i32_2 = arith.constant 0 : i32
    return %c0_i32, %c0_i32_0, %c0_i32_1 : i32, i32, i32
  }
  func.func @transform_5(%arg0: i32) -> (i32, i32, i32) {
    %c0_i32 = arith.constant 0 : i32
    %c0_i32_0 = arith.constant 0 : i32
    %c0_i32_1 = arith.constant 0 : i32
    %c0_i32_2 = arith.constant 0 : i32
    return %c0_i32, %c0_i32_0, %c0_i32_1 : i32, i32, i32
  }
  func.func @transform_6(%arg0: i32) -> (i32, i32, i32) {
    %c0_i32 = arith.constant 0 : i32
    %c0_i32_0 = arith.constant 0 : i32
    %c0_i32_1 = arith.constant 0 : i32
    %c0_i32_2 = arith.constant 0 : i32
    return %c0_i32, %c0_i32_0, %c0_i32_1 : i32, i32, i32
  }
  func.func @transform_7(%arg0: i32) -> (i32, i32, i32) {
    %c0_i32 = arith.constant 0 : i32
    %c0_i32_0 = arith.constant 0 : i32
    %c0_i32_1 = arith.constant 0 : i32
    %c0_i32_2 = arith.constant 0 : i32
    return %c0_i32, %c0_i32_0, %c0_i32_1 : i32, i32, i32
  }
  func.func @transform_8(%arg0: i32) -> (i32, i32, i32) {
    %c0_i32 = arith.constant 0 : i32
    %c0_i32_0 = arith.constant 0 : i32
    %c0_i32_1 = arith.constant 0 : i32
    %c0_i32_2 = arith.constant 0 : i32
    return %c0_i32, %c0_i32_0, %c0_i32_1 : i32, i32, i32
  }
  func.func @transform_9(%arg0: i32) -> (i32, i32, i32) {
    %c0_i32 = arith.constant 0 : i32
    %c0_i32_0 = arith.constant 0 : i32
    %c0_i32_1 = arith.constant 0 : i32
    %c0_i32_2 = arith.constant 0 : i32
    return %c0_i32, %c0_i32_0, %c0_i32_1 : i32, i32, i32
  }
  func.func @transform_10(%arg0: i32) -> (i32, i32, i32) {
    %c0_i32 = arith.constant 0 : i32
    %c0_i32_0 = arith.constant 0 : i32
    %c0_i32_1 = arith.constant 0 : i32
    %c0_i32_2 = arith.constant 0 : i32
    return %c0_i32, %c0_i32_0, %c0_i32_1 : i32, i32, i32
  }
  func.func @transform_11(%arg0: i32) -> (i32, i32, i32) {
    %c0_i32 = arith.constant 0 : i32
    %c0_i32_0 = arith.constant 0 : i32
    %c0_i32_1 = arith.constant 0 : i32
    %c0_i32_2 = arith.constant 0 : i32
    return %c0_i32, %c0_i32_0, %c0_i32_1 : i32, i32, i32
  }
  func.func @transform_12(%arg0: i32) -> (i32, i32) {
    %c0_i32 = arith.constant 0 : i32
    %c0_i32_0 = arith.constant 0 : i32
    %c0_i32_1 = arith.constant 0 : i32
    return %c0_i32, %c0_i32_0 : i32, i32
  }
  func.func @transform_13(%arg0: i32) -> (i32, i32) {
    %c0_i32 = arith.constant 0 : i32
    %c0_i32_0 = arith.constant 0 : i32
    %c0_i32_1 = arith.constant 0 : i32
    return %c0_i32, %c0_i32_0 : i32, i32
  }
  func.func @transform_14(%arg0: i32) -> (i32, i32) {
    %c0_i32 = arith.constant 0 : i32
    %c0_i32_0 = arith.constant 0 : i32
    %c0_i32_1 = arith.constant 0 : i32
    return %c0_i32, %c0_i32_0 : i32, i32
  }
  func.func @transform_15(%arg0: i32) -> (i32, i32) {
    %c0_i32 = arith.constant 0 : i32
    %c0_i32_0 = arith.constant 0 : i32
    %c0_i32_1 = arith.constant 0 : i32
    return %c0_i32, %c0_i32_0 : i32, i32
  }
  func.func @transform_16(%arg0: i32) -> (i32, i32) {
    %c0_i32 = arith.constant 0 : i32
    %c0_i32_0 = arith.constant 0 : i32
    %c0_i32_1 = arith.constant 0 : i32
    return %c0_i32, %c0_i32_0 : i32, i32
  }
  func.func @transform_17(%arg0: i32) -> (i32, i32) {
    %c0_i32 = arith.constant 0 : i32
    %c0_i32_0 = arith.constant 0 : i32
    %c0_i32_1 = arith.constant 0 : i32
    return %c0_i32, %c0_i32_0 : i32, i32
  }
  func.func @transform_18(%arg0: i32) -> (i32, i32, i32) {
    %c0_i32 = arith.constant 0 : i32
    %c0_i32_0 = arith.constant 0 : i32
    %c0_i32_1 = arith.constant 0 : i32
    return %arg0, %c0_i32, %c0_i32_0 : i32, i32, i32
  }
}

module attributes {stable_mosaic.version = 11 : i64} {
  func.func @_spatial_kernel(%arg0: i32, %arg1: memref<1x16x64xf32, #tpu.memory_space<vmem>>, %arg2: memref<64x32xf32, #tpu.memory_space<vmem>>, %arg3: memref<1x32xf32, #tpu.memory_space<vmem>>, %arg4: memref<1x4x32xf32, #tpu.memory_space<vmem>>, %arg5: memref<1x16x32xf32, #tpu.memory_space<vmem>>, %arg6: memref<20x20xf32, #tpu.memory_space<vmem>>, %arg7: memref<2x1x32xf32, #tpu.memory_space<vmem>>, %arg8: memref<2x1x32xf32, #tpu.memory_space<vmem>>, %arg9: memref<2x32x96xf32, #tpu.memory_space<vmem>>, %arg10: memref<2x32x32xf32, #tpu.memory_space<vmem>>, %arg11: memref<2x1x32xf32, #tpu.memory_space<vmem>>, %arg12: memref<2x1x32xf32, #tpu.memory_space<vmem>>, %arg13: memref<2x1x32xf32, #tpu.memory_space<vmem>>, %arg14: memref<2x32x128xf32, #tpu.memory_space<vmem>>, %arg15: memref<2x1x128xf32, #tpu.memory_space<vmem>>, %arg16: memref<2x128x32xf32, #tpu.memory_space<vmem>>, %arg17: memref<2x1x32xf32, #tpu.memory_space<vmem>>, %arg18: memref<1x32xf32, #tpu.memory_space<vmem>>, %arg19: memref<1x32xf32, #tpu.memory_space<vmem>>, %arg20: memref<1x4x32xf32, #tpu.memory_space<vmem>>) attributes {dimension_semantics = [#tpu.dimension_semantics<parallel>], iteration_bounds = array<i64: 2>, scalar_prefetch = 0 : i64, scratch_operands = 0 : i64, tpu.core_type = #tpu.core_type<tc>, window_params = [{transform_indices = @transform_0, window_bounds = array<i64: 1, 16, 64>}, {pipeline_mode = #tpu.pipeline_mode<synchronous>, transform_indices = @transform_1, window_bounds = array<i64: 64, 32>}, {pipeline_mode = #tpu.pipeline_mode<synchronous>, transform_indices = @transform_2, window_bounds = array<i64: 1, 32>}, {transform_indices = @transform_3, window_bounds = array<i64: 1, 4, 32>}, {transform_indices = @transform_4, window_bounds = array<i64: 1, 16, 32>}, {pipeline_mode = #tpu.pipeline_mode<synchronous>, transform_indices = @transform_5, window_bounds = array<i64: 20, 20>}, {pipeline_mode = #tpu.pipeline_mode<synchronous>, transform_indices = @transform_6, window_bounds = array<i64: 2, 1, 32>}, {pipeline_mode = #tpu.pipeline_mode<synchronous>, transform_indices = @transform_7, window_bounds = array<i64: 2, 1, 32>}, {pipeline_mode = #tpu.pipeline_mode<synchronous>, transform_indices = @transform_8, window_bounds = array<i64: 2, 32, 96>}, {pipeline_mode = #tpu.pipeline_mode<synchronous>, transform_indices = @transform_9, window_bounds = array<i64: 2, 32, 32>}, {pipeline_mode = #tpu.pipeline_mode<synchronous>, transform_indices = @transform_10, window_bounds = array<i64: 2, 1, 32>}, {pipeline_mode = #tpu.pipeline_mode<synchronous>, transform_indices = @transform_11, window_bounds = array<i64: 2, 1, 32>}, {pipeline_mode = #tpu.pipeline_mode<synchronous>, transform_indices = @transform_12, window_bounds = array<i64: 2, 1, 32>}, {pipeline_mode = #tpu.pipeline_mode<synchronous>, transform_indices = @transform_13, window_bounds = array<i64: 2, 32, 128>}, {pipeline_mode = #tpu.pipeline_mode<synchronous>, transform_indices = @transform_14, window_bounds = array<i64: 2, 1, 128>}, {pipeline_mode = #tpu.pipeline_mode<synchronous>, transform_indices = @transform_15, window_bounds = array<i64: 2, 128, 32>}, {pipeline_mode = #tpu.pipeline_mode<synchronous>, transform_indices = @transform_16, window_bounds = array<i64: 2, 1, 32>}, {pipeline_mode = #tpu.pipeline_mode<synchronous>, transform_indices = @transform_17, window_bounds = array<i64: 1, 32>}, {pipeline_mode = #tpu.pipeline_mode<synchronous>, transform_indices = @transform_18, window_bounds = array<i64: 1, 32>}, {transform_indices = @transform_19, window_bounds = array<i64: 1, 4, 32>}]} {
    %c0 = arith.constant 0 : index
    %c0_0 = arith.constant 0 : index
    %c0_1 = arith.constant 0 : index
    %0 = vector.load %arg1[%c0, %c0_0, %c0_1] : memref<1x16x64xf32, #tpu.memory_space<vmem>>, vector<1x16x64xf32>
    %1 = vector.shape_cast %0 : vector<1x16x64xf32> to vector<16x64xf32>
    %c0_2 = arith.constant 0 : index
    %c0_3 = arith.constant 0 : index
    %2 = vector.load %arg2[%c0_2, %c0_3] : memref<64x32xf32, #tpu.memory_space<vmem>>, vector<64x32xf32>
    %3 = arith.truncf %1 : vector<16x64xf32> to vector<16x64xbf16>
    %4 = arith.truncf %2 : vector<64x32xf32> to vector<64x32xbf16>
    %cst = arith.constant dense<0.000000e+00> : vector<16x32xf32>
    %5 = tpu.matmul %3, %4, %cst {dimension_numbers = #tpu.dot_dimension_numbers<[1], [0], [0], [1], [0, 0, 1, 1], [], []>} : vector<16x64xbf16>, vector<64x32xbf16>, vector<16x32xf32> -> vector<16x32xf32>
    %c0_4 = arith.constant 0 : index
    %c0_5 = arith.constant 0 : index
    %6 = vector.load %arg3[%c0_4, %c0_5] : memref<1x32xf32, #tpu.memory_space<vmem>>, vector<1x32xf32>
    %7 = vector.broadcast %6 : vector<1x32xf32> to vector<16x32xf32>
    %8 = arith.addf %5, %7 : vector<16x32xf32>
    %c0_6 = arith.constant 0 : index
    %c0_7 = arith.constant 0 : index
    %c0_8 = arith.constant 0 : index
    %9 = vector.load %arg5[%c0_6, %c0_7, %c0_8] : memref<1x16x32xf32, #tpu.memory_space<vmem>>, vector<1x16x32xf32>
    %10 = vector.shape_cast %9 : vector<1x16x32xf32> to vector<16x32xf32>
    %11 = arith.addf %8, %10 : vector<16x32xf32>
    %c0_9 = arith.constant 0 : index
    %c0_10 = arith.constant 0 : index
    %c0_11 = arith.constant 0 : index
    %12 = vector.load %arg4[%c0_9, %c0_10, %c0_11] : memref<1x4x32xf32, #tpu.memory_space<vmem>>, vector<1x4x32xf32>
    %13 = vector.shape_cast %12 : vector<1x4x32xf32> to vector<4x32xf32>
    %14 = tpu.concatenate %11, %13 in 0 : vector<16x32xf32>, vector<4x32xf32> -> vector<20x32xf32>
    %c0_12 = arith.constant 0 : index
    %c0_13 = arith.constant 0 : index
    %15 = vector.load %arg6[%c0_12, %c0_13] : memref<20x20xf32, #tpu.memory_space<vmem>>, vector<20x20xf32>
    %c0_14 = arith.constant 0 : index
    %c0_15 = arith.constant 0 : index
    %c0_16 = arith.constant 0 : index
    %16 = vector.load %arg7[%c0_14, %c0_15, %c0_16] : memref<2x1x32xf32, #tpu.memory_space<vmem>>, vector<1x1x32xf32>
    %17 = vector.shape_cast %16 : vector<1x1x32xf32> to vector<1x32xf32>
    %c0_17 = arith.constant 0 : index
    %c0_18 = arith.constant 0 : index
    %c0_19 = arith.constant 0 : index
    %18 = vector.load %arg8[%c0_17, %c0_18, %c0_19] : memref<2x1x32xf32, #tpu.memory_space<vmem>>, vector<1x1x32xf32>
    %19 = vector.shape_cast %18 : vector<1x1x32xf32> to vector<1x32xf32>
    %cst_20 = arith.constant dense<0.000000e+00> : vector<20xf32>
    %20 = vector.multi_reduction <add>, %14, %cst_20 [1] : vector<20x32xf32> to vector<20xf32>
    %21 = vector.shape_cast %20 : vector<20xf32> to vector<20x1xf32>
    %cst_21 = arith.constant 3.200000e+01 : f32
    %22 = vector.broadcast %cst_21 : f32 to vector<20x1xf32>
    %23 = arith.divf %21, %22 : vector<20x1xf32>
    %24 = vector.broadcast %23 : vector<20x1xf32> to vector<20x32xf32>
    %25 = arith.subf %14, %24 : vector<20x32xf32>
    %26 = arith.mulf %25, %25 : vector<20x32xf32>
    %cst_22 = arith.constant dense<0.000000e+00> : vector<20xf32>
    %27 = vector.multi_reduction <add>, %26, %cst_22 [1] : vector<20x32xf32> to vector<20xf32>
    %28 = vector.shape_cast %27 : vector<20xf32> to vector<20x1xf32>
    %cst_23 = arith.constant 3.200000e+01 : f32
    %29 = vector.broadcast %cst_23 : f32 to vector<20x1xf32>
    %30 = arith.divf %28, %29 : vector<20x1xf32>
    %cst_24 = arith.constant 9.99999974E-6 : f32
    %31 = vector.broadcast %cst_24 : f32 to vector<20x1xf32>
    %32 = arith.addf %30, %31 : vector<20x1xf32>
    %33 = math.rsqrt %32 : vector<20x1xf32>
    %34 = vector.broadcast %33 : vector<20x1xf32> to vector<20x32xf32>
    %35 = arith.mulf %25, %34 : vector<20x32xf32>
    %36 = vector.broadcast %17 : vector<1x32xf32> to vector<20x32xf32>
    %37 = arith.mulf %35, %36 : vector<20x32xf32>
    %38 = vector.broadcast %19 : vector<1x32xf32> to vector<20x32xf32>
    %39 = arith.addf %37, %38 : vector<20x32xf32>
    %c0_25 = arith.constant 0 : index
    %c0_26 = arith.constant 0 : index
    %c0_27 = arith.constant 0 : index
    %40 = vector.load %arg9[%c0_25, %c0_26, %c0_27] : memref<2x32x96xf32, #tpu.memory_space<vmem>>, vector<1x32x96xf32>
    %41 = vector.shape_cast %40 : vector<1x32x96xf32> to vector<32x96xf32>
    %42 = arith.truncf %39 : vector<20x32xf32> to vector<20x32xbf16>
    %43 = arith.truncf %41 : vector<32x96xf32> to vector<32x96xbf16>
    %cst_28 = arith.constant dense<0.000000e+00> : vector<20x96xf32>
    %44 = tpu.matmul %42, %43, %cst_28 {dimension_numbers = #tpu.dot_dimension_numbers<[1], [0], [0], [1], [0, 0, 1, 1], [], []>} : vector<20x32xbf16>, vector<32x96xbf16>, vector<20x96xf32> -> vector<20x96xf32>
    %c0_29 = arith.constant 0 : index
    %c0_30 = arith.constant 0 : index
    %c0_31 = arith.constant 0 : index
    %45 = vector.load %arg10[%c0_29, %c0_30, %c0_31] : memref<2x32x32xf32, #tpu.memory_space<vmem>>, vector<1x32x32xf32>
    %46 = vector.shape_cast %45 : vector<1x32x32xf32> to vector<32x32xf32>
    %cst_32 = arith.constant 0.000000e+00 : f32
    %47 = vector.broadcast %cst_32 : f32 to vector<20x32xf32>
    %48 = vector.extract_strided_slice %44 {offsets = [0, 0], sizes = [20, 8], strides = [1, 1]} : vector<20x96xf32> to vector<20x8xf32>
    %49 = vector.extract_strided_slice %44 {offsets = [0, 32], sizes = [20, 8], strides = [1, 1]} : vector<20x96xf32> to vector<20x8xf32>
    %50 = vector.extract_strided_slice %44 {offsets = [0, 64], sizes = [20, 8], strides = [1, 1]} : vector<20x96xf32> to vector<20x8xf32>
    %51 = arith.truncf %48 : vector<20x8xf32> to vector<20x8xbf16>
    %52 = arith.truncf %49 : vector<20x8xf32> to vector<20x8xbf16>
    %cst_33 = arith.constant dense<0.000000e+00> : vector<20x20xf32>
    %53 = tpu.matmul %51, %52, %cst_33 {dimension_numbers = #tpu.dot_dimension_numbers<[1], [1], [0], [0], [0, 0, 1, 0], [], []>} : vector<20x8xbf16>, vector<20x8xbf16>, vector<20x20xf32> -> vector<20x20xf32>
    %cst_34 = arith.constant 0.353553385 : f32
    %54 = vector.broadcast %cst_34 : f32 to vector<20x20xf32>
    %55 = arith.mulf %53, %54 : vector<20x20xf32>
    %56 = arith.addf %55, %15 : vector<20x20xf32>
    %cst_35 = arith.constant dense<0xFF800000> : vector<20xf32>
    %57 = vector.multi_reduction <maximumf>, %56, %cst_35 [1] : vector<20x20xf32> to vector<20xf32>
    %58 = vector.shape_cast %57 : vector<20xf32> to vector<20x1xf32>
    %59 = vector.broadcast %58 : vector<20x1xf32> to vector<20x20xf32>
    %60 = arith.subf %56, %59 : vector<20x20xf32>
    %61 = math.exp %60 : vector<20x20xf32>
    %cst_36 = arith.constant dense<0.000000e+00> : vector<20xf32>
    %62 = vector.multi_reduction <add>, %61, %cst_36 [1] : vector<20x20xf32> to vector<20xf32>
    %63 = vector.shape_cast %62 : vector<20xf32> to vector<20x1xf32>
    %64 = tpu.reciprocal %63 {approx = true} : vector<20x1xf32> -> vector<20x1xf32>
    %65 = vector.broadcast %64 : vector<20x1xf32> to vector<20x20xf32>
    %66 = arith.mulf %61, %65 : vector<20x20xf32>
    %67 = arith.truncf %66 : vector<20x20xf32> to vector<20x20xbf16>
    %68 = arith.truncf %50 : vector<20x8xf32> to vector<20x8xbf16>
    %cst_37 = arith.constant dense<0.000000e+00> : vector<20x8xf32>
    %69 = tpu.matmul %67, %68, %cst_37 {dimension_numbers = #tpu.dot_dimension_numbers<[1], [0], [0], [1], [0, 0, 1, 1], [], []>} : vector<20x20xbf16>, vector<20x8xbf16>, vector<20x8xf32> -> vector<20x8xf32>
    %70 = vector.extract_strided_slice %46 {offsets = [0, 0], sizes = [8, 32], strides = [1, 1]} : vector<32x32xf32> to vector<8x32xf32>
    %71 = arith.truncf %69 : vector<20x8xf32> to vector<20x8xbf16>
    %72 = arith.truncf %70 : vector<8x32xf32> to vector<8x32xbf16>
    %cst_38 = arith.constant dense<0.000000e+00> : vector<20x32xf32>
    %73 = tpu.matmul %71, %72, %cst_38 {dimension_numbers = #tpu.dot_dimension_numbers<[1], [0], [0], [1], [0, 0, 1, 1], [], []>} : vector<20x8xbf16>, vector<8x32xbf16>, vector<20x32xf32> -> vector<20x32xf32>
    %74 = arith.addf %47, %73 : vector<20x32xf32>
    %75 = vector.extract_strided_slice %44 {offsets = [0, 8], sizes = [20, 8], strides = [1, 1]} : vector<20x96xf32> to vector<20x8xf32>
    %76 = vector.extract_strided_slice %44 {offsets = [0, 40], sizes = [20, 8], strides = [1, 1]} : vector<20x96xf32> to vector<20x8xf32>
    %77 = vector.extract_strided_slice %44 {offsets = [0, 72], sizes = [20, 8], strides = [1, 1]} : vector<20x96xf32> to vector<20x8xf32>
    %78 = arith.truncf %75 : vector<20x8xf32> to vector<20x8xbf16>
    %79 = arith.truncf %76 : vector<20x8xf32> to vector<20x8xbf16>
    %cst_39 = arith.constant dense<0.000000e+00> : vector<20x20xf32>
    %80 = tpu.matmul %78, %79, %cst_39 {dimension_numbers = #tpu.dot_dimension_numbers<[1], [1], [0], [0], [0, 0, 1, 0], [], []>} : vector<20x8xbf16>, vector<20x8xbf16>, vector<20x20xf32> -> vector<20x20xf32>
    %cst_40 = arith.constant 0.353553385 : f32
    %81 = vector.broadcast %cst_40 : f32 to vector<20x20xf32>
    %82 = arith.mulf %80, %81 : vector<20x20xf32>
    %83 = arith.addf %82, %15 : vector<20x20xf32>
    %cst_41 = arith.constant dense<0xFF800000> : vector<20xf32>
    %84 = vector.multi_reduction <maximumf>, %83, %cst_41 [1] : vector<20x20xf32> to vector<20xf32>
    %85 = vector.shape_cast %84 : vector<20xf32> to vector<20x1xf32>
    %86 = vector.broadcast %85 : vector<20x1xf32> to vector<20x20xf32>
    %87 = arith.subf %83, %86 : vector<20x20xf32>
    %88 = math.exp %87 : vector<20x20xf32>
    %cst_42 = arith.constant dense<0.000000e+00> : vector<20xf32>
    %89 = vector.multi_reduction <add>, %88, %cst_42 [1] : vector<20x20xf32> to vector<20xf32>
    %90 = vector.shape_cast %89 : vector<20xf32> to vector<20x1xf32>
    %91 = tpu.reciprocal %90 {approx = true} : vector<20x1xf32> -> vector<20x1xf32>
    %92 = vector.broadcast %91 : vector<20x1xf32> to vector<20x20xf32>
    %93 = arith.mulf %88, %92 : vector<20x20xf32>
    %94 = arith.truncf %93 : vector<20x20xf32> to vector<20x20xbf16>
    %95 = arith.truncf %77 : vector<20x8xf32> to vector<20x8xbf16>
    %cst_43 = arith.constant dense<0.000000e+00> : vector<20x8xf32>
    %96 = tpu.matmul %94, %95, %cst_43 {dimension_numbers = #tpu.dot_dimension_numbers<[1], [0], [0], [1], [0, 0, 1, 1], [], []>} : vector<20x20xbf16>, vector<20x8xbf16>, vector<20x8xf32> -> vector<20x8xf32>
    %97 = vector.extract_strided_slice %46 {offsets = [8, 0], sizes = [8, 32], strides = [1, 1]} : vector<32x32xf32> to vector<8x32xf32>
    %98 = arith.truncf %96 : vector<20x8xf32> to vector<20x8xbf16>
    %99 = arith.truncf %97 : vector<8x32xf32> to vector<8x32xbf16>
    %cst_44 = arith.constant dense<0.000000e+00> : vector<20x32xf32>
    %100 = tpu.matmul %98, %99, %cst_44 {dimension_numbers = #tpu.dot_dimension_numbers<[1], [0], [0], [1], [0, 0, 1, 1], [], []>} : vector<20x8xbf16>, vector<8x32xbf16>, vector<20x32xf32> -> vector<20x32xf32>
    %101 = arith.addf %74, %100 : vector<20x32xf32>
    %102 = vector.extract_strided_slice %44 {offsets = [0, 16], sizes = [20, 8], strides = [1, 1]} : vector<20x96xf32> to vector<20x8xf32>
    %103 = vector.extract_strided_slice %44 {offsets = [0, 48], sizes = [20, 8], strides = [1, 1]} : vector<20x96xf32> to vector<20x8xf32>
    %104 = vector.extract_strided_slice %44 {offsets = [0, 80], sizes = [20, 8], strides = [1, 1]} : vector<20x96xf32> to vector<20x8xf32>
    %105 = arith.truncf %102 : vector<20x8xf32> to vector<20x8xbf16>
    %106 = arith.truncf %103 : vector<20x8xf32> to vector<20x8xbf16>
    %cst_45 = arith.constant dense<0.000000e+00> : vector<20x20xf32>
    %107 = tpu.matmul %105, %106, %cst_45 {dimension_numbers = #tpu.dot_dimension_numbers<[1], [1], [0], [0], [0, 0, 1, 0], [], []>} : vector<20x8xbf16>, vector<20x8xbf16>, vector<20x20xf32> -> vector<20x20xf32>
    %cst_46 = arith.constant 0.353553385 : f32
    %108 = vector.broadcast %cst_46 : f32 to vector<20x20xf32>
    %109 = arith.mulf %107, %108 : vector<20x20xf32>
    %110 = arith.addf %109, %15 : vector<20x20xf32>
    %cst_47 = arith.constant dense<0xFF800000> : vector<20xf32>
    %111 = vector.multi_reduction <maximumf>, %110, %cst_47 [1] : vector<20x20xf32> to vector<20xf32>
    %112 = vector.shape_cast %111 : vector<20xf32> to vector<20x1xf32>
    %113 = vector.broadcast %112 : vector<20x1xf32> to vector<20x20xf32>
    %114 = arith.subf %110, %113 : vector<20x20xf32>
    %115 = math.exp %114 : vector<20x20xf32>
    %cst_48 = arith.constant dense<0.000000e+00> : vector<20xf32>
    %116 = vector.multi_reduction <add>, %115, %cst_48 [1] : vector<20x20xf32> to vector<20xf32>
    %117 = vector.shape_cast %116 : vector<20xf32> to vector<20x1xf32>
    %118 = tpu.reciprocal %117 {approx = true} : vector<20x1xf32> -> vector<20x1xf32>
    %119 = vector.broadcast %118 : vector<20x1xf32> to vector<20x20xf32>
    %120 = arith.mulf %115, %119 : vector<20x20xf32>
    %121 = arith.truncf %120 : vector<20x20xf32> to vector<20x20xbf16>
    %122 = arith.truncf %104 : vector<20x8xf32> to vector<20x8xbf16>
    %cst_49 = arith.constant dense<0.000000e+00> : vector<20x8xf32>
    %123 = tpu.matmul %121, %122, %cst_49 {dimension_numbers = #tpu.dot_dimension_numbers<[1], [0], [0], [1], [0, 0, 1, 1], [], []>} : vector<20x20xbf16>, vector<20x8xbf16>, vector<20x8xf32> -> vector<20x8xf32>
    %124 = vector.extract_strided_slice %46 {offsets = [16, 0], sizes = [8, 32], strides = [1, 1]} : vector<32x32xf32> to vector<8x32xf32>
    %125 = arith.truncf %123 : vector<20x8xf32> to vector<20x8xbf16>
    %126 = arith.truncf %124 : vector<8x32xf32> to vector<8x32xbf16>
    %cst_50 = arith.constant dense<0.000000e+00> : vector<20x32xf32>
    %127 = tpu.matmul %125, %126, %cst_50 {dimension_numbers = #tpu.dot_dimension_numbers<[1], [0], [0], [1], [0, 0, 1, 1], [], []>} : vector<20x8xbf16>, vector<8x32xbf16>, vector<20x32xf32> -> vector<20x32xf32>
    %128 = arith.addf %101, %127 : vector<20x32xf32>
    %129 = vector.extract_strided_slice %44 {offsets = [0, 24], sizes = [20, 8], strides = [1, 1]} : vector<20x96xf32> to vector<20x8xf32>
    %130 = vector.extract_strided_slice %44 {offsets = [0, 56], sizes = [20, 8], strides = [1, 1]} : vector<20x96xf32> to vector<20x8xf32>
    %131 = vector.extract_strided_slice %44 {offsets = [0, 88], sizes = [20, 8], strides = [1, 1]} : vector<20x96xf32> to vector<20x8xf32>
    %132 = arith.truncf %129 : vector<20x8xf32> to vector<20x8xbf16>
    %133 = arith.truncf %130 : vector<20x8xf32> to vector<20x8xbf16>
    %cst_51 = arith.constant dense<0.000000e+00> : vector<20x20xf32>
    %134 = tpu.matmul %132, %133, %cst_51 {dimension_numbers = #tpu.dot_dimension_numbers<[1], [1], [0], [0], [0, 0, 1, 0], [], []>} : vector<20x8xbf16>, vector<20x8xbf16>, vector<20x20xf32> -> vector<20x20xf32>
    %cst_52 = arith.constant 0.353553385 : f32
    %135 = vector.broadcast %cst_52 : f32 to vector<20x20xf32>
    %136 = arith.mulf %134, %135 : vector<20x20xf32>
    %137 = arith.addf %136, %15 : vector<20x20xf32>
    %cst_53 = arith.constant dense<0xFF800000> : vector<20xf32>
    %138 = vector.multi_reduction <maximumf>, %137, %cst_53 [1] : vector<20x20xf32> to vector<20xf32>
    %139 = vector.shape_cast %138 : vector<20xf32> to vector<20x1xf32>
    %140 = vector.broadcast %139 : vector<20x1xf32> to vector<20x20xf32>
    %141 = arith.subf %137, %140 : vector<20x20xf32>
    %142 = math.exp %141 : vector<20x20xf32>
    %cst_54 = arith.constant dense<0.000000e+00> : vector<20xf32>
    %143 = vector.multi_reduction <add>, %142, %cst_54 [1] : vector<20x20xf32> to vector<20xf32>
    %144 = vector.shape_cast %143 : vector<20xf32> to vector<20x1xf32>
    %145 = tpu.reciprocal %144 {approx = true} : vector<20x1xf32> -> vector<20x1xf32>
    %146 = vector.broadcast %145 : vector<20x1xf32> to vector<20x20xf32>
    %147 = arith.mulf %142, %146 : vector<20x20xf32>
    %148 = arith.truncf %147 : vector<20x20xf32> to vector<20x20xbf16>
    %149 = arith.truncf %131 : vector<20x8xf32> to vector<20x8xbf16>
    %cst_55 = arith.constant dense<0.000000e+00> : vector<20x8xf32>
    %150 = tpu.matmul %148, %149, %cst_55 {dimension_numbers = #tpu.dot_dimension_numbers<[1], [0], [0], [1], [0, 0, 1, 1], [], []>} : vector<20x20xbf16>, vector<20x8xbf16>, vector<20x8xf32> -> vector<20x8xf32>
    %151 = vector.extract_strided_slice %46 {offsets = [24, 0], sizes = [8, 32], strides = [1, 1]} : vector<32x32xf32> to vector<8x32xf32>
    %152 = arith.truncf %150 : vector<20x8xf32> to vector<20x8xbf16>
    %153 = arith.truncf %151 : vector<8x32xf32> to vector<8x32xbf16>
    %cst_56 = arith.constant dense<0.000000e+00> : vector<20x32xf32>
    %154 = tpu.matmul %152, %153, %cst_56 {dimension_numbers = #tpu.dot_dimension_numbers<[1], [0], [0], [1], [0, 0, 1, 1], [], []>} : vector<20x8xbf16>, vector<8x32xbf16>, vector<20x32xf32> -> vector<20x32xf32>
    %155 = arith.addf %128, %154 : vector<20x32xf32>
    %156 = arith.addf %14, %155 : vector<20x32xf32>
    %c0_57 = arith.constant 0 : index
    %c0_58 = arith.constant 0 : index
    %c0_59 = arith.constant 0 : index
    %157 = vector.load %arg11[%c0_57, %c0_58, %c0_59] : memref<2x1x32xf32, #tpu.memory_space<vmem>>, vector<1x1x32xf32>
    %158 = vector.shape_cast %157 : vector<1x1x32xf32> to vector<1x32xf32>
    %159 = vector.broadcast %158 : vector<1x32xf32> to vector<20x32xf32>
    %160 = arith.addf %156, %159 : vector<20x32xf32>
    %c0_60 = arith.constant 0 : index
    %c0_61 = arith.constant 0 : index
    %c0_62 = arith.constant 0 : index
    %161 = vector.load %arg12[%c0_60, %c0_61, %c0_62] : memref<2x1x32xf32, #tpu.memory_space<vmem>>, vector<1x1x32xf32>
    %162 = vector.shape_cast %161 : vector<1x1x32xf32> to vector<1x32xf32>
    %c0_63 = arith.constant 0 : index
    %c0_64 = arith.constant 0 : index
    %c0_65 = arith.constant 0 : index
    %163 = vector.load %arg13[%c0_63, %c0_64, %c0_65] : memref<2x1x32xf32, #tpu.memory_space<vmem>>, vector<1x1x32xf32>
    %164 = vector.shape_cast %163 : vector<1x1x32xf32> to vector<1x32xf32>
    %cst_66 = arith.constant dense<0.000000e+00> : vector<20xf32>
    %165 = vector.multi_reduction <add>, %160, %cst_66 [1] : vector<20x32xf32> to vector<20xf32>
    %166 = vector.shape_cast %165 : vector<20xf32> to vector<20x1xf32>
    %cst_67 = arith.constant 3.200000e+01 : f32
    %167 = vector.broadcast %cst_67 : f32 to vector<20x1xf32>
    %168 = arith.divf %166, %167 : vector<20x1xf32>
    %169 = vector.broadcast %168 : vector<20x1xf32> to vector<20x32xf32>
    %170 = arith.subf %160, %169 : vector<20x32xf32>
    %171 = arith.mulf %170, %170 : vector<20x32xf32>
    %cst_68 = arith.constant dense<0.000000e+00> : vector<20xf32>
    %172 = vector.multi_reduction <add>, %171, %cst_68 [1] : vector<20x32xf32> to vector<20xf32>
    %173 = vector.shape_cast %172 : vector<20xf32> to vector<20x1xf32>
    %cst_69 = arith.constant 3.200000e+01 : f32
    %174 = vector.broadcast %cst_69 : f32 to vector<20x1xf32>
    %175 = arith.divf %173, %174 : vector<20x1xf32>
    %cst_70 = arith.constant 9.99999974E-6 : f32
    %176 = vector.broadcast %cst_70 : f32 to vector<20x1xf32>
    %177 = arith.addf %175, %176 : vector<20x1xf32>
    %178 = math.rsqrt %177 : vector<20x1xf32>
    %179 = vector.broadcast %178 : vector<20x1xf32> to vector<20x32xf32>
    %180 = arith.mulf %170, %179 : vector<20x32xf32>
    %181 = vector.broadcast %162 : vector<1x32xf32> to vector<20x32xf32>
    %182 = arith.mulf %180, %181 : vector<20x32xf32>
    %183 = vector.broadcast %164 : vector<1x32xf32> to vector<20x32xf32>
    %184 = arith.addf %182, %183 : vector<20x32xf32>
    %c0_71 = arith.constant 0 : index
    %c0_72 = arith.constant 0 : index
    %c0_73 = arith.constant 0 : index
    %185 = vector.load %arg14[%c0_71, %c0_72, %c0_73] : memref<2x32x128xf32, #tpu.memory_space<vmem>>, vector<1x32x128xf32>
    %186 = vector.shape_cast %185 : vector<1x32x128xf32> to vector<32x128xf32>
    %187 = arith.truncf %184 : vector<20x32xf32> to vector<20x32xbf16>
    %188 = arith.truncf %186 : vector<32x128xf32> to vector<32x128xbf16>
    %cst_74 = arith.constant dense<0.000000e+00> : vector<20x128xf32>
    %189 = tpu.matmul %187, %188, %cst_74 {dimension_numbers = #tpu.dot_dimension_numbers<[1], [0], [0], [1], [0, 0, 1, 1], [], []>} : vector<20x32xbf16>, vector<32x128xbf16>, vector<20x128xf32> -> vector<20x128xf32>
    %c0_75 = arith.constant 0 : index
    %c0_76 = arith.constant 0 : index
    %c0_77 = arith.constant 0 : index
    %190 = vector.load %arg15[%c0_75, %c0_76, %c0_77] : memref<2x1x128xf32, #tpu.memory_space<vmem>>, vector<1x1x128xf32>
    %191 = vector.shape_cast %190 : vector<1x1x128xf32> to vector<1x128xf32>
    %192 = vector.broadcast %191 : vector<1x128xf32> to vector<20x128xf32>
    %193 = arith.addf %189, %192 : vector<20x128xf32>
    %194 = arith.mulf %193, %193 : vector<20x128xf32>
    %195 = arith.mulf %193, %194 : vector<20x128xf32>
    %cst_78 = arith.constant 4.471500e-02 : f32
    %196 = vector.broadcast %cst_78 : f32 to vector<20x128xf32>
    %197 = arith.mulf %196, %195 : vector<20x128xf32>
    %198 = arith.addf %193, %197 : vector<20x128xf32>
    %cst_79 = arith.constant 0.797884583 : f32
    %199 = vector.broadcast %cst_79 : f32 to vector<20x128xf32>
    %200 = arith.mulf %199, %198 : vector<20x128xf32>
    %201 = math.tanh %200 : vector<20x128xf32>
    %cst_80 = arith.constant 1.000000e+00 : f32
    %202 = vector.broadcast %cst_80 : f32 to vector<20x128xf32>
    %203 = arith.addf %202, %201 : vector<20x128xf32>
    %cst_81 = arith.constant 5.000000e-01 : f32
    %204 = vector.broadcast %cst_81 : f32 to vector<20x128xf32>
    %205 = arith.mulf %204, %203 : vector<20x128xf32>
    %206 = arith.mulf %193, %205 : vector<20x128xf32>
    %c0_82 = arith.constant 0 : index
    %c0_83 = arith.constant 0 : index
    %c0_84 = arith.constant 0 : index
    %207 = vector.load %arg16[%c0_82, %c0_83, %c0_84] : memref<2x128x32xf32, #tpu.memory_space<vmem>>, vector<1x128x32xf32>
    %208 = vector.shape_cast %207 : vector<1x128x32xf32> to vector<128x32xf32>
    %209 = arith.truncf %206 : vector<20x128xf32> to vector<20x128xbf16>
    %210 = arith.truncf %208 : vector<128x32xf32> to vector<128x32xbf16>
    %cst_85 = arith.constant dense<0.000000e+00> : vector<20x32xf32>
    %211 = tpu.matmul %209, %210, %cst_85 {dimension_numbers = #tpu.dot_dimension_numbers<[1], [0], [0], [1], [0, 0, 1, 1], [], []>} : vector<20x128xbf16>, vector<128x32xbf16>, vector<20x32xf32> -> vector<20x32xf32>
    %c0_86 = arith.constant 0 : index
    %c0_87 = arith.constant 0 : index
    %c0_88 = arith.constant 0 : index
    %212 = vector.load %arg17[%c0_86, %c0_87, %c0_88] : memref<2x1x32xf32, #tpu.memory_space<vmem>>, vector<1x1x32xf32>
    %213 = vector.shape_cast %212 : vector<1x1x32xf32> to vector<1x32xf32>
    %214 = vector.broadcast %213 : vector<1x32xf32> to vector<20x32xf32>
    %215 = arith.addf %211, %214 : vector<20x32xf32>
    %216 = arith.addf %160, %215 : vector<20x32xf32>
    %c1 = arith.constant 1 : index
    %c0_89 = arith.constant 0 : index
    %c0_90 = arith.constant 0 : index
    %217 = vector.load %arg7[%c1, %c0_89, %c0_90] : memref<2x1x32xf32, #tpu.memory_space<vmem>>, vector<1x1x32xf32>
    %218 = vector.shape_cast %217 : vector<1x1x32xf32> to vector<1x32xf32>
    %c1_91 = arith.constant 1 : index
    %c0_92 = arith.constant 0 : index
    %c0_93 = arith.constant 0 : index
    %219 = vector.load %arg8[%c1_91, %c0_92, %c0_93] : memref<2x1x32xf32, #tpu.memory_space<vmem>>, vector<1x1x32xf32>
    %220 = vector.shape_cast %219 : vector<1x1x32xf32> to vector<1x32xf32>
    %cst_94 = arith.constant dense<0.000000e+00> : vector<20xf32>
    %221 = vector.multi_reduction <add>, %216, %cst_94 [1] : vector<20x32xf32> to vector<20xf32>
    %222 = vector.shape_cast %221 : vector<20xf32> to vector<20x1xf32>
    %cst_95 = arith.constant 3.200000e+01 : f32
    %223 = vector.broadcast %cst_95 : f32 to vector<20x1xf32>
    %224 = arith.divf %222, %223 : vector<20x1xf32>
    %225 = vector.broadcast %224 : vector<20x1xf32> to vector<20x32xf32>
    %226 = arith.subf %216, %225 : vector<20x32xf32>
    %227 = arith.mulf %226, %226 : vector<20x32xf32>
    %cst_96 = arith.constant dense<0.000000e+00> : vector<20xf32>
    %228 = vector.multi_reduction <add>, %227, %cst_96 [1] : vector<20x32xf32> to vector<20xf32>
    %229 = vector.shape_cast %228 : vector<20xf32> to vector<20x1xf32>
    %cst_97 = arith.constant 3.200000e+01 : f32
    %230 = vector.broadcast %cst_97 : f32 to vector<20x1xf32>
    %231 = arith.divf %229, %230 : vector<20x1xf32>
    %cst_98 = arith.constant 9.99999974E-6 : f32
    %232 = vector.broadcast %cst_98 : f32 to vector<20x1xf32>
    %233 = arith.addf %231, %232 : vector<20x1xf32>
    %234 = math.rsqrt %233 : vector<20x1xf32>
    %235 = vector.broadcast %234 : vector<20x1xf32> to vector<20x32xf32>
    %236 = arith.mulf %226, %235 : vector<20x32xf32>
    %237 = vector.broadcast %218 : vector<1x32xf32> to vector<20x32xf32>
    %238 = arith.mulf %236, %237 : vector<20x32xf32>
    %239 = vector.broadcast %220 : vector<1x32xf32> to vector<20x32xf32>
    %240 = arith.addf %238, %239 : vector<20x32xf32>
    %c1_99 = arith.constant 1 : index
    %c0_100 = arith.constant 0 : index
    %c0_101 = arith.constant 0 : index
    %241 = vector.load %arg9[%c1_99, %c0_100, %c0_101] : memref<2x32x96xf32, #tpu.memory_space<vmem>>, vector<1x32x96xf32>
    %242 = vector.shape_cast %241 : vector<1x32x96xf32> to vector<32x96xf32>
    %243 = arith.truncf %240 : vector<20x32xf32> to vector<20x32xbf16>
    %244 = arith.truncf %242 : vector<32x96xf32> to vector<32x96xbf16>
    %cst_102 = arith.constant dense<0.000000e+00> : vector<20x96xf32>
    %245 = tpu.matmul %243, %244, %cst_102 {dimension_numbers = #tpu.dot_dimension_numbers<[1], [0], [0], [1], [0, 0, 1, 1], [], []>} : vector<20x32xbf16>, vector<32x96xbf16>, vector<20x96xf32> -> vector<20x96xf32>
    %c1_103 = arith.constant 1 : index
    %c0_104 = arith.constant 0 : index
    %c0_105 = arith.constant 0 : index
    %246 = vector.load %arg10[%c1_103, %c0_104, %c0_105] : memref<2x32x32xf32, #tpu.memory_space<vmem>>, vector<1x32x32xf32>
    %247 = vector.shape_cast %246 : vector<1x32x32xf32> to vector<32x32xf32>
    %cst_106 = arith.constant 0.000000e+00 : f32
    %248 = vector.broadcast %cst_106 : f32 to vector<20x32xf32>
    %249 = vector.extract_strided_slice %245 {offsets = [0, 0], sizes = [20, 8], strides = [1, 1]} : vector<20x96xf32> to vector<20x8xf32>
    %250 = vector.extract_strided_slice %245 {offsets = [0, 32], sizes = [20, 8], strides = [1, 1]} : vector<20x96xf32> to vector<20x8xf32>
    %251 = vector.extract_strided_slice %245 {offsets = [0, 64], sizes = [20, 8], strides = [1, 1]} : vector<20x96xf32> to vector<20x8xf32>
    %252 = arith.truncf %249 : vector<20x8xf32> to vector<20x8xbf16>
    %253 = arith.truncf %250 : vector<20x8xf32> to vector<20x8xbf16>
    %cst_107 = arith.constant dense<0.000000e+00> : vector<20x20xf32>
    %254 = tpu.matmul %252, %253, %cst_107 {dimension_numbers = #tpu.dot_dimension_numbers<[1], [1], [0], [0], [0, 0, 1, 0], [], []>} : vector<20x8xbf16>, vector<20x8xbf16>, vector<20x20xf32> -> vector<20x20xf32>
    %cst_108 = arith.constant 0.353553385 : f32
    %255 = vector.broadcast %cst_108 : f32 to vector<20x20xf32>
    %256 = arith.mulf %254, %255 : vector<20x20xf32>
    %257 = arith.addf %256, %15 : vector<20x20xf32>
    %cst_109 = arith.constant dense<0xFF800000> : vector<20xf32>
    %258 = vector.multi_reduction <maximumf>, %257, %cst_109 [1] : vector<20x20xf32> to vector<20xf32>
    %259 = vector.shape_cast %258 : vector<20xf32> to vector<20x1xf32>
    %260 = vector.broadcast %259 : vector<20x1xf32> to vector<20x20xf32>
    %261 = arith.subf %257, %260 : vector<20x20xf32>
    %262 = math.exp %261 : vector<20x20xf32>
    %cst_110 = arith.constant dense<0.000000e+00> : vector<20xf32>
    %263 = vector.multi_reduction <add>, %262, %cst_110 [1] : vector<20x20xf32> to vector<20xf32>
    %264 = vector.shape_cast %263 : vector<20xf32> to vector<20x1xf32>
    %265 = tpu.reciprocal %264 {approx = true} : vector<20x1xf32> -> vector<20x1xf32>
    %266 = vector.broadcast %265 : vector<20x1xf32> to vector<20x20xf32>
    %267 = arith.mulf %262, %266 : vector<20x20xf32>
    %268 = arith.truncf %267 : vector<20x20xf32> to vector<20x20xbf16>
    %269 = arith.truncf %251 : vector<20x8xf32> to vector<20x8xbf16>
    %cst_111 = arith.constant dense<0.000000e+00> : vector<20x8xf32>
    %270 = tpu.matmul %268, %269, %cst_111 {dimension_numbers = #tpu.dot_dimension_numbers<[1], [0], [0], [1], [0, 0, 1, 1], [], []>} : vector<20x20xbf16>, vector<20x8xbf16>, vector<20x8xf32> -> vector<20x8xf32>
    %271 = vector.extract_strided_slice %247 {offsets = [0, 0], sizes = [8, 32], strides = [1, 1]} : vector<32x32xf32> to vector<8x32xf32>
    %272 = arith.truncf %270 : vector<20x8xf32> to vector<20x8xbf16>
    %273 = arith.truncf %271 : vector<8x32xf32> to vector<8x32xbf16>
    %cst_112 = arith.constant dense<0.000000e+00> : vector<20x32xf32>
    %274 = tpu.matmul %272, %273, %cst_112 {dimension_numbers = #tpu.dot_dimension_numbers<[1], [0], [0], [1], [0, 0, 1, 1], [], []>} : vector<20x8xbf16>, vector<8x32xbf16>, vector<20x32xf32> -> vector<20x32xf32>
    %275 = arith.addf %248, %274 : vector<20x32xf32>
    %276 = vector.extract_strided_slice %245 {offsets = [0, 8], sizes = [20, 8], strides = [1, 1]} : vector<20x96xf32> to vector<20x8xf32>
    %277 = vector.extract_strided_slice %245 {offsets = [0, 40], sizes = [20, 8], strides = [1, 1]} : vector<20x96xf32> to vector<20x8xf32>
    %278 = vector.extract_strided_slice %245 {offsets = [0, 72], sizes = [20, 8], strides = [1, 1]} : vector<20x96xf32> to vector<20x8xf32>
    %279 = arith.truncf %276 : vector<20x8xf32> to vector<20x8xbf16>
    %280 = arith.truncf %277 : vector<20x8xf32> to vector<20x8xbf16>
    %cst_113 = arith.constant dense<0.000000e+00> : vector<20x20xf32>
    %281 = tpu.matmul %279, %280, %cst_113 {dimension_numbers = #tpu.dot_dimension_numbers<[1], [1], [0], [0], [0, 0, 1, 0], [], []>} : vector<20x8xbf16>, vector<20x8xbf16>, vector<20x20xf32> -> vector<20x20xf32>
    %cst_114 = arith.constant 0.353553385 : f32
    %282 = vector.broadcast %cst_114 : f32 to vector<20x20xf32>
    %283 = arith.mulf %281, %282 : vector<20x20xf32>
    %284 = arith.addf %283, %15 : vector<20x20xf32>
    %cst_115 = arith.constant dense<0xFF800000> : vector<20xf32>
    %285 = vector.multi_reduction <maximumf>, %284, %cst_115 [1] : vector<20x20xf32> to vector<20xf32>
    %286 = vector.shape_cast %285 : vector<20xf32> to vector<20x1xf32>
    %287 = vector.broadcast %286 : vector<20x1xf32> to vector<20x20xf32>
    %288 = arith.subf %284, %287 : vector<20x20xf32>
    %289 = math.exp %288 : vector<20x20xf32>
    %cst_116 = arith.constant dense<0.000000e+00> : vector<20xf32>
    %290 = vector.multi_reduction <add>, %289, %cst_116 [1] : vector<20x20xf32> to vector<20xf32>
    %291 = vector.shape_cast %290 : vector<20xf32> to vector<20x1xf32>
    %292 = tpu.reciprocal %291 {approx = true} : vector<20x1xf32> -> vector<20x1xf32>
    %293 = vector.broadcast %292 : vector<20x1xf32> to vector<20x20xf32>
    %294 = arith.mulf %289, %293 : vector<20x20xf32>
    %295 = arith.truncf %294 : vector<20x20xf32> to vector<20x20xbf16>
    %296 = arith.truncf %278 : vector<20x8xf32> to vector<20x8xbf16>
    %cst_117 = arith.constant dense<0.000000e+00> : vector<20x8xf32>
    %297 = tpu.matmul %295, %296, %cst_117 {dimension_numbers = #tpu.dot_dimension_numbers<[1], [0], [0], [1], [0, 0, 1, 1], [], []>} : vector<20x20xbf16>, vector<20x8xbf16>, vector<20x8xf32> -> vector<20x8xf32>
    %298 = vector.extract_strided_slice %247 {offsets = [8, 0], sizes = [8, 32], strides = [1, 1]} : vector<32x32xf32> to vector<8x32xf32>
    %299 = arith.truncf %297 : vector<20x8xf32> to vector<20x8xbf16>
    %300 = arith.truncf %298 : vector<8x32xf32> to vector<8x32xbf16>
    %cst_118 = arith.constant dense<0.000000e+00> : vector<20x32xf32>
    %301 = tpu.matmul %299, %300, %cst_118 {dimension_numbers = #tpu.dot_dimension_numbers<[1], [0], [0], [1], [0, 0, 1, 1], [], []>} : vector<20x8xbf16>, vector<8x32xbf16>, vector<20x32xf32> -> vector<20x32xf32>
    %302 = arith.addf %275, %301 : vector<20x32xf32>
    %303 = vector.extract_strided_slice %245 {offsets = [0, 16], sizes = [20, 8], strides = [1, 1]} : vector<20x96xf32> to vector<20x8xf32>
    %304 = vector.extract_strided_slice %245 {offsets = [0, 48], sizes = [20, 8], strides = [1, 1]} : vector<20x96xf32> to vector<20x8xf32>
    %305 = vector.extract_strided_slice %245 {offsets = [0, 80], sizes = [20, 8], strides = [1, 1]} : vector<20x96xf32> to vector<20x8xf32>
    %306 = arith.truncf %303 : vector<20x8xf32> to vector<20x8xbf16>
    %307 = arith.truncf %304 : vector<20x8xf32> to vector<20x8xbf16>
    %cst_119 = arith.constant dense<0.000000e+00> : vector<20x20xf32>
    %308 = tpu.matmul %306, %307, %cst_119 {dimension_numbers = #tpu.dot_dimension_numbers<[1], [1], [0], [0], [0, 0, 1, 0], [], []>} : vector<20x8xbf16>, vector<20x8xbf16>, vector<20x20xf32> -> vector<20x20xf32>
    %cst_120 = arith.constant 0.353553385 : f32
    %309 = vector.broadcast %cst_120 : f32 to vector<20x20xf32>
    %310 = arith.mulf %308, %309 : vector<20x20xf32>
    %311 = arith.addf %310, %15 : vector<20x20xf32>
    %cst_121 = arith.constant dense<0xFF800000> : vector<20xf32>
    %312 = vector.multi_reduction <maximumf>, %311, %cst_121 [1] : vector<20x20xf32> to vector<20xf32>
    %313 = vector.shape_cast %312 : vector<20xf32> to vector<20x1xf32>
    %314 = vector.broadcast %313 : vector<20x1xf32> to vector<20x20xf32>
    %315 = arith.subf %311, %314 : vector<20x20xf32>
    %316 = math.exp %315 : vector<20x20xf32>
    %cst_122 = arith.constant dense<0.000000e+00> : vector<20xf32>
    %317 = vector.multi_reduction <add>, %316, %cst_122 [1] : vector<20x20xf32> to vector<20xf32>
    %318 = vector.shape_cast %317 : vector<20xf32> to vector<20x1xf32>
    %319 = tpu.reciprocal %318 {approx = true} : vector<20x1xf32> -> vector<20x1xf32>
    %320 = vector.broadcast %319 : vector<20x1xf32> to vector<20x20xf32>
    %321 = arith.mulf %316, %320 : vector<20x20xf32>
    %322 = arith.truncf %321 : vector<20x20xf32> to vector<20x20xbf16>
    %323 = arith.truncf %305 : vector<20x8xf32> to vector<20x8xbf16>
    %cst_123 = arith.constant dense<0.000000e+00> : vector<20x8xf32>
    %324 = tpu.matmul %322, %323, %cst_123 {dimension_numbers = #tpu.dot_dimension_numbers<[1], [0], [0], [1], [0, 0, 1, 1], [], []>} : vector<20x20xbf16>, vector<20x8xbf16>, vector<20x8xf32> -> vector<20x8xf32>
    %325 = vector.extract_strided_slice %247 {offsets = [16, 0], sizes = [8, 32], strides = [1, 1]} : vector<32x32xf32> to vector<8x32xf32>
    %326 = arith.truncf %324 : vector<20x8xf32> to vector<20x8xbf16>
    %327 = arith.truncf %325 : vector<8x32xf32> to vector<8x32xbf16>
    %cst_124 = arith.constant dense<0.000000e+00> : vector<20x32xf32>
    %328 = tpu.matmul %326, %327, %cst_124 {dimension_numbers = #tpu.dot_dimension_numbers<[1], [0], [0], [1], [0, 0, 1, 1], [], []>} : vector<20x8xbf16>, vector<8x32xbf16>, vector<20x32xf32> -> vector<20x32xf32>
    %329 = arith.addf %302, %328 : vector<20x32xf32>
    %330 = vector.extract_strided_slice %245 {offsets = [0, 24], sizes = [20, 8], strides = [1, 1]} : vector<20x96xf32> to vector<20x8xf32>
    %331 = vector.extract_strided_slice %245 {offsets = [0, 56], sizes = [20, 8], strides = [1, 1]} : vector<20x96xf32> to vector<20x8xf32>
    %332 = vector.extract_strided_slice %245 {offsets = [0, 88], sizes = [20, 8], strides = [1, 1]} : vector<20x96xf32> to vector<20x8xf32>
    %333 = arith.truncf %330 : vector<20x8xf32> to vector<20x8xbf16>
    %334 = arith.truncf %331 : vector<20x8xf32> to vector<20x8xbf16>
    %cst_125 = arith.constant dense<0.000000e+00> : vector<20x20xf32>
    %335 = tpu.matmul %333, %334, %cst_125 {dimension_numbers = #tpu.dot_dimension_numbers<[1], [1], [0], [0], [0, 0, 1, 0], [], []>} : vector<20x8xbf16>, vector<20x8xbf16>, vector<20x20xf32> -> vector<20x20xf32>
    %cst_126 = arith.constant 0.353553385 : f32
    %336 = vector.broadcast %cst_126 : f32 to vector<20x20xf32>
    %337 = arith.mulf %335, %336 : vector<20x20xf32>
    %338 = arith.addf %337, %15 : vector<20x20xf32>
    %cst_127 = arith.constant dense<0xFF800000> : vector<20xf32>
    %339 = vector.multi_reduction <maximumf>, %338, %cst_127 [1] : vector<20x20xf32> to vector<20xf32>
    %340 = vector.shape_cast %339 : vector<20xf32> to vector<20x1xf32>
    %341 = vector.broadcast %340 : vector<20x1xf32> to vector<20x20xf32>
    %342 = arith.subf %338, %341 : vector<20x20xf32>
    %343 = math.exp %342 : vector<20x20xf32>
    %cst_128 = arith.constant dense<0.000000e+00> : vector<20xf32>
    %344 = vector.multi_reduction <add>, %343, %cst_128 [1] : vector<20x20xf32> to vector<20xf32>
    %345 = vector.shape_cast %344 : vector<20xf32> to vector<20x1xf32>
    %346 = tpu.reciprocal %345 {approx = true} : vector<20x1xf32> -> vector<20x1xf32>
    %347 = vector.broadcast %346 : vector<20x1xf32> to vector<20x20xf32>
    %348 = arith.mulf %343, %347 : vector<20x20xf32>
    %349 = arith.truncf %348 : vector<20x20xf32> to vector<20x20xbf16>
    %350 = arith.truncf %332 : vector<20x8xf32> to vector<20x8xbf16>
    %cst_129 = arith.constant dense<0.000000e+00> : vector<20x8xf32>
    %351 = tpu.matmul %349, %350, %cst_129 {dimension_numbers = #tpu.dot_dimension_numbers<[1], [0], [0], [1], [0, 0, 1, 1], [], []>} : vector<20x20xbf16>, vector<20x8xbf16>, vector<20x8xf32> -> vector<20x8xf32>
    %352 = vector.extract_strided_slice %247 {offsets = [24, 0], sizes = [8, 32], strides = [1, 1]} : vector<32x32xf32> to vector<8x32xf32>
    %353 = arith.truncf %351 : vector<20x8xf32> to vector<20x8xbf16>
    %354 = arith.truncf %352 : vector<8x32xf32> to vector<8x32xbf16>
    %cst_130 = arith.constant dense<0.000000e+00> : vector<20x32xf32>
    %355 = tpu.matmul %353, %354, %cst_130 {dimension_numbers = #tpu.dot_dimension_numbers<[1], [0], [0], [1], [0, 0, 1, 1], [], []>} : vector<20x8xbf16>, vector<8x32xbf16>, vector<20x32xf32> -> vector<20x32xf32>
    %356 = arith.addf %329, %355 : vector<20x32xf32>
    %357 = arith.addf %216, %356 : vector<20x32xf32>
    %c1_131 = arith.constant 1 : index
    %c0_132 = arith.constant 0 : index
    %c0_133 = arith.constant 0 : index
    %358 = vector.load %arg11[%c1_131, %c0_132, %c0_133] : memref<2x1x32xf32, #tpu.memory_space<vmem>>, vector<1x1x32xf32>
    %359 = vector.shape_cast %358 : vector<1x1x32xf32> to vector<1x32xf32>
    %360 = vector.broadcast %359 : vector<1x32xf32> to vector<20x32xf32>
    %361 = arith.addf %357, %360 : vector<20x32xf32>
    %c1_134 = arith.constant 1 : index
    %c0_135 = arith.constant 0 : index
    %c0_136 = arith.constant 0 : index
    %362 = vector.load %arg12[%c1_134, %c0_135, %c0_136] : memref<2x1x32xf32, #tpu.memory_space<vmem>>, vector<1x1x32xf32>
    %363 = vector.shape_cast %362 : vector<1x1x32xf32> to vector<1x32xf32>
    %c1_137 = arith.constant 1 : index
    %c0_138 = arith.constant 0 : index
    %c0_139 = arith.constant 0 : index
    %364 = vector.load %arg13[%c1_137, %c0_138, %c0_139] : memref<2x1x32xf32, #tpu.memory_space<vmem>>, vector<1x1x32xf32>
    %365 = vector.shape_cast %364 : vector<1x1x32xf32> to vector<1x32xf32>
    %cst_140 = arith.constant dense<0.000000e+00> : vector<20xf32>
    %366 = vector.multi_reduction <add>, %361, %cst_140 [1] : vector<20x32xf32> to vector<20xf32>
    %367 = vector.shape_cast %366 : vector<20xf32> to vector<20x1xf32>
    %cst_141 = arith.constant 3.200000e+01 : f32
    %368 = vector.broadcast %cst_141 : f32 to vector<20x1xf32>
    %369 = arith.divf %367, %368 : vector<20x1xf32>
    %370 = vector.broadcast %369 : vector<20x1xf32> to vector<20x32xf32>
    %371 = arith.subf %361, %370 : vector<20x32xf32>
    %372 = arith.mulf %371, %371 : vector<20x32xf32>
    %cst_142 = arith.constant dense<0.000000e+00> : vector<20xf32>
    %373 = vector.multi_reduction <add>, %372, %cst_142 [1] : vector<20x32xf32> to vector<20xf32>
    %374 = vector.shape_cast %373 : vector<20xf32> to vector<20x1xf32>
    %cst_143 = arith.constant 3.200000e+01 : f32
    %375 = vector.broadcast %cst_143 : f32 to vector<20x1xf32>
    %376 = arith.divf %374, %375 : vector<20x1xf32>
    %cst_144 = arith.constant 9.99999974E-6 : f32
    %377 = vector.broadcast %cst_144 : f32 to vector<20x1xf32>
    %378 = arith.addf %376, %377 : vector<20x1xf32>
    %379 = math.rsqrt %378 : vector<20x1xf32>
    %380 = vector.broadcast %379 : vector<20x1xf32> to vector<20x32xf32>
    %381 = arith.mulf %371, %380 : vector<20x32xf32>
    %382 = vector.broadcast %363 : vector<1x32xf32> to vector<20x32xf32>
    %383 = arith.mulf %381, %382 : vector<20x32xf32>
    %384 = vector.broadcast %365 : vector<1x32xf32> to vector<20x32xf32>
    %385 = arith.addf %383, %384 : vector<20x32xf32>
    %c1_145 = arith.constant 1 : index
    %c0_146 = arith.constant 0 : index
    %c0_147 = arith.constant 0 : index
    %386 = vector.load %arg14[%c1_145, %c0_146, %c0_147] : memref<2x32x128xf32, #tpu.memory_space<vmem>>, vector<1x32x128xf32>
    %387 = vector.shape_cast %386 : vector<1x32x128xf32> to vector<32x128xf32>
    %388 = arith.truncf %385 : vector<20x32xf32> to vector<20x32xbf16>
    %389 = arith.truncf %387 : vector<32x128xf32> to vector<32x128xbf16>
    %cst_148 = arith.constant dense<0.000000e+00> : vector<20x128xf32>
    %390 = tpu.matmul %388, %389, %cst_148 {dimension_numbers = #tpu.dot_dimension_numbers<[1], [0], [0], [1], [0, 0, 1, 1], [], []>} : vector<20x32xbf16>, vector<32x128xbf16>, vector<20x128xf32> -> vector<20x128xf32>
    %c1_149 = arith.constant 1 : index
    %c0_150 = arith.constant 0 : index
    %c0_151 = arith.constant 0 : index
    %391 = vector.load %arg15[%c1_149, %c0_150, %c0_151] : memref<2x1x128xf32, #tpu.memory_space<vmem>>, vector<1x1x128xf32>
    %392 = vector.shape_cast %391 : vector<1x1x128xf32> to vector<1x128xf32>
    %393 = vector.broadcast %392 : vector<1x128xf32> to vector<20x128xf32>
    %394 = arith.addf %390, %393 : vector<20x128xf32>
    %395 = arith.mulf %394, %394 : vector<20x128xf32>
    %396 = arith.mulf %394, %395 : vector<20x128xf32>
    %cst_152 = arith.constant 4.471500e-02 : f32
    %397 = vector.broadcast %cst_152 : f32 to vector<20x128xf32>
    %398 = arith.mulf %397, %396 : vector<20x128xf32>
    %399 = arith.addf %394, %398 : vector<20x128xf32>
    %cst_153 = arith.constant 0.797884583 : f32
    %400 = vector.broadcast %cst_153 : f32 to vector<20x128xf32>
    %401 = arith.mulf %400, %399 : vector<20x128xf32>
    %402 = math.tanh %401 : vector<20x128xf32>
    %cst_154 = arith.constant 1.000000e+00 : f32
    %403 = vector.broadcast %cst_154 : f32 to vector<20x128xf32>
    %404 = arith.addf %403, %402 : vector<20x128xf32>
    %cst_155 = arith.constant 5.000000e-01 : f32
    %405 = vector.broadcast %cst_155 : f32 to vector<20x128xf32>
    %406 = arith.mulf %405, %404 : vector<20x128xf32>
    %407 = arith.mulf %394, %406 : vector<20x128xf32>
    %c1_156 = arith.constant 1 : index
    %c0_157 = arith.constant 0 : index
    %c0_158 = arith.constant 0 : index
    %408 = vector.load %arg16[%c1_156, %c0_157, %c0_158] : memref<2x128x32xf32, #tpu.memory_space<vmem>>, vector<1x128x32xf32>
    %409 = vector.shape_cast %408 : vector<1x128x32xf32> to vector<128x32xf32>
    %410 = arith.truncf %407 : vector<20x128xf32> to vector<20x128xbf16>
    %411 = arith.truncf %409 : vector<128x32xf32> to vector<128x32xbf16>
    %cst_159 = arith.constant dense<0.000000e+00> : vector<20x32xf32>
    %412 = tpu.matmul %410, %411, %cst_159 {dimension_numbers = #tpu.dot_dimension_numbers<[1], [0], [0], [1], [0, 0, 1, 1], [], []>} : vector<20x128xbf16>, vector<128x32xbf16>, vector<20x32xf32> -> vector<20x32xf32>
    %c1_160 = arith.constant 1 : index
    %c0_161 = arith.constant 0 : index
    %c0_162 = arith.constant 0 : index
    %413 = vector.load %arg17[%c1_160, %c0_161, %c0_162] : memref<2x1x32xf32, #tpu.memory_space<vmem>>, vector<1x1x32xf32>
    %414 = vector.shape_cast %413 : vector<1x1x32xf32> to vector<1x32xf32>
    %415 = vector.broadcast %414 : vector<1x32xf32> to vector<20x32xf32>
    %416 = arith.addf %412, %415 : vector<20x32xf32>
    %417 = arith.addf %361, %416 : vector<20x32xf32>
    %c0_163 = arith.constant 0 : index
    %c0_164 = arith.constant 0 : index
    %418 = vector.load %arg18[%c0_163, %c0_164] : memref<1x32xf32, #tpu.memory_space<vmem>>, vector<1x32xf32>
    %c0_165 = arith.constant 0 : index
    %c0_166 = arith.constant 0 : index
    %419 = vector.load %arg19[%c0_165, %c0_166] : memref<1x32xf32, #tpu.memory_space<vmem>>, vector<1x32xf32>
    %cst_167 = arith.constant dense<0.000000e+00> : vector<20xf32>
    %420 = vector.multi_reduction <add>, %417, %cst_167 [1] : vector<20x32xf32> to vector<20xf32>
    %421 = vector.shape_cast %420 : vector<20xf32> to vector<20x1xf32>
    %cst_168 = arith.constant 3.200000e+01 : f32
    %422 = vector.broadcast %cst_168 : f32 to vector<20x1xf32>
    %423 = arith.divf %421, %422 : vector<20x1xf32>
    %424 = vector.broadcast %423 : vector<20x1xf32> to vector<20x32xf32>
    %425 = arith.subf %417, %424 : vector<20x32xf32>
    %426 = arith.mulf %425, %425 : vector<20x32xf32>
    %cst_169 = arith.constant dense<0.000000e+00> : vector<20xf32>
    %427 = vector.multi_reduction <add>, %426, %cst_169 [1] : vector<20x32xf32> to vector<20xf32>
    %428 = vector.shape_cast %427 : vector<20xf32> to vector<20x1xf32>
    %cst_170 = arith.constant 3.200000e+01 : f32
    %429 = vector.broadcast %cst_170 : f32 to vector<20x1xf32>
    %430 = arith.divf %428, %429 : vector<20x1xf32>
    %cst_171 = arith.constant 9.99999974E-6 : f32
    %431 = vector.broadcast %cst_171 : f32 to vector<20x1xf32>
    %432 = arith.addf %430, %431 : vector<20x1xf32>
    %433 = math.rsqrt %432 : vector<20x1xf32>
    %434 = vector.broadcast %433 : vector<20x1xf32> to vector<20x32xf32>
    %435 = arith.mulf %425, %434 : vector<20x32xf32>
    %436 = vector.broadcast %418 : vector<1x32xf32> to vector<20x32xf32>
    %437 = arith.mulf %435, %436 : vector<20x32xf32>
    %438 = vector.broadcast %419 : vector<1x32xf32> to vector<20x32xf32>
    %439 = arith.addf %437, %438 : vector<20x32xf32>
    %440 = vector.extract_strided_slice %439 {offsets = [16, 0], sizes = [4, 32], strides = [1, 1]} : vector<20x32xf32> to vector<4x32xf32>
    %c0_172 = arith.constant 0 : index
    %c0_173 = arith.constant 0 : index
    %c0_174 = arith.constant 0 : index
    %441 = vector.load %arg20[%c0_172, %c0_173, %c0_174] : memref<1x4x32xf32, #tpu.memory_space<vmem>>, vector<1x4x32xf32>
    %442 = vector.shape_cast %441 : vector<1x4x32xf32> to vector<4x32xf32>
    %443 = vector.shape_cast %440 : vector<4x32xf32> to vector<1x4x32xf32>
    tpu.vector_store %arg20[%c0_172, %c0_173, %c0_174], %443 {strides = array<i32>} : memref<1x4x32xf32, #tpu.memory_space<vmem>>, vector<1x4x32xf32>,
    return
  }
  func.func @transform_0(%arg0: i32) -> (i32, i32, i32) {
    %c0_i32 = arith.constant 0 : i32
    %c0_i32_0 = arith.constant 0 : i32
    %c0_i32_1 = arith.constant 0 : i32
    return %arg0, %c0_i32, %c0_i32_0 : i32, i32, i32
  }
  func.func @transform_1(%arg0: i32) -> (i32, i32) {
    %c0_i32 = arith.constant 0 : i32
    %c0_i32_0 = arith.constant 0 : i32
    %c0_i32_1 = arith.constant 0 : i32
    return %c0_i32, %c0_i32_0 : i32, i32
  }
  func.func @transform_2(%arg0: i32) -> (i32, i32) {
    %c0_i32 = arith.constant 0 : i32
    %c0_i32_0 = arith.constant 0 : i32
    %c0_i32_1 = arith.constant 0 : i32
    return %c0_i32, %c0_i32_0 : i32, i32
  }
  func.func @transform_3(%arg0: i32) -> (i32, i32, i32) {
    %c0_i32 = arith.constant 0 : i32
    %c0_i32_0 = arith.constant 0 : i32
    %c0_i32_1 = arith.constant 0 : i32
    return %arg0, %c0_i32, %c0_i32_0 : i32, i32, i32
  }
  func.func @transform_4(%arg0: i32) -> (i32, i32, i32) {
    %c0_i32 = arith.constant 0 : i32
    %c0_i32_0 = arith.constant 0 : i32
    %c0_i32_1 = arith.constant 0 : i32
    return %arg0, %c0_i32, %c0_i32_0 : i32, i32, i32
  }
  func.func @transform_5(%arg0: i32) -> (i32, i32) {
    %c0_i32 = arith.constant 0 : i32
    %c0_i32_0 = arith.constant 0 : i32
    %c0_i32_1 = arith.constant 0 : i32
    return %c0_i32, %c0_i32_0 : i32, i32
  }
  func.func @transform_6(%arg0: i32) -> (i32, i32, i32) {
    %c0_i32 = arith.constant 0 : i32
    %c0_i32_0 = arith.constant 0 : i32
    %c0_i32_1 = arith.constant 0 : i32
    %c0_i32_2 = arith.constant 0 : i32
    return %c0_i32, %c0_i32_0, %c0_i32_1 : i32, i32, i32
  }
  func.func @transform_7(%arg0: i32) -> (i32, i32, i32) {
    %c0_i32 = arith.constant 0 : i32
    %c0_i32_0 = arith.constant 0 : i32
    %c0_i32_1 = arith.constant 0 : i32
    %c0_i32_2 = arith.constant 0 : i32
    return %c0_i32, %c0_i32_0, %c0_i32_1 : i32, i32, i32
  }
  func.func @transform_8(%arg0: i32) -> (i32, i32, i32) {
    %c0_i32 = arith.constant 0 : i32
    %c0_i32_0 = arith.constant 0 : i32
    %c0_i32_1 = arith.constant 0 : i32
    %c0_i32_2 = arith.constant 0 : i32
    return %c0_i32, %c0_i32_0, %c0_i32_1 : i32, i32, i32
  }
  func.func @transform_9(%arg0: i32) -> (i32, i32, i32) {
    %c0_i32 = arith.constant 0 : i32
    %c0_i32_0 = arith.constant 0 : i32
    %c0_i32_1 = arith.constant 0 : i32
    %c0_i32_2 = arith.constant 0 : i32
    return %c0_i32, %c0_i32_0, %c0_i32_1 : i32, i32, i32
  }
  func.func @transform_10(%arg0: i32) -> (i32, i32, i32) {
    %c0_i32 = arith.constant 0 : i32
    %c0_i32_0 = arith.constant 0 : i32
    %c0_i32_1 = arith.constant 0 : i32
    %c0_i32_2 = arith.constant 0 : i32
    return %c0_i32, %c0_i32_0, %c0_i32_1 : i32, i32, i32
  }
  func.func @transform_11(%arg0: i32) -> (i32, i32, i32) {
    %c0_i32 = arith.constant 0 : i32
    %c0_i32_0 = arith.constant 0 : i32
    %c0_i32_1 = arith.constant 0 : i32
    %c0_i32_2 = arith.constant 0 : i32
    return %c0_i32, %c0_i32_0, %c0_i32_1 : i32, i32, i32
  }
  func.func @transform_12(%arg0: i32) -> (i32, i32, i32) {
    %c0_i32 = arith.constant 0 : i32
    %c0_i32_0 = arith.constant 0 : i32
    %c0_i32_1 = arith.constant 0 : i32
    %c0_i32_2 = arith.constant 0 : i32
    return %c0_i32, %c0_i32_0, %c0_i32_1 : i32, i32, i32
  }
  func.func @transform_13(%arg0: i32) -> (i32, i32, i32) {
    %c0_i32 = arith.constant 0 : i32
    %c0_i32_0 = arith.constant 0 : i32
    %c0_i32_1 = arith.constant 0 : i32
    %c0_i32_2 = arith.constant 0 : i32
    return %c0_i32, %c0_i32_0, %c0_i32_1 : i32, i32, i32
  }
  func.func @transform_14(%arg0: i32) -> (i32, i32, i32) {
    %c0_i32 = arith.constant 0 : i32
    %c0_i32_0 = arith.constant 0 : i32
    %c0_i32_1 = arith.constant 0 : i32
    %c0_i32_2 = arith.constant 0 : i32
    return %c0_i32, %c0_i32_0, %c0_i32_1 : i32, i32, i32
  }
  func.func @transform_15(%arg0: i32) -> (i32, i32, i32) {
    %c0_i32 = arith.constant 0 : i32
    %c0_i32_0 = arith.constant 0 : i32
    %c0_i32_1 = arith.constant 0 : i32
    %c0_i32_2 = arith.constant 0 : i32
    return %c0_i32, %c0_i32_0, %c0_i32_1 : i32, i32, i32
  }
  func.func @transform_16(%arg0: i32) -> (i32, i32, i32) {
    %c0_i32 = arith.constant 0 : i32
    %c0_i32_0 = arith.constant 0 : i32
    %c0_i32_1 = arith.constant 0 : i32
    %c0_i32_2 = arith.constant 0 : i32
    return %c0_i32, %c0_i32_0, %c0_i32_1 : i32, i32, i32
  }
  func.func @transform_17(%arg0: i32) -> (i32, i32) {
    %c0_i32 = arith.constant 0 : i32
    %c0_i32_0 = arith.constant 0 : i32
    %c0_i32_1 = arith.constant 0 : i32
    return %c0_i32, %c0_i32_0 : i32, i32
  }
  func.func @transform_18(%arg0: i32) -> (i32, i32) {
    %c0_i32 = arith.constant 0 : i32
    %c0_i32_0 = arith.constant 0 : i32
    %c0_i32_1 = arith.constant 0 : i32
    return %c0_i32, %c0_i32_0 : i32, i32
  }
  func.func @transform_19(%arg0: i32) -> (i32, i32, i32) {
    %c0_i32 = arith.constant 0 : i32
    %c0_i32_0 = arith.constant 0 : i32
    %c0_i32_1 = arith.constant 0 : i32
    return %arg0, %c0_i32, %c0_i32_0 : i32, i32, i32
  }
}

</mosaic_0001>

<llo_original>
// kernel: traffic_vivit_forward.3
$region0: #{traffic_vivit_forward.3}
  #allocation0 [shape = 'u32[]', space=smem, size = 0x4, offset = 0x4, fixed_abs, tag = 'smem constant byte address 0x4 - core index']
  #allocation1 [shape = 'u32[144,128]{1,0:T(1,128)}', space=vmem, size = 0x12000, scoped, tag = 'internal scratch']
  %s0 = inlined_call_operand.vmem [shape: f32[2,4,32], index: 0, kind: input, shape index: {}]
  %s1 = inlined_call_operand.vmem [shape: f32[2,1,32], index: 1, kind: input, shape index: {}]
  %s2 = inlined_call_operand.vmem [shape: f32[2,1,32], index: 2, kind: input, shape index: {}]
  %s3 = inlined_call_operand.vmem [shape: f32[2,32,96], index: 3, kind: input, shape index: {}]
  %s4 = inlined_call_operand.vmem [shape: f32[2,32,32], index: 4, kind: input, shape index: {}]
  %s5 = inlined_call_operand.vmem [shape: f32[2,1,32], index: 5, kind: input, shape index: {}]
  %s6 = inlined_call_operand.vmem [shape: f32[2,1,32], index: 6, kind: input, shape index: {}]
  %s7 = inlined_call_operand.vmem [shape: f32[2,1,32], index: 7, kind: input, shape index: {}]
  %s8 = inlined_call_operand.vmem [shape: f32[2,32,128], index: 8, kind: input, shape index: {}]
  %s9 = inlined_call_operand.vmem [shape: f32[2,1,128], index: 9, kind: input, shape index: {}]
  %s10 = inlined_call_operand.vmem [shape: f32[2,128,32], index: 10, kind: input, shape index: {}]
  %s11 = inlined_call_operand.vmem [shape: f32[2,1,32], index: 11, kind: input, shape index: {}]
  %s12 = inlined_call_operand.vmem [shape: f32[1,32], index: 12, kind: input, shape index: {}]
  %s13 = inlined_call_operand.vmem [shape: f32[1,32], index: 13, kind: input, shape index: {}]
  %s14 = inlined_call_operand.vmem [shape: f32[1,32], index: 14, kind: input, shape index: {}]
  %s15 = inlined_call_operand.vmem [shape: f32[1,32], index: 15, kind: input, shape index: {}]
  %s16 = inlined_call_operand.vmem [shape: f32[32,256], index: 16, kind: input, shape index: {}]
  %s17 = inlined_call_operand.vmem [shape: f32[1,256], index: 17, kind: input, shape index: {}]
  %s18 = inlined_call_operand.vmem [shape: f32[2,4,256], index: 18, kind: output, shape index: {}]
  %s19 = sld [smem:[#allocation0]]
  $region105: #{traffic_vivit_forward.3} parent=0
    _
  %s21 = ssub.s32 1, %s19
  %s22 = scalar_select 0, %s21, %s19
  loop: start=0, step=1, limit=4
  $region2: #{traffic_vivit_forward.3} parent=0 // loop_pre_header
    _
  $region3: #{traffic_vivit_forward.3} parent=0 // loop_header
    %s24 = sphi 0, %s28
    %p25 = scmp.ge.s32.totalorder %s24, 4
    %s34 = sphi 0, %s36
    %s37 = sphi 0, %s34
    %s38 = sphi 0, %s37
    %s54 = sphi 0, %s38
    %s58 = sphi 0, %s58
    %s60 = sphi 0, %s58
    %s61 = sphi 0, %s60
    %s75 = sphi 0, %s61
    %s79 = sphi 0, %s79
    %s81 = sphi 0, %s79
    %s82 = sphi 0, %s81
    %s96 = sphi 0, %s82
    %s100 = sphi 0, %s100
    %s102 = sphi 0, %s100
    %s103 = sphi 0, %s102
    %s117 = sphi 0, %s103
    %s121 = sphi 0, %s121
    %s123 = sphi 0, %s121
    %s124 = sphi 0, %s123
    %s138 = sphi 0, %s124
    %s142 = sphi 0, %s142
    %s144 = sphi 0, %s142
    %s145 = sphi 0, %s144
    %s159 = sphi 0, %s145
    %s163 = sphi 0, %s163
    %s165 = sphi 0, %s163
    %s166 = sphi 0, %s165
    %s180 = sphi 0, %s166
    %s184 = sphi 0, %s184
    %s186 = sphi 0, %s184
    %s187 = sphi 0, %s186
    %s201 = sphi 0, %s187
    %s205 = sphi 0, %s205
    %s207 = sphi 0, %s205
    %s208 = sphi 0, %s207
    %s222 = sphi 0, %s208
    %s226 = sphi 0, %s226
    %s228 = sphi 0, %s226
    %s229 = sphi 0, %s228
    %s243 = sphi 0, %s229
    %s247 = sphi 0, %s247
    %s249 = sphi 0, %s247
    %s250 = sphi 0, %s249
    %s264 = sphi 0, %s250
    %s268 = sphi 0, %s268
    %s270 = sphi 0, %s268
    %s271 = sphi 0, %s270
    %s285 = sphi 0, %s271
    %s289 = sphi 0, %s289
    %s291 = sphi 0, %s289
    %s292 = sphi 0, %s291
    %s306 = sphi 0, %s292
    %s310 = sphi 0, %s310
    %s312 = sphi 0, %s310
    %s313 = sphi 0, %s312
    %s327 = sphi 0, %s313
    %s331 = sphi 0, %s331
    %s333 = sphi 0, %s331
    %s334 = sphi 0, %s333
    %s348 = sphi 0, %s334
    %s352 = sphi 0, %s352
    %s354 = sphi 0, %s352
    %s355 = sphi 0, %s354
    %s369 = sphi 0, %s355
    %s373 = sphi 0, %s373
    %s375 = sphi 0, %s373
    %s376 = sphi 0, %s375
    %s390 = sphi 0, %s376
    %s394 = sphi 0, %s394
    %s396 = sphi 0, %s394
    %s397 = sphi 0, %s396
    %s411 = sphi 0, %s397
    %s417 = sphi 0, %s419
    %s420 = sphi 0, %s417
    %s421 = sphi 0, %s420
    %s437 = sphi 0, %s421
  $region4: #{traffic_vivit_forward.3} parent=0 // loop_header_branch
    %27 = sbr.rel (%p25) target = $region8
  $region5: #{traffic_vivit_forward.3} parent=0 // loop_body
    %s29 = ssub.s32 %s24, 1
    %s30 = ssub.s32 %s24, 2
    %s31 = sadd.s32 %s24, 1
    %s32 = ssub.s32 %s24, %s31
    %p33 = scmp.eq.s32.totalorder %s32, 0
    %s35 = sadd.s32 %s34, 1
    %s36 = scalar_select %p33, %s34, %s35
    %p39 = pneg %p33
    %p40 = scmp.eq.s32.totalorder %s24, 1
    %p41 = por %p39, %p40
    %p42 = scmp.ne.s32.totalorder %s34, %s37
    %p43 = scmp.eq.s32.totalorder %s24, 0
    %p44 = por %p42, %p43
    %p45 = scmp.ne.s32.totalorder %s34, %s37
    %p46 = scmp.eq.s32.totalorder %s29, 1
    %p47 = por %p45, %p46
    %p48 = scmp.ne.s32.totalorder %s37, %s38
    %p49 = scmp.eq.s32.totalorder %s29, 0
    %p50 = por %p48, %p49
    %p51 = scmp.ne.s32.totalorder %s37, %s38
    %p52 = scmp.eq.s32.totalorder %s30, 1
    %p53 = por %p51, %p52
    %p55 = scmp.ne.s32.totalorder %s38, %s54
    %p56 = scmp.eq.s32.totalorder %s30, 0
    %p57 = por %p55, %p56
    %s59 = sadd.s32 %s58, 1
    %p62 = scmp.eq.s32.totalorder %s24, 1
    %p63 = scmp.ne.s32.totalorder %s58, %s60
    %p64 = scmp.eq.s32.totalorder %s24, 0
    %p65 = por %p63, %p64
    %p66 = scmp.ne.s32.totalorder %s58, %s60
    %p67 = scmp.eq.s32.totalorder %s29, 1
    %p68 = por %p66, %p67
    %p69 = scmp.ne.s32.totalorder %s60, %s61
    %p70 = scmp.eq.s32.totalorder %s29, 0
    %p71 = por %p69, %p70
    %p72 = scmp.ne.s32.totalorder %s60, %s61
    %p73 = scmp.eq.s32.totalorder %s30, 1
    %p74 = por %p72, %p73
    %p76 = scmp.ne.s32.totalorder %s61, %s75
    %p77 = scmp.eq.s32.totalorder %s30, 0
    %p78 = por %p76, %p77
    %s80 = sadd.s32 %s79, 1
    %p83 = scmp.eq.s32.totalorder %s24, 1
    %p84 = scmp.ne.s32.totalorder %s79, %s81
    %p85 = scmp.eq.s32.totalorder %s24, 0
    %p86 = por %p84, %p85
    %p87 = scmp.ne.s32.totalorder %s79, %s81
    %p88 = scmp.eq.s32.totalorder %s29, 1
    %p89 = por %p87, %p88
    %p90 = scmp.ne.s32.totalorder %s81, %s82
    %p91 = scmp.eq.s32.totalorder %s29, 0
    %p92 = por %p90, %p91
    %p93 = scmp.ne.s32.totalorder %s81, %s82
    %p94 = scmp.eq.s32.totalorder %s30, 1
    %p95 = por %p93, %p94
    %p97 = scmp.ne.s32.totalorder %s82, %s96
    %p98 = scmp.eq.s32.totalorder %s30, 0
    %p99 = por %p97, %p98
    %s101 = sadd.s32 %s100, 1
    %p104 = scmp.eq.s32.totalorder %s24, 1
    %p105 = scmp.ne.s32.totalorder %s100, %s102
    %p106 = scmp.eq.s32.totalorder %s24, 0
    %p107 = por %p105, %p106
    %p108 = scmp.ne.s32.totalorder %s100, %s102
    %p109 = scmp.eq.s32.totalorder %s29, 1
    %p110 = por %p108, %p109
    %p111 = scmp.ne.s32.totalorder %s102, %s103
    %p112 = scmp.eq.s32.totalorder %s29, 0
    %p113 = por %p111, %p112
    %p114 = scmp.ne.s32.totalorder %s102, %s103
    %p115 = scmp.eq.s32.totalorder %s30, 1
    %p116 = por %p114, %p115
    %p118 = scmp.ne.s32.totalorder %s103, %s117
    %p119 = scmp.eq.s32.totalorder %s30, 0
    %p120 = por %p118, %p119
    %s122 = sadd.s32 %s121, 1
    %p125 = scmp.eq.s32.totalorder %s24, 1
    %p126 = scmp.ne.s32.totalorder %s121, %s123
    %p127 = scmp.eq.s32.totalorder %s24, 0
    %p128 = por %p126, %p127
    %p129 = scmp.ne.s32.totalorder %s121, %s123
    %p130 = scmp.eq.s32.totalorder %s29, 1
    %p131 = por %p129, %p130
    %p132 = scmp.ne.s32.totalorder %s123, %s124
    %p133 = scmp.eq.s32.totalorder %s29, 0
    %p134 = por %p132, %p133
    %p135 = scmp.ne.s32.totalorder %s123, %s124
    %p136 = scmp.eq.s32.totalorder %s30, 1
    %p137 = por %p135, %p136
    %p139 = scmp.ne.s32.totalorder %s124, %s138
    %p140 = scmp.eq.s32.totalorder %s30, 0
    %p141 = por %p139, %p140
    %s143 = sadd.s32 %s142, 1
    %p146 = scmp.eq.s32.totalorder %s24, 1
    %p147 = scmp.ne.s32.totalorder %s142, %s144
    %p148 = scmp.eq.s32.totalorder %s24, 0
    %p149 = por %p147, %p148
    %p150 = scmp.ne.s32.totalorder %s142, %s144
    %p151 = scmp.eq.s32.totalorder %s29, 1
    %p152 = por %p150, %p151
    %p153 = scmp.ne.s32.totalorder %s144, %s145
    %p154 = scmp.eq.s32.totalorder %s29, 0
    %p155 = por %p153, %p154
    %p156 = scmp.ne.s32.totalorder %s144, %s145
    %p157 = scmp.eq.s32.totalorder %s30, 1
    %p158 = por %p156, %p157
    %p160 = scmp.ne.s32.totalorder %s145, %s159
    %p161 = scmp.eq.s32.totalorder %s30, 0
    %p162 = por %p160, %p161
    %s164 = sadd.s32 %s163, 1
    %p167 = scmp.eq.s32.totalorder %s24, 1
    %p168 = scmp.ne.s32.totalorder %s163, %s165
    %p169 = scmp.eq.s32.totalorder %s24, 0
    %p170 = por %p168, %p169
    %p171 = scmp.ne.s32.totalorder %s163, %s165
    %p172 = scmp.eq.s32.totalorder %s29, 1
    %p173 = por %p171, %p172
    %p174 = scmp.ne.s32.totalorder %s165, %s166
    %p175 = scmp.eq.s32.totalorder %s29, 0
    %p176 = por %p174, %p175
    %p177 = scmp.ne.s32.totalorder %s165, %s166
    %p178 = scmp.eq.s32.totalorder %s30, 1
    %p179 = por %p177, %p178
    %p181 = scmp.ne.s32.totalorder %s166, %s180
    %p182 = scmp.eq.s32.totalorder %s30, 0
    %p183 = por %p181, %p182
    %s185 = sadd.s32 %s184, 1
    %p188 = scmp.eq.s32.totalorder %s24, 1
    %p189 = scmp.ne.s32.totalorder %s184, %s186
    %p190 = scmp.eq.s32.totalorder %s24, 0
    %p191 = por %p189, %p190
    %p192 = scmp.ne.s32.totalorder %s184, %s186
    %p193 = scmp.eq.s32.totalorder %s29, 1
    %p194 = por %p192, %p193
    %p195 = scmp.ne.s32.totalorder %s186, %s187
    %p196 = scmp.eq.s32.totalorder %s29, 0
    %p197 = por %p195, %p196
    %p198 = scmp.ne.s32.totalorder %s186, %s187
    %p199 = scmp.eq.s32.totalorder %s30, 1
    %p200 = por %p198, %p199
    %p202 = scmp.ne.s32.totalorder %s187, %s201
    %p203 = scmp.eq.s32.totalorder %s30, 0
    %p204 = por %p202, %p203
    %s206 = sadd.s32 %s205, 1
    %p209 = scmp.eq.s32.totalorder %s24, 1
    %p210 = scmp.ne.s32.totalorder %s205, %s207
    %p211 = scmp.eq.s32.totalorder %s24, 0
    %p212 = por %p210, %p211
    %p213 = scmp.ne.s32.totalorder %s205, %s207
    %p214 = scmp.eq.s32.totalorder %s29, 1
    %p215 = por %p213, %p214
    %p216 = scmp.ne.s32.totalorder %s207, %s208
    %p217 = scmp.eq.s32.totalorder %s29, 0
    %p218 = por %p216, %p217
    %p219 = scmp.ne.s32.totalorder %s207, %s208
    %p220 = scmp.eq.s32.totalorder %s30, 1
    %p221 = por %p219, %p220
    %p223 = scmp.ne.s32.totalorder %s208, %s222
    %p224 = scmp.eq.s32.totalorder %s30, 0
    %p225 = por %p223, %p224
    %s227 = sadd.s32 %s226, 1
    %p230 = scmp.eq.s32.totalorder %s24, 1
    %p231 = scmp.ne.s32.totalorder %s226, %s228
    %p232 = scmp.eq.s32.totalorder %s24, 0
    %p233 = por %p231, %p232
    %p234 = scmp.ne.s32.totalorder %s226, %s228
    %p235 = scmp.eq.s32.totalorder %s29, 1
    %p236 = por %p234, %p235
    %p237 = scmp.ne.s32.totalorder %s228, %s229
    %p238 = scmp.eq.s32.totalorder %s29, 0
    %p239 = por %p237, %p238
    %p240 = scmp.ne.s32.totalorder %s228, %s229
    %p241 = scmp.eq.s32.totalorder %s30, 1
    %p242 = por %p240, %p241
    %p244 = scmp.ne.s32.totalorder %s229, %s243
    %p245 = scmp.eq.s32.totalorder %s30, 0
    %p246 = por %p244, %p245
    %s248 = sadd.s32 %s247, 1
    %p251 = scmp.eq.s32.totalorder %s24, 1
    %p252 = scmp.ne.s32.totalorder %s247, %s249
    %p253 = scmp.eq.s32.totalorder %s24, 0
    %p254 = por %p252, %p253
    %p255 = scmp.ne.s32.totalorder %s247, %s249
    %p256 = scmp.eq.s32.totalorder %s29, 1
    %p257 = por %p255, %p256
    %p258 = scmp.ne.s32.totalorder %s249, %s250
    %p259 = scmp.eq.s32.totalorder %s29, 0
    %p260 = por %p258, %p259
    %p261 = scmp.ne.s32.totalorder %s249, %s250
    %p262 = scmp.eq.s32.totalorder %s30, 1
    %p263 = por %p261, %p262
    %p265 = scmp.ne.s32.totalorder %s250, %s264
    %p266 = scmp.eq.s32.totalorder %s30, 0
    %p267 = por %p265, %p266
    %s269 = sadd.s32 %s268, 1
    %p272 = scmp.eq.s32.totalorder %s24, 1
    %p273 = scmp.ne.s32.totalorder %s268, %s270
    %p274 = scmp.eq.s32.totalorder %s24, 0
    %p275 = por %p273, %p274
    %p276 = scmp.ne.s32.totalorder %s268, %s270
    %p277 = scmp.eq.s32.totalorder %s29, 1
    %p278 = por %p276, %p277
    %p279 = scmp.ne.s32.totalorder %s270, %s271
    %p280 = scmp.eq.s32.totalorder %s29, 0
    %p281 = por %p279, %p280
    %p282 = scmp.ne.s32.totalorder %s270, %s271
    %p283 = scmp.eq.s32.totalorder %s30, 1
    %p284 = por %p282, %p283
    %p286 = scmp.ne.s32.totalorder %s271, %s285
    %p287 = scmp.eq.s32.totalorder %s30, 0
    %p288 = por %p286, %p287
    %s290 = sadd.s32 %s289, 1
    %p293 = scmp.eq.s32.totalorder %s24, 1
    %p294 = scmp.ne.s32.totalorder %s289, %s291
    %p295 = scmp.eq.s32.totalorder %s24, 0
    %p296 = por %p294, %p295
    %p297 = scmp.ne.s32.totalorder %s289, %s291
    %p298 = scmp.eq.s32.totalorder %s29, 1
    %p299 = por %p297, %p298
    %p300 = scmp.ne.s32.totalorder %s291, %s292
    %p301 = scmp.eq.s32.totalorder %s29, 0
    %p302 = por %p300, %p301
    %p303 = scmp.ne.s32.totalorder %s291, %s292
    %p304 = scmp.eq.s32.totalorder %s30, 1
    %p305 = por %p303, %p304
    %p307 = scmp.ne.s32.totalorder %s292, %s306
    %p308 = scmp.eq.s32.totalorder %s30, 0
    %p309 = por %p307, %p308
    %s311 = sadd.s32 %s310, 1
    %p314 = scmp.eq.s32.totalorder %s24, 1
    %p315 = scmp.ne.s32.totalorder %s310, %s312
    %p316 = scmp.eq.s32.totalorder %s24, 0
    %p317 = por %p315, %p316
    %p318 = scmp.ne.s32.totalorder %s310, %s312
    %p319 = scmp.eq.s32.totalorder %s29, 1
    %p320 = por %p318, %p319
    %p321 = scmp.ne.s32.totalorder %s312, %s313
    %p322 = scmp.eq.s32.totalorder %s29, 0
    %p323 = por %p321, %p322
    %p324 = scmp.ne.s32.totalorder %s312, %s313
    %p325 = scmp.eq.s32.totalorder %s30, 1
    %p326 = por %p324, %p325
    %p328 = scmp.ne.s32.totalorder %s313, %s327
    %p329 = scmp.eq.s32.totalorder %s30, 0
    %p330 = por %p328, %p329
    %s332 = sadd.s32 %s331, 1
    %p335 = scmp.eq.s32.totalorder %s24, 1
    %p336 = scmp.ne.s32.totalorder %s331, %s333
    %p337 = scmp.eq.s32.totalorder %s24, 0
    %p338 = por %p336, %p337
    %p339 = scmp.ne.s32.totalorder %s331, %s333
    %p340 = scmp.eq.s32.totalorder %s29, 1
    %p341 = por %p339, %p340
    %p342 = scmp.ne.s32.totalorder %s333, %s334
    %p343 = scmp.eq.s32.totalorder %s29, 0
    %p344 = por %p342, %p343
    %p345 = scmp.ne.s32.totalorder %s333, %s334
    %p346 = scmp.eq.s32.totalorder %s30, 1
    %p347 = por %p345, %p346
    %p349 = scmp.ne.s32.totalorder %s334, %s348
    %p350 = scmp.eq.s32.totalorder %s30, 0
    %p351 = por %p349, %p350
    %s353 = sadd.s32 %s352, 1
    %p356 = scmp.eq.s32.totalorder %s24, 1
    %p357 = scmp.ne.s32.totalorder %s352, %s354
    %p358 = scmp.eq.s32.totalorder %s24, 0
    %p359 = por %p357, %p358
    %p360 = scmp.ne.s32.totalorder %s352, %s354
    %p361 = scmp.eq.s32.totalorder %s29, 1
    %p362 = por %p360, %p361
    %p363 = scmp.ne.s32.totalorder %s354, %s355
    %p364 = scmp.eq.s32.totalorder %s29, 0
    %p365 = por %p363, %p364
    %p366 = scmp.ne.s32.totalorder %s354, %s355
    %p367 = scmp.eq.s32.totalorder %s30, 1
    %p368 = por %p366, %p367
    %p370 = scmp.ne.s32.totalorder %s355, %s369
    %p371 = scmp.eq.s32.totalorder %s30, 0
    %p372 = por %p370, %p371
    %s374 = sadd.s32 %s373, 1
    %p377 = scmp.eq.s32.totalorder %s24, 1
    %p378 = scmp.ne.s32.totalorder %s373, %s375
    %p379 = scmp.eq.s32.totalorder %s24, 0
    %p380 = por %p378, %p379
    %p381 = scmp.ne.s32.totalorder %s373, %s375
    %p382 = scmp.eq.s32.totalorder %s29, 1
    %p383 = por %p381, %p382
    %p384 = scmp.ne.s32.totalorder %s375, %s376
    %p385 = scmp.eq.s32.totalorder %s29, 0
    %p386 = por %p384, %p385
    %p387 = scmp.ne.s32.totalorder %s375, %s376
    %p388 = scmp.eq.s32.totalorder %s30, 1
    %p389 = por %p387, %p388
    %p391 = scmp.ne.s32.totalorder %s376, %s390
    %p392 = scmp.eq.s32.totalorder %s30, 0
    %p393 = por %p391, %p392
    %s395 = sadd.s32 %s394, 1
    %p398 = scmp.eq.s32.totalorder %s24, 1
    %p399 = scmp.ne.s32.totalorder %s394, %s396
    %p400 = scmp.eq.s32.totalorder %s24, 0
    %p401 = por %p399, %p400
    %p402 = scmp.ne.s32.totalorder %s394, %s396
    %p403 = scmp.eq.s32.totalorder %s29, 1
    %p404 = por %p402, %p403
    %p405 = scmp.ne.s32.totalorder %s396, %s397
    %p406 = scmp.eq.s32.totalorder %s29, 0
    %p407 = por %p405, %p406
    %p408 = scmp.ne.s32.totalorder %s396, %s397
    %p409 = scmp.eq.s32.totalorder %s30, 1
    %p410 = por %p408, %p409
    %p412 = scmp.ne.s32.totalorder %s397, %s411
    %p413 = scmp.eq.s32.totalorder %s30, 0
    %p414 = por %p412, %p413
    %s415 = ssub.s32 %s24, %s31
    %p416 = scmp.eq.s32.totalorder %s415, 0
    %s418 = sadd.s32 %s417, 1
    %s419 = scalar_select %p416, %s417, %s418
    %p422 = pneg %p416
    %p423 = scmp.eq.s32.totalorder %s24, 1
    %p424 = por %p422, %p423
    %p425 = scmp.ne.s32.totalorder %s417, %s420
    %p426 = scmp.eq.s32.totalorder %s24, 0
    %p427 = por %p425, %p426
    %p428 = scmp.ne.s32.totalorder %s417, %s420
    %p429 = scmp.eq.s32.totalorder %s29, 1
    %p430 = por %p428, %p429
    %p431 = scmp.ne.s32.totalorder %s420, %s421
    %p432 = scmp.eq.s32.totalorder %s29, 0
    %p433 = por %p431, %p432
    %p434 = scmp.ne.s32.totalorder %s420, %s421
    %p435 = scmp.eq.s32.totalorder %s30, 1
    %p436 = por %p434, %p435
    %p438 = scmp.ne.s32.totalorder %s421, %s437
    %p439 = scmp.eq.s32.totalorder %s30, 0
    %p440 = por %p438, %p439
    %p441 = scmp.le.s32.totalorder 1, %s24
    %p442 = scmp.lt.s32.totalorder %s24, 3
    %p443 = pnand %p441, %p442
    %p444 = pneg %p443
    // Predicated region
    $region9: #{traffic_vivit_forward.3} parent=5 // pred_check
      _
    $region10: #{traffic_vivit_forward.3} parent=5 // pred_check_branch
      %446 = sbr.rel (%p443) target = $region12
    $region11: #{traffic_vivit_forward.3} parent=5 // pred_region
      %s447 = ssub.s32 %s24, 1
      // Predicated region
      $region13: #{traffic_vivit_forward.3} parent=11 // pred_check
        %p448 = pneg %p71
      $region14: #{traffic_vivit_forward.3} parent=11 // pred_check_branch
        %450 = sbr.rel (%p448) target = $region16
      $region15: #{traffic_vivit_forward.3} parent=11 // pred_region
        _
      $region16: #{traffic_vivit_forward.3} parent=11 // pred_fallthru
        _
      // Predicated region
      $region17: #{traffic_vivit_forward.3} parent=11 // pred_check
        %p451 = pneg %p92
      $region18: #{traffic_vivit_forward.3} parent=11 // pred_check_branch
        %453 = sbr.rel (%p451) target = $region20
      $region19: #{traffic_vivit_forward.3} parent=11 // pred_region
        _
      $region20: #{traffic_vivit_forward.3} parent=11 // pred_fallthru
        _
      // Predicated region
      $region21: #{traffic_vivit_forward.3} parent=11 // pred_check
        %p454 = pneg %p113
      $region22: #{traffic_vivit_forward.3} parent=11 // pred_check_branch
        %456 = sbr.rel (%p454) target = $region24
      $region23: #{traffic_vivit_forward.3} parent=11 // pred_region
        _
      $region24: #{traffic_vivit_forward.3} parent=11 // pred_fallthru
        _
      // Predicated region
      $region25: #{traffic_vivit_forward.3} parent=11 // pred_check
        %p457 = pneg %p134
      $region26: #{traffic_vivit_forward.3} parent=11 // pred_check_branch
        %459 = sbr.rel (%p457) target = $region28
      $region27: #{traffic_vivit_forward.3} parent=11 // pred_region
        _
      $region28: #{traffic_vivit_forward.3} parent=11 // pred_fallthru
        _
      // Predicated region
      $region29: #{traffic_vivit_forward.3} parent=11 // pred_check
        %p460 = pneg %p155
      $region30: #{traffic_vivit_forward.3} parent=11 // pred_check_branch
        %462 = sbr.rel (%p460) target = $region32
      $region31: #{traffic_vivit_forward.3} parent=11 // pred_region
        _
      $region32: #{traffic_vivit_forward.3} parent=11 // pred_fallthru
        _
      // Predicated region
      $region33: #{traffic_vivit_forward.3} parent=11 // pred_check
        %p463 = pneg %p176
      $region34: #{traffic_vivit_forward.3} parent=11 // pred_check_branch
        %465 = sbr.rel (%p463) target = $region36
      $region35: #{traffic_vivit_forward.3} parent=11 // pred_region
        _
      $region36: #{traffic_vivit_forward.3} parent=11 // pred_fallthru
        _
      // Predicated region
      $region37: #{traffic_vivit_forward.3} parent=11 // pred_check
        %p466 = pneg %p197
      $region38: #{traffic_vivit_forward.3} parent=11 // pred_check_branch
        %468 = sbr.rel (%p466) target = $region40
      $region39: #{traffic_vivit_forward.3} parent=11 // pred_region
        _
      $region40: #{traffic_vivit_forward.3} parent=11 // pred_fallthru
        _
      // Predicated region
      $region41: #{traffic_vivit_forward.3} parent=11 // pred_check
        %p469 = pneg %p218
      $region42: #{traffic_vivit_forward.3} parent=11 // pred_check_branch
        %471 = sbr.rel (%p469) target = $region44
      $region43: #{traffic_vivit_forward.3} parent=11 // pred_region
        _
      $region44: #{traffic_vivit_forward.3} parent=11 // pred_fallthru
        _
      // Predicated region
      $region45: #{traffic_vivit_forward.3} parent=11 // pred_check
        %p472 = pneg %p239
      $region46: #{traffic_vivit_forward.3} parent=11 // pred_check_branch
        %474 = sbr.rel (%p472) target = $region48
      $region47: #{traffic_vivit_forward.3} parent=11 // pred_region
        _
      $region48: #{traffic_vivit_forward.3} parent=11 // pred_fallthru
        _
      // Predicated region
      $region49: #{traffic_vivit_forward.3} parent=11 // pred_check
        %p475 = pneg %p260
      $region50: #{traffic_vivit_forward.3} parent=11 // pred_check_branch
        %477 = sbr.rel (%p475) target = $region52
      $region51: #{traffic_vivit_forward.3} parent=11 // pred_region
        _
      $region52: #{traffic_vivit_forward.3} parent=11 // pred_fallthru
        _
      // Predicated region
      $region53: #{traffic_vivit_forward.3} parent=11 // pred_check
        %p478 = pneg %p281
      $region54: #{traffic_vivit_forward.3} parent=11 // pred_check_branch
        %480 = sbr.rel (%p478) target = $region56
      $region55: #{traffic_vivit_forward.3} parent=11 // pred_region
        _
      $region56: #{traffic_vivit_forward.3} parent=11 // pred_fallthru
        _
      // Predicated region
      $region57: #{traffic_vivit_forward.3} parent=11 // pred_check
        %p481 = pneg %p302
      $region58: #{traffic_vivit_forward.3} parent=11 // pred_check_branch
        %483 = sbr.rel (%p481) target = $region60
      $region59: #{traffic_vivit_forward.3} parent=11 // pred_region
        _
      $region60: #{traffic_vivit_forward.3} parent=11 // pred_fallthru
        _
      // Predicated region
      $region61: #{traffic_vivit_forward.3} parent=11 // pred_check
        %p484 = pneg %p323
      $region62: #{traffic_vivit_forward.3} parent=11 // pred_check_branch
        %486 = sbr.rel (%p484) target = $region64
      $region63: #{traffic_vivit_forward.3} parent=11 // pred_region
        _
      $region64: #{traffic_vivit_forward.3} parent=11 // pred_fallthru
        _
      // Predicated region
      $region65: #{traffic_vivit_forward.3} parent=11 // pred_check
        %p487 = pneg %p344
      $region66: #{traffic_vivit_forward.3} parent=11 // pred_check_branch
        %489 = sbr.rel (%p487) target = $region68
      $region67: #{traffic_vivit_forward.3} parent=11 // pred_region
        _
      $region68: #{traffic_vivit_forward.3} parent=11 // pred_fallthru
        _
      // Predicated region
      $region69: #{traffic_vivit_forward.3} parent=11 // pred_check
        %p490 = pneg %p365
      $region70: #{traffic_vivit_forward.3} parent=11 // pred_check_branch
        %492 = sbr.rel (%p490) target = $region72
      $region71: #{traffic_vivit_forward.3} parent=11 // pred_region
        _
      $region72: #{traffic_vivit_forward.3} parent=11 // pred_fallthru
        _
      // Predicated region
      $region73: #{traffic_vivit_forward.3} parent=11 // pred_check
        %p493 = pneg %p386
      $region74: #{traffic_vivit_forward.3} parent=11 // pred_check_branch
        %495 = sbr.rel (%p493) target = $region76
      $region75: #{traffic_vivit_forward.3} parent=11 // pred_region
        _
      $region76: #{traffic_vivit_forward.3} parent=11 // pred_fallthru
        _
      // Predicated region
      $region77: #{traffic_vivit_forward.3} parent=11 // pred_check
        %p496 = pneg %p407
      $region78: #{traffic_vivit_forward.3} parent=11 // pred_check_branch
        %498 = sbr.rel (%p496) target = $region80
      $region79: #{traffic_vivit_forward.3} parent=11 // pred_region
        _
      $region80: #{traffic_vivit_forward.3} parent=11 // pred_fallthru
        _
    $region12: #{traffic_vivit_forward.3} parent=5 // pred_fallthru
      _
    %p499 = scmp.lt.s32.totalorder %s24, 2
    // Predicated region
    $region81: #{traffic_vivit_forward.3} parent=5 // pred_check
      %p500 = pneg %p499
    $region82: #{traffic_vivit_forward.3} parent=5 // pred_check_branch
      %502 = sbr.rel (%p500) target = $region84
    $region83: #{traffic_vivit_forward.3} parent=5 // pred_region
      // Predicated region
      $region85: #{traffic_vivit_forward.3} parent=83 // pred_check
        %p503 = pneg %p44
      $region86: #{traffic_vivit_forward.3} parent=83 // pred_check_branch
        %505 = sbr.rel (%p503) target = $region88
      $region87: #{traffic_vivit_forward.3} parent=83 // pred_region
        %p506 = scmp.lt.s32.totalorder %s24, 1
        %s507 = scalar_select %p506, %s24, 1
        %s508 = smul.addr %s507, 4
        %s509 = scalar_lea.vmem %s0, %s508
      $region88: #{traffic_vivit_forward.3} parent=83 // pred_fallthru
        _
    $region84: #{traffic_vivit_forward.3} parent=5 // pred_fallthru
      _
    %p510 = scmp.le.s32.totalorder 1, %s24
    %p511 = scmp.lt.s32.totalorder %s24, 3
    %p512 = pnand %p510, %p511
    %p513 = pneg %p512
    // Predicated region
    $region89: #{traffic_vivit_forward.3} parent=5 // pred_check
      _
    $region90: #{traffic_vivit_forward.3} parent=5 // pred_check_branch
      %515 = sbr.rel (%p512) target = $region92
    $region91: #{traffic_vivit_forward.3} parent=5 // pred_region
      %s516 = ssub.s32 %s24, 1
      %p517 = scmp.lt.s32.totalorder %s29, 1
      %s518 = scalar_select %p517, %s29, 1
      %s519 = smul.addr %s518, 4
      %s520 = scalar_lea.vmem %s0, %s519
      %p521 = pneg %p50
      %p522 = pneg %p47
      %p523 = pneg %p71
      %p524 = pneg %p68
      %p525 = pneg %p92
      %p526 = pneg %p89
      %p527 = pneg %p113
      %p528 = pneg %p110
      %p529 = pneg %p134
      %p530 = pneg %p131
      %p531 = pneg %p155
      %p532 = pneg %p152
      %p533 = pneg %p176
      %p534 = pneg %p173
      %p535 = pneg %p197
      %p536 = pneg %p194
      %p537 = pneg %p218
      %p538 = pneg %p215
      %p539 = pneg %p239
      %p540 = pneg %p236
      %p541 = pneg %p260
      %p542 = pneg %p257
      %p543 = pneg %p281
      %p544 = pneg %p278
      %p545 = pneg %p302
      %p546 = pneg %p299
      %p547 = pneg %p323
      %p548 = pneg %p320
      %p549 = pneg %p344
      %p550 = pneg %p341
      %p551 = pneg %p365
      %p552 = pneg %p362
      %p553 = pneg %p386
      %p554 = pneg %p383
      %p555 = pneg %p407
      %p556 = pneg %p404
      %p557 = pneg %p433
      %p558 = pneg %p430
      %p559 = scmp.lt.s32.totalorder %s29, 1
      %s560 = scalar_select %p559, %s29, 1
      %s561 = smul.addr %s560, 2
      %s562 = smul.addr %s561, 4
      %s563 = scalar_lea.vmem %s18, %s562
      %p564 = scmp.lt.s32.totalorder %s29, 1
      %s565 = scalar_select %p564, %s29, 1
      %s566 = smul.addr %s565, 4
      %s567 = scalar_lea.vmem %s0, %s566
      %p568 = scmp.lt.s32.totalorder %s29, 1
      %s569 = scalar_select %p568, %s29, 1
      %s570 = smul.addr %s569, 2
      %s571 = smul.addr %s570, 4
      %s572 = scalar_lea.vmem %s18, %s571
      %v574 = vld [vmem:[%s567] sm:$0xf]
      %v575 = vld [vmem:[%s1] sm:$0x1]
      %v576 = vld [vmem:[%s2] sm:$0x1]
      %vm577 = vcmask 257024
      %v578 = vsel %vm577, %v574, 0.0
      %579 = vadd.xlane.f32.xlu0 %v578
      %v580 = vpop.xlane.xlu0 %579
      %v581 = vrcp.pop 32.0
      %v582 = vmul.f32 %v580, %v581
      %v583 = vsub.f32 %v574, %v582
      %v584 = vmul.f32 %v583, %v583
      %v585 = vsel %vm577, %v584, 0.0
      %586 = vadd.xlane.f32.xlu0 %v585
      %v587 = vpop.xlane.xlu0 %586
      %v588 = vmul.f32 %v587, %v581
      %v589 = vadd.f32 %v588, 1e-05
      %v590 = vrsqrt.pop %v589
      %v591 = vmul.f32 %v583, %v590
      %v593 = vlaneseq
      %v594 = vshrl.u32 %v593, 7
      %v595 = vsub.s32 0, %v594
      %v596 = vrot.slane %v575, %v595
      %v598 = vmul.f32 %v591, %v596
      %v600 = vlaneseq
      %v601 = vshrl.u32 %v600, 7
      %v602 = vsub.s32 0, %v601
      %v603 = vrot.slane %v576, %v602
      %v605 = vadd.f32 %v598, %v603
      %v606 = vld [vmem:[%s3] sm:$0xff]
      %v607 = vld [vmem:[%s3 + $0x8] sm:$0xff]
      %v608 = vld [vmem:[%s3 + $0x10] sm:$0xff]
      %v609 = vld [vmem:[%s3 + $0x18] sm:$0xff]
      %v610 = vpack.c.bf16 %v605, %v605
      %v611 = vpack.c.bf16 %v607, %v606
      %v612 = vpack.c.bf16 %v609, %v608
      %vm613 = vcmask 261120
      %v615 = vsel %vm613, %v610, 0
      %617 = vmatprep.subr.bf16.mxu0 0
      %618 = vmatpush1.bf16.msra.mxu0 0
      %619 = vmatprep.subr.bf16.mxu0 0
      %620 = vmatpush1.bf16.msra.mxu0 0
      %621 = vmatprep.subr.bf16.mxu0 0
      %622 = vmatpush1.bf16.msra.mxu0 0
      %623 = vmatprep.subr.bf16.mxu0 0
      %624 = vmatpush1.bf16.msra.mxu0 0
      %625 = vmatprep.subr.bf16.mxu0 0
      %626 = vmatpush1.bf16.msra.mxu0 0
      %627 = vmatprep.subr.bf16.mxu0 0
      %628 = vmatpush1.bf16.msra.mxu0 0
      %629 = vmatprep.subr.bf16.mxu0 0
      %630 = vmatpush1.bf16.msra.mxu0 %v612
      %631 = vmatprep.subr.bf16.mxu0 0
      %632 = vmatpush1.bf16.msra.mxu0 %v611
      %633 = vmatprep.subr.bf16.mxu0 0
      %634 = vmatpush2.bf16.msra.mxu0 0
      %635 = vmatprep.subr.bf16.mxu0 0
      %636 = vmatpush2.bf16.msra.mxu0 0
      %637 = vmatprep.subr.bf16.mxu0 0
      %638 = vmatpush2.bf16.msra.mxu0 0
      %639 = vmatprep.subr.bf16.mxu0 0
      %640 = vmatpush2.bf16.msra.mxu0 0
      %641 = vmatprep.subr.bf16.mxu0 0
      %642 = vmatpush2.bf16.msra.mxu0 0
      %643 = vmatprep.subr.bf16.mxu0 0
      %644 = vmatpush2.bf16.msra.mxu0 0
      %645 = vmatprep.subr.bf16.mxu0 0
      %646 = vmatpush2.bf16.msra.mxu0 0
      %647 = vmatprep.subr.bf16.mxu0 0
      %648 = vmatpush2.bf16.msra.mxu0 0
      %649 = vmatprep.mubr.bf16.mxu0 0
      %650 = vmatmul.mubr.bf16.gmra.mxu0 %v615
      %v651 = vpop.f32.mrf.mxu0
      %v652 = vadd.f32 0.0, %v651
      %v653 = vpop.f32.mrf.mxu0
      %v654 = vpop.f32.mrf.mxu0
      %v655 = vpop.f32.mrf.mxu0
      %656 = vdwg.mxu0
      %v657 = vld [vmem:[%s4] sm:$0xff]
      %v658 = vld [vmem:[%s4 + $0x8] sm:$0xff]
      %v659 = vld [vmem:[%s4 + $0x10] sm:$0xff]
      %v660 = vld [vmem:[%s4 + $0x18] sm:$0xff]
      %v661 = vpack.c.bf16 %v652, %v652
      %663 = vrot.lane.b32.xlu0 %v661, 96
      %v664 = vpop.permute.xlu0 %663
      %vm665 = vcmask 64512
      %v667 = vsel %vm665, %v661, 0
      %v670 = vsel %vm665, %v664, 0
      %672 = vmatprep.subr.bf16.mxu0 0
      %673 = vmatpush1.bf16.xpose.msra.mxu0 0
      %674 = vmatprep.subr.bf16.mxu0 0
      %675 = vmatpush1.bf16.xpose.msra.mxu0 0
      %676 = vmatprep.subr.bf16.mxu0 0
      %677 = vmatpush1.bf16.xpose.msra.mxu0 0
      %678 = vmatprep.subr.bf16.mxu0 0
      %679 = vmatpush1.bf16.xpose.msra.mxu0 0
      %680 = vmatprep.subr.bf16.mxu0 0
      %681 = vmatpush1.bf16.xpose.msra.mxu0 0
      %682 = vmatprep.subr.bf16.mxu0 0
      %683 = vmatpush1.bf16.xpose.msra.mxu0 0
      %684 = vmatprep.subr.bf16.mxu0 0
      %685 = vmatpush1.bf16.xpose.msra.mxu0 0
      %686 = vmatprep.subr.bf16.mxu0 0
      %687 = vmatpush1.bf16.xpose.msra.mxu0 %v670
      %688 = vmatprep.subr.bf16.mxu0 0
      %689 = vmatpush2.bf16.xpose.msra.mxu0 0
      %690 = vmatprep.subr.bf16.mxu0 0
      %691 = vmatpush2.bf16.xpose.msra.mxu0 0
      %692 = vmatprep.subr.bf16.mxu0 0
      %693 = vmatpush2.bf16.xpose.msra.mxu0 0
      %694 = vmatprep.subr.bf16.mxu0 0
      %695 = vmatpush2.bf16.xpose.msra.mxu0 0
      %696 = vmatprep.subr.bf16.mxu0 0
      %697 = vmatpush2.bf16.xpose.msra.mxu0 0
      %698 = vmatprep.subr.bf16.mxu0 0
      %699 = vmatpush2.bf16.xpose.msra.mxu0 0
      %700 = vmatprep.subr.bf16.mxu0 0
      %701 = vmatpush2.bf16.xpose.msra.mxu0 0
      %702 = vmatprep.subr.bf16.mxu0 0
      %703 = vmatpush2.bf16.xpose.msra.mxu0 0
      %704 = vmatprep.mubr.bf16.mxu0 0
      %705 = vmatmul.mubr.bf16.gmra.mxu0 %v667
      %v706 = vpop.f32.mrf.mxu0
      %v707 = vadd.f32 0.0, %v706
      %v708 = vpop.f32.mrf.mxu0
      %v709 = vpop.f32.mrf.mxu0
      %v710 = vpop.f32.mrf.mxu0
      %711 = vdwg.mxu0
      %v712 = vmul.f32 %v707, 0.35355338
      %vm713 = vcmask 27648
      %v714 = vsel %vm713, %v712, -inf
      %715 = vmax.xlane.f32.xlu0 %v714
      %v716 = vpop.xlane.xlu0 %715
      %v717 = vsub.f32 %v712, %v716
      %v718 = vmul.f32 %v717, 1.442695
      %v719 = vpow.pop %v718
      %v720 = vsel %vm713, %v719, 0.0
      %721 = vadd.xlane.f32.xlu0 %v720
      %v722 = vpop.xlane.xlu0 %721
      %v723 = vrcp.pop %v722
      %v724 = vmul.f32 %v719, %v723
      %v725 = vpack.c.bf16 %v724, %v724
      %726 = vrot.lane.b32.xlu0 %v661, 64
      %v727 = vpop.permute.xlu0 %726
      %vm728 = vcmask 31744
      %v730 = vsel %vm728, %v725, 0
      %vm732 = vcmask 1041408
      %v734 = vsel %vm732, %v727, 0
      %736 = vmatprep.subr.bf16.mxu0 0
      %737 = vmatpush1.bf16.msra.mxu0 0
      %738 = vmatprep.subr.bf16.mxu0 0
      %739 = vmatpush1.bf16.msra.mxu0 0
      %740 = vmatprep.subr.bf16.mxu0 0
      %741 = vmatpush1.bf16.msra.mxu0 0
      %742 = vmatprep.subr.bf16.mxu0 0
      %743 = vmatpush1.bf16.msra.mxu0 0
      %744 = vmatprep.subr.bf16.mxu0 0
      %745 = vmatpush1.bf16.msra.mxu0 0
      %746 = vmatprep.subr.bf16.mxu0 0
      %747 = vmatpush1.bf16.msra.mxu0 0
      %748 = vmatprep.subr.bf16.mxu0 0
      %749 = vmatpush1.bf16.msra.mxu0 0
      %750 = vmatprep.subr.bf16.mxu0 0
      %751 = vmatpush1.bf16.msra.mxu0 %v734
      %752 = vmatprep.subr.bf16.mxu0 0
      %753 = vmatpush2.bf16.msra.mxu0 0
      %754 = vmatprep.subr.bf16.mxu0 0
      %755 = vmatpush2.bf16.msra.mxu0 0
      %756 = vmatprep.subr.bf16.mxu0 0
      %757 = vmatpush2.bf16.msra.mxu0 0
      %758 = vmatprep.subr.bf16.mxu0 0
      %759 = vmatpush2.bf16.msra.mxu0 0
      %760 = vmatprep.subr.bf16.mxu0 0
      %761 = vmatpush2.bf16.msra.mxu0 0
      %762 = vmatprep.subr.bf16.mxu0 0
      %763 = vmatpush2.bf16.msra.mxu0 0
      %764 = vmatprep.subr.bf16.mxu0 0
      %765 = vmatpush2.bf16.msra.mxu0 0
      %766 = vmatprep.subr.bf16.mxu0 0
      %767 = vmatpush2.bf16.msra.mxu0 0
      %768 = vmatprep.mubr.bf16.mxu0 0
      %769 = vmatmul.mubr.bf16.gmra.mxu0 %v730
      %v770 = vpop.f32.mrf.mxu0
      %v771 = vadd.f32 0.0, %v770
      %v772 = vpop.f32.mrf.mxu0
      %v773 = vpop.f32.mrf.mxu0
      %v774 = vpop.f32.mrf.mxu0
      %775 = vdwg.mxu0
      %v776 = vpack.c.bf16 %v771, %v771
      %v777 = vpack.c.bf16 %v657, %v657
      %778 = vrot.lane.b32.xlu0 %v661, 120
      %v779 = vpop.permute.xlu0 %778
      %780 = vrot.lane.b32.xlu0 %v661, 88
      %v781 = vpop.permute.xlu0 %780
      %v783 = vsel %vm665, %v779, 0
      %v786 = vsel %vm665, %v781, 0
      %788 = vmatprep.subr.bf16.mxu0 0
      %789 = vmatpush1.bf16.xpose.msra.mxu0 0
      %790 = vmatprep.subr.bf16.mxu0 0
      %791 = vmatpush1.bf16.xpose.msra.mxu0 0
      %792 = vmatprep.subr.bf16.mxu0 0
      %793 = vmatpush1.bf16.xpose.msra.mxu0 0
      %794 = vmatprep.subr.bf16.mxu0 0
      %795 = vmatpush1.bf16.xpose.msra.mxu0 0
      %796 = vmatprep.subr.bf16.mxu0 0
      %797 = vmatpush1.bf16.xpose.msra.mxu0 0
      %798 = vmatprep.subr.bf16.mxu0 0
      %799 = vmatpush1.bf16.xpose.msra.mxu0 0
      %800 = vmatprep.subr.bf16.mxu0 0
      %801 = vmatpush1.bf16.xpose.msra.mxu0 0
      %802 = vmatprep.subr.bf16.mxu0 0
      %803 = vmatpush1.bf16.xpose.msra.mxu0 %v786
      %804 = vmatprep.subr.bf16.mxu0 0
      %805 = vmatpush2.bf16.xpose.msra.mxu0 0
      %806 = vmatprep.subr.bf16.mxu0 0
      %807 = vmatpush2.bf16.xpose.msra.mxu0 0
      %808 = vmatprep.subr.bf16.mxu0 0
      %809 = vmatpush2.bf16.xpose.msra.mxu0 0
      %810 = vmatprep.subr.bf16.mxu0 0
      %811 = vmatpush2.bf16.xpose.msra.mxu0 0
      %812 = vmatprep.subr.bf16.mxu0 0
      %813 = vmatpush2.bf16.xpose.msra.mxu0 0
      %814 = vmatprep.subr.bf16.mxu0 0
      %815 = vmatpush2.bf16.xpose.msra.mxu0 0
      %816 = vmatprep.subr.bf16.mxu0 0
      %817 = vmatpush2.bf16.xpose.msra.mxu0 0
      %818 = vmatprep.subr.bf16.mxu0 0
      %819 = vmatpush2.bf16.xpose.msra.mxu0 0
      %820 = vmatprep.mubr.bf16.mxu0 0
      %821 = vmatmul.mubr.bf16.gmra.mxu0 %v783
      %v822 = vpop.f32.mrf.mxu0
      %v823 = vadd.f32 0.0, %v822
      %v824 = vpop.f32.mrf.mxu0
      %v825 = vpop.f32.mrf.mxu0
      %v826 = vpop.f32.mrf.mxu0
      %827 = vdwg.mxu0
      %v828 = vmul.f32 %v823, 0.35355338
      %v829 = vsel %vm713, %v828, -inf
      %830 = vmax.xlane.f32.xlu0 %v829
      %v831 = vpop.xlane.xlu0 %830
      %v832 = vsub.f32 %v828, %v831
      %v833 = vmul.f32 %v832, 1.442695
      %v834 = vpow.pop %v833
      %v835 = vsel %vm713, %v834, 0.0
      %836 = vadd.xlane.f32.xlu0 %v835
      %v837 = vpop.xlane.xlu0 %836
      %v838 = vrcp.pop %v837
      %v839 = vmul.f32 %v834, %v838
      %v840 = vpack.c.bf16 %v839, %v839
      %841 = vrot.lane.b32.xlu0 %v661, 56
      %v842 = vpop.permute.xlu0 %841
      %v844 = vsel %vm728, %v840, 0
      %v847 = vsel %vm732, %v842, 0
      %849 = vmatprep.subr.bf16.mxu0 0
      %850 = vmatpush1.bf16.msra.mxu0 0
      %851 = vmatprep.subr.bf16.mxu0 0
      %852 = vmatpush1.bf16.msra.mxu0 0
      %853 = vmatprep.subr.bf16.mxu0 0
      %854 = vmatpush1.bf16.msra.mxu0 0
      %855 = vmatprep.subr.bf16.mxu0 0
      %856 = vmatpush1.bf16.msra.mxu0 0
      %857 = vmatprep.subr.bf16.mxu0 0
      %858 = vmatpush1.bf16.msra.mxu0 0
      %859 = vmatprep.subr.bf16.mxu0 0
      %860 = vmatpush1.bf16.msra.mxu0 0
      %861 = vmatprep.subr.bf16.mxu0 0
      %862 = vmatpush1.bf16.msra.mxu0 0
      %863 = vmatprep.subr.bf16.mxu0 0
      %864 = vmatpush1.bf16.msra.mxu0 %v847
      %865 = vmatprep.subr.bf16.mxu0 0
      %866 = vmatpush2.bf16.msra.mxu0 0
      %867 = vmatprep.subr.bf16.mxu0 0
      %868 = vmatpush2.bf16.msra.mxu0 0
      %869 = vmatprep.subr.bf16.mxu0 0
      %870 = vmatpush2.bf16.msra.mxu0 0
      %871 = vmatprep.subr.bf16.mxu0 0
      %872 = vmatpush2.bf16.msra.mxu0 0
      %873 = vmatprep.subr.bf16.mxu0 0
      %874 = vmatpush2.bf16.msra.mxu0 0
      %875 = vmatprep.subr.bf16.mxu0 0
      %876 = vmatpush2.bf16.msra.mxu0 0
      %877 = vmatprep.subr.bf16.mxu0 0
      %878 = vmatpush2.bf16.msra.mxu0 0
      %879 = vmatprep.subr.bf16.mxu0 0
      %880 = vmatpush2.bf16.msra.mxu0 0
      %881 = vmatprep.mubr.bf16.mxu0 0
      %882 = vmatmul.mubr.bf16.gmra.mxu0 %v844
      %v883 = vpop.f32.mrf.mxu0
      %v884 = vadd.f32 0.0, %v883
      %v885 = vpop.f32.mrf.mxu0
      %v886 = vpop.f32.mrf.mxu0
      %v887 = vpop.f32.mrf.mxu0
      %888 = vdwg.mxu0
      %v889 = vpack.c.bf16 %v884, %v884
      %v890 = vpack.c.bf16 %v658, %v658
      %v892 = vsel %vm665, %v889, 0
      %vm894 = vcmask 1043456
      %v896 = vsel %vm894, %v890, 0
      %898 = vmatprep.subr.bf16.mxu0 0
      %899 = vmatpush1.bf16.msra.mxu0 0
      %900 = vmatprep.subr.bf16.mxu0 0
      %901 = vmatpush1.bf16.msra.mxu0 0
      %902 = vmatprep.subr.bf16.mxu0 0
      %903 = vmatpush1.bf16.msra.mxu0 0
      %904 = vmatprep.subr.bf16.mxu0 0
      %905 = vmatpush1.bf16.msra.mxu0 0
      %906 = vmatprep.subr.bf16.mxu0 0
      %907 = vmatpush1.bf16.msra.mxu0 0
      %908 = vmatprep.subr.bf16.mxu0 0
      %909 = vmatpush1.bf16.msra.mxu0 0
      %910 = vmatprep.subr.bf16.mxu0 0
      %911 = vmatpush1.bf16.msra.mxu0 0
      %912 = vmatprep.subr.bf16.mxu0 0
      %913 = vmatpush1.bf16.msra.mxu0 %v896
      %914 = vmatprep.subr.bf16.mxu0 0
      %915 = vmatpush2.bf16.msra.mxu0 0
      %916 = vmatprep.subr.bf16.mxu0 0
      %917 = vmatpush2.bf16.msra.mxu0 0
      %918 = vmatprep.subr.bf16.mxu0 0
      %919 = vmatpush2.bf16.msra.mxu0 0
      %920 = vmatprep.subr.bf16.mxu0 0
      %921 = vmatpush2.bf16.msra.mxu0 0
      %922 = vmatprep.subr.bf16.mxu0 0
      %923 = vmatpush2.bf16.msra.mxu0 0
      %924 = vmatprep.subr.bf16.mxu0 0
      %925 = vmatpush2.bf16.msra.mxu0 0
      %926 = vmatprep.subr.bf16.mxu0 0
      %927 = vmatpush2.bf16.msra.mxu0 0
      %928 = vmatprep.subr.bf16.mxu0 0
      %929 = vmatpush2.bf16.msra.mxu0 0
      %930 = vmatprep.mubr.bf16.mxu0 0
      %931 = vmatmul.mubr.bf16.gmra.mxu0 %v892
      %v932 = vpop.f32.mrf.mxu0
      %v933 = vadd.f32 0.0, %v932
      %v934 = vpop.f32.mrf.mxu0
      %v935 = vpop.f32.mrf.mxu0
      %v936 = vpop.f32.mrf.mxu0
      %937 = vdwg.mxu0
      %v939 = vsel %vm665, %v776, 0
      %v942 = vsel %vm894, %v777, 0
      %944 = vmatprep.subr.bf16.mxu0 0
      %945 = vmatpush1.bf16.msra.mxu0 0
      %946 = vmatprep.subr.bf16.mxu0 0
      %947 = vmatpush1.bf16.msra.mxu0 0
      %948 = vmatprep.subr.bf16.mxu0 0
      %949 = vmatpush1.bf16.msra.mxu0 0
      %950 = vmatprep.subr.bf16.mxu0 0
      %951 = vmatpush1.bf16.msra.mxu0 0
      %952 = vmatprep.subr.bf16.mxu0 0
      %953 = vmatpush1.bf16.msra.mxu0 0
      %954 = vmatprep.subr.bf16.mxu0 0
      %955 = vmatpush1.bf16.msra.mxu0 0
      %956 = vmatprep.subr.bf16.mxu0 0
      %957 = vmatpush1.bf16.msra.mxu0 0
      %958 = vmatprep.subr.bf16.mxu0 0
      %959 = vmatpush1.bf16.msra.mxu0 %v942
      %960 = vmatprep.subr.bf16.mxu0 0
      %961 = vmatpush2.bf16.msra.mxu0 0
      %962 = vmatprep.subr.bf16.mxu0 0
      %963 = vmatpush2.bf16.msra.mxu0 0
      %964 = vmatprep.subr.bf16.mxu0 0
      %965 = vmatpush2.bf16.msra.mxu0 0
      %966 = vmatprep.subr.bf16.mxu0 0
      %967 = vmatpush2.bf16.msra.mxu0 0
      %968 = vmatprep.subr.bf16.mxu0 0
      %969 = vmatpush2.bf16.msra.mxu0 0
      %970 = vmatprep.subr.bf16.mxu0 0
      %971 = vmatpush2.bf16.msra.mxu0 0
      %972 = vmatprep.subr.bf16.mxu0 0
      %973 = vmatpush2.bf16.msra.mxu0 0
      %974 = vmatprep.subr.bf16.mxu0 0
      %975 = vmatpush2.bf16.msra.mxu0 0
      %976 = vmatprep.mubr.bf16.mxu0 0
      %977 = vmatmul.mubr.bf16.gmra.mxu0 %v939
      %v978 = vpop.f32.mrf.mxu0
      %v979 = vadd.f32 %v933, %v978
      %v980 = vpop.f32.mrf.mxu0
      %v981 = vpop.f32.mrf.mxu0
      %v982 = vpop.f32.mrf.mxu0
      %983 = vdwg.mxu0
      %984 = vrot.lane.b32.xlu0 %v661, 112
      %v985 = vpop.permute.xlu0 %984
      %986 = vrot.lane.b32.xlu0 %v661, 80
      %v987 = vpop.permute.xlu0 %986
      %v989 = vsel %vm665, %v985, 0
      %v992 = vsel %vm665, %v987, 0
      %994 = vmatprep.subr.bf16.mxu0 0
      %995 = vmatpush1.bf16.xpose.msra.mxu0 0
      %996 = vmatprep.subr.bf16.mxu0 0
      %997 = vmatpush1.bf16.xpose.msra.mxu0 0
      %998 = vmatprep.subr.bf16.mxu0 0
      %999 = vmatpush1.bf16.xpose.msra.mxu0 0
      %1000 = vmatprep.subr.bf16.mxu0 0
      %1001 = vmatpush1.bf16.xpose.msra.mxu0 0
      %1002 = vmatprep.subr.bf16.mxu0 0
      %1003 = vmatpush1.bf16.xpose.msra.mxu0 0
      %1004 = vmatprep.subr.bf16.mxu0 0
      %1005 = vmatpush1.bf16.xpose.msra.mxu0 0
      %1006 = vmatprep.subr.bf16.mxu0 0
      %1007 = vmatpush1.bf16.xpose.msra.mxu0 0
      %1008 = vmatprep.subr.bf16.mxu0 0
      %1009 = vmatpush1.bf16.xpose.msra.mxu0 %v992
      %1010 = vmatprep.subr.bf16.mxu0 0
      %1011 = vmatpush2.bf16.xpose.msra.mxu0 0
      %1012 = vmatprep.subr.bf16.mxu0 0
      %1013 = vmatpush2.bf16.xpose.msra.mxu0 0
      %1014 = vmatprep.subr.bf16.mxu0 0
      %1015 = vmatpush2.bf16.xpose.msra.mxu0 0
      %1016 = vmatprep.subr.bf16.mxu0 0
      %1017 = vmatpush2.bf16.xpose.msra.mxu0 0
      %1018 = vmatprep.subr.bf16.mxu0 0
      %1019 = vmatpush2.bf16.xpose.msra.mxu0 0
      %1020 = vmatprep.subr.bf16.mxu0 0
      %1021 = vmatpush2.bf16.xpose.msra.mxu0 0
      %1022 = vmatprep.subr.bf16.mxu0 0
      %1023 = vmatpush2.bf16.xpose.msra.mxu0 0
      %1024 = vmatprep.subr.bf16.mxu0 0
      %1025 = vmatpush2.bf16.xpose.msra.mxu0 0
      %1026 = vmatprep.mubr.bf16.mxu0 0
      %1027 = vmatmul.mubr.bf16.gmra.mxu0 %v989
      %v1028 = vpop.f32.mrf.mxu0
      %v1029 = vadd.f32 0.0, %v1028
      %v1030 = vpop.f32.mrf.mxu0
      %v1031 = vpop.f32.mrf.mxu0
      %v1032 = vpop.f32.mrf.mxu0
      %1033 = vdwg.mxu0
      %v1034 = vmul.f32 %v1029, 0.35355338
      %v1035 = vsel %vm713, %v1034, -inf
      %1036 = vmax.xlane.f32.xlu0 %v1035
      %v1037 = vpop.xlane.xlu0 %1036
      %v1038 = vsub.f32 %v1034, %v1037
      %v1039 = vmul.f32 %v1038, 1.442695
      %v1040 = vpow.pop %v1039
      %v1041 = vsel %vm713, %v1040, 0.0
      %1042 = vadd.xlane.f32.xlu0 %v1041
      %v1043 = vpop.xlane.xlu0 %1042
      %v1044 = vrcp.pop %v1043
      %v1045 = vmul.f32 %v1040, %v1044
      %v1046 = vpack.c.bf16 %v1045, %v1045
      %1047 = vrot.lane.b32.xlu0 %v661, 48
      %v1048 = vpop.permute.xlu0 %1047
      %v1050 = vsel %vm728, %v1046, 0
      %v1053 = vsel %vm732, %v1048, 0
      %1055 = vmatprep.subr.bf16.mxu0 0
      %1056 = vmatpush1.bf16.msra.mxu0 0
      %1057 = vmatprep.subr.bf16.mxu0 0
      %1058 = vmatpush1.bf16.msra.mxu0 0
      %1059 = vmatprep.subr.bf16.mxu0 0
      %1060 = vmatpush1.bf16.msra.mxu0 0
      %1061 = vmatprep.subr.bf16.mxu0 0
      %1062 = vmatpush1.bf16.msra.mxu0 0
      %1063 = vmatprep.subr.bf16.mxu0 0
      %1064 = vmatpush1.bf16.msra.mxu0 0
      %1065 = vmatprep.subr.bf16.mxu0 0
      %1066 = vmatpush1.bf16.msra.mxu0 0
      %1067 = vmatprep.subr.bf16.mxu0 0
      %1068 = vmatpush1.bf16.msra.mxu0 0
      %1069 = vmatprep.subr.bf16.mxu0 0
      %1070 = vmatpush1.bf16.msra.mxu0 %v1053
      %1071 = vmatprep.subr.bf16.mxu0 0
      %1072 = vmatpush2.bf16.msra.mxu0 0
      %1073 = vmatprep.subr.bf16.mxu0 0
      %1074 = vmatpush2.bf16.msra.mxu0 0
      %1075 = vmatprep.subr.bf16.mxu0 0
      %1076 = vmatpush2.bf16.msra.mxu0 0
      %1077 = vmatprep.subr.bf16.mxu0 0
      %1078 = vmatpush2.bf16.msra.mxu0 0
      %1079 = vmatprep.subr.bf16.mxu0 0
      %1080 = vmatpush2.bf16.msra.mxu0 0
      %1081 = vmatprep.subr.bf16.mxu0 0
      %1082 = vmatpush2.bf16.msra.mxu0 0
      %1083 = vmatprep.subr.bf16.mxu0 0
      %1084 = vmatpush2.bf16.msra.mxu0 0
      %1085 = vmatprep.subr.bf16.mxu0 0
      %1086 = vmatpush2.bf16.msra.mxu0 0
      %1087 = vmatprep.mubr.bf16.mxu0 0
      %1088 = vmatmul.mubr.bf16.gmra.mxu0 %v1050
      %v1089 = vpop.f32.mrf.mxu0
      %v1090 = vadd.f32 0.0, %v1089
      %v1091 = vpop.f32.mrf.mxu0
      %v1092 = vpop.f32.mrf.mxu0
      %v1093 = vpop.f32.mrf.mxu0
      %1094 = vdwg.mxu0
      %v1095 = vpack.c.bf16 %v1090, %v1090
      %v1096 = vpack.c.bf16 %v659, %v659
      %v1098 = vsel %vm665, %v1095, 0
      %v1101 = vsel %vm894, %v1096, 0
      %1103 = vmatprep.subr.bf16.mxu0 0
      %1104 = vmatpush1.bf16.msra.mxu0 0
      %1105 = vmatprep.subr.bf16.mxu0 0
      %1106 = vmatpush1.bf16.msra.mxu0 0
      %1107 = vmatprep.subr.bf16.mxu0 0
      %1108 = vmatpush1.bf16.msra.mxu0 0
      %1109 = vmatprep.subr.bf16.mxu0 0
      %1110 = vmatpush1.bf16.msra.mxu0 0
      %1111 = vmatprep.subr.bf16.mxu0 0
      %1112 = vmatpush1.bf16.msra.mxu0 0
      %1113 = vmatprep.subr.bf16.mxu0 0
      %1114 = vmatpush1.bf16.msra.mxu0 0
      %1115 = vmatprep.subr.bf16.mxu0 0
      %1116 = vmatpush1.bf16.msra.mxu0 0
      %1117 = vmatprep.subr.bf16.mxu0 0
      %1118 = vmatpush1.bf16.msra.mxu0 %v1101
      %1119 = vmatprep.subr.bf16.mxu0 0
      %1120 = vmatpush2.bf16.msra.mxu0 0
      %1121 = vmatprep.subr.bf16.mxu0 0
      %1122 = vmatpush2.bf16.msra.mxu0 0
      %1123 = vmatprep.subr.bf16.mxu0 0
      %1124 = vmatpush2.bf16.msra.mxu0 0
      %1125 = vmatprep.subr.bf16.mxu0 0
      %1126 = vmatpush2.bf16.msra.mxu0 0
      %1127 = vmatprep.subr.bf16.mxu0 0
      %1128 = vmatpush2.bf16.msra.mxu0 0
      %1129 = vmatprep.subr.bf16.mxu0 0
      %1130 = vmatpush2.bf16.msra.mxu0 0
      %1131 = vmatprep.subr.bf16.mxu0 0
      %1132 = vmatpush2.bf16.msra.mxu0 0
      %1133 = vmatprep.subr.bf16.mxu0 0
      %1134 = vmatpush2.bf16.msra.mxu0 0
      %1135 = vmatprep.mubr.bf16.mxu0 0
      %1136 = vmatmul.mubr.bf16.gmra.mxu0 %v1098
      %v1137 = vpop.f32.mrf.mxu0
      %v1138 = vadd.f32 0.0, %v1137
      %v1139 = vpop.f32.mrf.mxu0
      %v1140 = vpop.f32.mrf.mxu0
      %v1141 = vpop.f32.mrf.mxu0
      %1142 = vdwg.mxu0
      %v1143 = vadd.f32 %v979, %v1138
      %1144 = vrot.lane.b32.xlu0 %v661, 104
      %v1145 = vpop.permute.xlu0 %1144
      %1146 = vrot.lane.b32.xlu0 %v661, 72
      %v1147 = vpop.permute.xlu0 %1146
      %v1149 = vsel %vm665, %v1145, 0
      %v1152 = vsel %vm665, %v1147, 0
      %1154 = vmatprep.subr.bf16.mxu0 0
      %1155 = vmatpush1.bf16.xpose.msra.mxu0 0
      %1156 = vmatprep.subr.bf16.mxu0 0
      %1157 = vmatpush1.bf16.xpose.msra.mxu0 0
      %1158 = vmatprep.subr.bf16.mxu0 0
      %1159 = vmatpush1.bf16.xpose.msra.mxu0 0
      %1160 = vmatprep.subr.bf16.mxu0 0
      %1161 = vmatpush1.bf16.xpose.msra.mxu0 0
      %1162 = vmatprep.subr.bf16.mxu0 0
      %1163 = vmatpush1.bf16.xpose.msra.mxu0 0
      %1164 = vmatprep.subr.bf16.mxu0 0
      %1165 = vmatpush1.bf16.xpose.msra.mxu0 0
      %1166 = vmatprep.subr.bf16.mxu0 0
      %1167 = vmatpush1.bf16.xpose.msra.mxu0 0
      %1168 = vmatprep.subr.bf16.mxu0 0
      %1169 = vmatpush1.bf16.xpose.msra.mxu0 %v1152
      %1170 = vmatprep.subr.bf16.mxu0 0
      %1171 = vmatpush2.bf16.xpose.msra.mxu0 0
      %1172 = vmatprep.subr.bf16.mxu0 0
      %1173 = vmatpush2.bf16.xpose.msra.mxu0 0
      %1174 = vmatprep.subr.bf16.mxu0 0
      %1175 = vmatpush2.bf16.xpose.msra.mxu0 0
      %1176 = vmatprep.subr.bf16.mxu0 0
      %1177 = vmatpush2.bf16.xpose.msra.mxu0 0
      %1178 = vmatprep.subr.bf16.mxu0 0
      %1179 = vmatpush2.bf16.xpose.msra.mxu0 0
      %1180 = vmatprep.subr.bf16.mxu0 0
      %1181 = vmatpush2.bf16.xpose.msra.mxu0 0
      %1182 = vmatprep.subr.bf16.mxu0 0
      %1183 = vmatpush2.bf16.xpose.msra.mxu0 0
      %1184 = vmatprep.subr.bf16.mxu0 0
      %1185 = vmatpush2.bf16.xpose.msra.mxu0 0
      %1186 = vmatprep.mubr.bf16.mxu0 0
      %1187 = vmatmul.mubr.bf16.gmra.mxu0 %v1149
      %v1188 = vpop.f32.mrf.mxu0
      %v1189 = vadd.f32 0.0, %v1188
      %v1190 = vpop.f32.mrf.mxu0
      %v1191 = vpop.f32.mrf.mxu0
      %v1192 = vpop.f32.mrf.mxu0
      %1193 = vdwg.mxu0
      %v1194 = vmul.f32 %v1189, 0.35355338
      %v1195 = vsel %vm713, %v1194, -inf
      %1196 = vmax.xlane.f32.xlu0 %v1195
      %v1197 = vpop.xlane.xlu0 %1196
      %v1198 = vsub.f32 %v1194, %v1197
      %v1199 = vmul.f32 %v1198, 1.442695
      %v1200 = vpow.pop %v1199
      %v1201 = vsel %vm713, %v1200, 0.0
      %1202 = vadd.xlane.f32.xlu0 %v1201
      %v1203 = vpop.xlane.xlu0 %1202
      %v1204 = vrcp.pop %v1203
      %v1205 = vmul.f32 %v1200, %v1204
      %v1206 = vpack.c.bf16 %v1205, %v1205
      %1207 = vrot.lane.b32.xlu0 %v661, 40
      %v1208 = vpop.permute.xlu0 %1207
      %v1210 = vsel %vm728, %v1206, 0
      %v1213 = vsel %vm732, %v1208, 0
      %1215 = vmatprep.subr.bf16.mxu0 0
      %1216 = vmatpush1.bf16.msra.mxu0 0
      %1217 = vmatprep.subr.bf16.mxu0 0
      %1218 = vmatpush1.bf16.msra.mxu0 0
      %1219 = vmatprep.subr.bf16.mxu0 0
      %1220 = vmatpush1.bf16.msra.mxu0 0
      %1221 = vmatprep.subr.bf16.mxu0 0
      %1222 = vmatpush1.bf16.msra.mxu0 0
      %1223 = vmatprep.subr.bf16.mxu0 0
      %1224 = vmatpush1.bf16.msra.mxu0 0
      %1225 = vmatprep.subr.bf16.mxu0 0
      %1226 = vmatpush1.bf16.msra.mxu0 0
      %1227 = vmatprep.subr.bf16.mxu0 0
      %1228 = vmatpush1.bf16.msra.mxu0 0
      %1229 = vmatprep.subr.bf16.mxu0 0
      %1230 = vmatpush1.bf16.msra.mxu0 %v1213
      %1231 = vmatprep.subr.bf16.mxu0 0
      %1232 = vmatpush2.bf16.msra.mxu0 0
      %1233 = vmatprep.subr.bf16.mxu0 0
      %1234 = vmatpush2.bf16.msra.mxu0 0
      %1235 = vmatprep.subr.bf16.mxu0 0
      %1236 = vmatpush2.bf16.msra.mxu0 0
      %1237 = vmatprep.subr.bf16.mxu0 0
      %1238 = vmatpush2.bf16.msra.mxu0 0
      %1239 = vmatprep.subr.bf16.mxu0 0
      %1240 = vmatpush2.bf16.msra.mxu0 0
      %1241 = vmatprep.subr.bf16.mxu0 0
      %1242 = vmatpush2.bf16.msra.mxu0 0
      %1243 = vmatprep.subr.bf16.mxu0 0
      %1244 = vmatpush2.bf16.msra.mxu0 0
      %1245 = vmatprep.subr.bf16.mxu0 0
      %1246 = vmatpush2.bf16.msra.mxu0 0
      %1247 = vmatprep.mubr.bf16.mxu0 0
      %1248 = vmatmul.mubr.bf16.gmra.mxu0 %v1210
      %v1249 = vpop.f32.mrf.mxu0
      %v1250 = vadd.f32 0.0, %v1249
      %v1251 = vpop.f32.mrf.mxu0
      %v1252 = vpop.f32.mrf.mxu0
      %v1253 = vpop.f32.mrf.mxu0
      %1254 = vdwg.mxu0
      %v1255 = vpack.c.bf16 %v1250, %v1250
      %v1256 = vpack.c.bf16 %v660, %v660
      %v1258 = vsel %vm665, %v1255, 0
      %v1261 = vsel %vm894, %v1256, 0
      %1263 = vmatprep.subr.bf16.mxu0 0
      %1264 = vmatpush1.bf16.msra.mxu0 0
      %1265 = vmatprep.subr.bf16.mxu0 0
      %1266 = vmatpush1.bf16.msra.mxu0 0
      %1267 = vmatprep.subr.bf16.mxu0 0
      %1268 = vmatpush1.bf16.msra.mxu0 0
      %1269 = vmatprep.subr.bf16.mxu0 0
      %1270 = vmatpush1.bf16.msra.mxu0 0
      %1271 = vmatprep.subr.bf16.mxu0 0
      %1272 = vmatpush1.bf16.msra.mxu0 0
      %1273 = vmatprep.subr.bf16.mxu0 0
      %1274 = vmatpush1.bf16.msra.mxu0 0
      %1275 = vmatprep.subr.bf16.mxu0 0
      %1276 = vmatpush1.bf16.msra.mxu0 0
      %1277 = vmatprep.subr.bf16.mxu0 0
      %1278 = vmatpush1.bf16.msra.mxu0 %v1261
      %1279 = vmatprep.subr.bf16.mxu0 0
      %1280 = vmatpush2.bf16.msra.mxu0 0
      %1281 = vmatprep.subr.bf16.mxu0 0
      %1282 = vmatpush2.bf16.msra.mxu0 0
      %1283 = vmatprep.subr.bf16.mxu0 0
      %1284 = vmatpush2.bf16.msra.mxu0 0
      %1285 = vmatprep.subr.bf16.mxu0 0
      %1286 = vmatpush2.bf16.msra.mxu0 0
      %1287 = vmatprep.subr.bf16.mxu0 0
      %1288 = vmatpush2.bf16.msra.mxu0 0
      %1289 = vmatprep.subr.bf16.mxu0 0
      %1290 = vmatpush2.bf16.msra.mxu0 0
      %1291 = vmatprep.subr.bf16.mxu0 0
      %1292 = vmatpush2.bf16.msra.mxu0 0
      %1293 = vmatprep.subr.bf16.mxu0 0
      %1294 = vmatpush2.bf16.msra.mxu0 0
      %1295 = vmatprep.mubr.bf16.mxu0 0
      %1296 = vmatmul.mubr.bf16.gmra.mxu0 %v1258
      %v1297 = vpop.f32.mrf.mxu0
      %v1298 = vadd.f32 0.0, %v1297
      %v1299 = vpop.f32.mrf.mxu0
      %v1300 = vpop.f32.mrf.mxu0
      %v1301 = vpop.f32.mrf.mxu0
      %1302 = vdwg.mxu0
      %v1303 = vadd.f32 %v1143, %v1298
      %v1304 = vadd.f32 %v574, %v1303
      %v1305 = vld [vmem:[%s5] sm:$0x1]
      %v1307 = vlaneseq
      %v1308 = vshrl.u32 %v1307, 7
      %v1309 = vsub.s32 0, %v1308
      %v1310 = vrot.slane %v1305, %v1309
      %v1312 = vadd.f32 %v1304, %v1310
      %v1313 = vld [vmem:[%s6] sm:$0x1]
      %v1314 = vld [vmem:[%s7] sm:$0x1]
      %v1315 = vsel %vm577, %v1312, 0.0
      %1316 = vadd.xlane.f32.xlu0 %v1315
      %v1317 = vpop.xlane.xlu0 %1316
      %v1318 = vmul.f32 %v1317, %v581
      %v1319 = vsub.f32 %v1312, %v1318
      %v1320 = vmul.f32 %v1319, %v1319
      %v1321 = vsel %vm577, %v1320, 0.0
      %1322 = vadd.xlane.f32.xlu0 %v1321
      %v1323 = vpop.xlane.xlu0 %1322
      %v1324 = vmul.f32 %v1323, %v581
      %v1325 = vadd.f32 %v1324, 1e-05
      %v1326 = vrsqrt.pop %v1325
      %v1327 = vmul.f32 %v1319, %v1326
      %v1329 = vlaneseq
      %v1330 = vshrl.u32 %v1329, 7
      %v1331 = vsub.s32 0, %v1330
      %v1332 = vrot.slane %v1313, %v1331
      %v1334 = vmul.f32 %v1327, %v1332
      %v1336 = vlaneseq
      %v1337 = vshrl.u32 %v1336, 7
      %v1338 = vsub.s32 0, %v1337
      %v1339 = vrot.slane %v1314, %v1338
      %v1341 = vadd.f32 %v1334, %v1339
      %v1342 = vld [vmem:[%s8] sm:$0xff]
      %v1343 = vld [vmem:[%s8 + $0x8] sm:$0xff]
      %v1344 = vld [vmem:[%s8 + $0x10] sm:$0xff]
      %v1345 = vld [vmem:[%s8 + $0x18] sm:$0xff]
      %v1346 = vpack.c.bf16 %v1341, %v1341
      %v1347 = vpack.c.bf16 %v1343, %v1342
      %v1348 = vpack.c.bf16 %v1345, %v1344
      %v1349 = vld [vmem:[%s9] sm:$0x1]
      %v1351 = vlaneseq
      %v1352 = vshrl.u32 %v1351, 7
      %v1353 = vsub.s32 0, %v1352
      %v1354 = vrot.slane %v1349, %v1353
      %v1357 = vsel %vm613, %v1346, 0
      %1359 = vmatprep.subr.bf16.mxu0 0
      %1360 = vmatpush1.bf16.msra.mxu0 0
      %1361 = vmatprep.subr.bf16.mxu0 0
      %1362 = vmatpush1.bf16.msra.mxu0 0
      %1363 = vmatprep.subr.bf16.mxu0 0
      %1364 = vmatpush1.bf16.msra.mxu0 0
      %1365 = vmatprep.subr.bf16.mxu0 0
      %1366 = vmatpush1.bf16.msra.mxu0 0
      %1367 = vmatprep.subr.bf16.mxu0 0
      %1368 = vmatpush1.bf16.msra.mxu0 0
      %1369 = vmatprep.subr.bf16.mxu0 0
      %1370 = vmatpush1.bf16.msra.mxu0 0
      %1371 = vmatprep.subr.bf16.mxu0 0
      %1372 = vmatpush1.bf16.msra.mxu0 %v1348
      %1373 = vmatprep.subr.bf16.mxu0 0
      %1374 = vmatpush1.bf16.msra.mxu0 %v1347
      %1375 = vmatprep.subr.bf16.mxu0 0
      %1376 = vmatpush2.bf16.msra.mxu0 0
      %1377 = vmatprep.subr.bf16.mxu0 0
      %1378 = vmatpush2.bf16.msra.mxu0 0
      %1379 = vmatprep.subr.bf16.mxu0 0
      %1380 = vmatpush2.bf16.msra.mxu0 0
      %1381 = vmatprep.subr.bf16.mxu0 0
      %1382 = vmatpush2.bf16.msra.mxu0 0
      %1383 = vmatprep.subr.bf16.mxu0 0
      %1384 = vmatpush2.bf16.msra.mxu0 0
      %1385 = vmatprep.subr.bf16.mxu0 0
      %1386 = vmatpush2.bf16.msra.mxu0 0
      %1387 = vmatprep.subr.bf16.mxu0 0
      %1388 = vmatpush2.bf16.msra.mxu0 0
      %1389 = vmatprep.subr.bf16.mxu0 0
      %1390 = vmatpush2.bf16.msra.mxu0 0
      %1391 = vmatprep.mubr.bf16.mxu0 0
      %1392 = vmatmul.mubr.bf16.gmra.mxu0 %v1357
      %v1393 = vpop.f32.mrf.mxu0
      %v1394 = vadd.f32 %v1354, %v1393
      %v1395 = vpop.f32.mrf.mxu0
      %v1396 = vpop.f32.mrf.mxu0
      %v1397 = vpop.f32.mrf.mxu0
      %1398 = vdwg.mxu0
      %v1399 = vmul.f32 %v1394, %v1394
      %v1400 = vmul.f32 %v1394, %v1399
      %v1401 = vmul.f32 %v1400, 0.044715
      %v1402 = vadd.f32 %v1394, %v1401
      %v1403 = vmul.f32 %v1402, 0.7978846
      %v1404 = vtanh.pop %v1403
      %v1405 = vadd.f32 %v1404, 1.0
      %v1406 = vmul.f32 %v1405, 0.5
      %v1407 = vmul.f32 %v1394, %v1406
      %v1408 = vld [vmem:[%s10] sm:$0xff]
      %v1409 = vld [vmem:[%s10 + $0x8] sm:$0xff]
      %v1410 = vld [vmem:[%s10 + $0x10] sm:$0xff]
      %v1411 = vld [vmem:[%s10 + $0x18] sm:$0xff]
      %v1412 = vld [vmem:[%s10 + $0x20] sm:$0xff]
      %v1413 = vld [vmem:[%s10 + $0x28] sm:$0xff]
      %v1414 = vld [vmem:[%s10 + $0x30] sm:$0xff]
      %v1415 = vld [vmem:[%s10 + $0x38] sm:$0xff]
      %v1416 = vld [vmem:[%s10 + $0x40] sm:$0xff]
      %v1417 = vld [vmem:[%s10 + $0x48] sm:$0xff]
      %v1418 = vld [vmem:[%s10 + $0x50] sm:$0xff]
      %v1419 = vld [vmem:[%s10 + $0x58] sm:$0xff]
      %v1420 = vld [vmem:[%s10 + $0x60] sm:$0xff]
      %v1421 = vld [vmem:[%s10 + $0x68] sm:$0xff]
      %v1422 = vld [vmem:[%s10 + $0x70] sm:$0xff]
      %v1423 = vld [vmem:[%s10 + $0x78] sm:$0xff]
      %v1424 = vpack.c.bf16 %v1407, %v1407
      %v1425 = vpack.c.bf16 %v1409, %v1408
      %v1426 = vpack.c.bf16 %v1411, %v1410
      %v1427 = vpack.c.bf16 %v1413, %v1412
      %v1428 = vpack.c.bf16 %v1415, %v1414
      %v1429 = vpack.c.bf16 %v1417, %v1416
      %v1430 = vpack.c.bf16 %v1419, %v1418
      %v1431 = vpack.c.bf16 %v1421, %v1420
      %v1432 = vpack.c.bf16 %v1423, %v1422
      %v1433 = vld [vmem:[%s11] sm:$0x1]
      %v1435 = vlaneseq
      %v1436 = vshrl.u32 %v1435, 7
      %v1437 = vsub.s32 0, %v1436
      %v1438 = vrot.slane %v1433, %v1437
      %1440 = vmatprep.subr.bf16.mxu0 0
      %1441 = vmatpush1.bf16.msra.mxu0 %v1432
      %1442 = vmatprep.subr.bf16.mxu0 0
      %1443 = vmatpush1.bf16.msra.mxu0 %v1431
      %1444 = vmatprep.subr.bf16.mxu0 0
      %1445 = vmatpush1.bf16.msra.mxu0 %v1430
      %1446 = vmatprep.subr.bf16.mxu0 0
      %1447 = vmatpush1.bf16.msra.mxu0 %v1429
      %1448 = vmatprep.subr.bf16.mxu0 0
      %1449 = vmatpush1.bf16.msra.mxu0 %v1428
      %1450 = vmatprep.subr.bf16.mxu0 0
      %1451 = vmatpush1.bf16.msra.mxu0 %v1427
      %1452 = vmatprep.subr.bf16.mxu0 0
      %1453 = vmatpush1.bf16.msra.mxu0 %v1426
      %1454 = vmatprep.subr.bf16.mxu0 0
      %1455 = vmatpush1.bf16.msra.mxu0 %v1425
      %1456 = vmatprep.subr.bf16.mxu0 0
      %1457 = vmatpush2.bf16.msra.mxu0 0
      %1458 = vmatprep.subr.bf16.mxu0 0
      %1459 = vmatpush2.bf16.msra.mxu0 0
      %1460 = vmatprep.subr.bf16.mxu0 0
      %1461 = vmatpush2.bf16.msra.mxu0 0
      %1462 = vmatprep.subr.bf16.mxu0 0
      %1463 = vmatpush2.bf16.msra.mxu0 0
      %1464 = vmatprep.subr.bf16.mxu0 0
      %1465 = vmatpush2.bf16.msra.mxu0 0
      %1466 = vmatprep.subr.bf16.mxu0 0
      %1467 = vmatpush2.bf16.msra.mxu0 0
      %1468 = vmatprep.subr.bf16.mxu0 0
      %1469 = vmatpush2.bf16.msra.mxu0 0
      %1470 = vmatprep.subr.bf16.mxu0 0
      %1471 = vmatpush2.bf16.msra.mxu0 0
      %1472 = vmatprep.mubr.bf16.mxu0 0
      %1473 = vmatmul.mubr.bf16.gmra.mxu0 %v1424
      %v1474 = vpop.f32.mrf.mxu0
      %v1475 = vadd.f32 %v1438, %v1474
      %v1476 = vpop.f32.mrf.mxu0
      %v1477 = vpop.f32.mrf.mxu0
      %v1478 = vpop.f32.mrf.mxu0
      %1479 = vdwg.mxu0
      %v1480 = vadd.f32 %v1312, %v1475
      %s1481 = scalar_lea.vmem %s1, 1
      %v1482 = vld [vmem:[%s1481] sm:$0x1]
      %s1483 = scalar_lea.vmem %s2, 1
      %v1484 = vld [vmem:[%s1483] sm:$0x1]
      %v1485 = vsel %vm577, %v1480, 0.0
      %1486 = vadd.xlane.f32.xlu0 %v1485
      %v1487 = vpop.xlane.xlu0 %1486
      %v1488 = vmul.f32 %v1487, %v581
      %v1489 = vsub.f32 %v1480, %v1488
      %v1490 = vmul.f32 %v1489, %v1489
      %v1491 = vsel %vm577, %v1490, 0.0
      %1492 = vadd.xlane.f32.xlu0 %v1491
      %v1493 = vpop.xlane.xlu0 %1492
      %v1494 = vmul.f32 %v1493, %v581
      %v1495 = vadd.f32 %v1494, 1e-05
      %v1496 = vrsqrt.pop %v1495
      %v1497 = vmul.f32 %v1489, %v1496
      %v1499 = vlaneseq
      %v1500 = vshrl.u32 %v1499, 7
      %v1501 = vsub.s32 0, %v1500
      %v1502 = vrot.slane %v1482, %v1501
      %v1504 = vmul.f32 %v1497, %v1502
      %v1506 = vlaneseq
      %v1507 = vshrl.u32 %v1506, 7
      %v1508 = vsub.s32 0, %v1507
      %v1509 = vrot.slane %v1484, %v1508
      %v1511 = vadd.f32 %v1504, %v1509
      %s1512 = scalar_lea.vmem %s3, 32
      %v1513 = vld [vmem:[%s1512] sm:$0xff]
      %v1514 = vld [vmem:[%s1512 + $0x8] sm:$0xff]
      %v1515 = vld [vmem:[%s1512 + $0x10] sm:$0xff]
      %v1516 = vld [vmem:[%s1512 + $0x18] sm:$0xff]
      %v1517 = vpack.c.bf16 %v1511, %v1511
      %v1518 = vpack.c.bf16 %v1514, %v1513
      %v1519 = vpack.c.bf16 %v1516, %v1515
      %v1521 = vsel %vm613, %v1517, 0
      %1523 = vmatprep.subr.bf16.mxu0 0
      %1524 = vmatpush1.bf16.msra.mxu0 0
      %1525 = vmatprep.subr.bf16.mxu0 0
      %1526 = vmatpush1.bf16.msra.mxu0 0
      %1527 = vmatprep.subr.bf16.mxu0 0
      %1528 = vmatpush1.bf16.msra.mxu0 0
      %1529 = vmatprep.subr.bf16.mxu0 0
      %1530 = vmatpush1.bf16.msra.mxu0 0
      %1531 = vmatprep.subr.bf16.mxu0 0
      %1532 = vmatpush1.bf16.msra.mxu0 0
      %1533 = vmatprep.subr.bf16.mxu0 0
      %1534 = vmatpush1.bf16.msra.mxu0 0
      %1535 = vmatprep.subr.bf16.mxu0 0
      %1536 = vmatpush1.bf16.msra.mxu0 %v1519
      %1537 = vmatprep.subr.bf16.mxu0 0
      %1538 = vmatpush1.bf16.msra.mxu0 %v1518
      %1539 = vmatprep.subr.bf16.mxu0 0
      %1540 = vmatpush2.bf16.msra.mxu0 0
      %1541 = vmatprep.subr.bf16.mxu0 0
      %1542 = vmatpush2.bf16.msra.mxu0 0
      %1543 = vmatprep.subr.bf16.mxu0 0
      %1544 = vmatpush2.bf16.msra.mxu0 0
      %1545 = vmatprep.subr.bf16.mxu0 0
      %1546 = vmatpush2.bf16.msra.mxu0 0
      %1547 = vmatprep.subr.bf16.mxu0 0
      %1548 = vmatpush2.bf16.msra.mxu0 0
      %1549 = vmatprep.subr.bf16.mxu0 0
      %1550 = vmatpush2.bf16.msra.mxu0 0
      %1551 = vmatprep.subr.bf16.mxu0 0
      %1552 = vmatpush2.bf16.msra.mxu0 0
      %1553 = vmatprep.subr.bf16.mxu0 0
      %1554 = vmatpush2.bf16.msra.mxu0 0
      %1555 = vmatprep.mubr.bf16.mxu0 0
      %1556 = vmatmul.mubr.bf16.gmra.mxu0 %v1521
      %v1557 = vpop.f32.mrf.mxu0
      %v1558 = vadd.f32 0.0, %v1557
      %v1559 = vpop.f32.mrf.mxu0
      %v1560 = vpop.f32.mrf.mxu0
      %v1561 = vpop.f32.mrf.mxu0
      %1562 = vdwg.mxu0
      %s1563 = scalar_lea.vmem %s4, 32
      %v1564 = vld [vmem:[%s1563] sm:$0xff]
      %v1565 = vld [vmem:[%s1563 + $0x8] sm:$0xff]
      %v1566 = vld [vmem:[%s1563 + $0x10] sm:$0xff]
      %v1567 = vld [vmem:[%s1563 + $0x18] sm:$0xff]
      %v1568 = vpack.c.bf16 %v1558, %v1558
      %1570 = vrot.lane.b32.xlu0 %v1568, 96
      %v1571 = vpop.permute.xlu0 %1570
      %v1573 = vsel %vm665, %v1568, 0
      %v1576 = vsel %vm665, %v1571, 0
      %1578 = vmatprep.subr.bf16.mxu0 0
      %1579 = vmatpush1.bf16.xpose.msra.mxu0 0
      %1580 = vmatprep.subr.bf16.mxu0 0
      %1581 = vmatpush1.bf16.xpose.msra.mxu0 0
      %1582 = vmatprep.subr.bf16.mxu0 0
      %1583 = vmatpush1.bf16.xpose.msra.mxu0 0
      %1584 = vmatprep.subr.bf16.mxu0 0
      %1585 = vmatpush1.bf16.xpose.msra.mxu0 0
      %1586 = vmatprep.subr.bf16.mxu0 0
      %1587 = vmatpush1.bf16.xpose.msra.mxu0 0
      %1588 = vmatprep.subr.bf16.mxu0 0
      %1589 = vmatpush1.bf16.xpose.msra.mxu0 0
      %1590 = vmatprep.subr.bf16.mxu0 0
      %1591 = vmatpush1.bf16.xpose.msra.mxu0 0
      %1592 = vmatprep.subr.bf16.mxu0 0
      %1593 = vmatpush1.bf16.xpose.msra.mxu0 %v1576
      %1594 = vmatprep.subr.bf16.mxu0 0
      %1595 = vmatpush2.bf16.xpose.msra.mxu0 0
      %1596 = vmatprep.subr.bf16.mxu0 0
      %1597 = vmatpush2.bf16.xpose.msra.mxu0 0
      %1598 = vmatprep.subr.bf16.mxu0 0
      %1599 = vmatpush2.bf16.xpose.msra.mxu0 0
      %1600 = vmatprep.subr.bf16.mxu0 0
      %1601 = vmatpush2.bf16.xpose.msra.mxu0 0
      %1602 = vmatprep.subr.bf16.mxu0 0
      %1603 = vmatpush2.bf16.xpose.msra.mxu0 0
      %1604 = vmatprep.subr.bf16.mxu0 0
      %1605 = vmatpush2.bf16.xpose.msra.mxu0 0
      %1606 = vmatprep.subr.bf16.mxu0 0
      %1607 = vmatpush2.bf16.xpose.msra.mxu0 0
      %1608 = vmatprep.subr.bf16.mxu0 0
      %1609 = vmatpush2.bf16.xpose.msra.mxu0 0
      %1610 = vmatprep.mubr.bf16.mxu0 0
      %1611 = vmatmul.mubr.bf16.gmra.mxu0 %v1573
      %v1612 = vpop.f32.mrf.mxu0
      %v1613 = vadd.f32 0.0, %v1612
      %v1614 = vpop.f32.mrf.mxu0
      %v1615 = vpop.f32.mrf.mxu0
      %v1616 = vpop.f32.mrf.mxu0
      %1617 = vdwg.mxu0
      %v1618 = vmul.f32 %v1613, 0.35355338
      %v1619 = vsel %vm713, %v1618, -inf
      %1620 = vmax.xlane.f32.xlu0 %v1619
      %v1621 = vpop.xlane.xlu0 %1620
      %v1622 = vsub.f32 %v1618, %v1621
      %v1623 = vmul.f32 %v1622, 1.442695
      %v1624 = vpow.pop %v1623
      %v1625 = vsel %vm713, %v1624, 0.0
      %1626 = vadd.xlane.f32.xlu0 %v1625
      %v1627 = vpop.xlane.xlu0 %1626
      %v1628 = vrcp.pop %v1627
      %v1629 = vmul.f32 %v1624, %v1628
      %v1630 = vpack.c.bf16 %v1629, %v1629
      %1631 = vrot.lane.b32.xlu0 %v1568, 64
      %v1632 = vpop.permute.xlu0 %1631
      %v1634 = vsel %vm728, %v1630, 0
      %v1637 = vsel %vm732, %v1632, 0
      %1639 = vmatprep.subr.bf16.mxu0 0
      %1640 = vmatpush1.bf16.msra.mxu0 0
      %1641 = vmatprep.subr.bf16.mxu0 0
      %1642 = vmatpush1.bf16.msra.mxu0 0
      %1643 = vmatprep.subr.bf16.mxu0 0
      %1644 = vmatpush1.bf16.msra.mxu0 0
      %1645 = vmatprep.subr.bf16.mxu0 0
      %1646 = vmatpush1.bf16.msra.mxu0 0
      %1647 = vmatprep.subr.bf16.mxu0 0
      %1648 = vmatpush1.bf16.msra.mxu0 0
      %1649 = vmatprep.subr.bf16.mxu0 0
      %1650 = vmatpush1.bf16.msra.mxu0 0
      %1651 = vmatprep.subr.bf16.mxu0 0
      %1652 = vmatpush1.bf16.msra.mxu0 0
      %1653 = vmatprep.subr.bf16.mxu0 0
      %1654 = vmatpush1.bf16.msra.mxu0 %v1637
      %1655 = vmatprep.subr.bf16.mxu0 0
      %1656 = vmatpush2.bf16.msra.mxu0 0
      %1657 = vmatprep.subr.bf16.mxu0 0
      %1658 = vmatpush2.bf16.msra.mxu0 0
      %1659 = vmatprep.subr.bf16.mxu0 0
      %1660 = vmatpush2.bf16.msra.mxu0 0
      %1661 = vmatprep.subr.bf16.mxu0 0
      %1662 = vmatpush2.bf16.msra.mxu0 0
      %1663 = vmatprep.subr.bf16.mxu0 0
      %1664 = vmatpush2.bf16.msra.mxu0 0
      %1665 = vmatprep.subr.bf16.mxu0 0
      %1666 = vmatpush2.bf16.msra.mxu0 0
      %1667 = vmatprep.subr.bf16.mxu0 0
      %1668 = vmatpush2.bf16.msra.mxu0 0
      %1669 = vmatprep.subr.bf16.mxu0 0
      %1670 = vmatpush2.bf16.msra.mxu0 0
      %1671 = vmatprep.mubr.bf16.mxu0 0
      %1672 = vmatmul.mubr.bf16.gmra.mxu0 %v1634
      %v1673 = vpop.f32.mrf.mxu0
      %v1674 = vadd.f32 0.0, %v1673
      %v1675 = vpop.f32.mrf.mxu0
      %v1676 = vpop.f32.mrf.mxu0
      %v1677 = vpop.f32.mrf.mxu0
      %1678 = vdwg.mxu0
      %v1679 = vpack.c.bf16 %v1674, %v1674
      %v1680 = vpack.c.bf16 %v1564, %v1564
      %1681 = vrot.lane.b32.xlu0 %v1568, 120
      %v1682 = vpop.permute.xlu0 %1681
      %1683 = vrot.lane.b32.xlu0 %v1568, 88
      %v1684 = vpop.permute.xlu0 %1683
      %v1686 = vsel %vm665, %v1682, 0
      %v1689 = vsel %vm665, %v1684, 0
      %1691 = vmatprep.subr.bf16.mxu0 0
      %1692 = vmatpush1.bf16.xpose.msra.mxu0 0
      %1693 = vmatprep.subr.bf16.mxu0 0
      %1694 = vmatpush1.bf16.xpose.msra.mxu0 0
      %1695 = vmatprep.subr.bf16.mxu0 0
      %1696 = vmatpush1.bf16.xpose.msra.mxu0 0
      %1697 = vmatprep.subr.bf16.mxu0 0
      %1698 = vmatpush1.bf16.xpose.msra.mxu0 0
      %1699 = vmatprep.subr.bf16.mxu0 0
      %1700 = vmatpush1.bf16.xpose.msra.mxu0 0
      %1701 = vmatprep.subr.bf16.mxu0 0
      %1702 = vmatpush1.bf16.xpose.msra.mxu0 0
      %1703 = vmatprep.subr.bf16.mxu0 0
      %1704 = vmatpush1.bf16.xpose.msra.mxu0 0
      %1705 = vmatprep.subr.bf16.mxu0 0
      %1706 = vmatpush1.bf16.xpose.msra.mxu0 %v1689
      %1707 = vmatprep.subr.bf16.mxu0 0
      %1708 = vmatpush2.bf16.xpose.msra.mxu0 0
      %1709 = vmatprep.subr.bf16.mxu0 0
      %1710 = vmatpush2.bf16.xpose.msra.mxu0 0
      %1711 = vmatprep.subr.bf16.mxu0 0
      %1712 = vmatpush2.bf16.xpose.msra.mxu0 0
      %1713 = vmatprep.subr.bf16.mxu0 0
      %1714 = vmatpush2.bf16.xpose.msra.mxu0 0
      %1715 = vmatprep.subr.bf16.mxu0 0
      %1716 = vmatpush2.bf16.xpose.msra.mxu0 0
      %1717 = vmatprep.subr.bf16.mxu0 0
      %1718 = vmatpush2.bf16.xpose.msra.mxu0 0
      %1719 = vmatprep.subr.bf16.mxu0 0
      %1720 = vmatpush2.bf16.xpose.msra.mxu0 0
      %1721 = vmatprep.subr.bf16.mxu0 0
      %1722 = vmatpush2.bf16.xpose.msra.mxu0 0
      %1723 = vmatprep.mubr.bf16.mxu0 0
      %1724 = vmatmul.mubr.bf16.gmra.mxu0 %v1686
      %v1725 = vpop.f32.mrf.mxu0
      %v1726 = vadd.f32 0.0, %v1725
      %v1727 = vpop.f32.mrf.mxu0
      %v1728 = vpop.f32.mrf.mxu0
      %v1729 = vpop.f32.mrf.mxu0
      %1730 = vdwg.mxu0
      %v1731 = vmul.f32 %v1726, 0.35355338
      %v1732 = vsel %vm713, %v1731, -inf
      %1733 = vmax.xlane.f32.xlu0 %v1732
      %v1734 = vpop.xlane.xlu0 %1733
      %v1735 = vsub.f32 %v1731, %v1734
      %v1736 = vmul.f32 %v1735, 1.442695
      %v1737 = vpow.pop %v1736
      %v1738 = vsel %vm713, %v1737, 0.0
      %1739 = vadd.xlane.f32.xlu0 %v1738
      %v1740 = vpop.xlane.xlu0 %1739
      %v1741 = vrcp.pop %v1740
      %v1742 = vmul.f32 %v1737, %v1741
      %v1743 = vpack.c.bf16 %v1742, %v1742
      %1744 = vrot.lane.b32.xlu0 %v1568, 56
      %v1745 = vpop.permute.xlu0 %1744
      %v1747 = vsel %vm728, %v1743, 0
      %v1750 = vsel %vm732, %v1745, 0
      %1752 = vmatprep.subr.bf16.mxu0 0
      %1753 = vmatpush1.bf16.msra.mxu0 0
      %1754 = vmatprep.subr.bf16.mxu0 0
      %1755 = vmatpush1.bf16.msra.mxu0 0
      %1756 = vmatprep.subr.bf16.mxu0 0
      %1757 = vmatpush1.bf16.msra.mxu0 0
      %1758 = vmatprep.subr.bf16.mxu0 0
      %1759 = vmatpush1.bf16.msra.mxu0 0
      %1760 = vmatprep.subr.bf16.mxu0 0
      %1761 = vmatpush1.bf16.msra.mxu0 0
      %1762 = vmatprep.subr.bf16.mxu0 0
      %1763 = vmatpush1.bf16.msra.mxu0 0
      %1764 = vmatprep.subr.bf16.mxu0 0
      %1765 = vmatpush1.bf16.msra.mxu0 0
      %1766 = vmatprep.subr.bf16.mxu0 0
      %1767 = vmatpush1.bf16.msra.mxu0 %v1750
      %1768 = vmatprep.subr.bf16.mxu0 0
      %1769 = vmatpush2.bf16.msra.mxu0 0
      %1770 = vmatprep.subr.bf16.mxu0 0
      %1771 = vmatpush2.bf16.msra.mxu0 0
      %1772 = vmatprep.subr.bf16.mxu0 0
      %1773 = vmatpush2.bf16.msra.mxu0 0
      %1774 = vmatprep.subr.bf16.mxu0 0
      %1775 = vmatpush2.bf16.msra.mxu0 0
      %1776 = vmatprep.subr.bf16.mxu0 0
      %1777 = vmatpush2.bf16.msra.mxu0 0
      %1778 = vmatprep.subr.bf16.mxu0 0
      %1779 = vmatpush2.bf16.msra.mxu0 0
      %1780 = vmatprep.subr.bf16.mxu0 0
      %1781 = vmatpush2.bf16.msra.mxu0 0
      %1782 = vmatprep.subr.bf16.mxu0 0
      %1783 = vmatpush2.bf16.msra.mxu0 0
      %1784 = vmatprep.mubr.bf16.mxu0 0
      %1785 = vmatmul.mubr.bf16.gmra.mxu0 %v1747
      %v1786 = vpop.f32.mrf.mxu0
      %v1787 = vadd.f32 0.0, %v1786
      %v1788 = vpop.f32.mrf.mxu0
      %v1789 = vpop.f32.mrf.mxu0
      %v1790 = vpop.f32.mrf.mxu0
      %1791 = vdwg.mxu0
      %v1792 = vpack.c.bf16 %v1787, %v1787
      %v1793 = vpack.c.bf16 %v1565, %v1565
      %v1795 = vsel %vm665, %v1792, 0
      %v1798 = vsel %vm894, %v1793, 0
      %1800 = vmatprep.subr.bf16.mxu0 0
      %1801 = vmatpush1.bf16.msra.mxu0 0
      %1802 = vmatprep.subr.bf16.mxu0 0
      %1803 = vmatpush1.bf16.msra.mxu0 0
      %1804 = vmatprep.subr.bf16.mxu0 0
      %1805 = vmatpush1.bf16.msra.mxu0 0
      %1806 = vmatprep.subr.bf16.mxu0 0
      %1807 = vmatpush1.bf16.msra.mxu0 0
      %1808 = vmatprep.subr.bf16.mxu0 0
      %1809 = vmatpush1.bf16.msra.mxu0 0
      %1810 = vmatprep.subr.bf16.mxu0 0
      %1811 = vmatpush1.bf16.msra.mxu0 0
      %1812 = vmatprep.subr.bf16.mxu0 0
      %1813 = vmatpush1.bf16.msra.mxu0 0
      %1814 = vmatprep.subr.bf16.mxu0 0
      %1815 = vmatpush1.bf16.msra.mxu0 %v1798
      %1816 = vmatprep.subr.bf16.mxu0 0
      %1817 = vmatpush2.bf16.msra.mxu0 0
      %1818 = vmatprep.subr.bf16.mxu0 0
      %1819 = vmatpush2.bf16.msra.mxu0 0
      %1820 = vmatprep.subr.bf16.mxu0 0
      %1821 = vmatpush2.bf16.msra.mxu0 0
      %1822 = vmatprep.subr.bf16.mxu0 0
      %1823 = vmatpush2.bf16.msra.mxu0 0
      %1824 = vmatprep.subr.bf16.mxu0 0
      %1825 = vmatpush2.bf16.msra.mxu0 0
      %1826 = vmatprep.subr.bf16.mxu0 0
      %1827 = vmatpush2.bf16.msra.mxu0 0
      %1828 = vmatprep.subr.bf16.mxu0 0
      %1829 = vmatpush2.bf16.msra.mxu0 0
      %1830 = vmatprep.subr.bf16.mxu0 0
      %1831 = vmatpush2.bf16.msra.mxu0 0
      %1832 = vmatprep.mubr.bf16.mxu0 0
      %1833 = vmatmul.mubr.bf16.gmra.mxu0 %v1795
      %v1834 = vpop.f32.mrf.mxu0
      %v1835 = vadd.f32 0.0, %v1834
      %v1836 = vpop.f32.mrf.mxu0
      %v1837 = vpop.f32.mrf.mxu0
      %v1838 = vpop.f32.mrf.mxu0
      %1839 = vdwg.mxu0
      %v1841 = vsel %vm665, %v1679, 0
      %v1844 = vsel %vm894, %v1680, 0
      %1846 = vmatprep.subr.bf16.mxu0 0
      %1847 = vmatpush1.bf16.msra.mxu0 0
      %1848 = vmatprep.subr.bf16.mxu0 0
      %1849 = vmatpush1.bf16.msra.mxu0 0
      %1850 = vmatprep.subr.bf16.mxu0 0
      %1851 = vmatpush1.bf16.msra.mxu0 0
      %1852 = vmatprep.subr.bf16.mxu0 0
      %1853 = vmatpush1.bf16.msra.mxu0 0
      %1854 = vmatprep.subr.bf16.mxu0 0
      %1855 = vmatpush1.bf16.msra.mxu0 0
      %1856 = vmatprep.subr.bf16.mxu0 0
      %1857 = vmatpush1.bf16.msra.mxu0 0
      %1858 = vmatprep.subr.bf16.mxu0 0
      %1859 = vmatpush1.bf16.msra.mxu0 0
      %1860 = vmatprep.subr.bf16.mxu0 0
      %1861 = vmatpush1.bf16.msra.mxu0 %v1844
      %1862 = vmatprep.subr.bf16.mxu0 0
      %1863 = vmatpush2.bf16.msra.mxu0 0
      %1864 = vmatprep.subr.bf16.mxu0 0
      %1865 = vmatpush2.bf16.msra.mxu0 0
      %1866 = vmatprep.subr.bf16.mxu0 0
      %1867 = vmatpush2.bf16.msra.mxu0 0
      %1868 = vmatprep.subr.bf16.mxu0 0
      %1869 = vmatpush2.bf16.msra.mxu0 0
      %1870 = vmatprep.subr.bf16.mxu0 0
      %1871 = vmatpush2.bf16.msra.mxu0 0
      %1872 = vmatprep.subr.bf16.mxu0 0
      %1873 = vmatpush2.bf16.msra.mxu0 0
      %1874 = vmatprep.subr.bf16.mxu0 0
      %1875 = vmatpush2.bf16.msra.mxu0 0
      %1876 = vmatprep.subr.bf16.mxu0 0
      %1877 = vmatpush2.bf16.msra.mxu0 0
      %1878 = vmatprep.mubr.bf16.mxu0 0
      %1879 = vmatmul.mubr.bf16.gmra.mxu0 %v1841
      %v1880 = vpop.f32.mrf.mxu0
      %v1881 = vadd.f32 %v1835, %v1880
      %v1882 = vpop.f32.mrf.mxu0
      %v1883 = vpop.f32.mrf.mxu0
      %v1884 = vpop.f32.mrf.mxu0
      %1885 = vdwg.mxu0
      %1886 = vrot.lane.b32.xlu0 %v1568, 112
      %v1887 = vpop.permute.xlu0 %1886
      %1888 = vrot.lane.b32.xlu0 %v1568, 80
      %v1889 = vpop.permute.xlu0 %1888
      %v1891 = vsel %vm665, %v1887, 0
      %v1894 = vsel %vm665, %v1889, 0
      %1896 = vmatprep.subr.bf16.mxu0 0
      %1897 = vmatpush1.bf16.xpose.msra.mxu0 0
      %1898 = vmatprep.subr.bf16.mxu0 0
      %1899 = vmatpush1.bf16.xpose.msra.mxu0 0
      %1900 = vmatprep.subr.bf16.mxu0 0
      %1901 = vmatpush1.bf16.xpose.msra.mxu0 0
      %1902 = vmatprep.subr.bf16.mxu0 0
      %1903 = vmatpush1.bf16.xpose.msra.mxu0 0
      %1904 = vmatprep.subr.bf16.mxu0 0
      %1905 = vmatpush1.bf16.xpose.msra.mxu0 0
      %1906 = vmatprep.subr.bf16.mxu0 0
      %1907 = vmatpush1.bf16.xpose.msra.mxu0 0
      %1908 = vmatprep.subr.bf16.mxu0 0
      %1909 = vmatpush1.bf16.xpose.msra.mxu0 0
      %1910 = vmatprep.subr.bf16.mxu0 0
      %1911 = vmatpush1.bf16.xpose.msra.mxu0 %v1894
      %1912 = vmatprep.subr.bf16.mxu0 0
      %1913 = vmatpush2.bf16.xpose.msra.mxu0 0
      %1914 = vmatprep.subr.bf16.mxu0 0
      %1915 = vmatpush2.bf16.xpose.msra.mxu0 0
      %1916 = vmatprep.subr.bf16.mxu0 0
      %1917 = vmatpush2.bf16.xpose.msra.mxu0 0
      %1918 = vmatprep.subr.bf16.mxu0 0
      %1919 = vmatpush2.bf16.xpose.msra.mxu0 0
      %1920 = vmatprep.subr.bf16.mxu0 0
      %1921 = vmatpush2.bf16.xpose.msra.mxu0 0
      %1922 = vmatprep.subr.bf16.mxu0 0
      %1923 = vmatpush2.bf16.xpose.msra.mxu0 0
      %1924 = vmatprep.subr.bf16.mxu0 0
      %1925 = vmatpush2.bf16.xpose.msra.mxu0 0
      %1926 = vmatprep.subr.bf16.mxu0 0
      %1927 = vmatpush2.bf16.xpose.msra.mxu0 0
      %1928 = vmatprep.mubr.bf16.mxu0 0
      %1929 = vmatmul.mubr.bf16.gmra.mxu0 %v1891
      %v1930 = vpop.f32.mrf.mxu0
      %v1931 = vadd.f32 0.0, %v1930
      %v1932 = vpop.f32.mrf.mxu0
      %v1933 = vpop.f32.mrf.mxu0
      %v1934 = vpop.f32.mrf.mxu0
      %1935 = vdwg.mxu0
      %v1936 = vmul.f32 %v1931, 0.35355338
      %v1937 = vsel %vm713, %v1936, -inf
      %1938 = vmax.xlane.f32.xlu0 %v1937
      %v1939 = vpop.xlane.xlu0 %1938
      %v1940 = vsub.f32 %v1936, %v1939
      %v1941 = vmul.f32 %v1940, 1.442695
      %v1942 = vpow.pop %v1941
      %v1943 = vsel %vm713, %v1942, 0.0
      %1944 = vadd.xlane.f32.xlu0 %v1943
      %v1945 = vpop.xlane.xlu0 %1944
      %v1946 = vrcp.pop %v1945
      %v1947 = vmul.f32 %v1942, %v1946
      %v1948 = vpack.c.bf16 %v1947, %v1947
      %1949 = vrot.lane.b32.xlu0 %v1568, 48
      %v1950 = vpop.permute.xlu0 %1949
      %v1952 = vsel %vm728, %v1948, 0
      %v1955 = vsel %vm732, %v1950, 0
      %1957 = vmatprep.subr.bf16.mxu0 0
      %1958 = vmatpush1.bf16.msra.mxu0 0
      %1959 = vmatprep.subr.bf16.mxu0 0
      %1960 = vmatpush1.bf16.msra.mxu0 0
      %1961 = vmatprep.subr.bf16.mxu0 0
      %1962 = vmatpush1.bf16.msra.mxu0 0
      %1963 = vmatprep.subr.bf16.mxu0 0
      %1964 = vmatpush1.bf16.msra.mxu0 0
      %1965 = vmatprep.subr.bf16.mxu0 0
      %1966 = vmatpush1.bf16.msra.mxu0 0
      %1967 = vmatprep.subr.bf16.mxu0 0
      %1968 = vmatpush1.bf16.msra.mxu0 0
      %1969 = vmatprep.subr.bf16.mxu0 0
      %1970 = vmatpush1.bf16.msra.mxu0 0
      %1971 = vmatprep.subr.bf16.mxu0 0
      %1972 = vmatpush1.bf16.msra.mxu0 %v1955
      %1973 = vmatprep.subr.bf16.mxu0 0
      %1974 = vmatpush2.bf16.msra.mxu0 0
      %1975 = vmatprep.subr.bf16.mxu0 0
      %1976 = vmatpush2.bf16.msra.mxu0 0
      %1977 = vmatprep.subr.bf16.mxu0 0
      %1978 = vmatpush2.bf16.msra.mxu0 0
      %1979 = vmatprep.subr.bf16.mxu0 0
      %1980 = vmatpush2.bf16.msra.mxu0 0
      %1981 = vmatprep.subr.bf16.mxu0 0
      %1982 = vmatpush2.bf16.msra.mxu0 0
      %1983 = vmatprep.subr.bf16.mxu0 0
      %1984 = vmatpush2.bf16.msra.mxu0 0
      %1985 = vmatprep.subr.bf16.mxu0 0
      %1986 = vmatpush2.bf16.msra.mxu0 0
      %1987 = vmatprep.subr.bf16.mxu0 0
      %1988 = vmatpush2.bf16.msra.mxu0 0
      %1989 = vmatprep.mubr.bf16.mxu0 0
      %1990 = vmatmul.mubr.bf16.gmra.mxu0 %v1952
      %v1991 = vpop.f32.mrf.mxu0
      %v1992 = vadd.f32 0.0, %v1991
      %v1993 = vpop.f32.mrf.mxu0
      %v1994 = vpop.f32.mrf.mxu0
      %v1995 = vpop.f32.mrf.mxu0
      %1996 = vdwg.mxu0
      %v1997 = vpack.c.bf16 %v1992, %v1992
      %v1998 = vpack.c.bf16 %v1566, %v1566
      %v2000 = vsel %vm665, %v1997, 0
      %v2003 = vsel %vm894, %v1998, 0
      %2005 = vmatprep.subr.bf16.mxu0 0
      %2006 = vmatpush1.bf16.msra.mxu0 0
      %2007 = vmatprep.subr.bf16.mxu0 0
      %2008 = vmatpush1.bf16.msra.mxu0 0
      %2009 = vmatprep.subr.bf16.mxu0 0
      %2010 = vmatpush1.bf16.msra.mxu0 0
      %2011 = vmatprep.subr.bf16.mxu0 0
      %2012 = vmatpush1.bf16.msra.mxu0 0
      %2013 = vmatprep.subr.bf16.mxu0 0
      %2014 = vmatpush1.bf16.msra.mxu0 0
      %2015 = vmatprep.subr.bf16.mxu0 0
      %2016 = vmatpush1.bf16.msra.mxu0 0
      %2017 = vmatprep.subr.bf16.mxu0 0
      %2018 = vmatpush1.bf16.msra.mxu0 0
      %2019 = vmatprep.subr.bf16.mxu0 0
      %2020 = vmatpush1.bf16.msra.mxu0 %v2003
      %2021 = vmatprep.subr.bf16.mxu0 0
      %2022 = vmatpush2.bf16.msra.mxu0 0
      %2023 = vmatprep.subr.bf16.mxu0 0
      %2024 = vmatpush2.bf16.msra.mxu0 0
      %2025 = vmatprep.subr.bf16.mxu0 0
      %2026 = vmatpush2.bf16.msra.mxu0 0
      %2027 = vmatprep.subr.bf16.mxu0 0
      %2028 = vmatpush2.bf16.msra.mxu0 0
      %2029 = vmatprep.subr.bf16.mxu0 0
      %2030 = vmatpush2.bf16.msra.mxu0 0
      %2031 = vmatprep.subr.bf16.mxu0 0
      %2032 = vmatpush2.bf16.msra.mxu0 0
      %2033 = vmatprep.subr.bf16.mxu0 0
      %2034 = vmatpush2.bf16.msra.mxu0 0
      %2035 = vmatprep.subr.bf16.mxu0 0
      %2036 = vmatpush2.bf16.msra.mxu0 0
      %2037 = vmatprep.mubr.bf16.mxu0 0
      %2038 = vmatmul.mubr.bf16.gmra.mxu0 %v2000
      %v2039 = vpop.f32.mrf.mxu0
      %v2040 = vadd.f32 0.0, %v2039
      %v2041 = vpop.f32.mrf.mxu0
      %v2042 = vpop.f32.mrf.mxu0
      %v2043 = vpop.f32.mrf.mxu0
      %2044 = vdwg.mxu0
      %v2045 = vadd.f32 %v1881, %v2040
      %2046 = vrot.lane.b32.xlu0 %v1568, 104
      %v2047 = vpop.permute.xlu0 %2046
      %2048 = vrot.lane.b32.xlu0 %v1568, 72
      %v2049 = vpop.permute.xlu0 %2048
      %v2051 = vsel %vm665, %v2047, 0
      %v2054 = vsel %vm665, %v2049, 0
      %2056 = vmatprep.subr.bf16.mxu0 0
      %2057 = vmatpush1.bf16.xpose.msra.mxu0 0
      %2058 = vmatprep.subr.bf16.mxu0 0
      %2059 = vmatpush1.bf16.xpose.msra.mxu0 0
      %2060 = vmatprep.subr.bf16.mxu0 0
      %2061 = vmatpush1.bf16.xpose.msra.mxu0 0
      %2062 = vmatprep.subr.bf16.mxu0 0
      %2063 = vmatpush1.bf16.xpose.msra.mxu0 0
      %2064 = vmatprep.subr.bf16.mxu0 0
      %2065 = vmatpush1.bf16.xpose.msra.mxu0 0
      %2066 = vmatprep.subr.bf16.mxu0 0
      %2067 = vmatpush1.bf16.xpose.msra.mxu0 0
      %2068 = vmatprep.subr.bf16.mxu0 0
      %2069 = vmatpush1.bf16.xpose.msra.mxu0 0
      %2070 = vmatprep.subr.bf16.mxu0 0
      %2071 = vmatpush1.bf16.xpose.msra.mxu0 %v2054
      %2072 = vmatprep.subr.bf16.mxu0 0
      %2073 = vmatpush2.bf16.xpose.msra.mxu0 0
      %2074 = vmatprep.subr.bf16.mxu0 0
      %2075 = vmatpush2.bf16.xpose.msra.mxu0 0
      %2076 = vmatprep.subr.bf16.mxu0 0
      %2077 = vmatpush2.bf16.xpose.msra.mxu0 0
      %2078 = vmatprep.subr.bf16.mxu0 0
      %2079 = vmatpush2.bf16.xpose.msra.mxu0 0
      %2080 = vmatprep.subr.bf16.mxu0 0
      %2081 = vmatpush2.bf16.xpose.msra.mxu0 0
      %2082 = vmatprep.subr.bf16.mxu0 0
      %2083 = vmatpush2.bf16.xpose.msra.mxu0 0
      %2084 = vmatprep.subr.bf16.mxu0 0
      %2085 = vmatpush2.bf16.xpose.msra.mxu0 0
      %2086 = vmatprep.subr.bf16.mxu0 0
      %2087 = vmatpush2.bf16.xpose.msra.mxu0 0
      %2088 = vmatprep.mubr.bf16.mxu0 0
      %2089 = vmatmul.mubr.bf16.gmra.mxu0 %v2051
      %v2090 = vpop.f32.mrf.mxu0
      %v2091 = vadd.f32 0.0, %v2090
      %v2092 = vpop.f32.mrf.mxu0
      %v2093 = vpop.f32.mrf.mxu0
      %v2094 = vpop.f32.mrf.mxu0
      %2095 = vdwg.mxu0
      %v2096 = vmul.f32 %v2091, 0.35355338
      %v2097 = vsel %vm713, %v2096, -inf
      %2098 = vmax.xlane.f32.xlu0 %v2097
      %v2099 = vpop.xlane.xlu0 %2098
      %v2100 = vsub.f32 %v2096, %v2099
      %v2101 = vmul.f32 %v2100, 1.442695
      %v2102 = vpow.pop %v2101
      %v2103 = vsel %vm713, %v2102, 0.0
      %2104 = vadd.xlane.f32.xlu0 %v2103
      %v2105 = vpop.xlane.xlu0 %2104
      %v2106 = vrcp.pop %v2105
      %v2107 = vmul.f32 %v2102, %v2106
      %v2108 = vpack.c.bf16 %v2107, %v2107
      %2109 = vrot.lane.b32.xlu0 %v1568, 40
      %v2110 = vpop.permute.xlu0 %2109
      %v2112 = vsel %vm728, %v2108, 0
      %v2115 = vsel %vm732, %v2110, 0
      %2117 = vmatprep.subr.bf16.mxu0 0
      %2118 = vmatpush1.bf16.msra.mxu0 0
      %2119 = vmatprep.subr.bf16.mxu0 0
      %2120 = vmatpush1.bf16.msra.mxu0 0
      %2121 = vmatprep.subr.bf16.mxu0 0
      %2122 = vmatpush1.bf16.msra.mxu0 0
      %2123 = vmatprep.subr.bf16.mxu0 0
      %2124 = vmatpush1.bf16.msra.mxu0 0
      %2125 = vmatprep.subr.bf16.mxu0 0
      %2126 = vmatpush1.bf16.msra.mxu0 0
      %2127 = vmatprep.subr.bf16.mxu0 0
      %2128 = vmatpush1.bf16.msra.mxu0 0
      %2129 = vmatprep.subr.bf16.mxu0 0
      %2130 = vmatpush1.bf16.msra.mxu0 0
      %2131 = vmatprep.subr.bf16.mxu0 0
      %2132 = vmatpush1.bf16.msra.mxu0 %v2115
      %2133 = vmatprep.subr.bf16.mxu0 0
      %2134 = vmatpush2.bf16.msra.mxu0 0
      %2135 = vmatprep.subr.bf16.mxu0 0
      %2136 = vmatpush2.bf16.msra.mxu0 0
      %2137 = vmatprep.subr.bf16.mxu0 0
      %2138 = vmatpush2.bf16.msra.mxu0 0
      %2139 = vmatprep.subr.bf16.mxu0 0
      %2140 = vmatpush2.bf16.msra.mxu0 0
      %2141 = vmatprep.subr.bf16.mxu0 0
      %2142 = vmatpush2.bf16.msra.mxu0 0
      %2143 = vmatprep.subr.bf16.mxu0 0
      %2144 = vmatpush2.bf16.msra.mxu0 0
      %2145 = vmatprep.subr.bf16.mxu0 0
      %2146 = vmatpush2.bf16.msra.mxu0 0
      %2147 = vmatprep.subr.bf16.mxu0 0
      %2148 = vmatpush2.bf16.msra.mxu0 0
      %2149 = vmatprep.mubr.bf16.mxu0 0
      %2150 = vmatmul.mubr.bf16.gmra.mxu0 %v2112
      %v2151 = vpop.f32.mrf.mxu0
      %v2152 = vadd.f32 0.0, %v2151
      %v2153 = vpop.f32.mrf.mxu0
      %v2154 = vpop.f32.mrf.mxu0
      %v2155 = vpop.f32.mrf.mxu0
      %2156 = vdwg.mxu0
      %v2157 = vpack.c.bf16 %v2152, %v2152
      %v2158 = vpack.c.bf16 %v1567, %v1567
      %v2160 = vsel %vm665, %v2157, 0
      %v2163 = vsel %vm894, %v2158, 0
      %2165 = vmatprep.subr.bf16.mxu0 0
      %2166 = vmatpush1.bf16.msra.mxu0 0
      %2167 = vmatprep.subr.bf16.mxu0 0
      %2168 = vmatpush1.bf16.msra.mxu0 0
      %2169 = vmatprep.subr.bf16.mxu0 0
      %2170 = vmatpush1.bf16.msra.mxu0 0
      %2171 = vmatprep.subr.bf16.mxu0 0
      %2172 = vmatpush1.bf16.msra.mxu0 0
      %2173 = vmatprep.subr.bf16.mxu0 0
      %2174 = vmatpush1.bf16.msra.mxu0 0
      %2175 = vmatprep.subr.bf16.mxu0 0
      %2176 = vmatpush1.bf16.msra.mxu0 0
      %2177 = vmatprep.subr.bf16.mxu0 0
      %2178 = vmatpush1.bf16.msra.mxu0 0
      %2179 = vmatprep.subr.bf16.mxu0 0
      %2180 = vmatpush1.bf16.msra.mxu0 %v2163
      %2181 = vmatprep.subr.bf16.mxu0 0
      %2182 = vmatpush2.bf16.msra.mxu0 0
      %2183 = vmatprep.subr.bf16.mxu0 0
      %2184 = vmatpush2.bf16.msra.mxu0 0
      %2185 = vmatprep.subr.bf16.mxu0 0
      %2186 = vmatpush2.bf16.msra.mxu0 0
      %2187 = vmatprep.subr.bf16.mxu0 0
      %2188 = vmatpush2.bf16.msra.mxu0 0
      %2189 = vmatprep.subr.bf16.mxu0 0
      %2190 = vmatpush2.bf16.msra.mxu0 0
      %2191 = vmatprep.subr.bf16.mxu0 0
      %2192 = vmatpush2.bf16.msra.mxu0 0
      %2193 = vmatprep.subr.bf16.mxu0 0
      %2194 = vmatpush2.bf16.msra.mxu0 0
      %2195 = vmatprep.subr.bf16.mxu0 0
      %2196 = vmatpush2.bf16.msra.mxu0 0
      %2197 = vmatprep.mubr.bf16.mxu0 0
      %2198 = vmatmul.mubr.bf16.gmra.mxu0 %v2160
      %v2199 = vpop.f32.mrf.mxu0
      %v2200 = vadd.f32 0.0, %v2199
      %v2201 = vpop.f32.mrf.mxu0
      %v2202 = vpop.f32.mrf.mxu0
      %v2203 = vpop.f32.mrf.mxu0
      %2204 = vdwg.mxu0
      %v2205 = vadd.f32 %v2045, %v2200
      %v2206 = vadd.f32 %v1480, %v2205
      %s2207 = scalar_lea.vmem %s5, 1
      %v2208 = vld [vmem:[%s2207] sm:$0x1]
      %v2210 = vlaneseq
      %v2211 = vshrl.u32 %v2210, 7
      %v2212 = vsub.s32 0, %v2211
      %v2213 = vrot.slane %v2208, %v2212
      %v2215 = vadd.f32 %v2206, %v2213
      %s2216 = scalar_lea.vmem %s6, 1
      %v2217 = vld [vmem:[%s2216] sm:$0x1]
      %s2218 = scalar_lea.vmem %s7, 1
      %v2219 = vld [vmem:[%s2218] sm:$0x1]
      %v2220 = vsel %vm577, %v2215, 0.0
      %2221 = vadd.xlane.f32.xlu0 %v2220
      %v2222 = vpop.xlane.xlu0 %2221
      %v2223 = vmul.f32 %v2222, %v581
      %v2224 = vsub.f32 %v2215, %v2223
      %v2225 = vmul.f32 %v2224, %v2224
      %v2226 = vsel %vm577, %v2225, 0.0
      %2227 = vadd.xlane.f32.xlu0 %v2226
      %v2228 = vpop.xlane.xlu0 %2227
      %v2229 = vmul.f32 %v2228, %v581
      %v2230 = vadd.f32 %v2229, 1e-05
      %v2231 = vrsqrt.pop %v2230
      %v2232 = vmul.f32 %v2224, %v2231
      %v2234 = vlaneseq
      %v2235 = vshrl.u32 %v2234, 7
      %v2236 = vsub.s32 0, %v2235
      %v2237 = vrot.slane %v2217, %v2236
      %v2239 = vmul.f32 %v2232, %v2237
      %v2241 = vlaneseq
      %v2242 = vshrl.u32 %v2241, 7
      %v2243 = vsub.s32 0, %v2242
      %v2244 = vrot.slane %v2219, %v2243
      %v2246 = vadd.f32 %v2239, %v2244
      %s2247 = scalar_lea.vmem %s8, 32
      %v2248 = vld [vmem:[%s2247] sm:$0xff]
      %v2249 = vld [vmem:[%s2247 + $0x8] sm:$0xff]
      %v2250 = vld [vmem:[%s2247 + $0x10] sm:$0xff]
      %v2251 = vld [vmem:[%s2247 + $0x18] sm:$0xff]
      %v2252 = vpack.c.bf16 %v2246, %v2246
      %v2253 = vpack.c.bf16 %v2249, %v2248
      %v2254 = vpack.c.bf16 %v2251, %v2250
      %s2255 = scalar_lea.vmem %s9, 1
      %v2256 = vld [vmem:[%s2255] sm:$0x1]
      %v2258 = vlaneseq
      %v2259 = vshrl.u32 %v2258, 7
      %v2260 = vsub.s32 0, %v2259
      %v2261 = vrot.slane %v2256, %v2260
      %v2264 = vsel %vm613, %v2252, 0
      %2266 = vmatprep.subr.bf16.mxu0 0
      %2267 = vmatpush1.bf16.msra.mxu0 0
      %2268 = vmatprep.subr.bf16.mxu0 0
      %2269 = vmatpush1.bf16.msra.mxu0 0
      %2270 = vmatprep.subr.bf16.mxu0 0
      %2271 = vmatpush1.bf16.msra.mxu0 0
      %2272 = vmatprep.subr.bf16.mxu0 0
      %2273 = vmatpush1.bf16.msra.mxu0 0
      %2274 = vmatprep.subr.bf16.mxu0 0
      %2275 = vmatpush1.bf16.msra.mxu0 0
      %2276 = vmatprep.subr.bf16.mxu0 0
      %2277 = vmatpush1.bf16.msra.mxu0 0
      %2278 = vmatprep.subr.bf16.mxu0 0
      %2279 = vmatpush1.bf16.msra.mxu0 %v2254
      %2280 = vmatprep.subr.bf16.mxu0 0
      %2281 = vmatpush1.bf16.msra.mxu0 %v2253
      %2282 = vmatprep.subr.bf16.mxu0 0
      %2283 = vmatpush2.bf16.msra.mxu0 0
      %2284 = vmatprep.subr.bf16.mxu0 0
      %2285 = vmatpush2.bf16.msra.mxu0 0
      %2286 = vmatprep.subr.bf16.mxu0 0
      %2287 = vmatpush2.bf16.msra.mxu0 0
      %2288 = vmatprep.subr.bf16.mxu0 0
      %2289 = vmatpush2.bf16.msra.mxu0 0
      %2290 = vmatprep.subr.bf16.mxu0 0
      %2291 = vmatpush2.bf16.msra.mxu0 0
      %2292 = vmatprep.subr.bf16.mxu0 0
      %2293 = vmatpush2.bf16.msra.mxu0 0
      %2294 = vmatprep.subr.bf16.mxu0 0
      %2295 = vmatpush2.bf16.msra.mxu0 0
      %2296 = vmatprep.subr.bf16.mxu0 0
      %2297 = vmatpush2.bf16.msra.mxu0 0
      %2298 = vmatprep.mubr.bf16.mxu0 0
      %2299 = vmatmul.mubr.bf16.gmra.mxu0 %v2264
      %v2300 = vpop.f32.mrf.mxu0
      %v2301 = vadd.f32 %v2261, %v2300
      %v2302 = vpop.f32.mrf.mxu0
      %v2303 = vpop.f32.mrf.mxu0
      %v2304 = vpop.f32.mrf.mxu0
      %2305 = vdwg.mxu0
      %v2306 = vmul.f32 %v2301, %v2301
      %v2307 = vmul.f32 %v2301, %v2306
      %v2308 = vmul.f32 %v2307, 0.044715
      %v2309 = vadd.f32 %v2301, %v2308
      %v2310 = vmul.f32 %v2309, 0.7978846
      %v2311 = vtanh.pop %v2310
      %v2312 = vadd.f32 %v2311, 1.0
      %v2313 = vmul.f32 %v2312, 0.5
      %v2314 = vmul.f32 %v2301, %v2313
      %s2315 = scalar_lea.vmem %s10, 128
      %v2316 = vld [vmem:[%s2315] sm:$0xff]
      %v2317 = vld [vmem:[%s2315 + $0x8] sm:$0xff]
      %v2318 = vld [vmem:[%s2315 + $0x10] sm:$0xff]
      %v2319 = vld [vmem:[%s2315 + $0x18] sm:$0xff]
      %v2320 = vld [vmem:[%s2315 + $0x20] sm:$0xff]
      %v2321 = vld [vmem:[%s2315 + $0x28] sm:$0xff]
      %v2322 = vld [vmem:[%s2315 + $0x30] sm:$0xff]
      %v2323 = vld [vmem:[%s2315 + $0x38] sm:$0xff]
      %v2324 = vld [vmem:[%s2315 + $0x40] sm:$0xff]
      %v2325 = vld [vmem:[%s2315 + $0x48] sm:$0xff]
      %v2326 = vld [vmem:[%s2315 + $0x50] sm:$0xff]
      %v2327 = vld [vmem:[%s2315 + $0x58] sm:$0xff]
      %v2328 = vld [vmem:[%s2315 + $0x60] sm:$0xff]
      %v2329 = vld [vmem:[%s2315 + $0x68] sm:$0xff]
      %v2330 = vld [vmem:[%s2315 + $0x70] sm:$0xff]
      %v2331 = vld [vmem:[%s2315 + $0x78] sm:$0xff]
      %v2332 = vpack.c.bf16 %v2314, %v2314
      %v2333 = vpack.c.bf16 %v2317, %v2316
      %v2334 = vpack.c.bf16 %v2319, %v2318
      %v2335 = vpack.c.bf16 %v2321, %v2320
      %v2336 = vpack.c.bf16 %v2323, %v2322
      %v2337 = vpack.c.bf16 %v2325, %v2324
      %v2338 = vpack.c.bf16 %v2327, %v2326
      %v2339 = vpack.c.bf16 %v2329, %v2328
      %v2340 = vpack.c.bf16 %v2331, %v2330
      %s2341 = scalar_lea.vmem %s11, 1
      %v2342 = vld [vmem:[%s2341] sm:$0x1]
      %v2344 = vlaneseq
      %v2345 = vshrl.u32 %v2344, 7
      %v2346 = vsub.s32 0, %v2345
      %v2347 = vrot.slane %v2342, %v2346
      %2349 = vmatprep.subr.bf16.mxu0 0
      %2350 = vmatpush1.bf16.msra.mxu0 %v2340
      %2351 = vmatprep.subr.bf16.mxu0 0
      %2352 = vmatpush1.bf16.msra.mxu0 %v2339
      %2353 = vmatprep.subr.bf16.mxu0 0
      %2354 = vmatpush1.bf16.msra.mxu0 %v2338
      %2355 = vmatprep.subr.bf16.mxu0 0
      %2356 = vmatpush1.bf16.msra.mxu0 %v2337
      %2357 = vmatprep.subr.bf16.mxu0 0
      %2358 = vmatpush1.bf16.msra.mxu0 %v2336
      %2359 = vmatprep.subr.bf16.mxu0 0
      %2360 = vmatpush1.bf16.msra.mxu0 %v2335
      %2361 = vmatprep.subr.bf16.mxu0 0
      %2362 = vmatpush1.bf16.msra.mxu0 %v2334
      %2363 = vmatprep.subr.bf16.mxu0 0
      %2364 = vmatpush1.bf16.msra.mxu0 %v2333
      %2365 = vmatprep.subr.bf16.mxu0 0
      %2366 = vmatpush2.bf16.msra.mxu0 0
      %2367 = vmatprep.subr.bf16.mxu0 0
      %2368 = vmatpush2.bf16.msra.mxu0 0
      %2369 = vmatprep.subr.bf16.mxu0 0
      %2370 = vmatpush2.bf16.msra.mxu0 0
      %2371 = vmatprep.subr.bf16.mxu0 0
      %2372 = vmatpush2.bf16.msra.mxu0 0
      %2373 = vmatprep.subr.bf16.mxu0 0
      %2374 = vmatpush2.bf16.msra.mxu0 0
      %2375 = vmatprep.subr.bf16.mxu0 0
      %2376 = vmatpush2.bf16.msra.mxu0 0
      %2377 = vmatprep.subr.bf16.mxu0 0
      %2378 = vmatpush2.bf16.msra.mxu0 0
      %2379 = vmatprep.subr.bf16.mxu0 0
      %2380 = vmatpush2.bf16.msra.mxu0 0
      %2381 = vmatprep.mubr.bf16.mxu0 0
      %2382 = vmatmul.mubr.bf16.gmra.mxu0 %v2332
      %v2383 = vpop.f32.mrf.mxu0
      %v2384 = vadd.f32 %v2347, %v2383
      %v2385 = vpop.f32.mrf.mxu0
      %v2386 = vpop.f32.mrf.mxu0
      %v2387 = vpop.f32.mrf.mxu0
      %2388 = vdwg.mxu0
      %v2389 = vadd.f32 %v2215, %v2384
      %v2390 = vld [vmem:[%s12] sm:$0x1]
      %v2391 = vld [vmem:[%s13] sm:$0x1]
      %v2392 = vsel %vm577, %v2389, 0.0
      %2393 = vadd.xlane.f32.xlu0 %v2392
      %v2394 = vpop.xlane.xlu0 %2393
      %v2395 = vmul.f32 %v2394, %v581
      %v2396 = vsub.f32 %v2389, %v2395
      %v2397 = vmul.f32 %v2396, %v2396
      %v2398 = vsel %vm577, %v2397, 0.0
      %2399 = vadd.xlane.f32.xlu0 %v2398
      %v2400 = vpop.xlane.xlu0 %2399
      %v2401 = vmul.f32 %v2400, %v581
      %v2402 = vadd.f32 %v2401, 1e-05
      %v2403 = vrsqrt.pop %v2402
      %v2404 = vmul.f32 %v2396, %v2403
      %v2406 = vlaneseq
      %v2407 = vshrl.u32 %v2406, 7
      %v2408 = vsub.s32 0, %v2407
      %v2409 = vrot.slane %v2390, %v2408
      %v2411 = vmul.f32 %v2404, %v2409
      %v2413 = vlaneseq
      %v2414 = vshrl.u32 %v2413, 7
      %v2415 = vsub.s32 0, %v2414
      %v2416 = vrot.slane %v2391, %v2415
      %v2418 = vadd.f32 %v2411, %v2416
      %v2419 = vld [vmem:[%s14] sm:$0x1]
      %v2420 = vld [vmem:[%s15] sm:$0x1]
      %v2421 = vsel %vm577, %v2418, 0.0
      %2422 = vadd.xlane.f32.xlu0 %v2421
      %v2423 = vpop.xlane.xlu0 %2422
      %v2424 = vmul.f32 %v2423, %v581
      %v2425 = vsub.f32 %v2418, %v2424
      %v2426 = vmul.f32 %v2425, %v2425
      %v2427 = vsel %vm577, %v2426, 0.0
      %2428 = vadd.xlane.f32.xlu0 %v2427
      %v2429 = vpop.xlane.xlu0 %2428
      %v2430 = vmul.f32 %v2429, %v581
      %v2431 = vadd.f32 %v2430, 1e-05
      %v2432 = vrsqrt.pop %v2431
      %v2433 = vmul.f32 %v2425, %v2432
      %v2435 = vlaneseq
      %v2436 = vshrl.u32 %v2435, 7
      %v2437 = vsub.s32 0, %v2436
      %v2438 = vrot.slane %v2419, %v2437
      %v2440 = vmul.f32 %v2433, %v2438
      %v2442 = vlaneseq
      %v2443 = vshrl.u32 %v2442, 7
      %v2444 = vsub.s32 0, %v2443
      %v2445 = vrot.slane %v2420, %v2444
      %v2447 = vadd.f32 %v2440, %v2445
      %v2448 = vld [vmem:[%s16] sm:$0xff]
      %v2449 = vld [vmem:[%s16 + $0x8] sm:$0xff]
      %v2450 = vld [vmem:[%s16 + $0x10] sm:$0xff]
      %v2451 = vld [vmem:[%s16 + $0x18] sm:$0xff]
      %v2452 = vld [vmem:[%s16 + $0x20] sm:$0xff]
      %v2453 = vld [vmem:[%s16 + $0x28] sm:$0xff]
      %v2454 = vld [vmem:[%s16 + $0x30] sm:$0xff]
      %v2455 = vld [vmem:[%s16 + $0x38] sm:$0xff]
      %v2456 = vpack.c.bf16 %v2447, %v2447
      %v2457 = vpack.c.bf16 %v2450, %v2448
      %v2458 = vpack.c.bf16 %v2451, %v2449
      %v2459 = vpack.c.bf16 %v2454, %v2452
      %v2460 = vpack.c.bf16 %v2455, %v2453
      %v2461 = vld [vmem:[%s17] sm:$0x3]
      %v2463 = vlaneseq
      %v2464 = vshrl.u32 %v2463, 7
      %v2465 = vsub.s32 0, %v2464
      %v2466 = vrot.slane %v2461, %v2465
      %v2467 = vlaneseq
      %v2468 = vshrl.u32 %v2467, 7
      %v2469 = vsub.s32 1, %v2468
      %v2470 = vrot.slane %v2461, %v2469
      %v2474 = vsel %vm613, %v2456, 0
      %2476 = vmatprep.subr.bf16.mxu0 0
      %2477 = vmatpush1.bf16.msra.mxu0 0
      %2478 = vmatprep.subr.bf16.mxu0 0
      %2479 = vmatpush1.bf16.msra.mxu0 0
      %2480 = vmatprep.subr.bf16.mxu0 0
      %2481 = vmatpush1.bf16.msra.mxu0 0
      %2482 = vmatprep.subr.bf16.mxu0 0
      %2483 = vmatpush1.bf16.msra.mxu0 0
      %2484 = vmatprep.subr.bf16.mxu0 0
      %2485 = vmatpush1.bf16.msra.mxu0 0
      %2486 = vmatprep.subr.bf16.mxu0 0
      %2487 = vmatpush1.bf16.msra.mxu0 0
      %2488 = vmatprep.subr.bf16.mxu0 %v2460
      %2489 = vmatpush1.bf16.msra.mxu0 %v2459
      %2490 = vmatprep.subr.bf16.mxu0 %v2458
      %2491 = vmatpush1.bf16.msra.mxu0 %v2457
      %2492 = vmatprep.subr.bf16.mxu0 0
      %2493 = vmatpush2.bf16.msra.mxu0 0
      %2494 = vmatprep.subr.bf16.mxu0 0
      %2495 = vmatpush2.bf16.msra.mxu0 0
      %2496 = vmatprep.subr.bf16.mxu0 0
      %2497 = vmatpush2.bf16.msra.mxu0 0
      %2498 = vmatprep.subr.bf16.mxu0 0
      %2499 = vmatpush2.bf16.msra.mxu0 0
      %2500 = vmatprep.subr.bf16.mxu0 0
      %2501 = vmatpush2.bf16.msra.mxu0 0
      %2502 = vmatprep.subr.bf16.mxu0 0
      %2503 = vmatpush2.bf16.msra.mxu0 0
      %2504 = vmatprep.subr.bf16.mxu0 0
      %2505 = vmatpush2.bf16.msra.mxu0 0
      %2506 = vmatprep.subr.bf16.mxu0 0
      %2507 = vmatpush2.bf16.msra.mxu0 0
      %2508 = vmatprep.mubr.bf16.mxu0 0
      %2509 = vmatmul.mubr.bf16.gmra.mxu0 %v2474
      %v2510 = vpop.f32.mrf.mxu0
      %v2511 = vadd.f32 %v2466, %v2510
      %v2512 = vpop.f32.mrf.mxu0
      %v2513 = vadd.f32 %v2470, %v2512
      %v2514 = vpop.f32.mrf.mxu0
      %v2515 = vpop.f32.mrf.mxu0
      %2516 = vdwg.mxu0
      %v2519 = vcombine.low %v2511, %v2513
      %2521 = vst [vmem:[%s572] sm:$0xff] %v2519
      %p2522 = scmp.lt.s32.totalorder %s29, 1
      %s2523 = scalar_select %p2522, %s29, 1
      %s2524 = smul.addr %s2523, 2
      %s2525 = smul.addr %s2524, 4
      %s2526 = scalar_lea.vmem %s18, %s2525
      // Predicated region
      $region93: #{traffic_vivit_forward.3} parent=91 // pred_check
        %p2527 = pneg %p430
      $region94: #{traffic_vivit_forward.3} parent=91 // pred_check_branch
        %2529 = sbr.rel (%p2527) target = $region96
      $region95: #{traffic_vivit_forward.3} parent=91 // pred_region
        _
      $region96: #{traffic_vivit_forward.3} parent=91 // pred_fallthru
        _
    $region92: #{traffic_vivit_forward.3} parent=5 // pred_fallthru
      _
    %p2530 = scmp.le.s32.totalorder 2, %s24
    // Predicated region
    $region97: #{traffic_vivit_forward.3} parent=5 // pred_check
      %p2531 = pneg %p2530
    $region98: #{traffic_vivit_forward.3} parent=5 // pred_check_branch
      %2533 = sbr.rel (%p2531) target = $region100
    $region99: #{traffic_vivit_forward.3} parent=5 // pred_region
      %s2534 = ssub.s32 %s24, 2
      // Predicated region
      $region101: #{traffic_vivit_forward.3} parent=99 // pred_check
        %p2535 = pneg %p436
      $region102: #{traffic_vivit_forward.3} parent=99 // pred_check_branch
        %2537 = sbr.rel (%p2535) target = $region104
      $region103: #{traffic_vivit_forward.3} parent=99 // pred_region
        %p2538 = scmp.lt.s32.totalorder %s30, 1
        %s2539 = scalar_select %p2538, %s30, 1
        %s2540 = smul.addr %s2539, 2
        %s2541 = smul.addr %s2540, 4
        %s2542 = scalar_lea.vmem %s18, %s2541
      $region104: #{traffic_vivit_forward.3} parent=99 // pred_fallthru
        _
    $region100: #{traffic_vivit_forward.3} parent=5 // pred_fallthru
      _
  $region6: #{traffic_vivit_forward.3} parent=0 // loop_footer
    %s28 = sadd.s32 1, %s24
  $region7: #{traffic_vivit_forward.3} parent=0 // loop_footer_branch
    %23 = sbr.rel target = $region3
  $region8: #{traffic_vivit_forward.3} parent=0 // loop_exit
    _

// kernel: traffic_vivit_forward.2
$region0: #{traffic_vivit_forward.2}
  #allocation0 [shape = 'u32[]', space=smem, size = 0x4, offset = 0x4, fixed_abs, tag = 'smem constant byte address 0x4 - core index']
  #allocation1 [shape = 'u32[144,128]{1,0:T(1,128)}', space=vmem, size = 0x12000, scoped, tag = 'internal scratch']
  %s0 = inlined_call_operand.vmem [shape: f32[2,16,64], index: 0, kind: input, shape index: {}]
  %s1 = inlined_call_operand.vmem [shape: f32[64,32], index: 1, kind: input, shape index: {}]
  %s2 = inlined_call_operand.vmem [shape: f32[1,32], index: 2, kind: input, shape index: {}]
  %s3 = inlined_call_operand.vmem [shape: f32[2,4,32], index: 3, kind: input, shape index: {}]
  %s4 = inlined_call_operand.vmem [shape: f32[2,16,32], index: 4, kind: input, shape index: {}]
  %s5 = inlined_call_operand.vmem [shape: f32[20,20], index: 5, kind: input, shape index: {}]
  %s6 = inlined_call_operand.vmem [shape: f32[2,1,32], index: 6, kind: input, shape index: {}]
  %s7 = inlined_call_operand.vmem [shape: f32[2,1,32], index: 7, kind: input, shape index: {}]
  %s8 = inlined_call_operand.vmem [shape: f32[2,32,96], index: 8, kind: input, shape index: {}]
  %s9 = inlined_call_operand.vmem [shape: f32[2,32,32], index: 9, kind: input, shape index: {}]
  %s10 = inlined_call_operand.vmem [shape: f32[2,1,32], index: 10, kind: input, shape index: {}]
  %s11 = inlined_call_operand.vmem [shape: f32[2,1,32], index: 11, kind: input, shape index: {}]
  %s12 = inlined_call_operand.vmem [shape: f32[2,1,32], index: 12, kind: input, shape index: {}]
  %s13 = inlined_call_operand.vmem [shape: f32[2,32,128], index: 13, kind: input, shape index: {}]
  %s14 = inlined_call_operand.vmem [shape: f32[2,1,128], index: 14, kind: input, shape index: {}]
  %s15 = inlined_call_operand.vmem [shape: f32[2,128,32], index: 15, kind: input, shape index: {}]
  %s16 = inlined_call_operand.vmem [shape: f32[2,1,32], index: 16, kind: input, shape index: {}]
  %s17 = inlined_call_operand.vmem [shape: f32[1,32], index: 17, kind: input, shape index: {}]
  %s18 = inlined_call_operand.vmem [shape: f32[1,32], index: 18, kind: input, shape index: {}]
  %s19 = inlined_call_operand.vmem [shape: f32[2,4,32], index: 19, kind: output, shape index: {}]
  %s20 = sld [smem:[#allocation0]]
  $region109: #{traffic_vivit_forward.2} parent=0
    _
  %s22 = ssub.s32 1, %s20
  %s23 = scalar_select 0, %s22, %s20
  loop: start=0, step=1, limit=4
  $region2: #{traffic_vivit_forward.2} parent=0 // loop_pre_header
    _
  $region3: #{traffic_vivit_forward.2} parent=0 // loop_header
    %s25 = sphi 0, %s29
    %p26 = scmp.ge.s32.totalorder %s25, 4
    %s35 = sphi 0, %s37
    %s38 = sphi 0, %s35
    %s39 = sphi 0, %s38
    %s55 = sphi 0, %s39
    %s59 = sphi 0, %s59
    %s61 = sphi 0, %s59
    %s62 = sphi 0, %s61
    %s76 = sphi 0, %s62
    %s80 = sphi 0, %s80
    %s82 = sphi 0, %s80
    %s83 = sphi 0, %s82
    %s97 = sphi 0, %s83
    %s103 = sphi 0, %s105
    %s106 = sphi 0, %s103
    %s107 = sphi 0, %s106
    %s123 = sphi 0, %s107
    %s129 = sphi 0, %s131
    %s132 = sphi 0, %s129
    %s133 = sphi 0, %s132
    %s149 = sphi 0, %s133
    %s153 = sphi 0, %s153
    %s155 = sphi 0, %s153
    %s156 = sphi 0, %s155
    %s170 = sphi 0, %s156
    %s174 = sphi 0, %s174
    %s176 = sphi 0, %s174
    %s177 = sphi 0, %s176
    %s191 = sphi 0, %s177
    %s195 = sphi 0, %s195
    %s197 = sphi 0, %s195
    %s198 = sphi 0, %s197
    %s212 = sphi 0, %s198
    %s216 = sphi 0, %s216
    %s218 = sphi 0, %s216
    %s219 = sphi 0, %s218
    %s233 = sphi 0, %s219
    %s237 = sphi 0, %s237
    %s239 = sphi 0, %s237
    %s240 = sphi 0, %s239
    %s254 = sphi 0, %s240
    %s258 = sphi 0, %s258
    %s260 = sphi 0, %s258
    %s261 = sphi 0, %s260
    %s275 = sphi 0, %s261
    %s279 = sphi 0, %s279
    %s281 = sphi 0, %s279
    %s282 = sphi 0, %s281
    %s296 = sphi 0, %s282
    %s300 = sphi 0, %s300
    %s302 = sphi 0, %s300
    %s303 = sphi 0, %s302
    %s317 = sphi 0, %s303
    %s321 = sphi 0, %s321
    %s323 = sphi 0, %s321
    %s324 = sphi 0, %s323
    %s338 = sphi 0, %s324
    %s342 = sphi 0, %s342
    %s344 = sphi 0, %s342
    %s345 = sphi 0, %s344
    %s359 = sphi 0, %s345
    %s363 = sphi 0, %s363
    %s365 = sphi 0, %s363
    %s366 = sphi 0, %s365
    %s380 = sphi 0, %s366
    %s384 = sphi 0, %s384
    %s386 = sphi 0, %s384
    %s387 = sphi 0, %s386
    %s401 = sphi 0, %s387
    %s405 = sphi 0, %s405
    %s407 = sphi 0, %s405
    %s408 = sphi 0, %s407
    %s422 = sphi 0, %s408
    %s426 = sphi 0, %s426
    %s428 = sphi 0, %s426
    %s429 = sphi 0, %s428
    %s443 = sphi 0, %s429
    %s449 = sphi 0, %s451
    %s452 = sphi 0, %s449
    %s453 = sphi 0, %s452
    %s469 = sphi 0, %s453
  $region4: #{traffic_vivit_forward.2} parent=0 // loop_header_branch
    %28 = sbr.rel (%p26) target = $region8
  $region5: #{traffic_vivit_forward.2} parent=0 // loop_body
    %s30 = ssub.s32 %s25, 1
    %s31 = ssub.s32 %s25, 2
    %s32 = sadd.s32 %s25, 1
    %s33 = ssub.s32 %s25, %s32
    %p34 = scmp.eq.s32.totalorder %s33, 0
    %s36 = sadd.s32 %s35, 1
    %s37 = scalar_select %p34, %s35, %s36
    %p40 = pneg %p34
    %p41 = scmp.eq.s32.totalorder %s25, 1
    %p42 = por %p40, %p41
    %p43 = scmp.ne.s32.totalorder %s35, %s38
    %p44 = scmp.eq.s32.totalorder %s25, 0
    %p45 = por %p43, %p44
    %p46 = scmp.ne.s32.totalorder %s35, %s38
    %p47 = scmp.eq.s32.totalorder %s30, 1
    %p48 = por %p46, %p47
    %p49 = scmp.ne.s32.totalorder %s38, %s39
    %p50 = scmp.eq.s32.totalorder %s30, 0
    %p51 = por %p49, %p50
    %p52 = scmp.ne.s32.totalorder %s38, %s39
    %p53 = scmp.eq.s32.totalorder %s31, 1
    %p54 = por %p52, %p53
    %p56 = scmp.ne.s32.totalorder %s39, %s55
    %p57 = scmp.eq.s32.totalorder %s31, 0
    %p58 = por %p56, %p57
    %s60 = sadd.s32 %s59, 1
    %p63 = scmp.eq.s32.totalorder %s25, 1
    %p64 = scmp.ne.s32.totalorder %s59, %s61
    %p65 = scmp.eq.s32.totalorder %s25, 0
    %p66 = por %p64, %p65
    %p67 = scmp.ne.s32.totalorder %s59, %s61
    %p68 = scmp.eq.s32.totalorder %s30, 1
    %p69 = por %p67, %p68
    %p70 = scmp.ne.s32.totalorder %s61, %s62
    %p71 = scmp.eq.s32.totalorder %s30, 0
    %p72 = por %p70, %p71
    %p73 = scmp.ne.s32.totalorder %s61, %s62
    %p74 = scmp.eq.s32.totalorder %s31, 1
    %p75 = por %p73, %p74
    %p77 = scmp.ne.s32.totalorder %s62, %s76
    %p78 = scmp.eq.s32.totalorder %s31, 0
    %p79 = por %p77, %p78
    %s81 = sadd.s32 %s80, 1
    %p84 = scmp.eq.s32.totalorder %s25, 1
    %p85 = scmp.ne.s32.totalorder %s80, %s82
    %p86 = scmp.eq.s32.totalorder %s25, 0
    %p87 = por %p85, %p86
    %p88 = scmp.ne.s32.totalorder %s80, %s82
    %p89 = scmp.eq.s32.totalorder %s30, 1
    %p90 = por %p88, %p89
    %p91 = scmp.ne.s32.totalorder %s82, %s83
    %p92 = scmp.eq.s32.totalorder %s30, 0
    %p93 = por %p91, %p92
    %p94 = scmp.ne.s32.totalorder %s82, %s83
    %p95 = scmp.eq.s32.totalorder %s31, 1
    %p96 = por %p94, %p95
    %p98 = scmp.ne.s32.totalorder %s83, %s97
    %p99 = scmp.eq.s32.totalorder %s31, 0
    %p100 = por %p98, %p99
    %s101 = ssub.s32 %s25, %s32
    %p102 = scmp.eq.s32.totalorder %s101, 0
    %s104 = sadd.s32 %s103, 1
    %s105 = scalar_select %p102, %s103, %s104
    %p108 = pneg %p102
    %p109 = scmp.eq.s32.totalorder %s25, 1
    %p110 = por %p108, %p109
    %p111 = scmp.ne.s32.totalorder %s103, %s106
    %p112 = scmp.eq.s32.totalorder %s25, 0
    %p113 = por %p111, %p112
    %p114 = scmp.ne.s32.totalorder %s103, %s106
    %p115 = scmp.eq.s32.totalorder %s30, 1
    %p116 = por %p114, %p115
    %p117 = scmp.ne.s32.totalorder %s106, %s107
    %p118 = scmp.eq.s32.totalorder %s30, 0
    %p119 = por %p117, %p118
    %p120 = scmp.ne.s32.totalorder %s106, %s107
    %p121 = scmp.eq.s32.totalorder %s31, 1
    %p122 = por %p120, %p121
    %p124 = scmp.ne.s32.totalorder %s107, %s123
    %p125 = scmp.eq.s32.totalorder %s31, 0
    %p126 = por %p124, %p125
    %s127 = ssub.s32 %s25, %s32
    %p128 = scmp.eq.s32.totalorder %s127, 0
    %s130 = sadd.s32 %s129, 1
    %s131 = scalar_select %p128, %s129, %s130
    %p134 = pneg %p128
    %p135 = scmp.eq.s32.totalorder %s25, 1
    %p136 = por %p134, %p135
    %p137 = scmp.ne.s32.totalorder %s129, %s132
    %p138 = scmp.eq.s32.totalorder %s25, 0
    %p139 = por %p137, %p138
    %p140 = scmp.ne.s32.totalorder %s129, %s132
    %p141 = scmp.eq.s32.totalorder %s30, 1
    %p142 = por %p140, %p141
    %p143 = scmp.ne.s32.totalorder %s132, %s133
    %p144 = scmp.eq.s32.totalorder %s30, 0
    %p145 = por %p143, %p144
    %p146 = scmp.ne.s32.totalorder %s132, %s133
    %p147 = scmp.eq.s32.totalorder %s31, 1
    %p148 = por %p146, %p147
    %p150 = scmp.ne.s32.totalorder %s133, %s149
    %p151 = scmp.eq.s32.totalorder %s31, 0
    %p152 = por %p150, %p151
    %s154 = sadd.s32 %s153, 1
    %p157 = scmp.eq.s32.totalorder %s25, 1
    %p158 = scmp.ne.s32.totalorder %s153, %s155
    %p159 = scmp.eq.s32.totalorder %s25, 0
    %p160 = por %p158, %p159
    %p161 = scmp.ne.s32.totalorder %s153, %s155
    %p162 = scmp.eq.s32.totalorder %s30, 1
    %p163 = por %p161, %p162
    %p164 = scmp.ne.s32.totalorder %s155, %s156
    %p165 = scmp.eq.s32.totalorder %s30, 0
    %p166 = por %p164, %p165
    %p167 = scmp.ne.s32.totalorder %s155, %s156
    %p168 = scmp.eq.s32.totalorder %s31, 1
    %p169 = por %p167, %p168
    %p171 = scmp.ne.s32.totalorder %s156, %s170
    %p172 = scmp.eq.s32.totalorder %s31, 0
    %p173 = por %p171, %p172
    %s175 = sadd.s32 %s174, 1
    %p178 = scmp.eq.s32.totalorder %s25, 1
    %p179 = scmp.ne.s32.totalorder %s174, %s176
    %p180 = scmp.eq.s32.totalorder %s25, 0
    %p181 = por %p179, %p180
    %p182 = scmp.ne.s32.totalorder %s174, %s176
    %p183 = scmp.eq.s32.totalorder %s30, 1
    %p184 = por %p182, %p183
    %p185 = scmp.ne.s32.totalorder %s176, %s177
    %p186 = scmp.eq.s32.totalorder %s30, 0
    %p187 = por %p185, %p186
    %p188 = scmp.ne.s32.totalorder %s176, %s177
    %p189 = scmp.eq.s32.totalorder %s31, 1
    %p190 = por %p188, %p189
    %p192 = scmp.ne.s32.totalorder %s177, %s191
    %p193 = scmp.eq.s32.totalorder %s31, 0
    %p194 = por %p192, %p193
    %s196 = sadd.s32 %s195, 1
    %p199 = scmp.eq.s32.totalorder %s25, 1
    %p200 = scmp.ne.s32.totalorder %s195, %s197
    %p201 = scmp.eq.s32.totalorder %s25, 0
    %p202 = por %p200, %p201
    %p203 = scmp.ne.s32.totalorder %s195, %s197
    %p204 = scmp.eq.s32.totalorder %s30, 1
    %p205 = por %p203, %p204
    %p206 = scmp.ne.s32.totalorder %s197, %s198
    %p207 = scmp.eq.s32.totalorder %s30, 0
    %p208 = por %p206, %p207
    %p209 = scmp.ne.s32.totalorder %s197, %s198
    %p210 = scmp.eq.s32.totalorder %s31, 1
    %p211 = por %p209, %p210
    %p213 = scmp.ne.s32.totalorder %s198, %s212
    %p214 = scmp.eq.s32.totalorder %s31, 0
    %p215 = por %p213, %p214
    %s217 = sadd.s32 %s216, 1
    %p220 = scmp.eq.s32.totalorder %s25, 1
    %p221 = scmp.ne.s32.totalorder %s216, %s218
    %p222 = scmp.eq.s32.totalorder %s25, 0
    %p223 = por %p221, %p222
    %p224 = scmp.ne.s32.totalorder %s216, %s218
    %p225 = scmp.eq.s32.totalorder %s30, 1
    %p226 = por %p224, %p225
    %p227 = scmp.ne.s32.totalorder %s218, %s219
    %p228 = scmp.eq.s32.totalorder %s30, 0
    %p229 = por %p227, %p228
    %p230 = scmp.ne.s32.totalorder %s218, %s219
    %p231 = scmp.eq.s32.totalorder %s31, 1
    %p232 = por %p230, %p231
    %p234 = scmp.ne.s32.totalorder %s219, %s233
    %p235 = scmp.eq.s32.totalorder %s31, 0
    %p236 = por %p234, %p235
    %s238 = sadd.s32 %s237, 1
    %p241 = scmp.eq.s32.totalorder %s25, 1
    %p242 = scmp.ne.s32.totalorder %s237, %s239
    %p243 = scmp.eq.s32.totalorder %s25, 0
    %p244 = por %p242, %p243
    %p245 = scmp.ne.s32.totalorder %s237, %s239
    %p246 = scmp.eq.s32.totalorder %s30, 1
    %p247 = por %p245, %p246
    %p248 = scmp.ne.s32.totalorder %s239, %s240
    %p249 = scmp.eq.s32.totalorder %s30, 0
    %p250 = por %p248, %p249
    %p251 = scmp.ne.s32.totalorder %s239, %s240
    %p252 = scmp.eq.s32.totalorder %s31, 1
    %p253 = por %p251, %p252
    %p255 = scmp.ne.s32.totalorder %s240, %s254
    %p256 = scmp.eq.s32.totalorder %s31, 0
    %p257 = por %p255, %p256
    %s259 = sadd.s32 %s258, 1
    %p262 = scmp.eq.s32.totalorder %s25, 1
    %p263 = scmp.ne.s32.totalorder %s258, %s260
    %p264 = scmp.eq.s32.totalorder %s25, 0
    %p265 = por %p263, %p264
    %p266 = scmp.ne.s32.totalorder %s258, %s260
    %p267 = scmp.eq.s32.totalorder %s30, 1
    %p268 = por %p266, %p267
    %p269 = scmp.ne.s32.totalorder %s260, %s261
    %p270 = scmp.eq.s32.totalorder %s30, 0
    %p271 = por %p269, %p270
    %p272 = scmp.ne.s32.totalorder %s260, %s261
    %p273 = scmp.eq.s32.totalorder %s31, 1
    %p274 = por %p272, %p273
    %p276 = scmp.ne.s32.totalorder %s261, %s275
    %p277 = scmp.eq.s32.totalorder %s31, 0
    %p278 = por %p276, %p277
    %s280 = sadd.s32 %s279, 1
    %p283 = scmp.eq.s32.totalorder %s25, 1
    %p284 = scmp.ne.s32.totalorder %s279, %s281
    %p285 = scmp.eq.s32.totalorder %s25, 0
    %p286 = por %p284, %p285
    %p287 = scmp.ne.s32.totalorder %s279, %s281
    %p288 = scmp.eq.s32.totalorder %s30, 1
    %p289 = por %p287, %p288
    %p290 = scmp.ne.s32.totalorder %s281, %s282
    %p291 = scmp.eq.s32.totalorder %s30, 0
    %p292 = por %p290, %p291
    %p293 = scmp.ne.s32.totalorder %s281, %s282
    %p294 = scmp.eq.s32.totalorder %s31, 1
    %p295 = por %p293, %p294
    %p297 = scmp.ne.s32.totalorder %s282, %s296
    %p298 = scmp.eq.s32.totalorder %s31, 0
    %p299 = por %p297, %p298
    %s301 = sadd.s32 %s300, 1
    %p304 = scmp.eq.s32.totalorder %s25, 1
    %p305 = scmp.ne.s32.totalorder %s300, %s302
    %p306 = scmp.eq.s32.totalorder %s25, 0
    %p307 = por %p305, %p306
    %p308 = scmp.ne.s32.totalorder %s300, %s302
    %p309 = scmp.eq.s32.totalorder %s30, 1
    %p310 = por %p308, %p309
    %p311 = scmp.ne.s32.totalorder %s302, %s303
    %p312 = scmp.eq.s32.totalorder %s30, 0
    %p313 = por %p311, %p312
    %p314 = scmp.ne.s32.totalorder %s302, %s303
    %p315 = scmp.eq.s32.totalorder %s31, 1
    %p316 = por %p314, %p315
    %p318 = scmp.ne.s32.totalorder %s303, %s317
    %p319 = scmp.eq.s32.totalorder %s31, 0
    %p320 = por %p318, %p319
    %s322 = sadd.s32 %s321, 1
    %p325 = scmp.eq.s32.totalorder %s25, 1
    %p326 = scmp.ne.s32.totalorder %s321, %s323
    %p327 = scmp.eq.s32.totalorder %s25, 0
    %p328 = por %p326, %p327
    %p329 = scmp.ne.s32.totalorder %s321, %s323
    %p330 = scmp.eq.s32.totalorder %s30, 1
    %p331 = por %p329, %p330
    %p332 = scmp.ne.s32.totalorder %s323, %s324
    %p333 = scmp.eq.s32.totalorder %s30, 0
    %p334 = por %p332, %p333
    %p335 = scmp.ne.s32.totalorder %s323, %s324
    %p336 = scmp.eq.s32.totalorder %s31, 1
    %p337 = por %p335, %p336
    %p339 = scmp.ne.s32.totalorder %s324, %s338
    %p340 = scmp.eq.s32.totalorder %s31, 0
    %p341 = por %p339, %p340
    %s343 = sadd.s32 %s342, 1
    %p346 = scmp.eq.s32.totalorder %s25, 1
    %p347 = scmp.ne.s32.totalorder %s342, %s344
    %p348 = scmp.eq.s32.totalorder %s25, 0
    %p349 = por %p347, %p348
    %p350 = scmp.ne.s32.totalorder %s342, %s344
    %p351 = scmp.eq.s32.totalorder %s30, 1
    %p352 = por %p350, %p351
    %p353 = scmp.ne.s32.totalorder %s344, %s345
    %p354 = scmp.eq.s32.totalorder %s30, 0
    %p355 = por %p353, %p354
    %p356 = scmp.ne.s32.totalorder %s344, %s345
    %p357 = scmp.eq.s32.totalorder %s31, 1
    %p358 = por %p356, %p357
    %p360 = scmp.ne.s32.totalorder %s345, %s359
    %p361 = scmp.eq.s32.totalorder %s31, 0
    %p362 = por %p360, %p361
    %s364 = sadd.s32 %s363, 1
    %p367 = scmp.eq.s32.totalorder %s25, 1
    %p368 = scmp.ne.s32.totalorder %s363, %s365
    %p369 = scmp.eq.s32.totalorder %s25, 0
    %p370 = por %p368, %p369
    %p371 = scmp.ne.s32.totalorder %s363, %s365
    %p372 = scmp.eq.s32.totalorder %s30, 1
    %p373 = por %p371, %p372
    %p374 = scmp.ne.s32.totalorder %s365, %s366
    %p375 = scmp.eq.s32.totalorder %s30, 0
    %p376 = por %p374, %p375
    %p377 = scmp.ne.s32.totalorder %s365, %s366
    %p378 = scmp.eq.s32.totalorder %s31, 1
    %p379 = por %p377, %p378
    %p381 = scmp.ne.s32.totalorder %s366, %s380
    %p382 = scmp.eq.s32.totalorder %s31, 0
    %p383 = por %p381, %p382
    %s385 = sadd.s32 %s384, 1
    %p388 = scmp.eq.s32.totalorder %s25, 1
    %p389 = scmp.ne.s32.totalorder %s384, %s386
    %p390 = scmp.eq.s32.totalorder %s25, 0
    %p391 = por %p389, %p390
    %p392 = scmp.ne.s32.totalorder %s384, %s386
    %p393 = scmp.eq.s32.totalorder %s30, 1
    %p394 = por %p392, %p393
    %p395 = scmp.ne.s32.totalorder %s386, %s387
    %p396 = scmp.eq.s32.totalorder %s30, 0
    %p397 = por %p395, %p396
    %p398 = scmp.ne.s32.totalorder %s386, %s387
    %p399 = scmp.eq.s32.totalorder %s31, 1
    %p400 = por %p398, %p399
    %p402 = scmp.ne.s32.totalorder %s387, %s401
    %p403 = scmp.eq.s32.totalorder %s31, 0
    %p404 = por %p402, %p403
    %s406 = sadd.s32 %s405, 1
    %p409 = scmp.eq.s32.totalorder %s25, 1
    %p410 = scmp.ne.s32.totalorder %s405, %s407
    %p411 = scmp.eq.s32.totalorder %s25, 0
    %p412 = por %p410, %p411
    %p413 = scmp.ne.s32.totalorder %s405, %s407
    %p414 = scmp.eq.s32.totalorder %s30, 1
    %p415 = por %p413, %p414
    %p416 = scmp.ne.s32.totalorder %s407, %s408
    %p417 = scmp.eq.s32.totalorder %s30, 0
    %p418 = por %p416, %p417
    %p419 = scmp.ne.s32.totalorder %s407, %s408
    %p420 = scmp.eq.s32.totalorder %s31, 1
    %p421 = por %p419, %p420
    %p423 = scmp.ne.s32.totalorder %s408, %s422
    %p424 = scmp.eq.s32.totalorder %s31, 0
    %p425 = por %p423, %p424
    %s427 = sadd.s32 %s426, 1
    %p430 = scmp.eq.s32.totalorder %s25, 1
    %p431 = scmp.ne.s32.totalorder %s426, %s428
    %p432 = scmp.eq.s32.totalorder %s25, 0
    %p433 = por %p431, %p432
    %p434 = scmp.ne.s32.totalorder %s426, %s428
    %p435 = scmp.eq.s32.totalorder %s30, 1
    %p436 = por %p434, %p435
    %p437 = scmp.ne.s32.totalorder %s428, %s429
    %p438 = scmp.eq.s32.totalorder %s30, 0
    %p439 = por %p437, %p438
    %p440 = scmp.ne.s32.totalorder %s428, %s429
    %p441 = scmp.eq.s32.totalorder %s31, 1
    %p442 = por %p440, %p441
    %p444 = scmp.ne.s32.totalorder %s429, %s443
    %p445 = scmp.eq.s32.totalorder %s31, 0
    %p446 = por %p444, %p445
    %s447 = ssub.s32 %s25, %s32
    %p448 = scmp.eq.s32.totalorder %s447, 0
    %s450 = sadd.s32 %s449, 1
    %s451 = scalar_select %p448, %s449, %s450
    %p454 = pneg %p448
    %p455 = scmp.eq.s32.totalorder %s25, 1
    %p456 = por %p454, %p455
    %p457 = scmp.ne.s32.totalorder %s449, %s452
    %p458 = scmp.eq.s32.totalorder %s25, 0
    %p459 = por %p457, %p458
    %p460 = scmp.ne.s32.totalorder %s449, %s452
    %p461 = scmp.eq.s32.totalorder %s30, 1
    %p462 = por %p460, %p461
    %p463 = scmp.ne.s32.totalorder %s452, %s453
    %p464 = scmp.eq.s32.totalorder %s30, 0
    %p465 = por %p463, %p464
    %p466 = scmp.ne.s32.totalorder %s452, %s453
    %p467 = scmp.eq.s32.totalorder %s31, 1
    %p468 = por %p466, %p467
    %p470 = scmp.ne.s32.totalorder %s453, %s469
    %p471 = scmp.eq.s32.totalorder %s31, 0
    %p472 = por %p470, %p471
    %p473 = scmp.le.s32.totalorder 1, %s25
    %p474 = scmp.lt.s32.totalorder %s25, 3
    %p475 = pnand %p473, %p474
    %p476 = pneg %p475
    // Predicated region
    $region9: #{traffic_vivit_forward.2} parent=5 // pred_check
      _
    $region10: #{traffic_vivit_forward.2} parent=5 // pred_check_branch
      %478 = sbr.rel (%p475) target = $region12
    $region11: #{traffic_vivit_forward.2} parent=5 // pred_region
      %s479 = ssub.s32 %s25, 1
      // Predicated region
      $region13: #{traffic_vivit_forward.2} parent=11 // pred_check
        %p480 = pneg %p72
      $region14: #{traffic_vivit_forward.2} parent=11 // pred_check_branch
        %482 = sbr.rel (%p480) target = $region16
      $region15: #{traffic_vivit_forward.2} parent=11 // pred_region
        _
      $region16: #{traffic_vivit_forward.2} parent=11 // pred_fallthru
        _
      // Predicated region
      $region17: #{traffic_vivit_forward.2} parent=11 // pred_check
        %p483 = pneg %p93
      $region18: #{traffic_vivit_forward.2} parent=11 // pred_check_branch
        %485 = sbr.rel (%p483) target = $region20
      $region19: #{traffic_vivit_forward.2} parent=11 // pred_region
        _
      $region20: #{traffic_vivit_forward.2} parent=11 // pred_fallthru
        _
      // Predicated region
      $region21: #{traffic_vivit_forward.2} parent=11 // pred_check
        %p486 = pneg %p166
      $region22: #{traffic_vivit_forward.2} parent=11 // pred_check_branch
        %488 = sbr.rel (%p486) target = $region24
      $region23: #{traffic_vivit_forward.2} parent=11 // pred_region
        _
      $region24: #{traffic_vivit_forward.2} parent=11 // pred_fallthru
        _
      // Predicated region
      $region25: #{traffic_vivit_forward.2} parent=11 // pred_check
        %p489 = pneg %p187
      $region26: #{traffic_vivit_forward.2} parent=11 // pred_check_branch
        %491 = sbr.rel (%p489) target = $region28
      $region27: #{traffic_vivit_forward.2} parent=11 // pred_region
        _
      $region28: #{traffic_vivit_forward.2} parent=11 // pred_fallthru
        _
      // Predicated region
      $region29: #{traffic_vivit_forward.2} parent=11 // pred_check
        %p492 = pneg %p208
      $region30: #{traffic_vivit_forward.2} parent=11 // pred_check_branch
        %494 = sbr.rel (%p492) target = $region32
      $region31: #{traffic_vivit_forward.2} parent=11 // pred_region
        _
      $region32: #{traffic_vivit_forward.2} parent=11 // pred_fallthru
        _
      // Predicated region
      $region33: #{traffic_vivit_forward.2} parent=11 // pred_check
        %p495 = pneg %p229
      $region34: #{traffic_vivit_forward.2} parent=11 // pred_check_branch
        %497 = sbr.rel (%p495) target = $region36
      $region35: #{traffic_vivit_forward.2} parent=11 // pred_region
        _
      $region36: #{traffic_vivit_forward.2} parent=11 // pred_fallthru
        _
      // Predicated region
      $region37: #{traffic_vivit_forward.2} parent=11 // pred_check
        %p498 = pneg %p250
      $region38: #{traffic_vivit_forward.2} parent=11 // pred_check_branch
        %500 = sbr.rel (%p498) target = $region40
      $region39: #{traffic_vivit_forward.2} parent=11 // pred_region
        _
      $region40: #{traffic_vivit_forward.2} parent=11 // pred_fallthru
        _
      // Predicated region
      $region41: #{traffic_vivit_forward.2} parent=11 // pred_check
        %p501 = pneg %p271
      $region42: #{traffic_vivit_forward.2} parent=11 // pred_check_branch
        %503 = sbr.rel (%p501) target = $region44
      $region43: #{traffic_vivit_forward.2} parent=11 // pred_region
        _
      $region44: #{traffic_vivit_forward.2} parent=11 // pred_fallthru
        _
      // Predicated region
      $region45: #{traffic_vivit_forward.2} parent=11 // pred_check
        %p504 = pneg %p292
      $region46: #{traffic_vivit_forward.2} parent=11 // pred_check_branch
        %506 = sbr.rel (%p504) target = $region48
      $region47: #{traffic_vivit_forward.2} parent=11 // pred_region
        _
      $region48: #{traffic_vivit_forward.2} parent=11 // pred_fallthru
        _
      // Predicated region
      $region49: #{traffic_vivit_forward.2} parent=11 // pred_check
        %p507 = pneg %p313
      $region50: #{traffic_vivit_forward.2} parent=11 // pred_check_branch
        %509 = sbr.rel (%p507) target = $region52
      $region51: #{traffic_vivit_forward.2} parent=11 // pred_region
        _
      $region52: #{traffic_vivit_forward.2} parent=11 // pred_fallthru
        _
      // Predicated region
      $region53: #{traffic_vivit_forward.2} parent=11 // pred_check
        %p510 = pneg %p334
      $region54: #{traffic_vivit_forward.2} parent=11 // pred_check_branch
        %512 = sbr.rel (%p510) target = $region56
      $region55: #{traffic_vivit_forward.2} parent=11 // pred_region
        _
      $region56: #{traffic_vivit_forward.2} parent=11 // pred_fallthru
        _
      // Predicated region
      $region57: #{traffic_vivit_forward.2} parent=11 // pred_check
        %p513 = pneg %p355
      $region58: #{traffic_vivit_forward.2} parent=11 // pred_check_branch
        %515 = sbr.rel (%p513) target = $region60
      $region59: #{traffic_vivit_forward.2} parent=11 // pred_region
        _
      $region60: #{traffic_vivit_forward.2} parent=11 // pred_fallthru
        _
      // Predicated region
      $region61: #{traffic_vivit_forward.2} parent=11 // pred_check
        %p516 = pneg %p376
      $region62: #{traffic_vivit_forward.2} parent=11 // pred_check_branch
        %518 = sbr.rel (%p516) target = $region64
      $region63: #{traffic_vivit_forward.2} parent=11 // pred_region
        _
      $region64: #{traffic_vivit_forward.2} parent=11 // pred_fallthru
        _
      // Predicated region
      $region65: #{traffic_vivit_forward.2} parent=11 // pred_check
        %p519 = pneg %p397
      $region66: #{traffic_vivit_forward.2} parent=11 // pred_check_branch
        %521 = sbr.rel (%p519) target = $region68
      $region67: #{traffic_vivit_forward.2} parent=11 // pred_region
        _
      $region68: #{traffic_vivit_forward.2} parent=11 // pred_fallthru
        _
      // Predicated region
      $region69: #{traffic_vivit_forward.2} parent=11 // pred_check
        %p522 = pneg %p418
      $region70: #{traffic_vivit_forward.2} parent=11 // pred_check_branch
        %524 = sbr.rel (%p522) target = $region72
      $region71: #{traffic_vivit_forward.2} parent=11 // pred_region
        _
      $region72: #{traffic_vivit_forward.2} parent=11 // pred_fallthru
        _
      // Predicated region
      $region73: #{traffic_vivit_forward.2} parent=11 // pred_check
        %p525 = pneg %p439
      $region74: #{traffic_vivit_forward.2} parent=11 // pred_check_branch
        %527 = sbr.rel (%p525) target = $region76
      $region75: #{traffic_vivit_forward.2} parent=11 // pred_region
        _
      $region76: #{traffic_vivit_forward.2} parent=11 // pred_fallthru
        _
    $region12: #{traffic_vivit_forward.2} parent=5 // pred_fallthru
      _
    %p528 = scmp.lt.s32.totalorder %s25, 2
    // Predicated region
    $region77: #{traffic_vivit_forward.2} parent=5 // pred_check
      %p529 = pneg %p528
    $region78: #{traffic_vivit_forward.2} parent=5 // pred_check_branch
      %531 = sbr.rel (%p529) target = $region80
    $region79: #{traffic_vivit_forward.2} parent=5 // pred_region
      // Predicated region
      $region81: #{traffic_vivit_forward.2} parent=79 // pred_check
        %p532 = pneg %p45
      $region82: #{traffic_vivit_forward.2} parent=79 // pred_check_branch
        %534 = sbr.rel (%p532) target = $region84
      $region83: #{traffic_vivit_forward.2} parent=79 // pred_region
        %p535 = scmp.lt.s32.totalorder %s25, 1
        %s536 = scalar_select %p535, %s25, 1
        %s537 = smul.addr %s536, 2
        %s538 = smul.addr %s537, 8
        %s539 = scalar_lea.vmem %s0, %s538
      $region84: #{traffic_vivit_forward.2} parent=79 // pred_fallthru
        _
      // Predicated region
      $region85: #{traffic_vivit_forward.2} parent=79 // pred_check
        %p540 = pneg %p113
      $region86: #{traffic_vivit_forward.2} parent=79 // pred_check_branch
        %542 = sbr.rel (%p540) target = $region88
      $region87: #{traffic_vivit_forward.2} parent=79 // pred_region
        %p543 = scmp.lt.s32.totalorder %s25, 1
        %s544 = scalar_select %p543, %s25, 1
        %s545 = smul.addr %s544, 4
        %s546 = scalar_lea.vmem %s3, %s545
      $region88: #{traffic_vivit_forward.2} parent=79 // pred_fallthru
        _
      // Predicated region
      $region89: #{traffic_vivit_forward.2} parent=79 // pred_check
        %p547 = pneg %p139
      $region90: #{traffic_vivit_forward.2} parent=79 // pred_check_branch
        %549 = sbr.rel (%p547) target = $region92
      $region91: #{traffic_vivit_forward.2} parent=79 // pred_region
        %p550 = scmp.lt.s32.totalorder %s25, 1
        %s551 = scalar_select %p550, %s25, 1
        %s552 = smul.addr %s551, 2
        %s553 = smul.addr %s552, 8
        %s554 = scalar_lea.vmem %s4, %s553
      $region92: #{traffic_vivit_forward.2} parent=79 // pred_fallthru
        _
    $region80: #{traffic_vivit_forward.2} parent=5 // pred_fallthru
      _
    %p555 = scmp.le.s32.totalorder 1, %s25
    %p556 = scmp.lt.s32.totalorder %s25, 3
    %p557 = pnand %p555, %p556
    %p558 = pneg %p557
    // Predicated region
    $region93: #{traffic_vivit_forward.2} parent=5 // pred_check
      _
    $region94: #{traffic_vivit_forward.2} parent=5 // pred_check_branch
      %560 = sbr.rel (%p557) target = $region96
    $region95: #{traffic_vivit_forward.2} parent=5 // pred_region
      %s561 = ssub.s32 %s25, 1
      %p562 = scmp.lt.s32.totalorder %s30, 1
      %s563 = scalar_select %p562, %s30, 1
      %s564 = smul.addr %s563, 2
      %s565 = smul.addr %s564, 8
      %s566 = scalar_lea.vmem %s0, %s565
      %p567 = pneg %p51
      %p568 = pneg %p48
      %p569 = pneg %p72
      %p570 = pneg %p69
      %p571 = pneg %p93
      %p572 = pneg %p90
      %p573 = scmp.lt.s32.totalorder %s30, 1
      %s574 = scalar_select %p573, %s30, 1
      %s575 = smul.addr %s574, 4
      %s576 = scalar_lea.vmem %s3, %s575
      %p577 = pneg %p119
      %p578 = pneg %p116
      %p579 = scmp.lt.s32.totalorder %s30, 1
      %s580 = scalar_select %p579, %s30, 1
      %s581 = smul.addr %s580, 2
      %s582 = smul.addr %s581, 8
      %s583 = scalar_lea.vmem %s4, %s582
      %p584 = pneg %p145
      %p585 = pneg %p142
      %p586 = pneg %p166
      %p587 = pneg %p163
      %p588 = pneg %p187
      %p589 = pneg %p184
      %p590 = pneg %p208
      %p591 = pneg %p205
      %p592 = pneg %p229
      %p593 = pneg %p226
      %p594 = pneg %p250
      %p595 = pneg %p247
      %p596 = pneg %p271
      %p597 = pneg %p268
      %p598 = pneg %p292
      %p599 = pneg %p289
      %p600 = pneg %p313
      %p601 = pneg %p310
      %p602 = pneg %p334
      %p603 = pneg %p331
      %p604 = pneg %p355
      %p605 = pneg %p352
      %p606 = pneg %p376
      %p607 = pneg %p373
      %p608 = pneg %p397
      %p609 = pneg %p394
      %p610 = pneg %p418
      %p611 = pneg %p415
      %p612 = pneg %p439
      %p613 = pneg %p436
      %p614 = pneg %p465
      %p615 = pneg %p462
      %p616 = scmp.lt.s32.totalorder %s30, 1
      %s617 = scalar_select %p616, %s30, 1
      %s618 = smul.addr %s617, 4
      %s619 = scalar_lea.vmem %s19, %s618
      %p620 = scmp.lt.s32.totalorder %s30, 1
      %s621 = scalar_select %p620, %s30, 1
      %s622 = smul.addr %s621, 2
      %s623 = smul.addr %s622, 8
      %s624 = scalar_lea.vmem %s0, %s623
      %p625 = scmp.lt.s32.totalorder %s30, 1
      %s626 = scalar_select %p625, %s30, 1
      %s627 = smul.addr %s626, 4
      %s628 = scalar_lea.vmem %s3, %s627
      %p629 = scmp.lt.s32.totalorder %s30, 1
      %s630 = scalar_select %p629, %s30, 1
      %s631 = smul.addr %s630, 2
      %s632 = smul.addr %s631, 8
      %s633 = scalar_lea.vmem %s4, %s632
      %p634 = scmp.lt.s32.totalorder %s30, 1
      %s635 = scalar_select %p634, %s30, 1
      %s636 = smul.addr %s635, 4
      %s637 = scalar_lea.vmem %s19, %s636
      %v639 = vld [vmem:[%s624] sm:$0xff]
      %v640 = vld [vmem:[%s624 + $0x8] sm:$0xff]
      %v641 = vld [vmem:[%s1] sm:$0xff]
      %v642 = vld [vmem:[%s1 + $0x8] sm:$0xff]
      %v643 = vld [vmem:[%s1 + $0x10] sm:$0xff]
      %v644 = vld [vmem:[%s1 + $0x18] sm:$0xff]
      %v645 = vld [vmem:[%s1 + $0x20] sm:$0xff]
      %v646 = vld [vmem:[%s1 + $0x28] sm:$0xff]
      %v647 = vld [vmem:[%s1 + $0x30] sm:$0xff]
      %v648 = vld [vmem:[%s1 + $0x38] sm:$0xff]
      %v649 = vpack.c.bf16 %v640, %v639
      %v650 = vpack.c.bf16 %v642, %v641
      %v651 = vpack.c.bf16 %v644, %v643
      %v652 = vpack.c.bf16 %v646, %v645
      %v653 = vpack.c.bf16 %v648, %v647
      %v654 = vld [vmem:[%s2] sm:$0x1]
      %v656 = vlaneseq
      %v657 = vshrl.u32 %v656, 7
      %v658 = vsub.s32 0, %v657
      %v659 = vrot.slane %v654, %v658
      %vm661 = vcmask 523264
      %v663 = vsel %vm661, %v649, 0
      %665 = vmatprep.subr.bf16.mxu0 0
      %666 = vmatpush1.bf16.msra.mxu0 0
      %667 = vmatprep.subr.bf16.mxu0 0
      %668 = vmatpush1.bf16.msra.mxu0 0
      %669 = vmatprep.subr.bf16.mxu0 0
      %670 = vmatpush1.bf16.msra.mxu0 0
      %671 = vmatprep.subr.bf16.mxu0 0
      %672 = vmatpush1.bf16.msra.mxu0 0
      %673 = vmatprep.subr.bf16.mxu0 0
      %674 = vmatpush1.bf16.msra.mxu0 %v653
      %675 = vmatprep.subr.bf16.mxu0 0
      %676 = vmatpush1.bf16.msra.mxu0 %v652
      %677 = vmatprep.subr.bf16.mxu0 0
      %678 = vmatpush1.bf16.msra.mxu0 %v651
      %679 = vmatprep.subr.bf16.mxu0 0
      %680 = vmatpush1.bf16.msra.mxu0 %v650
      %681 = vmatprep.subr.bf16.mxu0 0
      %682 = vmatpush2.bf16.msra.mxu0 0
      %683 = vmatprep.subr.bf16.mxu0 0
      %684 = vmatpush2.bf16.msra.mxu0 0
      %685 = vmatprep.subr.bf16.mxu0 0
      %686 = vmatpush2.bf16.msra.mxu0 0
      %687 = vmatprep.subr.bf16.mxu0 0
      %688 = vmatpush2.bf16.msra.mxu0 0
      %689 = vmatprep.subr.bf16.mxu0 0
      %690 = vmatpush2.bf16.msra.mxu0 0
      %691 = vmatprep.subr.bf16.mxu0 0
      %692 = vmatpush2.bf16.msra.mxu0 0
      %693 = vmatprep.subr.bf16.mxu0 0
      %694 = vmatpush2.bf16.msra.mxu0 0
      %695 = vmatprep.subr.bf16.mxu0 0
      %696 = vmatpush2.bf16.msra.mxu0 0
      %697 = vmatprep.mubr.bf16.mxu0 0
      %698 = vmatmul.mubr.bf16.gmra.mxu0 %v663
      %v699 = vpop.f32.mrf.mxu0
      %v700 = vadd.f32 %v659, %v699
      %v701 = vpop.f32.mrf.mxu0
      %v702 = vpop.f32.mrf.mxu0
      %v703 = vadd.f32 %v659, %v702
      %v704 = vpop.f32.mrf.mxu0
      %705 = vdwg.mxu0
      %v706 = vld [vmem:[%s633] sm:$0xff]
      %v707 = vld [vmem:[%s633 + $0x8] sm:$0xff]
      %v708 = vadd.f32 %v700, %v706
      %v709 = vadd.f32 %v703, %v707
      %v710 = vld [vmem:[%s628] sm:$0xf]
      %v711 = vld [vmem:[%s5] sm:$0xff]
      %v712 = vld [vmem:[%s5 + $0x8] sm:$0xff]
      %v713 = vld [vmem:[%s5 + $0x10] sm:$0xf]
      %v714 = vld [vmem:[%s6] sm:$0x1]
      %v715 = vld [vmem:[%s7] sm:$0x1]
      %vm716 = vcmask 261120
      %v717 = vsel %vm716, %v708, 0.0
      %718 = vadd.xlane.f32.xlu0 %v717
      %v719 = vpop.xlane.xlu0 %718
      %v720 = vsel %vm716, %v709, 0.0
      %721 = vadd.xlane.f32.xlu0 %v720
      %v722 = vpop.xlane.xlu0 %721
      %vm723 = vcmask 257024
      %v724 = vsel %vm723, %v710, 0.0
      %725 = vadd.xlane.f32.xlu0 %v724
      %v726 = vpop.xlane.xlu0 %725
      %v727 = vrcp.pop 32.0
      %v728 = vmul.f32 %v719, %v727
      %v729 = vmul.f32 %v722, %v727
      %v730 = vmul.f32 %v726, %v727
      %v731 = vsub.f32 %v708, %v728
      %v732 = vsub.f32 %v709, %v729
      %v733 = vsub.f32 %v710, %v730
      %v734 = vmul.f32 %v731, %v731
      %v735 = vmul.f32 %v732, %v732
      %v736 = vmul.f32 %v733, %v733
      %v737 = vsel %vm716, %v734, 0.0
      %738 = vadd.xlane.f32.xlu0 %v737
      %v739 = vpop.xlane.xlu0 %738
      %v740 = vsel %vm716, %v735, 0.0
      %741 = vadd.xlane.f32.xlu0 %v740
      %v742 = vpop.xlane.xlu0 %741
      %v743 = vsel %vm723, %v736, 0.0
      %744 = vadd.xlane.f32.xlu0 %v743
      %v745 = vpop.xlane.xlu0 %744
      %v746 = vmul.f32 %v739, %v727
      %v747 = vmul.f32 %v742, %v727
      %v748 = vmul.f32 %v745, %v727
      %v749 = vadd.f32 %v746, 1e-05
      %v750 = vadd.f32 %v747, 1e-05
      %v751 = vadd.f32 %v748, 1e-05
      %v752 = vrsqrt.pop %v749
      %v753 = vrsqrt.pop %v750
      %v754 = vrsqrt.pop %v751
      %v755 = vmul.f32 %v731, %v752
      %v756 = vmul.f32 %v732, %v753
      %v757 = vmul.f32 %v733, %v754
      %v759 = vlaneseq
      %v760 = vshrl.u32 %v759, 7
      %v761 = vsub.s32 0, %v760
      %v762 = vrot.slane %v714, %v761
      %v764 = vmul.f32 %v755, %v762
      %v765 = vmul.f32 %v756, %v762
      %v766 = vmul.f32 %v757, %v762
      %v768 = vlaneseq
      %v769 = vshrl.u32 %v768, 7
      %v770 = vsub.s32 0, %v769
      %v771 = vrot.slane %v715, %v770
      %v773 = vadd.f32 %v764, %v771
      %v774 = vadd.f32 %v765, %v771
      %v775 = vadd.f32 %v766, %v771
      %v776 = vld [vmem:[%s8] sm:$0xff]
      %v777 = vld [vmem:[%s8 + $0x8] sm:$0xff]
      %v778 = vld [vmem:[%s8 + $0x10] sm:$0xff]
      %v779 = vld [vmem:[%s8 + $0x18] sm:$0xff]
      %v780 = vpack.c.bf16 %v774, %v773
      %v781 = vpack.c.bf16 %v775, %v775
      %v782 = vpack.c.bf16 %v777, %v776
      %v783 = vpack.c.bf16 %v779, %v778
      %v785 = vsel %vm716, %v780, 0
      %v788 = vsel %vm716, %v781, 0
      %790 = vmatprep.subr.bf16.mxu0 0
      %791 = vmatpush1.bf16.msra.mxu0 0
      %792 = vmatprep.subr.bf16.mxu0 0
      %793 = vmatpush1.bf16.msra.mxu0 0
      %794 = vmatprep.subr.bf16.mxu0 0
      %795 = vmatpush1.bf16.msra.mxu0 0
      %796 = vmatprep.subr.bf16.mxu0 0
      %797 = vmatpush1.bf16.msra.mxu0 0
      %798 = vmatprep.subr.bf16.mxu0 0
      %799 = vmatpush1.bf16.msra.mxu0 0
      %800 = vmatprep.subr.bf16.mxu0 0
      %801 = vmatpush1.bf16.msra.mxu0 0
      %802 = vmatprep.subr.bf16.mxu0 0
      %803 = vmatpush1.bf16.msra.mxu0 %v783
      %804 = vmatprep.subr.bf16.mxu0 0
      %805 = vmatpush1.bf16.msra.mxu0 %v782
      %806 = vmatprep.subr.bf16.mxu0 0
      %807 = vmatpush2.bf16.msra.mxu0 0
      %808 = vmatprep.subr.bf16.mxu0 0
      %809 = vmatpush2.bf16.msra.mxu0 0
      %810 = vmatprep.subr.bf16.mxu0 0
      %811 = vmatpush2.bf16.msra.mxu0 0
      %812 = vmatprep.subr.bf16.mxu0 0
      %813 = vmatpush2.bf16.msra.mxu0 0
      %814 = vmatprep.subr.bf16.mxu0 0
      %815 = vmatpush2.bf16.msra.mxu0 0
      %816 = vmatprep.subr.bf16.mxu0 0
      %817 = vmatpush2.bf16.msra.mxu0 0
      %818 = vmatprep.subr.bf16.mxu0 0
      %819 = vmatpush2.bf16.msra.mxu0 0
      %820 = vmatprep.subr.bf16.mxu0 0
      %821 = vmatpush2.bf16.msra.mxu0 0
      %822 = vmatprep.mubr.bf16.mxu0 0
      %823 = vmatmul.mubr.bf16.gmra.mxu0 %v785
      %v824 = vpop.f32.mrf.mxu0
      %v825 = vadd.f32 0.0, %v824
      %v826 = vpop.f32.mrf.mxu0
      %v827 = vpop.f32.mrf.mxu0
      %v828 = vadd.f32 0.0, %v827
      %v829 = vpop.f32.mrf.mxu0
      %830 = vmatprep.mubr.bf16.mxu0 0
      %831 = vmatmul.mubr.bf16.gmra.mxu0 %v788
      %v832 = vpop.f32.mrf.mxu0
      %v833 = vadd.f32 0.0, %v832
      %v834 = vpop.f32.mrf.mxu0
      %v835 = vpop.f32.mrf.mxu0
      %v836 = vpop.f32.mrf.mxu0
      %837 = vdwg.mxu0
      %v838 = vld [vmem:[%s9] sm:$0xff]
      %v839 = vld [vmem:[%s9 + $0x8] sm:$0xff]
      %v840 = vld [vmem:[%s9 + $0x10] sm:$0xff]
      %v841 = vld [vmem:[%s9 + $0x18] sm:$0xff]
      %v842 = vpack.c.bf16 %v828, %v825
      %v843 = vpack.c.bf16 %v833, %v833
      %846 = vrot.lane.b32.xlu0 %v842, 96
      %v847 = vpop.permute.xlu0 %846
      %848 = vrot.lane.b32.xlu0 %v843, 96
      %v849 = vpop.permute.xlu0 %848
      %vm850 = vcmask 64512
      %v852 = vsel %vm850, %v842, 0
      %v855 = vsel %vm850, %v843, 0
      %v858 = vsel %vm850, %v847, 0
      %v861 = vsel %vm850, %v849, 0
      %863 = vmatprep.subr.bf16.mxu0 0
      %864 = vmatpush1.bf16.xpose.msra.mxu0 0
      %865 = vmatprep.subr.bf16.mxu0 0
      %866 = vmatpush1.bf16.xpose.msra.mxu0 0
      %867 = vmatprep.subr.bf16.mxu0 0
      %868 = vmatpush1.bf16.xpose.msra.mxu0 0
      %869 = vmatprep.subr.bf16.mxu0 0
      %870 = vmatpush1.bf16.xpose.msra.mxu0 0
      %871 = vmatprep.subr.bf16.mxu0 0
      %872 = vmatpush1.bf16.xpose.msra.mxu0 0
      %873 = vmatprep.subr.bf16.mxu0 0
      %874 = vmatpush1.bf16.xpose.msra.mxu0 0
      %875 = vmatprep.subr.bf16.mxu0 0
      %876 = vmatpush1.bf16.xpose.msra.mxu0 %v861
      %877 = vmatprep.subr.bf16.mxu0 0
      %878 = vmatpush1.bf16.xpose.msra.mxu0 %v858
      %879 = vmatprep.subr.bf16.mxu0 0
      %880 = vmatpush2.bf16.xpose.msra.mxu0 0
      %881 = vmatprep.subr.bf16.mxu0 0
      %882 = vmatpush2.bf16.xpose.msra.mxu0 0
      %883 = vmatprep.subr.bf16.mxu0 0
      %884 = vmatpush2.bf16.xpose.msra.mxu0 0
      %885 = vmatprep.subr.bf16.mxu0 0
      %886 = vmatpush2.bf16.xpose.msra.mxu0 0
      %887 = vmatprep.subr.bf16.mxu0 0
      %888 = vmatpush2.bf16.xpose.msra.mxu0 0
      %889 = vmatprep.subr.bf16.mxu0 0
      %890 = vmatpush2.bf16.xpose.msra.mxu0 0
      %891 = vmatprep.subr.bf16.mxu0 0
      %892 = vmatpush2.bf16.xpose.msra.mxu0 0
      %893 = vmatprep.subr.bf16.mxu0 0
      %894 = vmatpush2.bf16.xpose.msra.mxu0 0
      %895 = vmatprep.mubr.bf16.mxu0 0
      %896 = vmatmul.mubr.bf16.gmra.mxu0 %v852
      %v897 = vpop.f32.mrf.mxu0
      %v898 = vadd.f32 0.0, %v897
      %v899 = vpop.f32.mrf.mxu0
      %v900 = vpop.f32.mrf.mxu0
      %v901 = vadd.f32 0.0, %v900
      %v902 = vpop.f32.mrf.mxu0
      %903 = vmatprep.mubr.bf16.mxu0 0
      %904 = vmatmul.mubr.bf16.gmra.mxu0 %v855
      %v905 = vpop.f32.mrf.mxu0
      %v906 = vadd.f32 0.0, %v905
      %v907 = vpop.f32.mrf.mxu0
      %v908 = vpop.f32.mrf.mxu0
      %v909 = vpop.f32.mrf.mxu0
      %910 = vdwg.mxu0
      %v911 = vmul.f32 %v898, 0.35355338
      %v912 = vmul.f32 %v901, 0.35355338
      %v913 = vmul.f32 %v906, 0.35355338
      %v914 = vadd.f32 %v911, %v711
      %v915 = vadd.f32 %v912, %v712
      %v916 = vadd.f32 %v913, %v713
      %vm917 = vcmask 162816
      %v918 = vsel %vm917, %v914, -inf
      %919 = vmax.xlane.f32.xlu0 %v918
      %v920 = vpop.xlane.xlu0 %919
      %v921 = vsel %vm917, %v915, -inf
      %922 = vmax.xlane.f32.xlu0 %v921
      %v923 = vpop.xlane.xlu0 %922
      %vm924 = vcmask 158720
      %v925 = vsel %vm924, %v916, -inf
      %926 = vmax.xlane.f32.xlu0 %v925
      %v927 = vpop.xlane.xlu0 %926
      %v928 = vsub.f32 %v914, %v920
      %v929 = vsub.f32 %v915, %v923
      %v930 = vsub.f32 %v916, %v927
      %v931 = vmul.f32 %v928, 1.442695
      %v932 = vpow.pop %v931
      %v933 = vmul.f32 %v929, 1.442695
      %v934 = vpow.pop %v933
      %v935 = vmul.f32 %v930, 1.442695
      %v936 = vpow.pop %v935
      %v937 = vsel %vm917, %v932, 0.0
      %938 = vadd.xlane.f32.xlu0 %v937
      %v939 = vpop.xlane.xlu0 %938
      %v940 = vsel %vm917, %v934, 0.0
      %941 = vadd.xlane.f32.xlu0 %v940
      %v942 = vpop.xlane.xlu0 %941
      %v943 = vsel %vm924, %v936, 0.0
      %944 = vadd.xlane.f32.xlu0 %v943
      %v945 = vpop.xlane.xlu0 %944
      %v946 = vrcp.pop %v939
      %v947 = vrcp.pop %v942
      %v948 = vrcp.pop %v945
      %v949 = vmul.f32 %v932, %v946
      %v950 = vmul.f32 %v934, %v947
      %v951 = vmul.f32 %v936, %v948
      %v952 = vpack.c.bf16 %v950, %v949
      %v953 = vpack.c.bf16 %v951, %v951
      %954 = vrot.lane.b32.xlu0 %v842, 64
      %v955 = vpop.permute.xlu0 %954
      %956 = vrot.lane.b32.xlu0 %v843, 64
      %v957 = vpop.permute.xlu0 %956
      %v960 = vsel %vm917, %v952, 0
      %v963 = vsel %vm917, %v953, 0
      %vm965 = vcmask 1041408
      %v967 = vsel %vm965, %v957, 0
      %969 = vmatprep.subr.bf16.mxu0 0
      %970 = vmatpush1.bf16.msra.mxu0 0
      %971 = vmatprep.subr.bf16.mxu0 0
      %972 = vmatpush1.bf16.msra.mxu0 0
      %973 = vmatprep.subr.bf16.mxu0 0
      %974 = vmatpush1.bf16.msra.mxu0 0
      %975 = vmatprep.subr.bf16.mxu0 0
      %976 = vmatpush1.bf16.msra.mxu0 0
      %977 = vmatprep.subr.bf16.mxu0 0
      %978 = vmatpush1.bf16.msra.mxu0 0
      %979 = vmatprep.subr.bf16.mxu0 0
      %980 = vmatpush1.bf16.msra.mxu0 0
      %981 = vmatprep.subr.bf16.mxu0 0
      %982 = vmatpush1.bf16.msra.mxu0 %v967
      %983 = vmatprep.subr.bf16.mxu0 0
      %984 = vmatpush1.bf16.msra.mxu0 %v955
      %985 = vmatprep.subr.bf16.mxu0 0
      %986 = vmatpush2.bf16.msra.mxu0 0
      %987 = vmatprep.subr.bf16.mxu0 0
      %988 = vmatpush2.bf16.msra.mxu0 0
      %989 = vmatprep.subr.bf16.mxu0 0
      %990 = vmatpush2.bf16.msra.mxu0 0
      %991 = vmatprep.subr.bf16.mxu0 0
      %992 = vmatpush2.bf16.msra.mxu0 0
      %993 = vmatprep.subr.bf16.mxu0 0
      %994 = vmatpush2.bf16.msra.mxu0 0
      %995 = vmatprep.subr.bf16.mxu0 0
      %996 = vmatpush2.bf16.msra.mxu0 0
      %997 = vmatprep.subr.bf16.mxu0 0
      %998 = vmatpush2.bf16.msra.mxu0 0
      %999 = vmatprep.subr.bf16.mxu0 0
      %1000 = vmatpush2.bf16.msra.mxu0 0
      %1001 = vmatprep.mubr.bf16.mxu0 0
      %1002 = vmatmul.mubr.bf16.gmra.mxu0 %v960
      %v1003 = vpop.f32.mrf.mxu0
      %v1004 = vadd.f32 0.0, %v1003
      %v1005 = vpop.f32.mrf.mxu0
      %v1006 = vpop.f32.mrf.mxu0
      %v1007 = vadd.f32 0.0, %v1006
      %v1008 = vpop.f32.mrf.mxu0
      %1009 = vmatprep.mubr.bf16.mxu0 0
      %1010 = vmatmul.mubr.bf16.gmra.mxu0 %v963
      %v1011 = vpop.f32.mrf.mxu0
      %v1012 = vadd.f32 0.0, %v1011
      %v1013 = vpop.f32.mrf.mxu0
      %v1014 = vpop.f32.mrf.mxu0
      %v1015 = vpop.f32.mrf.mxu0
      %1016 = vdwg.mxu0
      %v1017 = vpack.c.bf16 %v1007, %v1004
      %v1018 = vpack.c.bf16 %v1012, %v1012
      %v1019 = vpack.c.bf16 %v838, %v838
      %1020 = vrot.lane.b32.xlu0 %v842, 120
      %v1021 = vpop.permute.xlu0 %1020
      %1022 = vrot.lane.b32.xlu0 %v843, 120
      %v1023 = vpop.permute.xlu0 %1022
      %1024 = vrot.lane.b32.xlu0 %v842, 88
      %v1025 = vpop.permute.xlu0 %1024
      %1026 = vrot.lane.b32.xlu0 %v843, 88
      %v1027 = vpop.permute.xlu0 %1026
      %v1029 = vsel %vm850, %v1021, 0
      %v1032 = vsel %vm850, %v1023, 0
      %v1035 = vsel %vm850, %v1025, 0
      %v1038 = vsel %vm850, %v1027, 0
      %1040 = vmatprep.subr.bf16.mxu0 0
      %1041 = vmatpush1.bf16.xpose.msra.mxu0 0
      %1042 = vmatprep.subr.bf16.mxu0 0
      %1043 = vmatpush1.bf16.xpose.msra.mxu0 0
      %1044 = vmatprep.subr.bf16.mxu0 0
      %1045 = vmatpush1.bf16.xpose.msra.mxu0 0
      %1046 = vmatprep.subr.bf16.mxu0 0
      %1047 = vmatpush1.bf16.xpose.msra.mxu0 0
      %1048 = vmatprep.subr.bf16.mxu0 0
      %1049 = vmatpush1.bf16.xpose.msra.mxu0 0
      %1050 = vmatprep.subr.bf16.mxu0 0
      %1051 = vmatpush1.bf16.xpose.msra.mxu0 0
      %1052 = vmatprep.subr.bf16.mxu0 0
      %1053 = vmatpush1.bf16.xpose.msra.mxu0 %v1038
      %1054 = vmatprep.subr.bf16.mxu0 0
      %1055 = vmatpush1.bf16.xpose.msra.mxu0 %v1035
      %1056 = vmatprep.subr.bf16.mxu0 0
      %1057 = vmatpush2.bf16.xpose.msra.mxu0 0
      %1058 = vmatprep.subr.bf16.mxu0 0
      %1059 = vmatpush2.bf16.xpose.msra.mxu0 0
      %1060 = vmatprep.subr.bf16.mxu0 0
      %1061 = vmatpush2.bf16.xpose.msra.mxu0 0
      %1062 = vmatprep.subr.bf16.mxu0 0
      %1063 = vmatpush2.bf16.xpose.msra.mxu0 0
      %1064 = vmatprep.subr.bf16.mxu0 0
      %1065 = vmatpush2.bf16.xpose.msra.mxu0 0
      %1066 = vmatprep.subr.bf16.mxu0 0
      %1067 = vmatpush2.bf16.xpose.msra.mxu0 0
      %1068 = vmatprep.subr.bf16.mxu0 0
      %1069 = vmatpush2.bf16.xpose.msra.mxu0 0
      %1070 = vmatprep.subr.bf16.mxu0 0
      %1071 = vmatpush2.bf16.xpose.msra.mxu0 0
      %1072 = vmatprep.mubr.bf16.mxu0 0
      %1073 = vmatmul.mubr.bf16.gmra.mxu0 %v1029
      %v1074 = vpop.f32.mrf.mxu0
      %v1075 = vadd.f32 0.0, %v1074
      %v1076 = vpop.f32.mrf.mxu0
      %v1077 = vpop.f32.mrf.mxu0
      %v1078 = vadd.f32 0.0, %v1077
      %v1079 = vpop.f32.mrf.mxu0
      %1080 = vmatprep.mubr.bf16.mxu0 0
      %1081 = vmatmul.mubr.bf16.gmra.mxu0 %v1032
      %v1082 = vpop.f32.mrf.mxu0
      %v1083 = vadd.f32 0.0, %v1082
      %v1084 = vpop.f32.mrf.mxu0
      %v1085 = vpop.f32.mrf.mxu0
      %v1086 = vpop.f32.mrf.mxu0
      %1087 = vdwg.mxu0
      %v1088 = vmul.f32 %v1075, 0.35355338
      %v1089 = vmul.f32 %v1078, 0.35355338
      %v1090 = vmul.f32 %v1083, 0.35355338
      %v1091 = vadd.f32 %v1088, %v711
      %v1092 = vadd.f32 %v1089, %v712
      %v1093 = vadd.f32 %v1090, %v713
      %v1094 = vsel %vm917, %v1091, -inf
      %1095 = vmax.xlane.f32.xlu0 %v1094
      %v1096 = vpop.xlane.xlu0 %1095
      %v1097 = vsel %vm917, %v1092, -inf
      %1098 = vmax.xlane.f32.xlu0 %v1097
      %v1099 = vpop.xlane.xlu0 %1098
      %v1100 = vsel %vm924, %v1093, -inf
      %1101 = vmax.xlane.f32.xlu0 %v1100
      %v1102 = vpop.xlane.xlu0 %1101
      %v1103 = vsub.f32 %v1091, %v1096
      %v1104 = vsub.f32 %v1092, %v1099
      %v1105 = vsub.f32 %v1093, %v1102
      %v1106 = vmul.f32 %v1103, 1.442695
      %v1107 = vpow.pop %v1106
      %v1108 = vmul.f32 %v1104, 1.442695
      %v1109 = vpow.pop %v1108
      %v1110 = vmul.f32 %v1105, 1.442695
      %v1111 = vpow.pop %v1110
      %v1112 = vsel %vm917, %v1107, 0.0
      %1113 = vadd.xlane.f32.xlu0 %v1112
      %v1114 = vpop.xlane.xlu0 %1113
      %v1115 = vsel %vm917, %v1109, 0.0
      %1116 = vadd.xlane.f32.xlu0 %v1115
      %v1117 = vpop.xlane.xlu0 %1116
      %v1118 = vsel %vm924, %v1111, 0.0
      %1119 = vadd.xlane.f32.xlu0 %v1118
      %v1120 = vpop.xlane.xlu0 %1119
      %v1121 = vrcp.pop %v1114
      %v1122 = vrcp.pop %v1117
      %v1123 = vrcp.pop %v1120
      %v1124 = vmul.f32 %v1107, %v1121
      %v1125 = vmul.f32 %v1109, %v1122
      %v1126 = vmul.f32 %v1111, %v1123
      %v1127 = vpack.c.bf16 %v1125, %v1124
      %v1128 = vpack.c.bf16 %v1126, %v1126
      %1129 = vrot.lane.b32.xlu0 %v842, 56
      %v1130 = vpop.permute.xlu0 %1129
      %1131 = vrot.lane.b32.xlu0 %v843, 56
      %v1132 = vpop.permute.xlu0 %1131
      %v1135 = vsel %vm917, %v1127, 0
      %v1138 = vsel %vm917, %v1128, 0
      %v1141 = vsel %vm965, %v1132, 0
      %1143 = vmatprep.subr.bf16.mxu0 0
      %1144 = vmatpush1.bf16.msra.mxu0 0
      %1145 = vmatprep.subr.bf16.mxu0 0
      %1146 = vmatpush1.bf16.msra.mxu0 0
      %1147 = vmatprep.subr.bf16.mxu0 0
      %1148 = vmatpush1.bf16.msra.mxu0 0
      %1149 = vmatprep.subr.bf16.mxu0 0
      %1150 = vmatpush1.bf16.msra.mxu0 0
      %1151 = vmatprep.subr.bf16.mxu0 0
      %1152 = vmatpush1.bf16.msra.mxu0 0
      %1153 = vmatprep.subr.bf16.mxu0 0
      %1154 = vmatpush1.bf16.msra.mxu0 0
      %1155 = vmatprep.subr.bf16.mxu0 0
      %1156 = vmatpush1.bf16.msra.mxu0 %v1141
      %1157 = vmatprep.subr.bf16.mxu0 0
      %1158 = vmatpush1.bf16.msra.mxu0 %v1130
      %1159 = vmatprep.subr.bf16.mxu0 0
      %1160 = vmatpush2.bf16.msra.mxu0 0
      %1161 = vmatprep.subr.bf16.mxu0 0
      %1162 = vmatpush2.bf16.msra.mxu0 0
      %1163 = vmatprep.subr.bf16.mxu0 0
      %1164 = vmatpush2.bf16.msra.mxu0 0
      %1165 = vmatprep.subr.bf16.mxu0 0
      %1166 = vmatpush2.bf16.msra.mxu0 0
      %1167 = vmatprep.subr.bf16.mxu0 0
      %1168 = vmatpush2.bf16.msra.mxu0 0
      %1169 = vmatprep.subr.bf16.mxu0 0
      %1170 = vmatpush2.bf16.msra.mxu0 0
      %1171 = vmatprep.subr.bf16.mxu0 0
      %1172 = vmatpush2.bf16.msra.mxu0 0
      %1173 = vmatprep.subr.bf16.mxu0 0
      %1174 = vmatpush2.bf16.msra.mxu0 0
      %1175 = vmatprep.mubr.bf16.mxu0 0
      %1176 = vmatmul.mubr.bf16.gmra.mxu0 %v1135
      %v1177 = vpop.f32.mrf.mxu0
      %v1178 = vadd.f32 0.0, %v1177
      %v1179 = vpop.f32.mrf.mxu0
      %v1180 = vpop.f32.mrf.mxu0
      %v1181 = vadd.f32 0.0, %v1180
      %v1182 = vpop.f32.mrf.mxu0
      %1183 = vmatprep.mubr.bf16.mxu0 0
      %1184 = vmatmul.mubr.bf16.gmra.mxu0 %v1138
      %v1185 = vpop.f32.mrf.mxu0
      %v1186 = vadd.f32 0.0, %v1185
      %v1187 = vpop.f32.mrf.mxu0
      %v1188 = vpop.f32.mrf.mxu0
      %v1189 = vpop.f32.mrf.mxu0
      %1190 = vdwg.mxu0
      %v1191 = vpack.c.bf16 %v1181, %v1178
      %v1192 = vpack.c.bf16 %v1186, %v1186
      %v1193 = vpack.c.bf16 %v839, %v839
      %v1195 = vsel %vm850, %v1191, 0
      %v1198 = vsel %vm850, %v1192, 0
      %vm1200 = vcmask 1043456
      %v1202 = vsel %vm1200, %v1193, 0
      %1204 = vmatprep.subr.bf16.mxu0 0
      %1205 = vmatpush1.bf16.msra.mxu0 0
      %1206 = vmatprep.subr.bf16.mxu0 0
      %1207 = vmatpush1.bf16.msra.mxu0 0
      %1208 = vmatprep.subr.bf16.mxu0 0
      %1209 = vmatpush1.bf16.msra.mxu0 0
      %1210 = vmatprep.subr.bf16.mxu0 0
      %1211 = vmatpush1.bf16.msra.mxu0 0
      %1212 = vmatprep.subr.bf16.mxu0 0
      %1213 = vmatpush1.bf16.msra.mxu0 0
      %1214 = vmatprep.subr.bf16.mxu0 0
      %1215 = vmatpush1.bf16.msra.mxu0 0
      %1216 = vmatprep.subr.bf16.mxu0 0
      %1217 = vmatpush1.bf16.msra.mxu0 0
      %1218 = vmatprep.subr.bf16.mxu0 0
      %1219 = vmatpush1.bf16.msra.mxu0 %v1202
      %1220 = vmatprep.subr.bf16.mxu0 0
      %1221 = vmatpush2.bf16.msra.mxu0 0
      %1222 = vmatprep.subr.bf16.mxu0 0
      %1223 = vmatpush2.bf16.msra.mxu0 0
      %1224 = vmatprep.subr.bf16.mxu0 0
      %1225 = vmatpush2.bf16.msra.mxu0 0
      %1226 = vmatprep.subr.bf16.mxu0 0
      %1227 = vmatpush2.bf16.msra.mxu0 0
      %1228 = vmatprep.subr.bf16.mxu0 0
      %1229 = vmatpush2.bf16.msra.mxu0 0
      %1230 = vmatprep.subr.bf16.mxu0 0
      %1231 = vmatpush2.bf16.msra.mxu0 0
      %1232 = vmatprep.subr.bf16.mxu0 0
      %1233 = vmatpush2.bf16.msra.mxu0 0
      %1234 = vmatprep.subr.bf16.mxu0 0
      %1235 = vmatpush2.bf16.msra.mxu0 0
      %1236 = vmatprep.mubr.bf16.mxu0 0
      %1237 = vmatmul.mubr.bf16.gmra.mxu0 %v1195
      %v1238 = vpop.f32.mrf.mxu0
      %v1239 = vadd.f32 0.0, %v1238
      %v1240 = vpop.f32.mrf.mxu0
      %v1241 = vpop.f32.mrf.mxu0
      %v1242 = vadd.f32 0.0, %v1241
      %v1243 = vpop.f32.mrf.mxu0
      %1244 = vmatprep.mubr.bf16.mxu0 0
      %1245 = vmatmul.mubr.bf16.gmra.mxu0 %v1198
      %v1246 = vpop.f32.mrf.mxu0
      %v1247 = vadd.f32 0.0, %v1246
      %v1248 = vpop.f32.mrf.mxu0
      %v1249 = vpop.f32.mrf.mxu0
      %v1250 = vpop.f32.mrf.mxu0
      %1251 = vdwg.mxu0
      %v1253 = vsel %vm850, %v1017, 0
      %v1256 = vsel %vm850, %v1018, 0
      %v1259 = vsel %vm1200, %v1019, 0
      %1261 = vmatprep.subr.bf16.mxu0 0
      %1262 = vmatpush1.bf16.msra.mxu0 0
      %1263 = vmatprep.subr.bf16.mxu0 0
      %1264 = vmatpush1.bf16.msra.mxu0 0
      %1265 = vmatprep.subr.bf16.mxu0 0
      %1266 = vmatpush1.bf16.msra.mxu0 0
      %1267 = vmatprep.subr.bf16.mxu0 0
      %1268 = vmatpush1.bf16.msra.mxu0 0
      %1269 = vmatprep.subr.bf16.mxu0 0
      %1270 = vmatpush1.bf16.msra.mxu0 0
      %1271 = vmatprep.subr.bf16.mxu0 0
      %1272 = vmatpush1.bf16.msra.mxu0 0
      %1273 = vmatprep.subr.bf16.mxu0 0
      %1274 = vmatpush1.bf16.msra.mxu0 0
      %1275 = vmatprep.subr.bf16.mxu0 0
      %1276 = vmatpush1.bf16.msra.mxu0 %v1259
      %1277 = vmatprep.subr.bf16.mxu0 0
      %1278 = vmatpush2.bf16.msra.mxu0 0
      %1279 = vmatprep.subr.bf16.mxu0 0
      %1280 = vmatpush2.bf16.msra.mxu0 0
      %1281 = vmatprep.subr.bf16.mxu0 0
      %1282 = vmatpush2.bf16.msra.mxu0 0
      %1283 = vmatprep.subr.bf16.mxu0 0
      %1284 = vmatpush2.bf16.msra.mxu0 0
      %1285 = vmatprep.subr.bf16.mxu0 0
      %1286 = vmatpush2.bf16.msra.mxu0 0
      %1287 = vmatprep.subr.bf16.mxu0 0
      %1288 = vmatpush2.bf16.msra.mxu0 0
      %1289 = vmatprep.subr.bf16.mxu0 0
      %1290 = vmatpush2.bf16.msra.mxu0 0
      %1291 = vmatprep.subr.bf16.mxu0 0
      %1292 = vmatpush2.bf16.msra.mxu0 0
      %1293 = vmatprep.mubr.bf16.mxu0 0
      %1294 = vmatmul.mubr.bf16.gmra.mxu0 %v1253
      %v1295 = vpop.f32.mrf.mxu0
      %v1296 = vadd.f32 %v1239, %v1295
      %v1297 = vpop.f32.mrf.mxu0
      %v1298 = vpop.f32.mrf.mxu0
      %v1299 = vadd.f32 %v1242, %v1298
      %v1300 = vpop.f32.mrf.mxu0
      %1301 = vmatprep.mubr.bf16.mxu0 0
      %1302 = vmatmul.mubr.bf16.gmra.mxu0 %v1256
      %v1303 = vpop.f32.mrf.mxu0
      %v1304 = vadd.f32 %v1247, %v1303
      %v1305 = vpop.f32.mrf.mxu0
      %v1306 = vpop.f32.mrf.mxu0
      %v1307 = vpop.f32.mrf.mxu0
      %1308 = vdwg.mxu0
      %1309 = vrot.lane.b32.xlu0 %v842, 112
      %v1310 = vpop.permute.xlu0 %1309
      %1311 = vrot.lane.b32.xlu0 %v843, 112
      %v1312 = vpop.permute.xlu0 %1311
      %1313 = vrot.lane.b32.xlu0 %v842, 80
      %v1314 = vpop.permute.xlu0 %1313
      %1315 = vrot.lane.b32.xlu0 %v843, 80
      %v1316 = vpop.permute.xlu0 %1315
      %v1318 = vsel %vm850, %v1310, 0
      %v1321 = vsel %vm850, %v1312, 0
      %v1324 = vsel %vm850, %v1314, 0
      %v1327 = vsel %vm850, %v1316, 0
      %1329 = vmatprep.subr.bf16.mxu0 0
      %1330 = vmatpush1.bf16.xpose.msra.mxu0 0
      %1331 = vmatprep.subr.bf16.mxu0 0
      %1332 = vmatpush1.bf16.xpose.msra.mxu0 0
      %1333 = vmatprep.subr.bf16.mxu0 0
      %1334 = vmatpush1.bf16.xpose.msra.mxu0 0
      %1335 = vmatprep.subr.bf16.mxu0 0
      %1336 = vmatpush1.bf16.xpose.msra.mxu0 0
      %1337 = vmatprep.subr.bf16.mxu0 0
      %1338 = vmatpush1.bf16.xpose.msra.mxu0 0
      %1339 = vmatprep.subr.bf16.mxu0 0
      %1340 = vmatpush1.bf16.xpose.msra.mxu0 0
      %1341 = vmatprep.subr.bf16.mxu0 0
      %1342 = vmatpush1.bf16.xpose.msra.mxu0 %v1327
      %1343 = vmatprep.subr.bf16.mxu0 0
      %1344 = vmatpush1.bf16.xpose.msra.mxu0 %v1324
      %1345 = vmatprep.subr.bf16.mxu0 0
      %1346 = vmatpush2.bf16.xpose.msra.mxu0 0
      %1347 = vmatprep.subr.bf16.mxu0 0
      %1348 = vmatpush2.bf16.xpose.msra.mxu0 0
      %1349 = vmatprep.subr.bf16.mxu0 0
      %1350 = vmatpush2.bf16.xpose.msra.mxu0 0
      %1351 = vmatprep.subr.bf16.mxu0 0
      %1352 = vmatpush2.bf16.xpose.msra.mxu0 0
      %1353 = vmatprep.subr.bf16.mxu0 0
      %1354 = vmatpush2.bf16.xpose.msra.mxu0 0
      %1355 = vmatprep.subr.bf16.mxu0 0
      %1356 = vmatpush2.bf16.xpose.msra.mxu0 0
      %1357 = vmatprep.subr.bf16.mxu0 0
      %1358 = vmatpush2.bf16.xpose.msra.mxu0 0
      %1359 = vmatprep.subr.bf16.mxu0 0
      %1360 = vmatpush2.bf16.xpose.msra.mxu0 0
      %1361 = vmatprep.mubr.bf16.mxu0 0
      %1362 = vmatmul.mubr.bf16.gmra.mxu0 %v1318
      %v1363 = vpop.f32.mrf.mxu0
      %v1364 = vadd.f32 0.0, %v1363
      %v1365 = vpop.f32.mrf.mxu0
      %v1366 = vpop.f32.mrf.mxu0
      %v1367 = vadd.f32 0.0, %v1366
      %v1368 = vpop.f32.mrf.mxu0
      %1369 = vmatprep.mubr.bf16.mxu0 0
      %1370 = vmatmul.mubr.bf16.gmra.mxu0 %v1321
      %v1371 = vpop.f32.mrf.mxu0
      %v1372 = vadd.f32 0.0, %v1371
      %v1373 = vpop.f32.mrf.mxu0
      %v1374 = vpop.f32.mrf.mxu0
      %v1375 = vpop.f32.mrf.mxu0
      %1376 = vdwg.mxu0
      %v1377 = vmul.f32 %v1364, 0.35355338
      %v1378 = vmul.f32 %v1367, 0.35355338
      %v1379 = vmul.f32 %v1372, 0.35355338
      %v1380 = vadd.f32 %v1377, %v711
      %v1381 = vadd.f32 %v1378, %v712
      %v1382 = vadd.f32 %v1379, %v713
      %v1383 = vsel %vm917, %v1380, -inf
      %1384 = vmax.xlane.f32.xlu0 %v1383
      %v1385 = vpop.xlane.xlu0 %1384
      %v1386 = vsel %vm917, %v1381, -inf
      %1387 = vmax.xlane.f32.xlu0 %v1386
      %v1388 = vpop.xlane.xlu0 %1387
      %v1389 = vsel %vm924, %v1382, -inf
      %1390 = vmax.xlane.f32.xlu0 %v1389
      %v1391 = vpop.xlane.xlu0 %1390
      %v1392 = vsub.f32 %v1380, %v1385
      %v1393 = vsub.f32 %v1381, %v1388
      %v1394 = vsub.f32 %v1382, %v1391
      %v1395 = vmul.f32 %v1392, 1.442695
      %v1396 = vpow.pop %v1395
      %v1397 = vmul.f32 %v1393, 1.442695
      %v1398 = vpow.pop %v1397
      %v1399 = vmul.f32 %v1394, 1.442695
      %v1400 = vpow.pop %v1399
      %v1401 = vsel %vm917, %v1396, 0.0
      %1402 = vadd.xlane.f32.xlu0 %v1401
      %v1403 = vpop.xlane.xlu0 %1402
      %v1404 = vsel %vm917, %v1398, 0.0
      %1405 = vadd.xlane.f32.xlu0 %v1404
      %v1406 = vpop.xlane.xlu0 %1405
      %v1407 = vsel %vm924, %v1400, 0.0
      %1408 = vadd.xlane.f32.xlu0 %v1407
      %v1409 = vpop.xlane.xlu0 %1408
      %v1410 = vrcp.pop %v1403
      %v1411 = vrcp.pop %v1406
      %v1412 = vrcp.pop %v1409
      %v1413 = vmul.f32 %v1396, %v1410
      %v1414 = vmul.f32 %v1398, %v1411
      %v1415 = vmul.f32 %v1400, %v1412
      %v1416 = vpack.c.bf16 %v1414, %v1413
      %v1417 = vpack.c.bf16 %v1415, %v1415
      %1418 = vrot.lane.b32.xlu0 %v842, 48
      %v1419 = vpop.permute.xlu0 %1418
      %1420 = vrot.lane.b32.xlu0 %v843, 48
      %v1421 = vpop.permute.xlu0 %1420
      %v1424 = vsel %vm917, %v1416, 0
      %v1427 = vsel %vm917, %v1417, 0
      %v1430 = vsel %vm965, %v1421, 0
      %1432 = vmatprep.subr.bf16.mxu0 0
      %1433 = vmatpush1.bf16.msra.mxu0 0
      %1434 = vmatprep.subr.bf16.mxu0 0
      %1435 = vmatpush1.bf16.msra.mxu0 0
      %1436 = vmatprep.subr.bf16.mxu0 0
      %1437 = vmatpush1.bf16.msra.mxu0 0
      %1438 = vmatprep.subr.bf16.mxu0 0
      %1439 = vmatpush1.bf16.msra.mxu0 0
      %1440 = vmatprep.subr.bf16.mxu0 0
      %1441 = vmatpush1.bf16.msra.mxu0 0
      %1442 = vmatprep.subr.bf16.mxu0 0
      %1443 = vmatpush1.bf16.msra.mxu0 0
      %1444 = vmatprep.subr.bf16.mxu0 0
      %1445 = vmatpush1.bf16.msra.mxu0 %v1430
      %1446 = vmatprep.subr.bf16.mxu0 0
      %1447 = vmatpush1.bf16.msra.mxu0 %v1419
      %1448 = vmatprep.subr.bf16.mxu0 0
      %1449 = vmatpush2.bf16.msra.mxu0 0
      %1450 = vmatprep.subr.bf16.mxu0 0
      %1451 = vmatpush2.bf16.msra.mxu0 0
      %1452 = vmatprep.subr.bf16.mxu0 0
      %1453 = vmatpush2.bf16.msra.mxu0 0
      %1454 = vmatprep.subr.bf16.mxu0 0
      %1455 = vmatpush2.bf16.msra.mxu0 0
      %1456 = vmatprep.subr.bf16.mxu0 0
      %1457 = vmatpush2.bf16.msra.mxu0 0
      %1458 = vmatprep.subr.bf16.mxu0 0
      %1459 = vmatpush2.bf16.msra.mxu0 0
      %1460 = vmatprep.subr.bf16.mxu0 0
      %1461 = vmatpush2.bf16.msra.mxu0 0
      %1462 = vmatprep.subr.bf16.mxu0 0
      %1463 = vmatpush2.bf16.msra.mxu0 0
      %1464 = vmatprep.mubr.bf16.mxu0 0
      %1465 = vmatmul.mubr.bf16.gmra.mxu0 %v1424
      %v1466 = vpop.f32.mrf.mxu0
      %v1467 = vadd.f32 0.0, %v1466
      %v1468 = vpop.f32.mrf.mxu0
      %v1469 = vpop.f32.mrf.mxu0
      %v1470 = vadd.f32 0.0, %v1469
      %v1471 = vpop.f32.mrf.mxu0
      %1472 = vmatprep.mubr.bf16.mxu0 0
      %1473 = vmatmul.mubr.bf16.gmra.mxu0 %v1427
      %v1474 = vpop.f32.mrf.mxu0
      %v1475 = vadd.f32 0.0, %v1474
      %v1476 = vpop.f32.mrf.mxu0
      %v1477 = vpop.f32.mrf.mxu0
      %v1478 = vpop.f32.mrf.mxu0
      %1479 = vdwg.mxu0
      %v1480 = vpack.c.bf16 %v1470, %v1467
      %v1481 = vpack.c.bf16 %v1475, %v1475
      %v1482 = vpack.c.bf16 %v840, %v840
      %v1484 = vsel %vm850, %v1480, 0
      %v1487 = vsel %vm850, %v1481, 0
      %v1490 = vsel %vm1200, %v1482, 0
      %1492 = vmatprep.subr.bf16.mxu0 0
      %1493 = vmatpush1.bf16.msra.mxu0 0
      %1494 = vmatprep.subr.bf16.mxu0 0
      %1495 = vmatpush1.bf16.msra.mxu0 0
      %1496 = vmatprep.subr.bf16.mxu0 0
      %1497 = vmatpush1.bf16.msra.mxu0 0
      %1498 = vmatprep.subr.bf16.mxu0 0
      %1499 = vmatpush1.bf16.msra.mxu0 0
      %1500 = vmatprep.subr.bf16.mxu0 0
      %1501 = vmatpush1.bf16.msra.mxu0 0
      %1502 = vmatprep.subr.bf16.mxu0 0
      %1503 = vmatpush1.bf16.msra.mxu0 0
      %1504 = vmatprep.subr.bf16.mxu0 0
      %1505 = vmatpush1.bf16.msra.mxu0 0
      %1506 = vmatprep.subr.bf16.mxu0 0
      %1507 = vmatpush1.bf16.msra.mxu0 %v1490
      %1508 = vmatprep.subr.bf16.mxu0 0
      %1509 = vmatpush2.bf16.msra.mxu0 0
      %1510 = vmatprep.subr.bf16.mxu0 0
      %1511 = vmatpush2.bf16.msra.mxu0 0
      %1512 = vmatprep.subr.bf16.mxu0 0
      %1513 = vmatpush2.bf16.msra.mxu0 0
      %1514 = vmatprep.subr.bf16.mxu0 0
      %1515 = vmatpush2.bf16.msra.mxu0 0
      %1516 = vmatprep.subr.bf16.mxu0 0
      %1517 = vmatpush2.bf16.msra.mxu0 0
      %1518 = vmatprep.subr.bf16.mxu0 0
      %1519 = vmatpush2.bf16.msra.mxu0 0
      %1520 = vmatprep.subr.bf16.mxu0 0
      %1521 = vmatpush2.bf16.msra.mxu0 0
      %1522 = vmatprep.subr.bf16.mxu0 0
      %1523 = vmatpush2.bf16.msra.mxu0 0
      %1524 = vmatprep.mubr.bf16.mxu0 0
      %1525 = vmatmul.mubr.bf16.gmra.mxu0 %v1484
      %v1526 = vpop.f32.mrf.mxu0
      %v1527 = vadd.f32 0.0, %v1526
      %v1528 = vpop.f32.mrf.mxu0
      %v1529 = vpop.f32.mrf.mxu0
      %v1530 = vadd.f32 0.0, %v1529
      %v1531 = vpop.f32.mrf.mxu0
      %1532 = vmatprep.mubr.bf16.mxu0 0
      %1533 = vmatmul.mubr.bf16.gmra.mxu0 %v1487
      %v1534 = vpop.f32.mrf.mxu0
      %v1535 = vadd.f32 0.0, %v1534
      %v1536 = vpop.f32.mrf.mxu0
      %v1537 = vpop.f32.mrf.mxu0
      %v1538 = vpop.f32.mrf.mxu0
      %1539 = vdwg.mxu0
      %v1540 = vadd.f32 %v1296, %v1527
      %v1541 = vadd.f32 %v1299, %v1530
      %v1542 = vadd.f32 %v1304, %v1535
      %1543 = vrot.lane.b32.xlu0 %v842, 104
      %v1544 = vpop.permute.xlu0 %1543
      %1545 = vrot.lane.b32.xlu0 %v843, 104
      %v1546 = vpop.permute.xlu0 %1545
      %1547 = vrot.lane.b32.xlu0 %v842, 72
      %v1548 = vpop.permute.xlu0 %1547
      %1549 = vrot.lane.b32.xlu0 %v843, 72
      %v1550 = vpop.permute.xlu0 %1549
      %v1552 = vsel %vm850, %v1544, 0
      %v1555 = vsel %vm850, %v1546, 0
      %v1558 = vsel %vm850, %v1548, 0
      %v1561 = vsel %vm850, %v1550, 0
      %1563 = vmatprep.subr.bf16.mxu0 0
      %1564 = vmatpush1.bf16.xpose.msra.mxu0 0
      %1565 = vmatprep.subr.bf16.mxu0 0
      %1566 = vmatpush1.bf16.xpose.msra.mxu0 0
      %1567 = vmatprep.subr.bf16.mxu0 0
      %1568 = vmatpush1.bf16.xpose.msra.mxu0 0
      %1569 = vmatprep.subr.bf16.mxu0 0
      %1570 = vmatpush1.bf16.xpose.msra.mxu0 0
      %1571 = vmatprep.subr.bf16.mxu0 0
      %1572 = vmatpush1.bf16.xpose.msra.mxu0 0
      %1573 = vmatprep.subr.bf16.mxu0 0
      %1574 = vmatpush1.bf16.xpose.msra.mxu0 0
      %1575 = vmatprep.subr.bf16.mxu0 0
      %1576 = vmatpush1.bf16.xpose.msra.mxu0 %v1561
      %1577 = vmatprep.subr.bf16.mxu0 0
      %1578 = vmatpush1.bf16.xpose.msra.mxu0 %v1558
      %1579 = vmatprep.subr.bf16.mxu0 0
      %1580 = vmatpush2.bf16.xpose.msra.mxu0 0
      %1581 = vmatprep.subr.bf16.mxu0 0
      %1582 = vmatpush2.bf16.xpose.msra.mxu0 0
      %1583 = vmatprep.subr.bf16.mxu0 0
      %1584 = vmatpush2.bf16.xpose.msra.mxu0 0
      %1585 = vmatprep.subr.bf16.mxu0 0
      %1586 = vmatpush2.bf16.xpose.msra.mxu0 0
      %1587 = vmatprep.subr.bf16.mxu0 0
      %1588 = vmatpush2.bf16.xpose.msra.mxu0 0
      %1589 = vmatprep.subr.bf16.mxu0 0
      %1590 = vmatpush2.bf16.xpose.msra.mxu0 0
      %1591 = vmatprep.subr.bf16.mxu0 0
      %1592 = vmatpush2.bf16.xpose.msra.mxu0 0
      %1593 = vmatprep.subr.bf16.mxu0 0
      %1594 = vmatpush2.bf16.xpose.msra.mxu0 0
      %1595 = vmatprep.mubr.bf16.mxu0 0
      %1596 = vmatmul.mubr.bf16.gmra.mxu0 %v1552
      %v1597 = vpop.f32.mrf.mxu0
      %v1598 = vadd.f32 0.0, %v1597
      %v1599 = vpop.f32.mrf.mxu0
      %v1600 = vpop.f32.mrf.mxu0
      %v1601 = vadd.f32 0.0, %v1600
      %v1602 = vpop.f32.mrf.mxu0
      %1603 = vmatprep.mubr.bf16.mxu0 0
      %1604 = vmatmul.mubr.bf16.gmra.mxu0 %v1555
      %v1605 = vpop.f32.mrf.mxu0
      %v1606 = vadd.f32 0.0, %v1605
      %v1607 = vpop.f32.mrf.mxu0
      %v1608 = vpop.f32.mrf.mxu0
      %v1609 = vpop.f32.mrf.mxu0
      %1610 = vdwg.mxu0
      %v1611 = vmul.f32 %v1598, 0.35355338
      %v1612 = vmul.f32 %v1601, 0.35355338
      %v1613 = vmul.f32 %v1606, 0.35355338
      %v1614 = vadd.f32 %v1611, %v711
      %v1615 = vadd.f32 %v1612, %v712
      %v1616 = vadd.f32 %v1613, %v713
      %v1617 = vsel %vm917, %v1614, -inf
      %1618 = vmax.xlane.f32.xlu0 %v1617
      %v1619 = vpop.xlane.xlu0 %1618
      %v1620 = vsel %vm917, %v1615, -inf
      %1621 = vmax.xlane.f32.xlu0 %v1620
      %v1622 = vpop.xlane.xlu0 %1621
      %v1623 = vsel %vm924, %v1616, -inf
      %1624 = vmax.xlane.f32.xlu0 %v1623
      %v1625 = vpop.xlane.xlu0 %1624
      %v1626 = vsub.f32 %v1614, %v1619
      %v1627 = vsub.f32 %v1615, %v1622
      %v1628 = vsub.f32 %v1616, %v1625
      %v1629 = vmul.f32 %v1626, 1.442695
      %v1630 = vpow.pop %v1629
      %v1631 = vmul.f32 %v1627, 1.442695
      %v1632 = vpow.pop %v1631
      %v1633 = vmul.f32 %v1628, 1.442695
      %v1634 = vpow.pop %v1633
      %v1635 = vsel %vm917, %v1630, 0.0
      %1636 = vadd.xlane.f32.xlu0 %v1635
      %v1637 = vpop.xlane.xlu0 %1636
      %v1638 = vsel %vm917, %v1632, 0.0
      %1639 = vadd.xlane.f32.xlu0 %v1638
      %v1640 = vpop.xlane.xlu0 %1639
      %v1641 = vsel %vm924, %v1634, 0.0
      %1642 = vadd.xlane.f32.xlu0 %v1641
      %v1643 = vpop.xlane.xlu0 %1642
      %v1644 = vrcp.pop %v1637
      %v1645 = vrcp.pop %v1640
      %v1646 = vrcp.pop %v1643
      %v1647 = vmul.f32 %v1630, %v1644
      %v1648 = vmul.f32 %v1632, %v1645
      %v1649 = vmul.f32 %v1634, %v1646
      %v1650 = vpack.c.bf16 %v1648, %v1647
      %v1651 = vpack.c.bf16 %v1649, %v1649
      %1652 = vrot.lane.b32.xlu0 %v842, 40
      %v1653 = vpop.permute.xlu0 %1652
      %1654 = vrot.lane.b32.xlu0 %v843, 40
      %v1655 = vpop.permute.xlu0 %1654
      %v1658 = vsel %vm917, %v1650, 0
      %v1661 = vsel %vm917, %v1651, 0
      %v1664 = vsel %vm965, %v1655, 0
      %1666 = vmatprep.subr.bf16.mxu0 0
      %1667 = vmatpush1.bf16.msra.mxu0 0
      %1668 = vmatprep.subr.bf16.mxu0 0
      %1669 = vmatpush1.bf16.msra.mxu0 0
      %1670 = vmatprep.subr.bf16.mxu0 0
      %1671 = vmatpush1.bf16.msra.mxu0 0
      %1672 = vmatprep.subr.bf16.mxu0 0
      %1673 = vmatpush1.bf16.msra.mxu0 0
      %1674 = vmatprep.subr.bf16.mxu0 0
      %1675 = vmatpush1.bf16.msra.mxu0 0
      %1676 = vmatprep.subr.bf16.mxu0 0
      %1677 = vmatpush1.bf16.msra.mxu0 0
      %1678 = vmatprep.subr.bf16.mxu0 0
      %1679 = vmatpush1.bf16.msra.mxu0 %v1664
      %1680 = vmatprep.subr.bf16.mxu0 0
      %1681 = vmatpush1.bf16.msra.mxu0 %v1653
      %1682 = vmatprep.subr.bf16.mxu0 0
      %1683 = vmatpush2.bf16.msra.mxu0 0
      %1684 = vmatprep.subr.bf16.mxu0 0
      %1685 = vmatpush2.bf16.msra.mxu0 0
      %1686 = vmatprep.subr.bf16.mxu0 0
      %1687 = vmatpush2.bf16.msra.mxu0 0
      %1688 = vmatprep.subr.bf16.mxu0 0
      %1689 = vmatpush2.bf16.msra.mxu0 0
      %1690 = vmatprep.subr.bf16.mxu0 0
      %1691 = vmatpush2.bf16.msra.mxu0 0
      %1692 = vmatprep.subr.bf16.mxu0 0
      %1693 = vmatpush2.bf16.msra.mxu0 0
      %1694 = vmatprep.subr.bf16.mxu0 0
      %1695 = vmatpush2.bf16.msra.mxu0 0
      %1696 = vmatprep.subr.bf16.mxu0 0
      %1697 = vmatpush2.bf16.msra.mxu0 0
      %1698 = vmatprep.mubr.bf16.mxu0 0
      %1699 = vmatmul.mubr.bf16.gmra.mxu0 %v1658
      %v1700 = vpop.f32.mrf.mxu0
      %v1701 = vadd.f32 0.0, %v1700
      %v1702 = vpop.f32.mrf.mxu0
      %v1703 = vpop.f32.mrf.mxu0
      %v1704 = vadd.f32 0.0, %v1703
      %v1705 = vpop.f32.mrf.mxu0
      %1706 = vmatprep.mubr.bf16.mxu0 0
      %1707 = vmatmul.mubr.bf16.gmra.mxu0 %v1661
      %v1708 = vpop.f32.mrf.mxu0
      %v1709 = vadd.f32 0.0, %v1708
      %v1710 = vpop.f32.mrf.mxu0
      %v1711 = vpop.f32.mrf.mxu0
      %v1712 = vpop.f32.mrf.mxu0
      %1713 = vdwg.mxu0
      %v1714 = vpack.c.bf16 %v1704, %v1701
      %v1715 = vpack.c.bf16 %v1709, %v1709
      %v1716 = vpack.c.bf16 %v841, %v841
      %v1718 = vsel %vm850, %v1714, 0
      %v1721 = vsel %vm850, %v1715, 0
      %v1724 = vsel %vm1200, %v1716, 0
      %1726 = vmatprep.subr.bf16.mxu0 0
      %1727 = vmatpush1.bf16.msra.mxu0 0
      %1728 = vmatprep.subr.bf16.mxu0 0
      %1729 = vmatpush1.bf16.msra.mxu0 0
      %1730 = vmatprep.subr.bf16.mxu0 0
      %1731 = vmatpush1.bf16.msra.mxu0 0
      %1732 = vmatprep.subr.bf16.mxu0 0
      %1733 = vmatpush1.bf16.msra.mxu0 0
      %1734 = vmatprep.subr.bf16.mxu0 0
      %1735 = vmatpush1.bf16.msra.mxu0 0
      %1736 = vmatprep.subr.bf16.mxu0 0
      %1737 = vmatpush1.bf16.msra.mxu0 0
      %1738 = vmatprep.subr.bf16.mxu0 0
      %1739 = vmatpush1.bf16.msra.mxu0 0
      %1740 = vmatprep.subr.bf16.mxu0 0
      %1741 = vmatpush1.bf16.msra.mxu0 %v1724
      %1742 = vmatprep.subr.bf16.mxu0 0
      %1743 = vmatpush2.bf16.msra.mxu0 0
      %1744 = vmatprep.subr.bf16.mxu0 0
      %1745 = vmatpush2.bf16.msra.mxu0 0
      %1746 = vmatprep.subr.bf16.mxu0 0
      %1747 = vmatpush2.bf16.msra.mxu0 0
      %1748 = vmatprep.subr.bf16.mxu0 0
      %1749 = vmatpush2.bf16.msra.mxu0 0
      %1750 = vmatprep.subr.bf16.mxu0 0
      %1751 = vmatpush2.bf16.msra.mxu0 0
      %1752 = vmatprep.subr.bf16.mxu0 0
      %1753 = vmatpush2.bf16.msra.mxu0 0
      %1754 = vmatprep.subr.bf16.mxu0 0
      %1755 = vmatpush2.bf16.msra.mxu0 0
      %1756 = vmatprep.subr.bf16.mxu0 0
      %1757 = vmatpush2.bf16.msra.mxu0 0
      %1758 = vmatprep.mubr.bf16.mxu0 0
      %1759 = vmatmul.mubr.bf16.gmra.mxu0 %v1718
      %v1760 = vpop.f32.mrf.mxu0
      %v1761 = vadd.f32 0.0, %v1760
      %v1762 = vpop.f32.mrf.mxu0
      %v1763 = vpop.f32.mrf.mxu0
      %v1764 = vadd.f32 0.0, %v1763
      %v1765 = vpop.f32.mrf.mxu0
      %1766 = vmatprep.mubr.bf16.mxu0 0
      %1767 = vmatmul.mubr.bf16.gmra.mxu0 %v1721
      %v1768 = vpop.f32.mrf.mxu0
      %v1769 = vadd.f32 0.0, %v1768
      %v1770 = vpop.f32.mrf.mxu0
      %v1771 = vpop.f32.mrf.mxu0
      %v1772 = vpop.f32.mrf.mxu0
      %1773 = vdwg.mxu0
      %v1774 = vadd.f32 %v1540, %v1761
      %v1775 = vadd.f32 %v1541, %v1764
      %v1776 = vadd.f32 %v1542, %v1769
      %v1777 = vadd.f32 %v708, %v1774
      %v1778 = vadd.f32 %v709, %v1775
      %v1779 = vadd.f32 %v710, %v1776
      %v1780 = vld [vmem:[%s10] sm:$0x1]
      %v1782 = vlaneseq
      %v1783 = vshrl.u32 %v1782, 7
      %v1784 = vsub.s32 0, %v1783
      %v1785 = vrot.slane %v1780, %v1784
      %v1787 = vadd.f32 %v1777, %v1785
      %v1788 = vadd.f32 %v1778, %v1785
      %v1789 = vadd.f32 %v1779, %v1785
      %v1790 = vld [vmem:[%s11] sm:$0x1]
      %v1791 = vld [vmem:[%s12] sm:$0x1]
      %v1792 = vsel %vm716, %v1787, 0.0
      %1793 = vadd.xlane.f32.xlu0 %v1792
      %v1794 = vpop.xlane.xlu0 %1793
      %v1795 = vsel %vm716, %v1788, 0.0
      %1796 = vadd.xlane.f32.xlu0 %v1795
      %v1797 = vpop.xlane.xlu0 %1796
      %v1798 = vsel %vm723, %v1789, 0.0
      %1799 = vadd.xlane.f32.xlu0 %v1798
      %v1800 = vpop.xlane.xlu0 %1799
      %v1801 = vmul.f32 %v1794, %v727
      %v1802 = vmul.f32 %v1797, %v727
      %v1803 = vmul.f32 %v1800, %v727
      %v1804 = vsub.f32 %v1787, %v1801
      %v1805 = vsub.f32 %v1788, %v1802
      %v1806 = vsub.f32 %v1789, %v1803
      %v1807 = vmul.f32 %v1804, %v1804
      %v1808 = vmul.f32 %v1805, %v1805
      %v1809 = vmul.f32 %v1806, %v1806
      %v1810 = vsel %vm716, %v1807, 0.0
      %1811 = vadd.xlane.f32.xlu0 %v1810
      %v1812 = vpop.xlane.xlu0 %1811
      %v1813 = vsel %vm716, %v1808, 0.0
      %1814 = vadd.xlane.f32.xlu0 %v1813
      %v1815 = vpop.xlane.xlu0 %1814
      %v1816 = vsel %vm723, %v1809, 0.0
      %1817 = vadd.xlane.f32.xlu0 %v1816
      %v1818 = vpop.xlane.xlu0 %1817
      %v1819 = vmul.f32 %v1812, %v727
      %v1820 = vmul.f32 %v1815, %v727
      %v1821 = vmul.f32 %v1818, %v727
      %v1822 = vadd.f32 %v1819, 1e-05
      %v1823 = vadd.f32 %v1820, 1e-05
      %v1824 = vadd.f32 %v1821, 1e-05
      %v1825 = vrsqrt.pop %v1822
      %v1826 = vrsqrt.pop %v1823
      %v1827 = vrsqrt.pop %v1824
      %v1828 = vmul.f32 %v1804, %v1825
      %v1829 = vmul.f32 %v1805, %v1826
      %v1830 = vmul.f32 %v1806, %v1827
      %v1832 = vlaneseq
      %v1833 = vshrl.u32 %v1832, 7
      %v1834 = vsub.s32 0, %v1833
      %v1835 = vrot.slane %v1790, %v1834
      %v1837 = vmul.f32 %v1828, %v1835
      %v1838 = vmul.f32 %v1829, %v1835
      %v1839 = vmul.f32 %v1830, %v1835
      %v1841 = vlaneseq
      %v1842 = vshrl.u32 %v1841, 7
      %v1843 = vsub.s32 0, %v1842
      %v1844 = vrot.slane %v1791, %v1843
      %v1846 = vadd.f32 %v1837, %v1844
      %v1847 = vadd.f32 %v1838, %v1844
      %v1848 = vadd.f32 %v1839, %v1844
      %v1849 = vld [vmem:[%s13] sm:$0xff]
      %v1850 = vld [vmem:[%s13 + $0x8] sm:$0xff]
      %v1851 = vld [vmem:[%s13 + $0x10] sm:$0xff]
      %v1852 = vld [vmem:[%s13 + $0x18] sm:$0xff]
      %v1853 = vpack.c.bf16 %v1847, %v1846
      %v1854 = vpack.c.bf16 %v1848, %v1848
      %v1855 = vpack.c.bf16 %v1850, %v1849
      %v1856 = vpack.c.bf16 %v1852, %v1851
      %v1857 = vld [vmem:[%s14] sm:$0x1]
      %v1859 = vlaneseq
      %v1860 = vshrl.u32 %v1859, 7
      %v1861 = vsub.s32 0, %v1860
      %v1862 = vrot.slane %v1857, %v1861
      %v1865 = vsel %vm716, %v1853, 0
      %v1868 = vsel %vm716, %v1854, 0
      %1870 = vmatprep.subr.bf16.mxu0 0
      %1871 = vmatpush1.bf16.msra.mxu0 0
      %1872 = vmatprep.subr.bf16.mxu0 0
      %1873 = vmatpush1.bf16.msra.mxu0 0
      %1874 = vmatprep.subr.bf16.mxu0 0
      %1875 = vmatpush1.bf16.msra.mxu0 0
      %1876 = vmatprep.subr.bf16.mxu0 0
      %1877 = vmatpush1.bf16.msra.mxu0 0
      %1878 = vmatprep.subr.bf16.mxu0 0
      %1879 = vmatpush1.bf16.msra.mxu0 0
      %1880 = vmatprep.subr.bf16.mxu0 0
      %1881 = vmatpush1.bf16.msra.mxu0 0
      %1882 = vmatprep.subr.bf16.mxu0 0
      %1883 = vmatpush1.bf16.msra.mxu0 %v1856
      %1884 = vmatprep.subr.bf16.mxu0 0
      %1885 = vmatpush1.bf16.msra.mxu0 %v1855
      %1886 = vmatprep.subr.bf16.mxu0 0
      %1887 = vmatpush2.bf16.msra.mxu0 0
      %1888 = vmatprep.subr.bf16.mxu0 0
      %1889 = vmatpush2.bf16.msra.mxu0 0
      %1890 = vmatprep.subr.bf16.mxu0 0
      %1891 = vmatpush2.bf16.msra.mxu0 0
      %1892 = vmatprep.subr.bf16.mxu0 0
      %1893 = vmatpush2.bf16.msra.mxu0 0
      %1894 = vmatprep.subr.bf16.mxu0 0
      %1895 = vmatpush2.bf16.msra.mxu0 0
      %1896 = vmatprep.subr.bf16.mxu0 0
      %1897 = vmatpush2.bf16.msra.mxu0 0
      %1898 = vmatprep.subr.bf16.mxu0 0
      %1899 = vmatpush2.bf16.msra.mxu0 0
      %1900 = vmatprep.subr.bf16.mxu0 0
      %1901 = vmatpush2.bf16.msra.mxu0 0
      %1902 = vmatprep.mubr.bf16.mxu0 0
      %1903 = vmatmul.mubr.bf16.gmra.mxu0 %v1865
      %v1904 = vpop.f32.mrf.mxu0
      %v1905 = vadd.f32 %v1862, %v1904
      %v1906 = vpop.f32.mrf.mxu0
      %v1907 = vpop.f32.mrf.mxu0
      %v1908 = vadd.f32 %v1862, %v1907
      %v1909 = vpop.f32.mrf.mxu0
      %1910 = vmatprep.mubr.bf16.mxu0 0
      %1911 = vmatmul.mubr.bf16.gmra.mxu0 %v1868
      %v1912 = vpop.f32.mrf.mxu0
      %v1913 = vadd.f32 %v1862, %v1912
      %v1914 = vpop.f32.mrf.mxu0
      %v1915 = vpop.f32.mrf.mxu0
      %v1916 = vpop.f32.mrf.mxu0
      %1917 = vdwg.mxu0
      %v1918 = vmul.f32 %v1905, %v1905
      %v1919 = vmul.f32 %v1908, %v1908
      %v1920 = vmul.f32 %v1913, %v1913
      %v1921 = vmul.f32 %v1905, %v1918
      %v1922 = vmul.f32 %v1908, %v1919
      %v1923 = vmul.f32 %v1913, %v1920
      %v1924 = vmul.f32 %v1921, 0.044715
      %v1925 = vmul.f32 %v1922, 0.044715
      %v1926 = vmul.f32 %v1923, 0.044715
      %v1927 = vadd.f32 %v1905, %v1924
      %v1928 = vadd.f32 %v1908, %v1925
      %v1929 = vadd.f32 %v1913, %v1926
      %v1930 = vmul.f32 %v1927, 0.7978846
      %v1931 = vmul.f32 %v1928, 0.7978846
      %v1932 = vmul.f32 %v1929, 0.7978846
      %v1933 = vtanh.pop %v1930
      %v1934 = vtanh.pop %v1931
      %v1935 = vtanh.pop %v1932
      %v1936 = vadd.f32 %v1933, 1.0
      %v1937 = vadd.f32 %v1934, 1.0
      %v1938 = vadd.f32 %v1935, 1.0
      %v1939 = vmul.f32 %v1936, 0.5
      %v1940 = vmul.f32 %v1937, 0.5
      %v1941 = vmul.f32 %v1938, 0.5
      %v1942 = vmul.f32 %v1905, %v1939
      %v1943 = vmul.f32 %v1908, %v1940
      %v1944 = vmul.f32 %v1913, %v1941
      %v1945 = vld [vmem:[%s15] sm:$0xff]
      %v1946 = vld [vmem:[%s15 + $0x8] sm:$0xff]
      %v1947 = vld [vmem:[%s15 + $0x10] sm:$0xff]
      %v1948 = vld [vmem:[%s15 + $0x18] sm:$0xff]
      %v1949 = vld [vmem:[%s15 + $0x20] sm:$0xff]
      %v1950 = vld [vmem:[%s15 + $0x28] sm:$0xff]
      %v1951 = vld [vmem:[%s15 + $0x30] sm:$0xff]
      %v1952 = vld [vmem:[%s15 + $0x38] sm:$0xff]
      %v1953 = vld [vmem:[%s15 + $0x40] sm:$0xff]
      %v1954 = vld [vmem:[%s15 + $0x48] sm:$0xff]
      %v1955 = vld [vmem:[%s15 + $0x50] sm:$0xff]
      %v1956 = vld [vmem:[%s15 + $0x58] sm:$0xff]
      %v1957 = vld [vmem:[%s15 + $0x60] sm:$0xff]
      %v1958 = vld [vmem:[%s15 + $0x68] sm:$0xff]
      %v1959 = vld [vmem:[%s15 + $0x70] sm:$0xff]
      %v1960 = vld [vmem:[%s15 + $0x78] sm:$0xff]
      %v1961 = vpack.c.bf16 %v1943, %v1942
      %v1962 = vpack.c.bf16 %v1944, %v1944
      %v1963 = vpack.c.bf16 %v1946, %v1945
      %v1964 = vpack.c.bf16 %v1948, %v1947
      %v1965 = vpack.c.bf16 %v1950, %v1949
      %v1966 = vpack.c.bf16 %v1952, %v1951
      %v1967 = vpack.c.bf16 %v1954, %v1953
      %v1968 = vpack.c.bf16 %v1956, %v1955
      %v1969 = vpack.c.bf16 %v1958, %v1957
      %v1970 = vpack.c.bf16 %v1960, %v1959
      %v1971 = vld [vmem:[%s16] sm:$0x1]
      %v1973 = vlaneseq
      %v1974 = vshrl.u32 %v1973, 7
      %v1975 = vsub.s32 0, %v1974
      %v1976 = vrot.slane %v1971, %v1975
      %1978 = vmatprep.subr.bf16.mxu0 0
      %1979 = vmatpush1.bf16.msra.mxu0 %v1970
      %1980 = vmatprep.subr.bf16.mxu0 0
      %1981 = vmatpush1.bf16.msra.mxu0 %v1969
      %1982 = vmatprep.subr.bf16.mxu0 0
      %1983 = vmatpush1.bf16.msra.mxu0 %v1968
      %1984 = vmatprep.subr.bf16.mxu0 0
      %1985 = vmatpush1.bf16.msra.mxu0 %v1967
      %1986 = vmatprep.subr.bf16.mxu0 0
      %1987 = vmatpush1.bf16.msra.mxu0 %v1966
      %1988 = vmatprep.subr.bf16.mxu0 0
      %1989 = vmatpush1.bf16.msra.mxu0 %v1965
      %1990 = vmatprep.subr.bf16.mxu0 0
      %1991 = vmatpush1.bf16.msra.mxu0 %v1964
      %1992 = vmatprep.subr.bf16.mxu0 0
      %1993 = vmatpush1.bf16.msra.mxu0 %v1963
      %1994 = vmatprep.subr.bf16.mxu0 0
      %1995 = vmatpush2.bf16.msra.mxu0 0
      %1996 = vmatprep.subr.bf16.mxu0 0
      %1997 = vmatpush2.bf16.msra.mxu0 0
      %1998 = vmatprep.subr.bf16.mxu0 0
      %1999 = vmatpush2.bf16.msra.mxu0 0
      %2000 = vmatprep.subr.bf16.mxu0 0
      %2001 = vmatpush2.bf16.msra.mxu0 0
      %2002 = vmatprep.subr.bf16.mxu0 0
      %2003 = vmatpush2.bf16.msra.mxu0 0
      %2004 = vmatprep.subr.bf16.mxu0 0
      %2005 = vmatpush2.bf16.msra.mxu0 0
      %2006 = vmatprep.subr.bf16.mxu0 0
      %2007 = vmatpush2.bf16.msra.mxu0 0
      %2008 = vmatprep.subr.bf16.mxu0 0
      %2009 = vmatpush2.bf16.msra.mxu0 0
      %2010 = vmatprep.mubr.bf16.mxu0 0
      %2011 = vmatmul.mubr.bf16.gmra.mxu0 %v1961
      %v2012 = vpop.f32.mrf.mxu0
      %v2013 = vadd.f32 %v1976, %v2012
      %v2014 = vpop.f32.mrf.mxu0
      %v2015 = vpop.f32.mrf.mxu0
      %v2016 = vadd.f32 %v1976, %v2015
      %v2017 = vpop.f32.mrf.mxu0
      %2018 = vmatprep.mubr.bf16.mxu0 0
      %2019 = vmatmul.mubr.bf16.gmra.mxu0 %v1962
      %v2020 = vpop.f32.mrf.mxu0
      %v2021 = vadd.f32 %v1976, %v2020
      %v2022 = vpop.f32.mrf.mxu0
      %v2023 = vpop.f32.mrf.mxu0
      %v2024 = vpop.f32.mrf.mxu0
      %2025 = vdwg.mxu0
      %v2026 = vadd.f32 %v1787, %v2013
      %v2027 = vadd.f32 %v1788, %v2016
      %v2028 = vadd.f32 %v1789, %v2021
      %s2029 = scalar_lea.vmem %s6, 1
      %v2030 = vld [vmem:[%s2029] sm:$0x1]
      %s2031 = scalar_lea.vmem %s7, 1
      %v2032 = vld [vmem:[%s2031] sm:$0x1]
      %v2033 = vsel %vm716, %v2026, 0.0
      %2034 = vadd.xlane.f32.xlu0 %v2033
      %v2035 = vpop.xlane.xlu0 %2034
      %v2036 = vsel %vm716, %v2027, 0.0
      %2037 = vadd.xlane.f32.xlu0 %v2036
      %v2038 = vpop.xlane.xlu0 %2037
      %v2039 = vsel %vm723, %v2028, 0.0
      %2040 = vadd.xlane.f32.xlu0 %v2039
      %v2041 = vpop.xlane.xlu0 %2040
      %v2042 = vmul.f32 %v2035, %v727
      %v2043 = vmul.f32 %v2038, %v727
      %v2044 = vmul.f32 %v2041, %v727
      %v2045 = vsub.f32 %v2026, %v2042
      %v2046 = vsub.f32 %v2027, %v2043
      %v2047 = vsub.f32 %v2028, %v2044
      %v2048 = vmul.f32 %v2045, %v2045
      %v2049 = vmul.f32 %v2046, %v2046
      %v2050 = vmul.f32 %v2047, %v2047
      %v2051 = vsel %vm716, %v2048, 0.0
      %2052 = vadd.xlane.f32.xlu0 %v2051
      %v2053 = vpop.xlane.xlu0 %2052
      %v2054 = vsel %vm716, %v2049, 0.0
      %2055 = vadd.xlane.f32.xlu0 %v2054
      %v2056 = vpop.xlane.xlu0 %2055
      %v2057 = vsel %vm723, %v2050, 0.0
      %2058 = vadd.xlane.f32.xlu0 %v2057
      %v2059 = vpop.xlane.xlu0 %2058
      %v2060 = vmul.f32 %v2053, %v727
      %v2061 = vmul.f32 %v2056, %v727
      %v2062 = vmul.f32 %v2059, %v727
      %v2063 = vadd.f32 %v2060, 1e-05
      %v2064 = vadd.f32 %v2061, 1e-05
      %v2065 = vadd.f32 %v2062, 1e-05
      %v2066 = vrsqrt.pop %v2063
      %v2067 = vrsqrt.pop %v2064
      %v2068 = vrsqrt.pop %v2065
      %v2069 = vmul.f32 %v2045, %v2066
      %v2070 = vmul.f32 %v2046, %v2067
      %v2071 = vmul.f32 %v2047, %v2068
      %v2073 = vlaneseq
      %v2074 = vshrl.u32 %v2073, 7
      %v2075 = vsub.s32 0, %v2074
      %v2076 = vrot.slane %v2030, %v2075
      %v2078 = vmul.f32 %v2069, %v2076
      %v2079 = vmul.f32 %v2070, %v2076
      %v2080 = vmul.f32 %v2071, %v2076
      %v2082 = vlaneseq
      %v2083 = vshrl.u32 %v2082, 7
      %v2084 = vsub.s32 0, %v2083
      %v2085 = vrot.slane %v2032, %v2084
      %v2087 = vadd.f32 %v2078, %v2085
      %v2088 = vadd.f32 %v2079, %v2085
      %v2089 = vadd.f32 %v2080, %v2085
      %s2090 = scalar_lea.vmem %s8, 32
      %v2091 = vld [vmem:[%s2090] sm:$0xff]
      %v2092 = vld [vmem:[%s2090 + $0x8] sm:$0xff]
      %v2093 = vld [vmem:[%s2090 + $0x10] sm:$0xff]
      %v2094 = vld [vmem:[%s2090 + $0x18] sm:$0xff]
      %v2095 = vpack.c.bf16 %v2088, %v2087
      %v2096 = vpack.c.bf16 %v2089, %v2089
      %v2097 = vpack.c.bf16 %v2092, %v2091
      %v2098 = vpack.c.bf16 %v2094, %v2093
      %v2100 = vsel %vm716, %v2095, 0
      %v2103 = vsel %vm716, %v2096, 0
      %2105 = vmatprep.subr.bf16.mxu0 0
      %2106 = vmatpush1.bf16.msra.mxu0 0
      %2107 = vmatprep.subr.bf16.mxu0 0
      %2108 = vmatpush1.bf16.msra.mxu0 0
      %2109 = vmatprep.subr.bf16.mxu0 0
      %2110 = vmatpush1.bf16.msra.mxu0 0
      %2111 = vmatprep.subr.bf16.mxu0 0
      %2112 = vmatpush1.bf16.msra.mxu0 0
      %2113 = vmatprep.subr.bf16.mxu0 0
      %2114 = vmatpush1.bf16.msra.mxu0 0
      %2115 = vmatprep.subr.bf16.mxu0 0
      %2116 = vmatpush1.bf16.msra.mxu0 0
      %2117 = vmatprep.subr.bf16.mxu0 0
      %2118 = vmatpush1.bf16.msra.mxu0 %v2098
      %2119 = vmatprep.subr.bf16.mxu0 0
      %2120 = vmatpush1.bf16.msra.mxu0 %v2097
      %2121 = vmatprep.subr.bf16.mxu0 0
      %2122 = vmatpush2.bf16.msra.mxu0 0
      %2123 = vmatprep.subr.bf16.mxu0 0
      %2124 = vmatpush2.bf16.msra.mxu0 0
      %2125 = vmatprep.subr.bf16.mxu0 0
      %2126 = vmatpush2.bf16.msra.mxu0 0
      %2127 = vmatprep.subr.bf16.mxu0 0
      %2128 = vmatpush2.bf16.msra.mxu0 0
      %2129 = vmatprep.subr.bf16.mxu0 0
      %2130 = vmatpush2.bf16.msra.mxu0 0
      %2131 = vmatprep.subr.bf16.mxu0 0
      %2132 = vmatpush2.bf16.msra.mxu0 0
      %2133 = vmatprep.subr.bf16.mxu0 0
      %2134 = vmatpush2.bf16.msra.mxu0 0
      %2135 = vmatprep.subr.bf16.mxu0 0
      %2136 = vmatpush2.bf16.msra.mxu0 0
      %2137 = vmatprep.mubr.bf16.mxu0 0
      %2138 = vmatmul.mubr.bf16.gmra.mxu0 %v2100
      %v2139 = vpop.f32.mrf.mxu0
      %v2140 = vadd.f32 0.0, %v2139
      %v2141 = vpop.f32.mrf.mxu0
      %v2142 = vpop.f32.mrf.mxu0
      %v2143 = vadd.f32 0.0, %v2142
      %v2144 = vpop.f32.mrf.mxu0
      %2145 = vmatprep.mubr.bf16.mxu0 0
      %2146 = vmatmul.mubr.bf16.gmra.mxu0 %v2103
      %v2147 = vpop.f32.mrf.mxu0
      %v2148 = vadd.f32 0.0, %v2147
      %v2149 = vpop.f32.mrf.mxu0
      %v2150 = vpop.f32.mrf.mxu0
      %v2151 = vpop.f32.mrf.mxu0
      %2152 = vdwg.mxu0
      %s2153 = scalar_lea.vmem %s9, 32
      %v2154 = vld [vmem:[%s2153] sm:$0xff]
      %v2155 = vld [vmem:[%s2153 + $0x8] sm:$0xff]
      %v2156 = vld [vmem:[%s2153 + $0x10] sm:$0xff]
      %v2157 = vld [vmem:[%s2153 + $0x18] sm:$0xff]
      %v2158 = vpack.c.bf16 %v2143, %v2140
      %v2159 = vpack.c.bf16 %v2148, %v2148
      %2162 = vrot.lane.b32.xlu0 %v2158, 96
      %v2163 = vpop.permute.xlu0 %2162
      %2164 = vrot.lane.b32.xlu0 %v2159, 96
      %v2165 = vpop.permute.xlu0 %2164
      %v2167 = vsel %vm850, %v2158, 0
      %v2170 = vsel %vm850, %v2159, 0
      %v2173 = vsel %vm850, %v2163, 0
      %v2176 = vsel %vm850, %v2165, 0
      %2178 = vmatprep.subr.bf16.mxu0 0
      %2179 = vmatpush1.bf16.xpose.msra.mxu0 0
      %2180 = vmatprep.subr.bf16.mxu0 0
      %2181 = vmatpush1.bf16.xpose.msra.mxu0 0
      %2182 = vmatprep.subr.bf16.mxu0 0
      %2183 = vmatpush1.bf16.xpose.msra.mxu0 0
      %2184 = vmatprep.subr.bf16.mxu0 0
      %2185 = vmatpush1.bf16.xpose.msra.mxu0 0
      %2186 = vmatprep.subr.bf16.mxu0 0
      %2187 = vmatpush1.bf16.xpose.msra.mxu0 0
      %2188 = vmatprep.subr.bf16.mxu0 0
      %2189 = vmatpush1.bf16.xpose.msra.mxu0 0
      %2190 = vmatprep.subr.bf16.mxu0 0
      %2191 = vmatpush1.bf16.xpose.msra.mxu0 %v2176
      %2192 = vmatprep.subr.bf16.mxu0 0
      %2193 = vmatpush1.bf16.xpose.msra.mxu0 %v2173
      %2194 = vmatprep.subr.bf16.mxu0 0
      %2195 = vmatpush2.bf16.xpose.msra.mxu0 0
      %2196 = vmatprep.subr.bf16.mxu0 0
      %2197 = vmatpush2.bf16.xpose.msra.mxu0 0
      %2198 = vmatprep.subr.bf16.mxu0 0
      %2199 = vmatpush2.bf16.xpose.msra.mxu0 0
      %2200 = vmatprep.subr.bf16.mxu0 0
      %2201 = vmatpush2.bf16.xpose.msra.mxu0 0
      %2202 = vmatprep.subr.bf16.mxu0 0
      %2203 = vmatpush2.bf16.xpose.msra.mxu0 0
      %2204 = vmatprep.subr.bf16.mxu0 0
      %2205 = vmatpush2.bf16.xpose.msra.mxu0 0
      %2206 = vmatprep.subr.bf16.mxu0 0
      %2207 = vmatpush2.bf16.xpose.msra.mxu0 0
      %2208 = vmatprep.subr.bf16.mxu0 0
      %2209 = vmatpush2.bf16.xpose.msra.mxu0 0
      %2210 = vmatprep.mubr.bf16.mxu0 0
      %2211 = vmatmul.mubr.bf16.gmra.mxu0 %v2167
      %v2212 = vpop.f32.mrf.mxu0
      %v2213 = vadd.f32 0.0, %v2212
      %v2214 = vpop.f32.mrf.mxu0
      %v2215 = vpop.f32.mrf.mxu0
      %v2216 = vadd.f32 0.0, %v2215
      %v2217 = vpop.f32.mrf.mxu0
      %2218 = vmatprep.mubr.bf16.mxu0 0
      %2219 = vmatmul.mubr.bf16.gmra.mxu0 %v2170
      %v2220 = vpop.f32.mrf.mxu0
      %v2221 = vadd.f32 0.0, %v2220
      %v2222 = vpop.f32.mrf.mxu0
      %v2223 = vpop.f32.mrf.mxu0
      %v2224 = vpop.f32.mrf.mxu0
      %2225 = vdwg.mxu0
      %v2226 = vmul.f32 %v2213, 0.35355338
      %v2227 = vmul.f32 %v2216, 0.35355338
      %v2228 = vmul.f32 %v2221, 0.35355338
      %v2229 = vadd.f32 %v2226, %v711
      %v2230 = vadd.f32 %v2227, %v712
      %v2231 = vadd.f32 %v2228, %v713
      %v2232 = vsel %vm917, %v2229, -inf
      %2233 = vmax.xlane.f32.xlu0 %v2232
      %v2234 = vpop.xlane.xlu0 %2233
      %v2235 = vsel %vm917, %v2230, -inf
      %2236 = vmax.xlane.f32.xlu0 %v2235
      %v2237 = vpop.xlane.xlu0 %2236
      %v2238 = vsel %vm924, %v2231, -inf
      %2239 = vmax.xlane.f32.xlu0 %v2238
      %v2240 = vpop.xlane.xlu0 %2239
      %v2241 = vsub.f32 %v2229, %v2234
      %v2242 = vsub.f32 %v2230, %v2237
      %v2243 = vsub.f32 %v2231, %v2240
      %v2244 = vmul.f32 %v2241, 1.442695
      %v2245 = vpow.pop %v2244
      %v2246 = vmul.f32 %v2242, 1.442695
      %v2247 = vpow.pop %v2246
      %v2248 = vmul.f32 %v2243, 1.442695
      %v2249 = vpow.pop %v2248
      %v2250 = vsel %vm917, %v2245, 0.0
      %2251 = vadd.xlane.f32.xlu0 %v2250
      %v2252 = vpop.xlane.xlu0 %2251
      %v2253 = vsel %vm917, %v2247, 0.0
      %2254 = vadd.xlane.f32.xlu0 %v2253
      %v2255 = vpop.xlane.xlu0 %2254
      %v2256 = vsel %vm924, %v2249, 0.0
      %2257 = vadd.xlane.f32.xlu0 %v2256
      %v2258 = vpop.xlane.xlu0 %2257
      %v2259 = vrcp.pop %v2252
      %v2260 = vrcp.pop %v2255
      %v2261 = vrcp.pop %v2258
      %v2262 = vmul.f32 %v2245, %v2259
      %v2263 = vmul.f32 %v2247, %v2260
      %v2264 = vmul.f32 %v2249, %v2261
      %v2265 = vpack.c.bf16 %v2263, %v2262
      %v2266 = vpack.c.bf16 %v2264, %v2264
      %2267 = vrot.lane.b32.xlu0 %v2158, 64
      %v2268 = vpop.permute.xlu0 %2267
      %2269 = vrot.lane.b32.xlu0 %v2159, 64
      %v2270 = vpop.permute.xlu0 %2269
      %v2273 = vsel %vm917, %v2265, 0
      %v2276 = vsel %vm917, %v2266, 0
      %v2279 = vsel %vm965, %v2270, 0
      %2281 = vmatprep.subr.bf16.mxu0 0
      %2282 = vmatpush1.bf16.msra.mxu0 0
      %2283 = vmatprep.subr.bf16.mxu0 0
      %2284 = vmatpush1.bf16.msra.mxu0 0
      %2285 = vmatprep.subr.bf16.mxu0 0
      %2286 = vmatpush1.bf16.msra.mxu0 0
      %2287 = vmatprep.subr.bf16.mxu0 0
      %2288 = vmatpush1.bf16.msra.mxu0 0
      %2289 = vmatprep.subr.bf16.mxu0 0
      %2290 = vmatpush1.bf16.msra.mxu0 0
      %2291 = vmatprep.subr.bf16.mxu0 0
      %2292 = vmatpush1.bf16.msra.mxu0 0
      %2293 = vmatprep.subr.bf16.mxu0 0
      %2294 = vmatpush1.bf16.msra.mxu0 %v2279
      %2295 = vmatprep.subr.bf16.mxu0 0
      %2296 = vmatpush1.bf16.msra.mxu0 %v2268
      %2297 = vmatprep.subr.bf16.mxu0 0
      %2298 = vmatpush2.bf16.msra.mxu0 0
      %2299 = vmatprep.subr.bf16.mxu0 0
      %2300 = vmatpush2.bf16.msra.mxu0 0
      %2301 = vmatprep.subr.bf16.mxu0 0
      %2302 = vmatpush2.bf16.msra.mxu0 0
      %2303 = vmatprep.subr.bf16.mxu0 0
      %2304 = vmatpush2.bf16.msra.mxu0 0
      %2305 = vmatprep.subr.bf16.mxu0 0
      %2306 = vmatpush2.bf16.msra.mxu0 0
      %2307 = vmatprep.subr.bf16.mxu0 0
      %2308 = vmatpush2.bf16.msra.mxu0 0
      %2309 = vmatprep.subr.bf16.mxu0 0
      %2310 = vmatpush2.bf16.msra.mxu0 0
      %2311 = vmatprep.subr.bf16.mxu0 0
      %2312 = vmatpush2.bf16.msra.mxu0 0
      %2313 = vmatprep.mubr.bf16.mxu0 0
      %2314 = vmatmul.mubr.bf16.gmra.mxu0 %v2273
      %v2315 = vpop.f32.mrf.mxu0
      %v2316 = vadd.f32 0.0, %v2315
      %v2317 = vpop.f32.mrf.mxu0
      %v2318 = vpop.f32.mrf.mxu0
      %v2319 = vadd.f32 0.0, %v2318
      %v2320 = vpop.f32.mrf.mxu0
      %2321 = vmatprep.mubr.bf16.mxu0 0
      %2322 = vmatmul.mubr.bf16.gmra.mxu0 %v2276
      %v2323 = vpop.f32.mrf.mxu0
      %v2324 = vadd.f32 0.0, %v2323
      %v2325 = vpop.f32.mrf.mxu0
      %v2326 = vpop.f32.mrf.mxu0
      %v2327 = vpop.f32.mrf.mxu0
      %2328 = vdwg.mxu0
      %v2329 = vpack.c.bf16 %v2319, %v2316
      %v2330 = vpack.c.bf16 %v2324, %v2324
      %v2331 = vpack.c.bf16 %v2154, %v2154
      %2332 = vrot.lane.b32.xlu0 %v2158, 120
      %v2333 = vpop.permute.xlu0 %2332
      %2334 = vrot.lane.b32.xlu0 %v2159, 120
      %v2335 = vpop.permute.xlu0 %2334
      %2336 = vrot.lane.b32.xlu0 %v2158, 88
      %v2337 = vpop.permute.xlu0 %2336
      %2338 = vrot.lane.b32.xlu0 %v2159, 88
      %v2339 = vpop.permute.xlu0 %2338
      %v2341 = vsel %vm850, %v2333, 0
      %v2344 = vsel %vm850, %v2335, 0
      %v2347 = vsel %vm850, %v2337, 0
      %v2350 = vsel %vm850, %v2339, 0
      %2352 = vmatprep.subr.bf16.mxu0 0
      %2353 = vmatpush1.bf16.xpose.msra.mxu0 0
      %2354 = vmatprep.subr.bf16.mxu0 0
      %2355 = vmatpush1.bf16.xpose.msra.mxu0 0
      %2356 = vmatprep.subr.bf16.mxu0 0
      %2357 = vmatpush1.bf16.xpose.msra.mxu0 0
      %2358 = vmatprep.subr.bf16.mxu0 0
      %2359 = vmatpush1.bf16.xpose.msra.mxu0 0
      %2360 = vmatprep.subr.bf16.mxu0 0
      %2361 = vmatpush1.bf16.xpose.msra.mxu0 0
      %2362 = vmatprep.subr.bf16.mxu0 0
      %2363 = vmatpush1.bf16.xpose.msra.mxu0 0
      %2364 = vmatprep.subr.bf16.mxu0 0
      %2365 = vmatpush1.bf16.xpose.msra.mxu0 %v2350
      %2366 = vmatprep.subr.bf16.mxu0 0
      %2367 = vmatpush1.bf16.xpose.msra.mxu0 %v2347
      %2368 = vmatprep.subr.bf16.mxu0 0
      %2369 = vmatpush2.bf16.xpose.msra.mxu0 0
      %2370 = vmatprep.subr.bf16.mxu0 0
      %2371 = vmatpush2.bf16.xpose.msra.mxu0 0
      %2372 = vmatprep.subr.bf16.mxu0 0
      %2373 = vmatpush2.bf16.xpose.msra.mxu0 0
      %2374 = vmatprep.subr.bf16.mxu0 0
      %2375 = vmatpush2.bf16.xpose.msra.mxu0 0
      %2376 = vmatprep.subr.bf16.mxu0 0
      %2377 = vmatpush2.bf16.xpose.msra.mxu0 0
      %2378 = vmatprep.subr.bf16.mxu0 0
      %2379 = vmatpush2.bf16.xpose.msra.mxu0 0
      %2380 = vmatprep.subr.bf16.mxu0 0
      %2381 = vmatpush2.bf16.xpose.msra.mxu0 0
      %2382 = vmatprep.subr.bf16.mxu0 0
      %2383 = vmatpush2.bf16.xpose.msra.mxu0 0
      %2384 = vmatprep.mubr.bf16.mxu0 0
      %2385 = vmatmul.mubr.bf16.gmra.mxu0 %v2341
      %v2386 = vpop.f32.mrf.mxu0
      %v2387 = vadd.f32 0.0, %v2386
      %v2388 = vpop.f32.mrf.mxu0
      %v2389 = vpop.f32.mrf.mxu0
      %v2390 = vadd.f32 0.0, %v2389
      %v2391 = vpop.f32.mrf.mxu0
      %2392 = vmatprep.mubr.bf16.mxu0 0
      %2393 = vmatmul.mubr.bf16.gmra.mxu0 %v2344
      %v2394 = vpop.f32.mrf.mxu0
      %v2395 = vadd.f32 0.0, %v2394
      %v2396 = vpop.f32.mrf.mxu0
      %v2397 = vpop.f32.mrf.mxu0
      %v2398 = vpop.f32.mrf.mxu0
      %2399 = vdwg.mxu0
      %v2400 = vmul.f32 %v2387, 0.35355338
      %v2401 = vmul.f32 %v2390, 0.35355338
      %v2402 = vmul.f32 %v2395, 0.35355338
      %v2403 = vadd.f32 %v2400, %v711
      %v2404 = vadd.f32 %v2401, %v712
      %v2405 = vadd.f32 %v2402, %v713
      %v2406 = vsel %vm917, %v2403, -inf
      %2407 = vmax.xlane.f32.xlu0 %v2406
      %v2408 = vpop.xlane.xlu0 %2407
      %v2409 = vsel %vm917, %v2404, -inf
      %2410 = vmax.xlane.f32.xlu0 %v2409
      %v2411 = vpop.xlane.xlu0 %2410
      %v2412 = vsel %vm924, %v2405, -inf
      %2413 = vmax.xlane.f32.xlu0 %v2412
      %v2414 = vpop.xlane.xlu0 %2413
      %v2415 = vsub.f32 %v2403, %v2408
      %v2416 = vsub.f32 %v2404, %v2411
      %v2417 = vsub.f32 %v2405, %v2414
      %v2418 = vmul.f32 %v2415, 1.442695
      %v2419 = vpow.pop %v2418
      %v2420 = vmul.f32 %v2416, 1.442695
      %v2421 = vpow.pop %v2420
      %v2422 = vmul.f32 %v2417, 1.442695
      %v2423 = vpow.pop %v2422
      %v2424 = vsel %vm917, %v2419, 0.0
      %2425 = vadd.xlane.f32.xlu0 %v2424
      %v2426 = vpop.xlane.xlu0 %2425
      %v2427 = vsel %vm917, %v2421, 0.0
      %2428 = vadd.xlane.f32.xlu0 %v2427
      %v2429 = vpop.xlane.xlu0 %2428
      %v2430 = vsel %vm924, %v2423, 0.0
      %2431 = vadd.xlane.f32.xlu0 %v2430
      %v2432 = vpop.xlane.xlu0 %2431
      %v2433 = vrcp.pop %v2426
      %v2434 = vrcp.pop %v2429
      %v2435 = vrcp.pop %v2432
      %v2436 = vmul.f32 %v2419, %v2433
      %v2437 = vmul.f32 %v2421, %v2434
      %v2438 = vmul.f32 %v2423, %v2435
      %v2439 = vpack.c.bf16 %v2437, %v2436
      %v2440 = vpack.c.bf16 %v2438, %v2438
      %2441 = vrot.lane.b32.xlu0 %v2158, 56
      %v2442 = vpop.permute.xlu0 %2441
      %2443 = vrot.lane.b32.xlu0 %v2159, 56
      %v2444 = vpop.permute.xlu0 %2443
      %v2447 = vsel %vm917, %v2439, 0
      %v2450 = vsel %vm917, %v2440, 0
      %v2453 = vsel %vm965, %v2444, 0
      %2455 = vmatprep.subr.bf16.mxu0 0
      %2456 = vmatpush1.bf16.msra.mxu0 0
      %2457 = vmatprep.subr.bf16.mxu0 0
      %2458 = vmatpush1.bf16.msra.mxu0 0
      %2459 = vmatprep.subr.bf16.mxu0 0
      %2460 = vmatpush1.bf16.msra.mxu0 0
      %2461 = vmatprep.subr.bf16.mxu0 0
      %2462 = vmatpush1.bf16.msra.mxu0 0
      %2463 = vmatprep.subr.bf16.mxu0 0
      %2464 = vmatpush1.bf16.msra.mxu0 0
      %2465 = vmatprep.subr.bf16.mxu0 0
      %2466 = vmatpush1.bf16.msra.mxu0 0
      %2467 = vmatprep.subr.bf16.mxu0 0
      %2468 = vmatpush1.bf16.msra.mxu0 %v2453
      %2469 = vmatprep.subr.bf16.mxu0 0
      %2470 = vmatpush1.bf16.msra.mxu0 %v2442
      %2471 = vmatprep.subr.bf16.mxu0 0
      %2472 = vmatpush2.bf16.msra.mxu0 0
      %2473 = vmatprep.subr.bf16.mxu0 0
      %2474 = vmatpush2.bf16.msra.mxu0 0
      %2475 = vmatprep.subr.bf16.mxu0 0
      %2476 = vmatpush2.bf16.msra.mxu0 0
      %2477 = vmatprep.subr.bf16.mxu0 0
      %2478 = vmatpush2.bf16.msra.mxu0 0
      %2479 = vmatprep.subr.bf16.mxu0 0
      %2480 = vmatpush2.bf16.msra.mxu0 0
      %2481 = vmatprep.subr.bf16.mxu0 0
      %2482 = vmatpush2.bf16.msra.mxu0 0
      %2483 = vmatprep.subr.bf16.mxu0 0
      %2484 = vmatpush2.bf16.msra.mxu0 0
      %2485 = vmatprep.subr.bf16.mxu0 0
      %2486 = vmatpush2.bf16.msra.mxu0 0
      %2487 = vmatprep.mubr.bf16.mxu0 0
      %2488 = vmatmul.mubr.bf16.gmra.mxu0 %v2447
      %v2489 = vpop.f32.mrf.mxu0
      %v2490 = vadd.f32 0.0, %v2489
      %v2491 = vpop.f32.mrf.mxu0
      %v2492 = vpop.f32.mrf.mxu0
      %v2493 = vadd.f32 0.0, %v2492
      %v2494 = vpop.f32.mrf.mxu0
      %2495 = vmatprep.mubr.bf16.mxu0 0
      %2496 = vmatmul.mubr.bf16.gmra.mxu0 %v2450
      %v2497 = vpop.f32.mrf.mxu0
      %v2498 = vadd.f32 0.0, %v2497
      %v2499 = vpop.f32.mrf.mxu0
      %v2500 = vpop.f32.mrf.mxu0
      %v2501 = vpop.f32.mrf.mxu0
      %2502 = vdwg.mxu0
      %v2503 = vpack.c.bf16 %v2493, %v2490
      %v2504 = vpack.c.bf16 %v2498, %v2498
      %v2505 = vpack.c.bf16 %v2155, %v2155
      %v2507 = vsel %vm850, %v2503, 0
      %v2510 = vsel %vm850, %v2504, 0
      %v2513 = vsel %vm1200, %v2505, 0
      %2515 = vmatprep.subr.bf16.mxu0 0
      %2516 = vmatpush1.bf16.msra.mxu0 0
      %2517 = vmatprep.subr.bf16.mxu0 0
      %2518 = vmatpush1.bf16.msra.mxu0 0
      %2519 = vmatprep.subr.bf16.mxu0 0
      %2520 = vmatpush1.bf16.msra.mxu0 0
      %2521 = vmatprep.subr.bf16.mxu0 0
      %2522 = vmatpush1.bf16.msra.mxu0 0
      %2523 = vmatprep.subr.bf16.mxu0 0
      %2524 = vmatpush1.bf16.msra.mxu0 0
      %2525 = vmatprep.subr.bf16.mxu0 0
      %2526 = vmatpush1.bf16.msra.mxu0 0
      %2527 = vmatprep.subr.bf16.mxu0 0
      %2528 = vmatpush1.bf16.msra.mxu0 0
      %2529 = vmatprep.subr.bf16.mxu0 0
      %2530 = vmatpush1.bf16.msra.mxu0 %v2513
      %2531 = vmatprep.subr.bf16.mxu0 0
      %2532 = vmatpush2.bf16.msra.mxu0 0
      %2533 = vmatprep.subr.bf16.mxu0 0
      %2534 = vmatpush2.bf16.msra.mxu0 0
      %2535 = vmatprep.subr.bf16.mxu0 0
      %2536 = vmatpush2.bf16.msra.mxu0 0
      %2537 = vmatprep.subr.bf16.mxu0 0
      %2538 = vmatpush2.bf16.msra.mxu0 0
      %2539 = vmatprep.subr.bf16.mxu0 0
      %2540 = vmatpush2.bf16.msra.mxu0 0
      %2541 = vmatprep.subr.bf16.mxu0 0
      %2542 = vmatpush2.bf16.msra.mxu0 0
      %2543 = vmatprep.subr.bf16.mxu0 0
      %2544 = vmatpush2.bf16.msra.mxu0 0
      %2545 = vmatprep.subr.bf16.mxu0 0
      %2546 = vmatpush2.bf16.msra.mxu0 0
      %2547 = vmatprep.mubr.bf16.mxu0 0
      %2548 = vmatmul.mubr.bf16.gmra.mxu0 %v2507
      %v2549 = vpop.f32.mrf.mxu0
      %v2550 = vadd.f32 0.0, %v2549
      %v2551 = vpop.f32.mrf.mxu0
      %v2552 = vpop.f32.mrf.mxu0
      %v2553 = vadd.f32 0.0, %v2552
      %v2554 = vpop.f32.mrf.mxu0
      %2555 = vmatprep.mubr.bf16.mxu0 0
      %2556 = vmatmul.mubr.bf16.gmra.mxu0 %v2510
      %v2557 = vpop.f32.mrf.mxu0
      %v2558 = vadd.f32 0.0, %v2557
      %v2559 = vpop.f32.mrf.mxu0
      %v2560 = vpop.f32.mrf.mxu0
      %v2561 = vpop.f32.mrf.mxu0
      %2562 = vdwg.mxu0
      %v2564 = vsel %vm850, %v2329, 0
      %v2567 = vsel %vm850, %v2330, 0
      %v2570 = vsel %vm1200, %v2331, 0
      %2572 = vmatprep.subr.bf16.mxu0 0
      %2573 = vmatpush1.bf16.msra.mxu0 0
      %2574 = vmatprep.subr.bf16.mxu0 0
      %2575 = vmatpush1.bf16.msra.mxu0 0
      %2576 = vmatprep.subr.bf16.mxu0 0
      %2577 = vmatpush1.bf16.msra.mxu0 0
      %2578 = vmatprep.subr.bf16.mxu0 0
      %2579 = vmatpush1.bf16.msra.mxu0 0
      %2580 = vmatprep.subr.bf16.mxu0 0
      %2581 = vmatpush1.bf16.msra.mxu0 0
      %2582 = vmatprep.subr.bf16.mxu0 0
      %2583 = vmatpush1.bf16.msra.mxu0 0
      %2584 = vmatprep.subr.bf16.mxu0 0
      %2585 = vmatpush1.bf16.msra.mxu0 0
      %2586 = vmatprep.subr.bf16.mxu0 0
      %2587 = vmatpush1.bf16.msra.mxu0 %v2570
      %2588 = vmatprep.subr.bf16.mxu0 0
      %2589 = vmatpush2.bf16.msra.mxu0 0
      %2590 = vmatprep.subr.bf16.mxu0 0
      %2591 = vmatpush2.bf16.msra.mxu0 0
      %2592 = vmatprep.subr.bf16.mxu0 0
      %2593 = vmatpush2.bf16.msra.mxu0 0
      %2594 = vmatprep.subr.bf16.mxu0 0
      %2595 = vmatpush2.bf16.msra.mxu0 0
      %2596 = vmatprep.subr.bf16.mxu0 0
      %2597 = vmatpush2.bf16.msra.mxu0 0
      %2598 = vmatprep.subr.bf16.mxu0 0
      %2599 = vmatpush2.bf16.msra.mxu0 0
      %2600 = vmatprep.subr.bf16.mxu0 0
      %2601 = vmatpush2.bf16.msra.mxu0 0
      %2602 = vmatprep.subr.bf16.mxu0 0
      %2603 = vmatpush2.bf16.msra.mxu0 0
      %2604 = vmatprep.mubr.bf16.mxu0 0
      %2605 = vmatmul.mubr.bf16.gmra.mxu0 %v2564
      %v2606 = vpop.f32.mrf.mxu0
      %v2607 = vadd.f32 %v2550, %v2606
      %v2608 = vpop.f32.mrf.mxu0
      %v2609 = vpop.f32.mrf.mxu0
      %v2610 = vadd.f32 %v2553, %v2609
      %v2611 = vpop.f32.mrf.mxu0
      %2612 = vmatprep.mubr.bf16.mxu0 0
      %2613 = vmatmul.mubr.bf16.gmra.mxu0 %v2567
      %v2614 = vpop.f32.mrf.mxu0
      %v2615 = vadd.f32 %v2558, %v2614
      %v2616 = vpop.f32.mrf.mxu0
      %v2617 = vpop.f32.mrf.mxu0
      %v2618 = vpop.f32.mrf.mxu0
      %2619 = vdwg.mxu0
      %2620 = vrot.lane.b32.xlu0 %v2158, 112
      %v2621 = vpop.permute.xlu0 %2620
      %2622 = vrot.lane.b32.xlu0 %v2159, 112
      %v2623 = vpop.permute.xlu0 %2622
      %2624 = vrot.lane.b32.xlu0 %v2158, 80
      %v2625 = vpop.permute.xlu0 %2624
      %2626 = vrot.lane.b32.xlu0 %v2159, 80
      %v2627 = vpop.permute.xlu0 %2626
      %v2629 = vsel %vm850, %v2621, 0
      %v2632 = vsel %vm850, %v2623, 0
      %v2635 = vsel %vm850, %v2625, 0
      %v2638 = vsel %vm850, %v2627, 0
      %2640 = vmatprep.subr.bf16.mxu0 0
      %2641 = vmatpush1.bf16.xpose.msra.mxu0 0
      %2642 = vmatprep.subr.bf16.mxu0 0
      %2643 = vmatpush1.bf16.xpose.msra.mxu0 0
      %2644 = vmatprep.subr.bf16.mxu0 0
      %2645 = vmatpush1.bf16.xpose.msra.mxu0 0
      %2646 = vmatprep.subr.bf16.mxu0 0
      %2647 = vmatpush1.bf16.xpose.msra.mxu0 0
      %2648 = vmatprep.subr.bf16.mxu0 0
      %2649 = vmatpush1.bf16.xpose.msra.mxu0 0
      %2650 = vmatprep.subr.bf16.mxu0 0
      %2651 = vmatpush1.bf16.xpose.msra.mxu0 0
      %2652 = vmatprep.subr.bf16.mxu0 0
      %2653 = vmatpush1.bf16.xpose.msra.mxu0 %v2638
      %2654 = vmatprep.subr.bf16.mxu0 0
      %2655 = vmatpush1.bf16.xpose.msra.mxu0 %v2635
      %2656 = vmatprep.subr.bf16.mxu0 0
      %2657 = vmatpush2.bf16.xpose.msra.mxu0 0
      %2658 = vmatprep.subr.bf16.mxu0 0
      %2659 = vmatpush2.bf16.xpose.msra.mxu0 0
      %2660 = vmatprep.subr.bf16.mxu0 0
      %2661 = vmatpush2.bf16.xpose.msra.mxu0 0
      %2662 = vmatprep.subr.bf16.mxu0 0
      %2663 = vmatpush2.bf16.xpose.msra.mxu0 0
      %2664 = vmatprep.subr.bf16.mxu0 0
      %2665 = vmatpush2.bf16.xpose.msra.mxu0 0
      %2666 = vmatprep.subr.bf16.mxu0 0
      %2667 = vmatpush2.bf16.xpose.msra.mxu0 0
      %2668 = vmatprep.subr.bf16.mxu0 0
      %2669 = vmatpush2.bf16.xpose.msra.mxu0 0
      %2670 = vmatprep.subr.bf16.mxu0 0
      %2671 = vmatpush2.bf16.xpose.msra.mxu0 0
      %2672 = vmatprep.mubr.bf16.mxu0 0
      %2673 = vmatmul.mubr.bf16.gmra.mxu0 %v2629
      %v2674 = vpop.f32.mrf.mxu0
      %v2675 = vadd.f32 0.0, %v2674
      %v2676 = vpop.f32.mrf.mxu0
      %v2677 = vpop.f32.mrf.mxu0
      %v2678 = vadd.f32 0.0, %v2677
      %v2679 = vpop.f32.mrf.mxu0
      %2680 = vmatprep.mubr.bf16.mxu0 0
      %2681 = vmatmul.mubr.bf16.gmra.mxu0 %v2632
      %v2682 = vpop.f32.mrf.mxu0
      %v2683 = vadd.f32 0.0, %v2682
      %v2684 = vpop.f32.mrf.mxu0
      %v2685 = vpop.f32.mrf.mxu0
      %v2686 = vpop.f32.mrf.mxu0
      %2687 = vdwg.mxu0
      %v2688 = vmul.f32 %v2675, 0.35355338
      %v2689 = vmul.f32 %v2678, 0.35355338
      %v2690 = vmul.f32 %v2683, 0.35355338
      %v2691 = vadd.f32 %v2688, %v711
      %v2692 = vadd.f32 %v2689, %v712
      %v2693 = vadd.f32 %v2690, %v713
      %v2694 = vsel %vm917, %v2691, -inf
      %2695 = vmax.xlane.f32.xlu0 %v2694
      %v2696 = vpop.xlane.xlu0 %2695
      %v2697 = vsel %vm917, %v2692, -inf
      %2698 = vmax.xlane.f32.xlu0 %v2697
      %v2699 = vpop.xlane.xlu0 %2698
      %v2700 = vsel %vm924, %v2693, -inf
      %2701 = vmax.xlane.f32.xlu0 %v2700
      %v2702 = vpop.xlane.xlu0 %2701
      %v2703 = vsub.f32 %v2691, %v2696
      %v2704 = vsub.f32 %v2692, %v2699
      %v2705 = vsub.f32 %v2693, %v2702
      %v2706 = vmul.f32 %v2703, 1.442695
      %v2707 = vpow.pop %v2706
      %v2708 = vmul.f32 %v2704, 1.442695
      %v2709 = vpow.pop %v2708
      %v2710 = vmul.f32 %v2705, 1.442695
      %v2711 = vpow.pop %v2710
      %v2712 = vsel %vm917, %v2707, 0.0
      %2713 = vadd.xlane.f32.xlu0 %v2712
      %v2714 = vpop.xlane.xlu0 %2713
      %v2715 = vsel %vm917, %v2709, 0.0
      %2716 = vadd.xlane.f32.xlu0 %v2715
      %v2717 = vpop.xlane.xlu0 %2716
      %v2718 = vsel %vm924, %v2711, 0.0
      %2719 = vadd.xlane.f32.xlu0 %v2718
      %v2720 = vpop.xlane.xlu0 %2719
      %v2721 = vrcp.pop %v2714
      %v2722 = vrcp.pop %v2717
      %v2723 = vrcp.pop %v2720
      %v2724 = vmul.f32 %v2707, %v2721
      %v2725 = vmul.f32 %v2709, %v2722
      %v2726 = vmul.f32 %v2711, %v2723
      %v2727 = vpack.c.bf16 %v2725, %v2724
      %v2728 = vpack.c.bf16 %v2726, %v2726
      %2729 = vrot.lane.b32.xlu0 %v2158, 48
      %v2730 = vpop.permute.xlu0 %2729
      %2731 = vrot.lane.b32.xlu0 %v2159, 48
      %v2732 = vpop.permute.xlu0 %2731
      %v2735 = vsel %vm917, %v2727, 0
      %v2738 = vsel %vm917, %v2728, 0
      %v2741 = vsel %vm965, %v2732, 0
      %2743 = vmatprep.subr.bf16.mxu0 0
      %2744 = vmatpush1.bf16.msra.mxu0 0
      %2745 = vmatprep.subr.bf16.mxu0 0
      %2746 = vmatpush1.bf16.msra.mxu0 0
      %2747 = vmatprep.subr.bf16.mxu0 0
      %2748 = vmatpush1.bf16.msra.mxu0 0
      %2749 = vmatprep.subr.bf16.mxu0 0
      %2750 = vmatpush1.bf16.msra.mxu0 0
      %2751 = vmatprep.subr.bf16.mxu0 0
      %2752 = vmatpush1.bf16.msra.mxu0 0
      %2753 = vmatprep.subr.bf16.mxu0 0
      %2754 = vmatpush1.bf16.msra.mxu0 0
      %2755 = vmatprep.subr.bf16.mxu0 0
      %2756 = vmatpush1.bf16.msra.mxu0 %v2741
      %2757 = vmatprep.subr.bf16.mxu0 0
      %2758 = vmatpush1.bf16.msra.mxu0 %v2730
      %2759 = vmatprep.subr.bf16.mxu0 0
      %2760 = vmatpush2.bf16.msra.mxu0 0
      %2761 = vmatprep.subr.bf16.mxu0 0
      %2762 = vmatpush2.bf16.msra.mxu0 0
      %2763 = vmatprep.subr.bf16.mxu0 0
      %2764 = vmatpush2.bf16.msra.mxu0 0
      %2765 = vmatprep.subr.bf16.mxu0 0
      %2766 = vmatpush2.bf16.msra.mxu0 0
      %2767 = vmatprep.subr.bf16.mxu0 0
      %2768 = vmatpush2.bf16.msra.mxu0 0
      %2769 = vmatprep.subr.bf16.mxu0 0
      %2770 = vmatpush2.bf16.msra.mxu0 0
      %2771 = vmatprep.subr.bf16.mxu0 0
      %2772 = vmatpush2.bf16.msra.mxu0 0
      %2773 = vmatprep.subr.bf16.mxu0 0
      %2774 = vmatpush2.bf16.msra.mxu0 0
      %2775 = vmatprep.mubr.bf16.mxu0 0
      %2776 = vmatmul.mubr.bf16.gmra.mxu0 %v2735
      %v2777 = vpop.f32.mrf.mxu0
      %v2778 = vadd.f32 0.0, %v2777
      %v2779 = vpop.f32.mrf.mxu0
      %v2780 = vpop.f32.mrf.mxu0
      %v2781 = vadd.f32 0.0, %v2780
      %v2782 = vpop.f32.mrf.mxu0
      %2783 = vmatprep.mubr.bf16.mxu0 0
      %2784 = vmatmul.mubr.bf16.gmra.mxu0 %v2738
      %v2785 = vpop.f32.mrf.mxu0
      %v2786 = vadd.f32 0.0, %v2785
      %v2787 = vpop.f32.mrf.mxu0
      %v2788 = vpop.f32.mrf.mxu0
      %v2789 = vpop.f32.mrf.mxu0
      %2790 = vdwg.mxu0
      %v2791 = vpack.c.bf16 %v2781, %v2778
      %v2792 = vpack.c.bf16 %v2786, %v2786
      %v2793 = vpack.c.bf16 %v2156, %v2156
      %v2795 = vsel %vm850, %v2791, 0
      %v2798 = vsel %vm850, %v2792, 0
      %v2801 = vsel %vm1200, %v2793, 0
      %2803 = vmatprep.subr.bf16.mxu0 0
      %2804 = vmatpush1.bf16.msra.mxu0 0
      %2805 = vmatprep.subr.bf16.mxu0 0
      %2806 = vmatpush1.bf16.msra.mxu0 0
      %2807 = vmatprep.subr.bf16.mxu0 0
      %2808 = vmatpush1.bf16.msra.mxu0 0
      %2809 = vmatprep.subr.bf16.mxu0 0
      %2810 = vmatpush1.bf16.msra.mxu0 0
      %2811 = vmatprep.subr.bf16.mxu0 0
      %2812 = vmatpush1.bf16.msra.mxu0 0
      %2813 = vmatprep.subr.bf16.mxu0 0
      %2814 = vmatpush1.bf16.msra.mxu0 0
      %2815 = vmatprep.subr.bf16.mxu0 0
      %2816 = vmatpush1.bf16.msra.mxu0 0
      %2817 = vmatprep.subr.bf16.mxu0 0
      %2818 = vmatpush1.bf16.msra.mxu0 %v2801
      %2819 = vmatprep.subr.bf16.mxu0 0
      %2820 = vmatpush2.bf16.msra.mxu0 0
      %2821 = vmatprep.subr.bf16.mxu0 0
      %2822 = vmatpush2.bf16.msra.mxu0 0
      %2823 = vmatprep.subr.bf16.mxu0 0
      %2824 = vmatpush2.bf16.msra.mxu0 0
      %2825 = vmatprep.subr.bf16.mxu0 0
      %2826 = vmatpush2.bf16.msra.mxu0 0
      %2827 = vmatprep.subr.bf16.mxu0 0
      %2828 = vmatpush2.bf16.msra.mxu0 0
      %2829 = vmatprep.subr.bf16.mxu0 0
      %2830 = vmatpush2.bf16.msra.mxu0 0
      %2831 = vmatprep.subr.bf16.mxu0 0
      %2832 = vmatpush2.bf16.msra.mxu0 0
      %2833 = vmatprep.subr.bf16.mxu0 0
      %2834 = vmatpush2.bf16.msra.mxu0 0
      %2835 = vmatprep.mubr.bf16.mxu0 0
      %2836 = vmatmul.mubr.bf16.gmra.mxu0 %v2795
      %v2837 = vpop.f32.mrf.mxu0
      %v2838 = vadd.f32 0.0, %v2837
      %v2839 = vpop.f32.mrf.mxu0
      %v2840 = vpop.f32.mrf.mxu0
      %v2841 = vadd.f32 0.0, %v2840
      %v2842 = vpop.f32.mrf.mxu0
      %2843 = vmatprep.mubr.bf16.mxu0 0
      %2844 = vmatmul.mubr.bf16.gmra.mxu0 %v2798
      %v2845 = vpop.f32.mrf.mxu0
      %v2846 = vadd.f32 0.0, %v2845
      %v2847 = vpop.f32.mrf.mxu0
      %v2848 = vpop.f32.mrf.mxu0
      %v2849 = vpop.f32.mrf.mxu0
      %2850 = vdwg.mxu0
      %v2851 = vadd.f32 %v2607, %v2838
      %v2852 = vadd.f32 %v2610, %v2841
      %v2853 = vadd.f32 %v2615, %v2846
      %2854 = vrot.lane.b32.xlu0 %v2158, 104
      %v2855 = vpop.permute.xlu0 %2854
      %2856 = vrot.lane.b32.xlu0 %v2159, 104
      %v2857 = vpop.permute.xlu0 %2856
      %2858 = vrot.lane.b32.xlu0 %v2158, 72
      %v2859 = vpop.permute.xlu0 %2858
      %2860 = vrot.lane.b32.xlu0 %v2159, 72
      %v2861 = vpop.permute.xlu0 %2860
      %v2863 = vsel %vm850, %v2855, 0
      %v2866 = vsel %vm850, %v2857, 0
      %v2869 = vsel %vm850, %v2859, 0
      %v2872 = vsel %vm850, %v2861, 0
      %2874 = vmatprep.subr.bf16.mxu0 0
      %2875 = vmatpush1.bf16.xpose.msra.mxu0 0
      %2876 = vmatprep.subr.bf16.mxu0 0
      %2877 = vmatpush1.bf16.xpose.msra.mxu0 0
      %2878 = vmatprep.subr.bf16.mxu0 0
      %2879 = vmatpush1.bf16.xpose.msra.mxu0 0
      %2880 = vmatprep.subr.bf16.mxu0 0
      %2881 = vmatpush1.bf16.xpose.msra.mxu0 0
      %2882 = vmatprep.subr.bf16.mxu0 0
      %2883 = vmatpush1.bf16.xpose.msra.mxu0 0
      %2884 = vmatprep.subr.bf16.mxu0 0
      %2885 = vmatpush1.bf16.xpose.msra.mxu0 0
      %2886 = vmatprep.subr.bf16.mxu0 0
      %2887 = vmatpush1.bf16.xpose.msra.mxu0 %v2872
      %2888 = vmatprep.subr.bf16.mxu0 0
      %2889 = vmatpush1.bf16.xpose.msra.mxu0 %v2869
      %2890 = vmatprep.subr.bf16.mxu0 0
      %2891 = vmatpush2.bf16.xpose.msra.mxu0 0
      %2892 = vmatprep.subr.bf16.mxu0 0
      %2893 = vmatpush2.bf16.xpose.msra.mxu0 0
      %2894 = vmatprep.subr.bf16.mxu0 0
      %2895 = vmatpush2.bf16.xpose.msra.mxu0 0
      %2896 = vmatprep.subr.bf16.mxu0 0
      %2897 = vmatpush2.bf16.xpose.msra.mxu0 0
      %2898 = vmatprep.subr.bf16.mxu0 0
      %2899 = vmatpush2.bf16.xpose.msra.mxu0 0
      %2900 = vmatprep.subr.bf16.mxu0 0
      %2901 = vmatpush2.bf16.xpose.msra.mxu0 0
      %2902 = vmatprep.subr.bf16.mxu0 0
      %2903 = vmatpush2.bf16.xpose.msra.mxu0 0
      %2904 = vmatprep.subr.bf16.mxu0 0
      %2905 = vmatpush2.bf16.xpose.msra.mxu0 0
      %2906 = vmatprep.mubr.bf16.mxu0 0
      %2907 = vmatmul.mubr.bf16.gmra.mxu0 %v2863
      %v2908 = vpop.f32.mrf.mxu0
      %v2909 = vadd.f32 0.0, %v2908
      %v2910 = vpop.f32.mrf.mxu0
      %v2911 = vpop.f32.mrf.mxu0
      %v2912 = vadd.f32 0.0, %v2911
      %v2913 = vpop.f32.mrf.mxu0
      %2914 = vmatprep.mubr.bf16.mxu0 0
      %2915 = vmatmul.mubr.bf16.gmra.mxu0 %v2866
      %v2916 = vpop.f32.mrf.mxu0
      %v2917 = vadd.f32 0.0, %v2916
      %v2918 = vpop.f32.mrf.mxu0
      %v2919 = vpop.f32.mrf.mxu0
      %v2920 = vpop.f32.mrf.mxu0
      %2921 = vdwg.mxu0
      %v2922 = vmul.f32 %v2909, 0.35355338
      %v2923 = vmul.f32 %v2912, 0.35355338
      %v2924 = vmul.f32 %v2917, 0.35355338
      %v2925 = vadd.f32 %v2922, %v711
      %v2926 = vadd.f32 %v2923, %v712
      %v2927 = vadd.f32 %v2924, %v713
      %v2928 = vsel %vm917, %v2925, -inf
      %2929 = vmax.xlane.f32.xlu0 %v2928
      %v2930 = vpop.xlane.xlu0 %2929
      %v2931 = vsel %vm917, %v2926, -inf
      %2932 = vmax.xlane.f32.xlu0 %v2931
      %v2933 = vpop.xlane.xlu0 %2932
      %v2934 = vsel %vm924, %v2927, -inf
      %2935 = vmax.xlane.f32.xlu0 %v2934
      %v2936 = vpop.xlane.xlu0 %2935
      %v2937 = vsub.f32 %v2925, %v2930
      %v2938 = vsub.f32 %v2926, %v2933
      %v2939 = vsub.f32 %v2927, %v2936
      %v2940 = vmul.f32 %v2937, 1.442695
      %v2941 = vpow.pop %v2940
      %v2942 = vmul.f32 %v2938, 1.442695
      %v2943 = vpow.pop %v2942
      %v2944 = vmul.f32 %v2939, 1.442695
      %v2945 = vpow.pop %v2944
      %v2946 = vsel %vm917, %v2941, 0.0
      %2947 = vadd.xlane.f32.xlu0 %v2946
      %v2948 = vpop.xlane.xlu0 %2947
      %v2949 = vsel %vm917, %v2943, 0.0
      %2950 = vadd.xlane.f32.xlu0 %v2949
      %v2951 = vpop.xlane.xlu0 %2950
      %v2952 = vsel %vm924, %v2945, 0.0
      %2953 = vadd.xlane.f32.xlu0 %v2952
      %v2954 = vpop.xlane.xlu0 %2953
      %v2955 = vrcp.pop %v2948
      %v2956 = vrcp.pop %v2951
      %v2957 = vrcp.pop %v2954
      %v2958 = vmul.f32 %v2941, %v2955
      %v2959 = vmul.f32 %v2943, %v2956
      %v2960 = vmul.f32 %v2945, %v2957
      %v2961 = vpack.c.bf16 %v2959, %v2958
      %v2962 = vpack.c.bf16 %v2960, %v2960
      %2963 = vrot.lane.b32.xlu0 %v2158, 40
      %v2964 = vpop.permute.xlu0 %2963
      %2965 = vrot.lane.b32.xlu0 %v2159, 40
      %v2966 = vpop.permute.xlu0 %2965
      %v2969 = vsel %vm917, %v2961, 0
      %v2972 = vsel %vm917, %v2962, 0
      %v2975 = vsel %vm965, %v2966, 0
      %2977 = vmatprep.subr.bf16.mxu0 0
      %2978 = vmatpush1.bf16.msra.mxu0 0
      %2979 = vmatprep.subr.bf16.mxu0 0
      %2980 = vmatpush1.bf16.msra.mxu0 0
      %2981 = vmatprep.subr.bf16.mxu0 0
      %2982 = vmatpush1.bf16.msra.mxu0 0
      %2983 = vmatprep.subr.bf16.mxu0 0
      %2984 = vmatpush1.bf16.msra.mxu0 0
      %2985 = vmatprep.subr.bf16.mxu0 0
      %2986 = vmatpush1.bf16.msra.mxu0 0
      %2987 = vmatprep.subr.bf16.mxu0 0
      %2988 = vmatpush1.bf16.msra.mxu0 0
      %2989 = vmatprep.subr.bf16.mxu0 0
      %2990 = vmatpush1.bf16.msra.mxu0 %v2975
      %2991 = vmatprep.subr.bf16.mxu0 0
      %2992 = vmatpush1.bf16.msra.mxu0 %v2964
      %2993 = vmatprep.subr.bf16.mxu0 0
      %2994 = vmatpush2.bf16.msra.mxu0 0
      %2995 = vmatprep.subr.bf16.mxu0 0
      %2996 = vmatpush2.bf16.msra.mxu0 0
      %2997 = vmatprep.subr.bf16.mxu0 0
      %2998 = vmatpush2.bf16.msra.mxu0 0
      %2999 = vmatprep.subr.bf16.mxu0 0
      %3000 = vmatpush2.bf16.msra.mxu0 0
      %3001 = vmatprep.subr.bf16.mxu0 0
      %3002 = vmatpush2.bf16.msra.mxu0 0
      %3003 = vmatprep.subr.bf16.mxu0 0
      %3004 = vmatpush2.bf16.msra.mxu0 0
      %3005 = vmatprep.subr.bf16.mxu0 0
      %3006 = vmatpush2.bf16.msra.mxu0 0
      %3007 = vmatprep.subr.bf16.mxu0 0
      %3008 = vmatpush2.bf16.msra.mxu0 0
      %3009 = vmatprep.mubr.bf16.mxu0 0
      %3010 = vmatmul.mubr.bf16.gmra.mxu0 %v2969
      %v3011 = vpop.f32.mrf.mxu0
      %v3012 = vadd.f32 0.0, %v3011
      %v3013 = vpop.f32.mrf.mxu0
      %v3014 = vpop.f32.mrf.mxu0
      %v3015 = vadd.f32 0.0, %v3014
      %v3016 = vpop.f32.mrf.mxu0
      %3017 = vmatprep.mubr.bf16.mxu0 0
      %3018 = vmatmul.mubr.bf16.gmra.mxu0 %v2972
      %v3019 = vpop.f32.mrf.mxu0
      %v3020 = vadd.f32 0.0, %v3019
      %v3021 = vpop.f32.mrf.mxu0
      %v3022 = vpop.f32.mrf.mxu0
      %v3023 = vpop.f32.mrf.mxu0
      %3024 = vdwg.mxu0
      %v3025 = vpack.c.bf16 %v3015, %v3012
      %v3026 = vpack.c.bf16 %v3020, %v3020
      %v3027 = vpack.c.bf16 %v2157, %v2157
      %v3029 = vsel %vm850, %v3025, 0
      %v3032 = vsel %vm850, %v3026, 0
      %v3035 = vsel %vm1200, %v3027, 0
      %3037 = vmatprep.subr.bf16.mxu0 0
      %3038 = vmatpush1.bf16.msra.mxu0 0
      %3039 = vmatprep.subr.bf16.mxu0 0
      %3040 = vmatpush1.bf16.msra.mxu0 0
      %3041 = vmatprep.subr.bf16.mxu0 0
      %3042 = vmatpush1.bf16.msra.mxu0 0
      %3043 = vmatprep.subr.bf16.mxu0 0
      %3044 = vmatpush1.bf16.msra.mxu0 0
      %3045 = vmatprep.subr.bf16.mxu0 0
      %3046 = vmatpush1.bf16.msra.mxu0 0
      %3047 = vmatprep.subr.bf16.mxu0 0
      %3048 = vmatpush1.bf16.msra.mxu0 0
      %3049 = vmatprep.subr.bf16.mxu0 0
      %3050 = vmatpush1.bf16.msra.mxu0 0
      %3051 = vmatprep.subr.bf16.mxu0 0
      %3052 = vmatpush1.bf16.msra.mxu0 %v3035
      %3053 = vmatprep.subr.bf16.mxu0 0
      %3054 = vmatpush2.bf16.msra.mxu0 0
      %3055 = vmatprep.subr.bf16.mxu0 0
      %3056 = vmatpush2.bf16.msra.mxu0 0
      %3057 = vmatprep.subr.bf16.mxu0 0
      %3058 = vmatpush2.bf16.msra.mxu0 0
      %3059 = vmatprep.subr.bf16.mxu0 0
      %3060 = vmatpush2.bf16.msra.mxu0 0
      %3061 = vmatprep.subr.bf16.mxu0 0
      %3062 = vmatpush2.bf16.msra.mxu0 0
      %3063 = vmatprep.subr.bf16.mxu0 0
      %3064 = vmatpush2.bf16.msra.mxu0 0
      %3065 = vmatprep.subr.bf16.mxu0 0
      %3066 = vmatpush2.bf16.msra.mxu0 0
      %3067 = vmatprep.subr.bf16.mxu0 0
      %3068 = vmatpush2.bf16.msra.mxu0 0
      %3069 = vmatprep.mubr.bf16.mxu0 0
      %3070 = vmatmul.mubr.bf16.gmra.mxu0 %v3029
      %v3071 = vpop.f32.mrf.mxu0
      %v3072 = vadd.f32 0.0, %v3071
      %v3073 = vpop.f32.mrf.mxu0
      %v3074 = vpop.f32.mrf.mxu0
      %v3075 = vadd.f32 0.0, %v3074
      %v3076 = vpop.f32.mrf.mxu0
      %3077 = vmatprep.mubr.bf16.mxu0 0
      %3078 = vmatmul.mubr.bf16.gmra.mxu0 %v3032
      %v3079 = vpop.f32.mrf.mxu0
      %v3080 = vadd.f32 0.0, %v3079
      %v3081 = vpop.f32.mrf.mxu0
      %v3082 = vpop.f32.mrf.mxu0
      %v3083 = vpop.f32.mrf.mxu0
      %3084 = vdwg.mxu0
      %v3085 = vadd.f32 %v2851, %v3072
      %v3086 = vadd.f32 %v2852, %v3075
      %v3087 = vadd.f32 %v2853, %v3080
      %v3088 = vadd.f32 %v2026, %v3085
      %v3089 = vadd.f32 %v2027, %v3086
      %v3090 = vadd.f32 %v2028, %v3087
      %s3091 = scalar_lea.vmem %s10, 1
      %v3092 = vld [vmem:[%s3091] sm:$0x1]
      %v3094 = vlaneseq
      %v3095 = vshrl.u32 %v3094, 7
      %v3096 = vsub.s32 0, %v3095
      %v3097 = vrot.slane %v3092, %v3096
      %v3099 = vadd.f32 %v3088, %v3097
      %v3100 = vadd.f32 %v3089, %v3097
      %v3101 = vadd.f32 %v3090, %v3097
      %s3102 = scalar_lea.vmem %s11, 1
      %v3103 = vld [vmem:[%s3102] sm:$0x1]
      %s3104 = scalar_lea.vmem %s12, 1
      %v3105 = vld [vmem:[%s3104] sm:$0x1]
      %v3106 = vsel %vm716, %v3099, 0.0
      %3107 = vadd.xlane.f32.xlu0 %v3106
      %v3108 = vpop.xlane.xlu0 %3107
      %v3109 = vsel %vm716, %v3100, 0.0
      %3110 = vadd.xlane.f32.xlu0 %v3109
      %v3111 = vpop.xlane.xlu0 %3110
      %v3112 = vsel %vm723, %v3101, 0.0
      %3113 = vadd.xlane.f32.xlu0 %v3112
      %v3114 = vpop.xlane.xlu0 %3113
      %v3115 = vmul.f32 %v3108, %v727
      %v3116 = vmul.f32 %v3111, %v727
      %v3117 = vmul.f32 %v3114, %v727
      %v3118 = vsub.f32 %v3099, %v3115
      %v3119 = vsub.f32 %v3100, %v3116
      %v3120 = vsub.f32 %v3101, %v3117
      %v3121 = vmul.f32 %v3118, %v3118
      %v3122 = vmul.f32 %v3119, %v3119
      %v3123 = vmul.f32 %v3120, %v3120
      %v3124 = vsel %vm716, %v3121, 0.0
      %3125 = vadd.xlane.f32.xlu0 %v3124
      %v3126 = vpop.xlane.xlu0 %3125
      %v3127 = vsel %vm716, %v3122, 0.0
      %3128 = vadd.xlane.f32.xlu0 %v3127
      %v3129 = vpop.xlane.xlu0 %3128
      %v3130 = vsel %vm723, %v3123, 0.0
      %3131 = vadd.xlane.f32.xlu0 %v3130
      %v3132 = vpop.xlane.xlu0 %3131
      %v3133 = vmul.f32 %v3126, %v727
      %v3134 = vmul.f32 %v3129, %v727
      %v3135 = vmul.f32 %v3132, %v727
      %v3136 = vadd.f32 %v3133, 1e-05
      %v3137 = vadd.f32 %v3134, 1e-05
      %v3138 = vadd.f32 %v3135, 1e-05
      %v3139 = vrsqrt.pop %v3136
      %v3140 = vrsqrt.pop %v3137
      %v3141 = vrsqrt.pop %v3138
      %v3142 = vmul.f32 %v3118, %v3139
      %v3143 = vmul.f32 %v3119, %v3140
      %v3144 = vmul.f32 %v3120, %v3141
      %v3146 = vlaneseq
      %v3147 = vshrl.u32 %v3146, 7
      %v3148 = vsub.s32 0, %v3147
      %v3149 = vrot.slane %v3103, %v3148
      %v3151 = vmul.f32 %v3142, %v3149
      %v3152 = vmul.f32 %v3143, %v3149
      %v3153 = vmul.f32 %v3144, %v3149
      %v3155 = vlaneseq
      %v3156 = vshrl.u32 %v3155, 7
      %v3157 = vsub.s32 0, %v3156
      %v3158 = vrot.slane %v3105, %v3157
      %v3160 = vadd.f32 %v3151, %v3158
      %v3161 = vadd.f32 %v3152, %v3158
      %v3162 = vadd.f32 %v3153, %v3158
      %s3163 = scalar_lea.vmem %s13, 32
      %v3164 = vld [vmem:[%s3163] sm:$0xff]
      %v3165 = vld [vmem:[%s3163 + $0x8] sm:$0xff]
      %v3166 = vld [vmem:[%s3163 + $0x10] sm:$0xff]
      %v3167 = vld [vmem:[%s3163 + $0x18] sm:$0xff]
      %v3168 = vpack.c.bf16 %v3161, %v3160
      %v3169 = vpack.c.bf16 %v3162, %v3162
      %v3170 = vpack.c.bf16 %v3165, %v3164
      %v3171 = vpack.c.bf16 %v3167, %v3166
      %s3172 = scalar_lea.vmem %s14, 1
      %v3173 = vld [vmem:[%s3172] sm:$0x1]
      %v3175 = vlaneseq
      %v3176 = vshrl.u32 %v3175, 7
      %v3177 = vsub.s32 0, %v3176
      %v3178 = vrot.slane %v3173, %v3177
      %v3181 = vsel %vm716, %v3168, 0
      %v3184 = vsel %vm716, %v3169, 0
      %3186 = vmatprep.subr.bf16.mxu0 0
      %3187 = vmatpush1.bf16.msra.mxu0 0
      %3188 = vmatprep.subr.bf16.mxu0 0
      %3189 = vmatpush1.bf16.msra.mxu0 0
      %3190 = vmatprep.subr.bf16.mxu0 0
      %3191 = vmatpush1.bf16.msra.mxu0 0
      %3192 = vmatprep.subr.bf16.mxu0 0
      %3193 = vmatpush1.bf16.msra.mxu0 0
      %3194 = vmatprep.subr.bf16.mxu0 0
      %3195 = vmatpush1.bf16.msra.mxu0 0
      %3196 = vmatprep.subr.bf16.mxu0 0
      %3197 = vmatpush1.bf16.msra.mxu0 0
      %3198 = vmatprep.subr.bf16.mxu0 0
      %3199 = vmatpush1.bf16.msra.mxu0 %v3171
      %3200 = vmatprep.subr.bf16.mxu0 0
      %3201 = vmatpush1.bf16.msra.mxu0 %v3170
      %3202 = vmatprep.subr.bf16.mxu0 0
      %3203 = vmatpush2.bf16.msra.mxu0 0
      %3204 = vmatprep.subr.bf16.mxu0 0
      %3205 = vmatpush2.bf16.msra.mxu0 0
      %3206 = vmatprep.subr.bf16.mxu0 0
      %3207 = vmatpush2.bf16.msra.mxu0 0
      %3208 = vmatprep.subr.bf16.mxu0 0
      %3209 = vmatpush2.bf16.msra.mxu0 0
      %3210 = vmatprep.subr.bf16.mxu0 0
      %3211 = vmatpush2.bf16.msra.mxu0 0
      %3212 = vmatprep.subr.bf16.mxu0 0
      %3213 = vmatpush2.bf16.msra.mxu0 0
      %3214 = vmatprep.subr.bf16.mxu0 0
      %3215 = vmatpush2.bf16.msra.mxu0 0
      %3216 = vmatprep.subr.bf16.mxu0 0
      %3217 = vmatpush2.bf16.msra.mxu0 0
      %3218 = vmatprep.mubr.bf16.mxu0 0
      %3219 = vmatmul.mubr.bf16.gmra.mxu0 %v3181
      %v3220 = vpop.f32.mrf.mxu0
      %v3221 = vadd.f32 %v3178, %v3220
      %v3222 = vpop.f32.mrf.mxu0
      %v3223 = vpop.f32.mrf.mxu0
      %v3224 = vadd.f32 %v3178, %v3223
      %v3225 = vpop.f32.mrf.mxu0
      %3226 = vmatprep.mubr.bf16.mxu0 0
      %3227 = vmatmul.mubr.bf16.gmra.mxu0 %v3184
      %v3228 = vpop.f32.mrf.mxu0
      %v3229 = vadd.f32 %v3178, %v3228
      %v3230 = vpop.f32.mrf.mxu0
      %v3231 = vpop.f32.mrf.mxu0
      %v3232 = vpop.f32.mrf.mxu0
      %3233 = vdwg.mxu0
      %v3234 = vmul.f32 %v3221, %v3221
      %v3235 = vmul.f32 %v3224, %v3224
      %v3236 = vmul.f32 %v3229, %v3229
      %v3237 = vmul.f32 %v3221, %v3234
      %v3238 = vmul.f32 %v3224, %v3235
      %v3239 = vmul.f32 %v3229, %v3236
      %v3240 = vmul.f32 %v3237, 0.044715
      %v3241 = vmul.f32 %v3238, 0.044715
      %v3242 = vmul.f32 %v3239, 0.044715
      %v3243 = vadd.f32 %v3221, %v3240
      %v3244 = vadd.f32 %v3224, %v3241
      %v3245 = vadd.f32 %v3229, %v3242
      %v3246 = vmul.f32 %v3243, 0.7978846
      %v3247 = vmul.f32 %v3244, 0.7978846
      %v3248 = vmul.f32 %v3245, 0.7978846
      %v3249 = vtanh.pop %v3246
      %v3250 = vtanh.pop %v3247
      %v3251 = vtanh.pop %v3248
      %v3252 = vadd.f32 %v3249, 1.0
      %v3253 = vadd.f32 %v3250, 1.0
      %v3254 = vadd.f32 %v3251, 1.0
      %v3255 = vmul.f32 %v3252, 0.5
      %v3256 = vmul.f32 %v3253, 0.5
      %v3257 = vmul.f32 %v3254, 0.5
      %v3258 = vmul.f32 %v3221, %v3255
      %v3259 = vmul.f32 %v3224, %v3256
      %v3260 = vmul.f32 %v3229, %v3257
      %s3261 = scalar_lea.vmem %s15, 128
      %v3262 = vld [vmem:[%s3261] sm:$0xff]
      %v3263 = vld [vmem:[%s3261 + $0x8] sm:$0xff]
      %v3264 = vld [vmem:[%s3261 + $0x10] sm:$0xff]
      %v3265 = vld [vmem:[%s3261 + $0x18] sm:$0xff]
      %v3266 = vld [vmem:[%s3261 + $0x20] sm:$0xff]
      %v3267 = vld [vmem:[%s3261 + $0x28] sm:$0xff]
      %v3268 = vld [vmem:[%s3261 + $0x30] sm:$0xff]
      %v3269 = vld [vmem:[%s3261 + $0x38] sm:$0xff]
      %v3270 = vld [vmem:[%s3261 + $0x40] sm:$0xff]
      %v3271 = vld [vmem:[%s3261 + $0x48] sm:$0xff]
      %v3272 = vld [vmem:[%s3261 + $0x50] sm:$0xff]
      %v3273 = vld [vmem:[%s3261 + $0x58] sm:$0xff]
      %v3274 = vld [vmem:[%s3261 + $0x60] sm:$0xff]
      %v3275 = vld [vmem:[%s3261 + $0x68] sm:$0xff]
      %v3276 = vld [vmem:[%s3261 + $0x70] sm:$0xff]
      %v3277 = vld [vmem:[%s3261 + $0x78] sm:$0xff]
      %v3278 = vpack.c.bf16 %v3259, %v3258
      %v3279 = vpack.c.bf16 %v3260, %v3260
      %v3280 = vpack.c.bf16 %v3263, %v3262
      %v3281 = vpack.c.bf16 %v3265, %v3264
      %v3282 = vpack.c.bf16 %v3267, %v3266
      %v3283 = vpack.c.bf16 %v3269, %v3268
      %v3284 = vpack.c.bf16 %v3271, %v3270
      %v3285 = vpack.c.bf16 %v3273, %v3272
      %v3286 = vpack.c.bf16 %v3275, %v3274
      %v3287 = vpack.c.bf16 %v3277, %v3276
      %s3288 = scalar_lea.vmem %s16, 1
      %v3289 = vld [vmem:[%s3288] sm:$0x1]
      %v3291 = vlaneseq
      %v3292 = vshrl.u32 %v3291, 7
      %v3293 = vsub.s32 0, %v3292
      %v3294 = vrot.slane %v3289, %v3293
      %3296 = vmatprep.subr.bf16.mxu0 0
      %3297 = vmatpush1.bf16.msra.mxu0 %v3287
      %3298 = vmatprep.subr.bf16.mxu0 0
      %3299 = vmatpush1.bf16.msra.mxu0 %v3286
      %3300 = vmatprep.subr.bf16.mxu0 0
      %3301 = vmatpush1.bf16.msra.mxu0 %v3285
      %3302 = vmatprep.subr.bf16.mxu0 0
      %3303 = vmatpush1.bf16.msra.mxu0 %v3284
      %3304 = vmatprep.subr.bf16.mxu0 0
      %3305 = vmatpush1.bf16.msra.mxu0 %v3283
      %3306 = vmatprep.subr.bf16.mxu0 0
      %3307 = vmatpush1.bf16.msra.mxu0 %v3282
      %3308 = vmatprep.subr.bf16.mxu0 0
      %3309 = vmatpush1.bf16.msra.mxu0 %v3281
      %3310 = vmatprep.subr.bf16.mxu0 0
      %3311 = vmatpush1.bf16.msra.mxu0 %v3280
      %3312 = vmatprep.subr.bf16.mxu0 0
      %3313 = vmatpush2.bf16.msra.mxu0 0
      %3314 = vmatprep.subr.bf16.mxu0 0
      %3315 = vmatpush2.bf16.msra.mxu0 0
      %3316 = vmatprep.subr.bf16.mxu0 0
      %3317 = vmatpush2.bf16.msra.mxu0 0
      %3318 = vmatprep.subr.bf16.mxu0 0
      %3319 = vmatpush2.bf16.msra.mxu0 0
      %3320 = vmatprep.subr.bf16.mxu0 0
      %3321 = vmatpush2.bf16.msra.mxu0 0
      %3322 = vmatprep.subr.bf16.mxu0 0
      %3323 = vmatpush2.bf16.msra.mxu0 0
      %3324 = vmatprep.subr.bf16.mxu0 0
      %3325 = vmatpush2.bf16.msra.mxu0 0
      %3326 = vmatprep.subr.bf16.mxu0 0
      %3327 = vmatpush2.bf16.msra.mxu0 0
      %3328 = vmatprep.mubr.bf16.mxu0 0
      %3329 = vmatmul.mubr.bf16.gmra.mxu0 %v3278
      %v3330 = vpop.f32.mrf.mxu0
      %v3331 = vpop.f32.mrf.mxu0
      %v3332 = vpop.f32.mrf.mxu0
      %v3333 = vpop.f32.mrf.mxu0
      %3334 = vmatprep.mubr.bf16.mxu0 0
      %3335 = vmatmul.mubr.bf16.gmra.mxu0 %v3279
      %v3336 = vpop.f32.mrf.mxu0
      %v3337 = vadd.f32 %v3294, %v3336
      %v3338 = vpop.f32.mrf.mxu0
      %v3339 = vpop.f32.mrf.mxu0
      %v3340 = vpop.f32.mrf.mxu0
      %3341 = vdwg.mxu0
      %v3342 = vadd.f32 %v3101, %v3337
      %v3343 = vld [vmem:[%s17] sm:$0x1]
      %v3344 = vld [vmem:[%s18] sm:$0x1]
      %v3345 = vsel %vm723, %v3342, 0.0
      %3346 = vadd.xlane.f32.xlu0 %v3345
      %v3347 = vpop.xlane.xlu0 %3346
      %v3348 = vmul.f32 %v3347, %v727
      %v3349 = vsub.f32 %v3342, %v3348
      %v3350 = vmul.f32 %v3349, %v3349
      %v3351 = vsel %vm723, %v3350, 0.0
      %3352 = vadd.xlane.f32.xlu0 %v3351
      %v3353 = vpop.xlane.xlu0 %3352
      %v3354 = vmul.f32 %v3353, %v727
      %v3355 = vadd.f32 %v3354, 1e-05
      %v3356 = vrsqrt.pop %v3355
      %v3357 = vmul.f32 %v3349, %v3356
      %v3359 = vlaneseq
      %v3360 = vshrl.u32 %v3359, 7
      %v3361 = vsub.s32 0, %v3360
      %v3362 = vrot.slane %v3343, %v3361
      %v3364 = vmul.f32 %v3357, %v3362
      %v3366 = vlaneseq
      %v3367 = vshrl.u32 %v3366, 7
      %v3368 = vsub.s32 0, %v3367
      %v3369 = vrot.slane %v3344, %v3368
      %v3371 = vadd.f32 %v3364, %v3369
      %3372 = vst.msk [vmem:[%s637] sm:$0xf] %vm723, %v3371
      %p3373 = scmp.lt.s32.totalorder %s30, 1
      %s3374 = scalar_select %p3373, %s30, 1
      %s3375 = smul.addr %s3374, 4
      %s3376 = scalar_lea.vmem %s19, %s3375
      // Predicated region
      $region97: #{traffic_vivit_forward.2} parent=95 // pred_check
        %p3377 = pneg %p462
      $region98: #{traffic_vivit_forward.2} parent=95 // pred_check_branch
        %3379 = sbr.rel (%p3377) target = $region100
      $region99: #{traffic_vivit_forward.2} parent=95 // pred_region
        _
      $region100: #{traffic_vivit_forward.2} parent=95 // pred_fallthru
        _
    $region96: #{traffic_vivit_forward.2} parent=5 // pred_fallthru
      _
    %p3380 = scmp.le.s32.totalorder 2, %s25
    // Predicated region
    $region101: #{traffic_vivit_forward.2} parent=5 // pred_check
      %p3381 = pneg %p3380
    $region102: #{traffic_vivit_forward.2} parent=5 // pred_check_branch
      %3383 = sbr.rel (%p3381) target = $region104
    $region103: #{traffic_vivit_forward.2} parent=5 // pred_region
      %s3384 = ssub.s32 %s25, 2
      // Predicated region
      $region105: #{traffic_vivit_forward.2} parent=103 // pred_check
        %p3385 = pneg %p468
      $region106: #{traffic_vivit_forward.2} parent=103 // pred_check_branch
        %3387 = sbr.rel (%p3385) target = $region108
      $region107: #{traffic_vivit_forward.2} parent=103 // pred_region
        %p3388 = scmp.lt.s32.totalorder %s31, 1
        %s3389 = scalar_select %p3388, %s31, 1
        %s3390 = smul.addr %s3389, 4
        %s3391 = scalar_lea.vmem %s19, %s3390
      $region108: #{traffic_vivit_forward.2} parent=103 // pred_fallthru
        _
    $region104: #{traffic_vivit_forward.2} parent=5 // pred_fallthru
      _
  $region6: #{traffic_vivit_forward.2} parent=0 // loop_footer
    %s29 = sadd.s32 1, %s25
  $region7: #{traffic_vivit_forward.2} parent=0 // loop_footer_branch
    %24 = sbr.rel target = $region3
  $region8: #{traffic_vivit_forward.2} parent=0 // loop_exit
    _

</llo_original>
